<compile_context>
chip_gen: v7x
topology: tpu7x:2x2x1
jax: 0.10.0
libtpu: 0.0.40
codegen_flags: <defaults>
</compile_context>

<pallas_src>
import functools
import math

import jax
import jax.numpy as jnp
from jax.experimental import pallas as pl
from jax.experimental.pallas import tpu as pltpu

# ----------------------------- config (small, consistent with the module) -----------------------------
B = 2          # batch
C_IN = 4       # in_channels
C_OUT = 32     # out_channels  (C_IN != C_OUT -> downsample branch is exercised)
IMG = 16       # spatial size
STRIDE = 1
K = 3
PAD = 1
BN_EPS = 1e-5  # PyTorch BatchNorm2d default
H_OUT = (IMG + 2 * PAD - K) // STRIDE + 1
W_OUT = H_OUT
HAS_DOWNSAMPLE = (STRIDE != 1) or (C_IN != C_OUT)


# ----------------------------- fused Pallas kernel -----------------------------
def _basic_block_kernel(xp_ref, w1_ref, s1_ref, b1_ref, w2_ref, s2_ref, b2_ref,
                        wd_ref, sd_ref, bd_ref, out_ref, ypad_ref, *,
                        stride, has_downsample):
    """One grid step == one image.

    xp_ref : (1, IMG+2P, IMG+2P, C_IN)   zero-padded NHWC input
    w1_ref : (K*K, C_IN,  C_OUT)         conv1 weights, tap-major matmul form
    w2_ref : (K*K, C_OUT, C_OUT)         conv2 weights, tap-major matmul form
    s*/b*  : (1, C_OUT)                  folded BN scale / shift
    wd_ref : (C_IN, C_OUT)               downsample 1x1 conv (dummy if unused)
    out_ref: (1, H_OUT, W_OUT, C_OUT)
    ypad_ref: VMEM scratch (H_OUT+2, W_OUT+2, C_OUT)  zero-padded conv2 input
    """
    hw = H_OUT * W_OUT
    xp = xp_ref[0]                                   # (IMG+2, IMG+2, C_IN)

    # ---- conv1 (3x3, stride, pad=1) as 9 shifted-tap MXU matmuls, f32 accumulation ----
    acc = jnp.zeros((hw, C_OUT), jnp.float32)
    for ky in range(K):
        for kx in range(K):
            tap = xp[ky:ky + (H_OUT - 1) * stride + 1:stride,
                     kx:kx + (W_OUT - 1) * stride + 1:stride, :]     # (H_OUT, W_OUT, C_IN)
            acc = acc + jnp.dot(tap.reshape(hw, C_IN), w1_ref[ky * K + kx],
                                preferred_element_type=jnp.float32)
    # bn1 (folded) + relu
    y1 = jnp.maximum(acc * s1_ref[...] + b1_ref[...], 0.0)          # (hw, C_OUT)

    # ---- zero-pad conv1 output into VMEM scratch (border = 1) for conv2 ----
    ypad_ref[...] = jnp.zeros_like(ypad_ref)
    ypad_ref[pl.ds(1, H_OUT), pl.ds(1, W_OUT), :] = y1.reshape(H_OUT, W_OUT, C_OUT)
    yp = ypad_ref[...]                               # (H_OUT+2, W_OUT+2, C_OUT)

    # ---- conv2 (3x3, stride=1, pad=1) ----
    acc2 = jnp.zeros((hw, C_OUT), jnp.float32)
    for ky in range(K):
        for kx in range(K):
            tap = yp[ky:ky + H_OUT, kx:kx + W_OUT, :]                # (H_OUT, W_OUT, C_OUT)
            acc2 = acc2 + jnp.dot(tap.reshape(hw, C_OUT), w2_ref[ky * K + kx],
                                  preferred_element_type=jnp.float32)
    y2 = acc2 * s2_ref[...] + b2_ref[...]                            # bn2 (folded)

    # ---- identity / downsample branch (uses the un-padded input, strided) ----
    xin = xp[1:1 + (H_OUT - 1) * stride + 1:stride,
             1:1 + (W_OUT - 1) * stride + 1:stride, :].reshape(hw, C_IN)
    if has_downsample:
        ident = jnp.dot(xin, wd_ref[...], preferred_element_type=jnp.float32)
        ident = ident * sd_ref[...] + bd_ref[...]
    else:
        ident = xin                                  # only valid when C_IN == C_OUT, stride == 1

    # ---- residual add + final relu, lane-dense store (last dim = C_OUT) ----
    out = jnp.maximum(y2 + ident, 0.0)
    out_ref[...] = out.reshape(1, H_OUT, W_OUT, C_OUT)


# ----------------------------- one-time parameter preparation (outside the kernel) -----------------------------
def _fold_bn(gamma, beta, rm, rv, eps=BN_EPS):
    scale = gamma / jnp.sqrt(rv + eps)
    shift = beta - rm * scale
    return scale.reshape(1, -1).astype(jnp.float32), shift.reshape(1, -1).astype(jnp.float32)


def prepare_kernel_params(params):
    """Pre-transpose conv weights into tap-major matmul form and fold BN (done once)."""
    kp = {
        "w1": params["conv1_w"].transpose(2, 3, 1, 0).reshape(K * K, C_IN, C_OUT),
        "w2": params["conv2_w"].transpose(2, 3, 1, 0).reshape(K * K, C_OUT, C_OUT),
    }
    kp["s1"], kp["b1"] = _fold_bn(params["bn1_g"], params["bn1_b"], params["bn1_rm"], params["bn1_rv"])
    kp["s2"], kp["b2"] = _fold_bn(params["bn2_g"], params["bn2_b"], params["bn2_rm"], params["bn2_rv"])
    if HAS_DOWNSAMPLE:
        kp["wd"] = params["down_w"].reshape(C_OUT, C_IN).T
        kp["sd"], kp["bd"] = _fold_bn(params["bnd_g"], params["bnd_b"], params["bnd_rm"], params["bnd_rv"])
    else:
        kp["wd"] = jnp.zeros((C_IN, C_OUT), jnp.float32)
        kp["sd"] = jnp.ones((1, C_OUT), jnp.float32)
        kp["bd"] = jnp.zeros((1, C_OUT), jnp.float32)
    return kp


# ----------------------------- forward (single pallas_call) -----------------------------
def basic_block_forward(kparams, x_nchw):
    x = jnp.transpose(x_nchw, (0, 2, 3, 1))                          # NCHW -> NHWC (one-time)
    xp = jnp.pad(x, ((0, 0), (PAD, PAD), (PAD, PAD), (0, 0)))        # zero padding for conv1
    hp = IMG + 2 * PAD

    kernel = functools.partial(_basic_block_kernel, stride=STRIDE,
                               has_downsample=HAS_DOWNSAMPLE)

    def full_spec(shape):
        return pl.BlockSpec(shape, lambda b, _s=shape: (0,) * len(_s))

    out_nhwc = pl.pallas_call(
        kernel,
        out_shape=jax.ShapeDtypeStruct((B, H_OUT, W_OUT, C_OUT), jnp.float32),
        grid=(B,),
        in_specs=[
            pl.BlockSpec((1, hp, hp, C_IN), lambda b: (b, 0, 0, 0)),  # per-image input tile
            full_spec((K * K, C_IN, C_OUT)),                          # w1
            full_spec((1, C_OUT)), full_spec((1, C_OUT)),             # s1, b1
            full_spec((K * K, C_OUT, C_OUT)),                         # w2
            full_spec((1, C_OUT)), full_spec((1, C_OUT)),             # s2, b2
            full_spec((C_IN, C_OUT)),                                 # wd
            full_spec((1, C_OUT)), full_spec((1, C_OUT)),             # sd, bd
        ],
        out_specs=pl.BlockSpec((1, H_OUT, W_OUT, C_OUT), lambda b: (b, 0, 0, 0)),
        scratch_shapes=[pltpu.VMEM((H_OUT + 2, W_OUT + 2, C_OUT), jnp.float32)],
        compiler_params=pltpu.CompilerParams(dimension_semantics=("parallel",)),
    )(xp, kparams["w1"], kparams["s1"], kparams["b1"],
      kparams["w2"], kparams["s2"], kparams["b2"],
      kparams["wd"], kparams["sd"], kparams["bd"])

    return jnp.transpose(out_nhwc, (0, 3, 1, 2))                      # NHWC -> NCHW


# ----------------------------- parameters (torch layouts) -----------------------------
def init_params(key):
    ks = jax.random.split(key, 16)

    def conv_init(k, shape):
        fan_in = shape[1] * shape[2] * shape[3]
        return jax.random.normal(k, shape, jnp.float32) * math.sqrt(2.0 / fan_in)

    params = {
        "conv1_w": conv_init(ks[0], (C_OUT, C_IN, K, K)),
        "bn1_g": jax.random.uniform(ks[1], (C_OUT,), jnp.float32, 0.5, 1.5),
        "bn1_b": 0.1 * jax.random.normal(ks[2], (C_OUT,), jnp.float32),
        "bn1_rm": 0.1 * jax.random.normal(ks[3], (C_OUT,), jnp.float32),
        "bn1_rv": jax.random.uniform(ks[4], (C_OUT,), jnp.float32, 0.5, 1.5),
        "conv2_w": conv_init(ks[5], (C_OUT, C_OUT, K, K)),
        "bn2_g": jax.random.uniform(ks[6], (C_OUT,), jnp.float32, 0.5, 1.5),
        "bn2_b": 0.1 * jax.random.normal(ks[7], (C_OUT,), jnp.float32),
        "bn2_rm": 0.1 * jax.random.normal(ks[8], (C_OUT,), jnp.float32),
        "bn2_rv": jax.random.uniform(ks[9], (C_OUT,), jnp.float32, 0.5, 1.5),
        "down_w": conv_init(ks[10], (C_OUT, C_IN, 1, 1)),
        "bnd_g": jax.random.uniform(ks[11], (C_OUT,), jnp.float32, 0.5, 1.5),
        "bnd_b": 0.1 * jax.random.normal(ks[12], (C_OUT,), jnp.float32),
        "bnd_rm": 0.1 * jax.random.normal(ks[13], (C_OUT,), jnp.float32),
        "bnd_rv": jax.random.uniform(ks[14], (C_OUT,), jnp.float32, 0.5, 1.5),
    }
    return params


# ----------------------------- pure-JAX reference (for a numerical sanity check) -----------------------------
def reference_forward(params, x):
    def conv(z, w, stride, pad):
        return jax.lax.conv_general_dilated(
            z, w, window_strides=(stride, stride),
            padding=((pad, pad), (pad, pad)),
            dimension_numbers=("NCHW", "OIHW", "NCHW"))

    def bn(z, g, b, rm, rv):
        shp = (1, -1, 1, 1)
        return (z - rm.reshape(shp)) / jnp.sqrt(rv.reshape(shp) + BN_EPS) * g.reshape(shp) + b.reshape(shp)

    out = conv(x, params["conv1_w"], STRIDE, PAD)
    out = jnp.maximum(bn(out, params["bn1_g"], params["bn1_b"], params["bn1_rm"], params["bn1_rv"]), 0.0)
    out = conv(out, params["conv2_w"], 1, PAD)
    out = bn(out, params["bn2_g"], params["bn2_b"], params["bn2_rm"], params["bn2_rv"])
    if HAS_DOWNSAMPLE:
        ident = conv(x, params["down_w"], STRIDE, 0)
        ident = bn(ident, params["bnd_g"], params["bnd_b"], params["bnd_rm"], params["bnd_rv"])
    else:
        ident = x
    return jnp.maximum(out + ident, 0.0)


# ----------------------------- main -----------------------------
if __name__ == "__main__":
    key = jax.random.PRNGKey(0)
    k_params, k_x = jax.random.split(key)
    params = init_params(k_params)
    kparams = prepare_kernel_params(params)                # one-time weight prep
    x = jax.random.normal(k_x, (B, C_IN, IMG, IMG), jnp.float32)   # NCHW, like PyTorch

    out = jax.jit(basic_block_forward)(kparams, x)
    jax.block_until_ready(out)
    assert out.shape == (B, C_OUT, H_OUT, W_OUT)
    assert out.dtype == jnp.float32

    ref = reference_forward(params, x)
    max_err = float(jnp.max(jnp.abs(out - ref)))
    assert max_err < 2e-4, f"max abs err vs reference: {max_err}"

    print("KERNEL_OK")
</pallas_src>

<mosaic_0001>
module attributes {stable_mosaic.version = 11 : i64} {
  func.func @_basic_block_kernel(%arg0: i32, %arg1: memref<1x18x18x4xf32, #tpu.memory_space<vmem>>, %arg2: memref<9x4x32xf32, #tpu.memory_space<vmem>>, %arg3: memref<1x32xf32, #tpu.memory_space<vmem>>, %arg4: memref<1x32xf32, #tpu.memory_space<vmem>>, %arg5: memref<9x32x32xf32, #tpu.memory_space<vmem>>, %arg6: memref<1x32xf32, #tpu.memory_space<vmem>>, %arg7: memref<1x32xf32, #tpu.memory_space<vmem>>, %arg8: memref<4x32xf32, #tpu.memory_space<vmem>>, %arg9: memref<1x32xf32, #tpu.memory_space<vmem>>, %arg10: memref<1x32xf32, #tpu.memory_space<vmem>>, %arg11: memref<1x16x16x32xf32, #tpu.memory_space<vmem>>, %arg12: memref<18x18x32xf32, #tpu.memory_space<vmem>>) attributes {dimension_semantics = [#tpu.dimension_semantics<parallel>], iteration_bounds = array<i64: 2>, scalar_prefetch = 0 : i64, scratch_operands = 1 : i64, tpu.core_type = #tpu.core_type<tc>, window_params = [{transform_indices = @transform_0, window_bounds = array<i64: 1, 18, 18, 4>}, {pipeline_mode = #tpu.pipeline_mode<synchronous>, transform_indices = @transform_1, window_bounds = array<i64: 9, 4, 32>}, {pipeline_mode = #tpu.pipeline_mode<synchronous>, transform_indices = @transform_2, window_bounds = array<i64: 1, 32>}, {pipeline_mode = #tpu.pipeline_mode<synchronous>, transform_indices = @transform_3, window_bounds = array<i64: 1, 32>}, {pipeline_mode = #tpu.pipeline_mode<synchronous>, transform_indices = @transform_4, window_bounds = array<i64: 9, 32, 32>}, {pipeline_mode = #tpu.pipeline_mode<synchronous>, transform_indices = @transform_5, window_bounds = array<i64: 1, 32>}, {pipeline_mode = #tpu.pipeline_mode<synchronous>, transform_indices = @transform_6, window_bounds = array<i64: 1, 32>}, {pipeline_mode = #tpu.pipeline_mode<synchronous>, transform_indices = @transform_7, window_bounds = array<i64: 4, 32>}, {pipeline_mode = #tpu.pipeline_mode<synchronous>, transform_indices = @transform_8, window_bounds = array<i64: 1, 32>}, {pipeline_mode = #tpu.pipeline_mode<synchronous>, transform_indices = @transform_9, window_bounds = array<i64: 1, 32>}, {transform_indices = @transform_10, window_bounds = array<i64: 1, 16, 16, 32>}]} {
    %c0 = arith.constant 0 : index
    %c0_0 = arith.constant 0 : index
    %c0_1 = arith.constant 0 : index
    %c0_2 = arith.constant 0 : index
    %0 = vector.load %arg1[%c0, %c0_0, %c0_1, %c0_2] : memref<1x18x18x4xf32, #tpu.memory_space<vmem>>, vector<1x18x18x4xf32>
    %1 = vector.shape_cast %0 : vector<1x18x18x4xf32> to vector<18x18x4xf32>
    %cst = arith.constant 0.000000e+00 : f32
    %2 = vector.broadcast %cst : f32 to vector<256x32xf32>
    %3 = vector.extract_strided_slice %1 {offsets = [0, 0, 0], sizes = [16, 16, 4], strides = [1, 1, 1]} : vector<18x18x4xf32> to vector<16x16x4xf32>
    %4 = vector.shape_cast %3 : vector<16x16x4xf32> to vector<256x4xf32>
    %c0_3 = arith.constant 0 : index
    %c0_4 = arith.constant 0 : index
    %c0_5 = arith.constant 0 : index
    %5 = vector.load %arg2[%c0_3, %c0_4, %c0_5] : memref<9x4x32xf32, #tpu.memory_space<vmem>>, vector<1x4x32xf32>
    %6 = vector.shape_cast %5 : vector<1x4x32xf32> to vector<4x32xf32>
    %cst_6 = arith.constant dense<0.000000e+00> : vector<256x32xf32>
    %7 = tpu.matmul %4, %6, %cst_6 {dimension_numbers = #tpu.dot_dimension_numbers<[1], [0], [0], [1], [0, 0, 1, 1], [], []>} : vector<256x4xf32>, vector<4x32xf32>, vector<256x32xf32> -> vector<256x32xf32>
    %8 = arith.addf %2, %7 : vector<256x32xf32>
    %9 = vector.extract_strided_slice %1 {offsets = [0, 1, 0], sizes = [16, 16, 4], strides = [1, 1, 1]} : vector<18x18x4xf32> to vector<16x16x4xf32>
    %10 = vector.shape_cast %9 : vector<16x16x4xf32> to vector<256x4xf32>
    %c1 = arith.constant 1 : index
    %c0_7 = arith.constant 0 : index
    %c0_8 = arith.constant 0 : index
    %11 = vector.load %arg2[%c1, %c0_7, %c0_8] : memref<9x4x32xf32, #tpu.memory_space<vmem>>, vector<1x4x32xf32>
    %12 = vector.shape_cast %11 : vector<1x4x32xf32> to vector<4x32xf32>
    %cst_9 = arith.constant dense<0.000000e+00> : vector<256x32xf32>
    %13 = tpu.matmul %10, %12, %cst_9 {dimension_numbers = #tpu.dot_dimension_numbers<[1], [0], [0], [1], [0, 0, 1, 1], [], []>} : vector<256x4xf32>, vector<4x32xf32>, vector<256x32xf32> -> vector<256x32xf32>
    %14 = arith.addf %8, %13 : vector<256x32xf32>
    %15 = vector.extract_strided_slice %1 {offsets = [0, 2, 0], sizes = [16, 16, 4], strides = [1, 1, 1]} : vector<18x18x4xf32> to vector<16x16x4xf32>
    %16 = vector.shape_cast %15 : vector<16x16x4xf32> to vector<256x4xf32>
    %c2 = arith.constant 2 : index
    %c0_10 = arith.constant 0 : index
    %c0_11 = arith.constant 0 : index
    %17 = vector.load %arg2[%c2, %c0_10, %c0_11] : memref<9x4x32xf32, #tpu.memory_space<vmem>>, vector<1x4x32xf32>
    %18 = vector.shape_cast %17 : vector<1x4x32xf32> to vector<4x32xf32>
    %cst_12 = arith.constant dense<0.000000e+00> : vector<256x32xf32>
    %19 = tpu.matmul %16, %18, %cst_12 {dimension_numbers = #tpu.dot_dimension_numbers<[1], [0], [0], [1], [0, 0, 1, 1], [], []>} : vector<256x4xf32>, vector<4x32xf32>, vector<256x32xf32> -> vector<256x32xf32>
    %20 = arith.addf %14, %19 : vector<256x32xf32>
    %21 = vector.extract_strided_slice %1 {offsets = [1, 0, 0], sizes = [16, 16, 4], strides = [1, 1, 1]} : vector<18x18x4xf32> to vector<16x16x4xf32>
    %22 = vector.shape_cast %21 : vector<16x16x4xf32> to vector<256x4xf32>
    %c3 = arith.constant 3 : index
    %c0_13 = arith.constant 0 : index
    %c0_14 = arith.constant 0 : index
    %23 = vector.load %arg2[%c3, %c0_13, %c0_14] : memref<9x4x32xf32, #tpu.memory_space<vmem>>, vector<1x4x32xf32>
    %24 = vector.shape_cast %23 : vector<1x4x32xf32> to vector<4x32xf32>
    %cst_15 = arith.constant dense<0.000000e+00> : vector<256x32xf32>
    %25 = tpu.matmul %22, %24, %cst_15 {dimension_numbers = #tpu.dot_dimension_numbers<[1], [0], [0], [1], [0, 0, 1, 1], [], []>} : vector<256x4xf32>, vector<4x32xf32>, vector<256x32xf32> -> vector<256x32xf32>
    %26 = arith.addf %20, %25 : vector<256x32xf32>
    %27 = vector.extract_strided_slice %1 {offsets = [1, 1, 0], sizes = [16, 16, 4], strides = [1, 1, 1]} : vector<18x18x4xf32> to vector<16x16x4xf32>
    %28 = vector.shape_cast %27 : vector<16x16x4xf32> to vector<256x4xf32>
    %c4 = arith.constant 4 : index
    %c0_16 = arith.constant 0 : index
    %c0_17 = arith.constant 0 : index
    %29 = vector.load %arg2[%c4, %c0_16, %c0_17] : memref<9x4x32xf32, #tpu.memory_space<vmem>>, vector<1x4x32xf32>
    %30 = vector.shape_cast %29 : vector<1x4x32xf32> to vector<4x32xf32>
    %cst_18 = arith.constant dense<0.000000e+00> : vector<256x32xf32>
    %31 = tpu.matmul %28, %30, %cst_18 {dimension_numbers = #tpu.dot_dimension_numbers<[1], [0], [0], [1], [0, 0, 1, 1], [], []>} : vector<256x4xf32>, vector<4x32xf32>, vector<256x32xf32> -> vector<256x32xf32>
    %32 = arith.addf %26, %31 : vector<256x32xf32>
    %33 = vector.extract_strided_slice %1 {offsets = [1, 2, 0], sizes = [16, 16, 4], strides = [1, 1, 1]} : vector<18x18x4xf32> to vector<16x16x4xf32>
    %34 = vector.shape_cast %33 : vector<16x16x4xf32> to vector<256x4xf32>
    %c5 = arith.constant 5 : index
    %c0_19 = arith.constant 0 : index
    %c0_20 = arith.constant 0 : index
    %35 = vector.load %arg2[%c5, %c0_19, %c0_20] : memref<9x4x32xf32, #tpu.memory_space<vmem>>, vector<1x4x32xf32>
    %36 = vector.shape_cast %35 : vector<1x4x32xf32> to vector<4x32xf32>
    %cst_21 = arith.constant dense<0.000000e+00> : vector<256x32xf32>
    %37 = tpu.matmul %34, %36, %cst_21 {dimension_numbers = #tpu.dot_dimension_numbers<[1], [0], [0], [1], [0, 0, 1, 1], [], []>} : vector<256x4xf32>, vector<4x32xf32>, vector<256x32xf32> -> vector<256x32xf32>
    %38 = arith.addf %32, %37 : vector<256x32xf32>
    %39 = vector.extract_strided_slice %1 {offsets = [2, 0, 0], sizes = [16, 16, 4], strides = [1, 1, 1]} : vector<18x18x4xf32> to vector<16x16x4xf32>
    %40 = vector.shape_cast %39 : vector<16x16x4xf32> to vector<256x4xf32>
    %c6 = arith.constant 6 : index
    %c0_22 = arith.constant 0 : index
    %c0_23 = arith.constant 0 : index
    %41 = vector.load %arg2[%c6, %c0_22, %c0_23] : memref<9x4x32xf32, #tpu.memory_space<vmem>>, vector<1x4x32xf32>
    %42 = vector.shape_cast %41 : vector<1x4x32xf32> to vector<4x32xf32>
    %cst_24 = arith.constant dense<0.000000e+00> : vector<256x32xf32>
    %43 = tpu.matmul %40, %42, %cst_24 {dimension_numbers = #tpu.dot_dimension_numbers<[1], [0], [0], [1], [0, 0, 1, 1], [], []>} : vector<256x4xf32>, vector<4x32xf32>, vector<256x32xf32> -> vector<256x32xf32>
    %44 = arith.addf %38, %43 : vector<256x32xf32>
    %45 = vector.extract_strided_slice %1 {offsets = [2, 1, 0], sizes = [16, 16, 4], strides = [1, 1, 1]} : vector<18x18x4xf32> to vector<16x16x4xf32>
    %46 = vector.shape_cast %45 : vector<16x16x4xf32> to vector<256x4xf32>
    %c7 = arith.constant 7 : index
    %c0_25 = arith.constant 0 : index
    %c0_26 = arith.constant 0 : index
    %47 = vector.load %arg2[%c7, %c0_25, %c0_26] : memref<9x4x32xf32, #tpu.memory_space<vmem>>, vector<1x4x32xf32>
    %48 = vector.shape_cast %47 : vector<1x4x32xf32> to vector<4x32xf32>
    %cst_27 = arith.constant dense<0.000000e+00> : vector<256x32xf32>
    %49 = tpu.matmul %46, %48, %cst_27 {dimension_numbers = #tpu.dot_dimension_numbers<[1], [0], [0], [1], [0, 0, 1, 1], [], []>} : vector<256x4xf32>, vector<4x32xf32>, vector<256x32xf32> -> vector<256x32xf32>
    %50 = arith.addf %44, %49 : vector<256x32xf32>
    %51 = vector.extract_strided_slice %1 {offsets = [2, 2, 0], sizes = [16, 16, 4], strides = [1, 1, 1]} : vector<18x18x4xf32> to vector<16x16x4xf32>
    %52 = vector.shape_cast %51 : vector<16x16x4xf32> to vector<256x4xf32>
    %c8 = arith.constant 8 : index
    %c0_28 = arith.constant 0 : index
    %c0_29 = arith.constant 0 : index
    %53 = vector.load %arg2[%c8, %c0_28, %c0_29] : memref<9x4x32xf32, #tpu.memory_space<vmem>>, vector<1x4x32xf32>
    %54 = vector.shape_cast %53 : vector<1x4x32xf32> to vector<4x32xf32>
    %cst_30 = arith.constant dense<0.000000e+00> : vector<256x32xf32>
    %55 = tpu.matmul %52, %54, %cst_30 {dimension_numbers = #tpu.dot_dimension_numbers<[1], [0], [0], [1], [0, 0, 1, 1], [], []>} : vector<256x4xf32>, vector<4x32xf32>, vector<256x32xf32> -> vector<256x32xf32>
    %56 = arith.addf %50, %55 : vector<256x32xf32>
    %c0_31 = arith.constant 0 : index
    %c0_32 = arith.constant 0 : index
    %57 = vector.load %arg3[%c0_31, %c0_32] : memref<1x32xf32, #tpu.memory_space<vmem>>, vector<1x32xf32>
    %58 = vector.broadcast %57 : vector<1x32xf32> to vector<256x32xf32>
    %59 = arith.mulf %56, %58 : vector<256x32xf32>
    %c0_33 = arith.constant 0 : index
    %c0_34 = arith.constant 0 : index
    %60 = vector.load %arg4[%c0_33, %c0_34] : memref<1x32xf32, #tpu.memory_space<vmem>>, vector<1x32xf32>
    %61 = vector.broadcast %60 : vector<1x32xf32> to vector<256x32xf32>
    %62 = arith.addf %59, %61 : vector<256x32xf32>
    %cst_35 = arith.constant 0.000000e+00 : f32
    %63 = vector.broadcast %cst_35 : f32 to vector<256x32xf32>
    %64 = arith.maximumf %62, %63 : vector<256x32xf32>
    %cst_36 = arith.constant 0.000000e+00 : f32
    %65 = vector.broadcast %cst_36 : f32 to vector<18x18x32xf32>
    %c0_37 = arith.constant 0 : index
    %c0_38 = arith.constant 0 : index
    %c0_39 = arith.constant 0 : index
    %66 = vector.load %arg12[%c0_37, %c0_38, %c0_39] : memref<18x18x32xf32, #tpu.memory_space<vmem>>, vector<18x18x32xf32>
    tpu.vector_store %arg12[%c0_37, %c0_38, %c0_39], %65 {strides = array<i32>} : memref<18x18x32xf32, #tpu.memory_space<vmem>>, vector<18x18x32xf32>,
    %67 = vector.shape_cast %64 : vector<256x32xf32> to vector<16x16x32xf32>
    %c1_40 = arith.constant 1 : index
    %c1_41 = arith.constant 1 : index
    %c0_42 = arith.constant 0 : index
    %68 = vector.load %arg12[%c1_40, %c1_41, %c0_42] : memref<18x18x32xf32, #tpu.memory_space<vmem>>, vector<16x16x32xf32>
    tpu.vector_store %arg12[%c1_40, %c1_41, %c0_42], %67 {strides = array<i32>} : memref<18x18x32xf32, #tpu.memory_space<vmem>>, vector<16x16x32xf32>,
    %c0_43 = arith.constant 0 : index
    %c0_44 = arith.constant 0 : index
    %c0_45 = arith.constant 0 : index
    %69 = vector.load %arg12[%c0_43, %c0_44, %c0_45] : memref<18x18x32xf32, #tpu.memory_space<vmem>>, vector<18x18x32xf32>
    %cst_46 = arith.constant 0.000000e+00 : f32
    %70 = vector.broadcast %cst_46 : f32 to vector<256x32xf32>
    %71 = vector.extract_strided_slice %69 {offsets = [0, 0, 0], sizes = [16, 16, 32], strides = [1, 1, 1]} : vector<18x18x32xf32> to vector<16x16x32xf32>
    %72 = vector.shape_cast %71 : vector<16x16x32xf32> to vector<256x32xf32>
    %c0_47 = arith.constant 0 : index
    %c0_48 = arith.constant 0 : index
    %c0_49 = arith.constant 0 : index
    %73 = vector.load %arg5[%c0_47, %c0_48, %c0_49] : memref<9x32x32xf32, #tpu.memory_space<vmem>>, vector<1x32x32xf32>
    %74 = vector.shape_cast %73 : vector<1x32x32xf32> to vector<32x32xf32>
    %cst_50 = arith.constant dense<0.000000e+00> : vector<256x32xf32>
    %75 = tpu.matmul %72, %74, %cst_50 {dimension_numbers = #tpu.dot_dimension_numbers<[1], [0], [0], [1], [0, 0, 1, 1], [], []>} : vector<256x32xf32>, vector<32x32xf32>, vector<256x32xf32> -> vector<256x32xf32>
    %76 = arith.addf %70, %75 : vector<256x32xf32>
    %77 = vector.extract_strided_slice %69 {offsets = [0, 1, 0], sizes = [16, 16, 32], strides = [1, 1, 1]} : vector<18x18x32xf32> to vector<16x16x32xf32>
    %78 = vector.shape_cast %77 : vector<16x16x32xf32> to vector<256x32xf32>
    %c1_51 = arith.constant 1 : index
    %c0_52 = arith.constant 0 : index
    %c0_53 = arith.constant 0 : index
    %79 = vector.load %arg5[%c1_51, %c0_52, %c0_53] : memref<9x32x32xf32, #tpu.memory_space<vmem>>, vector<1x32x32xf32>
    %80 = vector.shape_cast %79 : vector<1x32x32xf32> to vector<32x32xf32>
    %cst_54 = arith.constant dense<0.000000e+00> : vector<256x32xf32>
    %81 = tpu.matmul %78, %80, %cst_54 {dimension_numbers = #tpu.dot_dimension_numbers<[1], [0], [0], [1], [0, 0, 1, 1], [], []>} : vector<256x32xf32>, vector<32x32xf32>, vector<256x32xf32> -> vector<256x32xf32>
    %82 = arith.addf %76, %81 : vector<256x32xf32>
    %83 = vector.extract_strided_slice %69 {offsets = [0, 2, 0], sizes = [16, 16, 32], strides = [1, 1, 1]} : vector<18x18x32xf32> to vector<16x16x32xf32>
    %84 = vector.shape_cast %83 : vector<16x16x32xf32> to vector<256x32xf32>
    %c2_55 = arith.constant 2 : index
    %c0_56 = arith.constant 0 : index
    %c0_57 = arith.constant 0 : index
    %85 = vector.load %arg5[%c2_55, %c0_56, %c0_57] : memref<9x32x32xf32, #tpu.memory_space<vmem>>, vector<1x32x32xf32>
    %86 = vector.shape_cast %85 : vector<1x32x32xf32> to vector<32x32xf32>
    %cst_58 = arith.constant dense<0.000000e+00> : vector<256x32xf32>
    %87 = tpu.matmul %84, %86, %cst_58 {dimension_numbers = #tpu.dot_dimension_numbers<[1], [0], [0], [1], [0, 0, 1, 1], [], []>} : vector<256x32xf32>, vector<32x32xf32>, vector<256x32xf32> -> vector<256x32xf32>
    %88 = arith.addf %82, %87 : vector<256x32xf32>
    %89 = vector.extract_strided_slice %69 {offsets = [1, 0, 0], sizes = [16, 16, 32], strides = [1, 1, 1]} : vector<18x18x32xf32> to vector<16x16x32xf32>
    %90 = vector.shape_cast %89 : vector<16x16x32xf32> to vector<256x32xf32>
    %c3_59 = arith.constant 3 : index
    %c0_60 = arith.constant 0 : index
    %c0_61 = arith.constant 0 : index
    %91 = vector.load %arg5[%c3_59, %c0_60, %c0_61] : memref<9x32x32xf32, #tpu.memory_space<vmem>>, vector<1x32x32xf32>
    %92 = vector.shape_cast %91 : vector<1x32x32xf32> to vector<32x32xf32>
    %cst_62 = arith.constant dense<0.000000e+00> : vector<256x32xf32>
    %93 = tpu.matmul %90, %92, %cst_62 {dimension_numbers = #tpu.dot_dimension_numbers<[1], [0], [0], [1], [0, 0, 1, 1], [], []>} : vector<256x32xf32>, vector<32x32xf32>, vector<256x32xf32> -> vector<256x32xf32>
    %94 = arith.addf %88, %93 : vector<256x32xf32>
    %95 = vector.extract_strided_slice %69 {offsets = [1, 1, 0], sizes = [16, 16, 32], strides = [1, 1, 1]} : vector<18x18x32xf32> to vector<16x16x32xf32>
    %96 = vector.shape_cast %95 : vector<16x16x32xf32> to vector<256x32xf32>
    %c4_63 = arith.constant 4 : index
    %c0_64 = arith.constant 0 : index
    %c0_65 = arith.constant 0 : index
    %97 = vector.load %arg5[%c4_63, %c0_64, %c0_65] : memref<9x32x32xf32, #tpu.memory_space<vmem>>, vector<1x32x32xf32>
    %98 = vector.shape_cast %97 : vector<1x32x32xf32> to vector<32x32xf32>
    %cst_66 = arith.constant dense<0.000000e+00> : vector<256x32xf32>
    %99 = tpu.matmul %96, %98, %cst_66 {dimension_numbers = #tpu.dot_dimension_numbers<[1], [0], [0], [1], [0, 0, 1, 1], [], []>} : vector<256x32xf32>, vector<32x32xf32>, vector<256x32xf32> -> vector<256x32xf32>
    %100 = arith.addf %94, %99 : vector<256x32xf32>
    %101 = vector.extract_strided_slice %69 {offsets = [1, 2, 0], sizes = [16, 16, 32], strides = [1, 1, 1]} : vector<18x18x32xf32> to vector<16x16x32xf32>
    %102 = vector.shape_cast %101 : vector<16x16x32xf32> to vector<256x32xf32>
    %c5_67 = arith.constant 5 : index
    %c0_68 = arith.constant 0 : index
    %c0_69 = arith.constant 0 : index
    %103 = vector.load %arg5[%c5_67, %c0_68, %c0_69] : memref<9x32x32xf32, #tpu.memory_space<vmem>>, vector<1x32x32xf32>
    %104 = vector.shape_cast %103 : vector<1x32x32xf32> to vector<32x32xf32>
    %cst_70 = arith.constant dense<0.000000e+00> : vector<256x32xf32>
    %105 = tpu.matmul %102, %104, %cst_70 {dimension_numbers = #tpu.dot_dimension_numbers<[1], [0], [0], [1], [0, 0, 1, 1], [], []>} : vector<256x32xf32>, vector<32x32xf32>, vector<256x32xf32> -> vector<256x32xf32>
    %106 = arith.addf %100, %105 : vector<256x32xf32>
    %107 = vector.extract_strided_slice %69 {offsets = [2, 0, 0], sizes = [16, 16, 32], strides = [1, 1, 1]} : vector<18x18x32xf32> to vector<16x16x32xf32>
    %108 = vector.shape_cast %107 : vector<16x16x32xf32> to vector<256x32xf32>
    %c6_71 = arith.constant 6 : index
    %c0_72 = arith.constant 0 : index
    %c0_73 = arith.constant 0 : index
    %109 = vector.load %arg5[%c6_71, %c0_72, %c0_73] : memref<9x32x32xf32, #tpu.memory_space<vmem>>, vector<1x32x32xf32>
    %110 = vector.shape_cast %109 : vector<1x32x32xf32> to vector<32x32xf32>
    %cst_74 = arith.constant dense<0.000000e+00> : vector<256x32xf32>
    %111 = tpu.matmul %108, %110, %cst_74 {dimension_numbers = #tpu.dot_dimension_numbers<[1], [0], [0], [1], [0, 0, 1, 1], [], []>} : vector<256x32xf32>, vector<32x32xf32>, vector<256x32xf32> -> vector<256x32xf32>
    %112 = arith.addf %106, %111 : vector<256x32xf32>
    %113 = vector.extract_strided_slice %69 {offsets = [2, 1, 0], sizes = [16, 16, 32], strides = [1, 1, 1]} : vector<18x18x32xf32> to vector<16x16x32xf32>
    %114 = vector.shape_cast %113 : vector<16x16x32xf32> to vector<256x32xf32>
    %c7_75 = arith.constant 7 : index
    %c0_76 = arith.constant 0 : index
    %c0_77 = arith.constant 0 : index
    %115 = vector.load %arg5[%c7_75, %c0_76, %c0_77] : memref<9x32x32xf32, #tpu.memory_space<vmem>>, vector<1x32x32xf32>
    %116 = vector.shape_cast %115 : vector<1x32x32xf32> to vector<32x32xf32>
    %cst_78 = arith.constant dense<0.000000e+00> : vector<256x32xf32>
    %117 = tpu.matmul %114, %116, %cst_78 {dimension_numbers = #tpu.dot_dimension_numbers<[1], [0], [0], [1], [0, 0, 1, 1], [], []>} : vector<256x32xf32>, vector<32x32xf32>, vector<256x32xf32> -> vector<256x32xf32>
    %118 = arith.addf %112, %117 : vector<256x32xf32>
    %119 = vector.extract_strided_slice %69 {offsets = [2, 2, 0], sizes = [16, 16, 32], strides = [1, 1, 1]} : vector<18x18x32xf32> to vector<16x16x32xf32>
    %120 = vector.shape_cast %119 : vector<16x16x32xf32> to vector<256x32xf32>
    %c8_79 = arith.constant 8 : index
    %c0_80 = arith.constant 0 : index
    %c0_81 = arith.constant 0 : index
    %121 = vector.load %arg5[%c8_79, %c0_80, %c0_81] : memref<9x32x32xf32, #tpu.memory_space<vmem>>, vector<1x32x32xf32>
    %122 = vector.shape_cast %121 : vector<1x32x32xf32> to vector<32x32xf32>
    %cst_82 = arith.constant dense<0.000000e+00> : vector<256x32xf32>
    %123 = tpu.matmul %120, %122, %cst_82 {dimension_numbers = #tpu.dot_dimension_numbers<[1], [0], [0], [1], [0, 0, 1, 1], [], []>} : vector<256x32xf32>, vector<32x32xf32>, vector<256x32xf32> -> vector<256x32xf32>
    %124 = arith.addf %118, %123 : vector<256x32xf32>
    %c0_83 = arith.constant 0 : index
    %c0_84 = arith.constant 0 : index
    %125 = vector.load %arg6[%c0_83, %c0_84] : memref<1x32xf32, #tpu.memory_space<vmem>>, vector<1x32xf32>
    %126 = vector.broadcast %125 : vector<1x32xf32> to vector<256x32xf32>
    %127 = arith.mulf %124, %126 : vector<256x32xf32>
    %c0_85 = arith.constant 0 : index
    %c0_86 = arith.constant 0 : index
    %128 = vector.load %arg7[%c0_85, %c0_86] : memref<1x32xf32, #tpu.memory_space<vmem>>, vector<1x32xf32>
    %129 = vector.broadcast %128 : vector<1x32xf32> to vector<256x32xf32>
    %130 = arith.addf %127, %129 : vector<256x32xf32>
    %131 = vector.extract_strided_slice %1 {offsets = [1, 1, 0], sizes = [16, 16, 4], strides = [1, 1, 1]} : vector<18x18x4xf32> to vector<16x16x4xf32>
    %132 = vector.shape_cast %131 : vector<16x16x4xf32> to vector<256x4xf32>
    %c0_87 = arith.constant 0 : index
    %c0_88 = arith.constant 0 : index
    %133 = vector.load %arg8[%c0_87, %c0_88] : memref<4x32xf32, #tpu.memory_space<vmem>>, vector<4x32xf32>
    %cst_89 = arith.constant dense<0.000000e+00> : vector<256x32xf32>
    %134 = tpu.matmul %132, %133, %cst_89 {dimension_numbers = #tpu.dot_dimension_numbers<[1], [0], [0], [1], [0, 0, 1, 1], [], []>} : vector<256x4xf32>, vector<4x32xf32>, vector<256x32xf32> -> vector<256x32xf32>
    %c0_90 = arith.constant 0 : index
    %c0_91 = arith.constant 0 : index
    %135 = vector.load %arg9[%c0_90, %c0_91] : memref<1x32xf32, #tpu.memory_space<vmem>>, vector<1x32xf32>
    %136 = vector.broadcast %135 : vector<1x32xf32> to vector<256x32xf32>
    %137 = arith.mulf %134, %136 : vector<256x32xf32>
    %c0_92 = arith.constant 0 : index
    %c0_93 = arith.constant 0 : index
    %138 = vector.load %arg10[%c0_92, %c0_93] : memref<1x32xf32, #tpu.memory_space<vmem>>, vector<1x32xf32>
    %139 = vector.broadcast %138 : vector<1x32xf32> to vector<256x32xf32>
    %140 = arith.addf %137, %139 : vector<256x32xf32>
    %141 = arith.addf %130, %140 : vector<256x32xf32>
    %cst_94 = arith.constant 0.000000e+00 : f32
    %142 = vector.broadcast %cst_94 : f32 to vector<256x32xf32>
    %143 = arith.maximumf %141, %142 : vector<256x32xf32>
    %144 = vector.shape_cast %143 : vector<256x32xf32> to vector<1x16x16x32xf32>
    %c0_95 = arith.constant 0 : index
    %c0_96 = arith.constant 0 : index
    %c0_97 = arith.constant 0 : index
    %c0_98 = arith.constant 0 : index
    %145 = vector.load %arg11[%c0_95, %c0_96, %c0_97, %c0_98] : memref<1x16x16x32xf32, #tpu.memory_space<vmem>>, vector<1x16x16x32xf32>
    tpu.vector_store %arg11[%c0_95, %c0_96, %c0_97, %c0_98], %144 {strides = array<i32>} : memref<1x16x16x32xf32, #tpu.memory_space<vmem>>, vector<1x16x16x32xf32>,
    return
  }
  func.func @transform_0(%arg0: i32) -> (i32, i32, i32, i32) {
    %c0_i32 = arith.constant 0 : i32
    %c0_i32_0 = arith.constant 0 : i32
    %c0_i32_1 = arith.constant 0 : i32
    %c0_i32_2 = arith.constant 0 : i32
    return %arg0, %c0_i32, %c0_i32_0, %c0_i32_1 : i32, i32, i32, i32
  }
  func.func @transform_1(%arg0: i32) -> (i32, i32, i32) {
    %c0_i32 = arith.constant 0 : i32
    %c0_i32_0 = arith.constant 0 : i32
    %c0_i32_1 = arith.constant 0 : i32
    %c0_i32_2 = arith.constant 0 : i32
    return %c0_i32, %c0_i32_0, %c0_i32_1 : i32, i32, i32
  }
  func.func @transform_2(%arg0: i32) -> (i32, i32) {
    %c0_i32 = arith.constant 0 : i32
    %c0_i32_0 = arith.constant 0 : i32
    %c0_i32_1 = arith.constant 0 : i32
    return %c0_i32, %c0_i32_0 : i32, i32
  }
  func.func @transform_3(%arg0: i32) -> (i32, i32) {
    %c0_i32 = arith.constant 0 : i32
    %c0_i32_0 = arith.constant 0 : i32
    %c0_i32_1 = arith.constant 0 : i32
    return %c0_i32, %c0_i32_0 : i32, i32
  }
  func.func @transform_4(%arg0: i32) -> (i32, i32, i32) {
    %c0_i32 = arith.constant 0 : i32
    %c0_i32_0 = arith.constant 0 : i32
    %c0_i32_1 = arith.constant 0 : i32
    %c0_i32_2 = arith.constant 0 : i32
    return %c0_i32, %c0_i32_0, %c0_i32_1 : i32, i32, i32
  }
  func.func @transform_5(%arg0: i32) -> (i32, i32) {
    %c0_i32 = arith.constant 0 : i32
    %c0_i32_0 = arith.constant 0 : i32
    %c0_i32_1 = arith.constant 0 : i32
    return %c0_i32, %c0_i32_0 : i32, i32
  }
  func.func @transform_6(%arg0: i32) -> (i32, i32) {
    %c0_i32 = arith.constant 0 : i32
    %c0_i32_0 = arith.constant 0 : i32
    %c0_i32_1 = arith.constant 0 : i32
    return %c0_i32, %c0_i32_0 : i32, i32
  }
  func.func @transform_7(%arg0: i32) -> (i32, i32) {
    %c0_i32 = arith.constant 0 : i32
    %c0_i32_0 = arith.constant 0 : i32
    %c0_i32_1 = arith.constant 0 : i32
    return %c0_i32, %c0_i32_0 : i32, i32
  }
  func.func @transform_8(%arg0: i32) -> (i32, i32) {
    %c0_i32 = arith.constant 0 : i32
    %c0_i32_0 = arith.constant 0 : i32
    %c0_i32_1 = arith.constant 0 : i32
    return %c0_i32, %c0_i32_0 : i32, i32
  }
  func.func @transform_9(%arg0: i32) -> (i32, i32) {
    %c0_i32 = arith.constant 0 : i32
    %c0_i32_0 = arith.constant 0 : i32
    %c0_i32_1 = arith.constant 0 : i32
    return %c0_i32, %c0_i32_0 : i32, i32
  }
  func.func @transform_10(%arg0: i32) -> (i32, i32, i32, i32) {
    %c0_i32 = arith.constant 0 : i32
    %c0_i32_0 = arith.constant 0 : i32
    %c0_i32_1 = arith.constant 0 : i32
    %c0_i32_2 = arith.constant 0 : i32
    return %arg0, %c0_i32, %c0_i32_0, %c0_i32_1 : i32, i32, i32, i32
  }
}

</mosaic_0001>

<llo_original>
// kernel: basic_block_forward.1
$region0: #{basic_block_forward.1}
  #allocation0 [shape = 'u32[]', space=smem, size = 0x4, offset = 0x4, fixed_abs, tag = 'smem constant byte address 0x4 - core index']
  #allocation1 [shape = 'u32[144,128]{1,0:T(1,128)}', space=vmem, size = 0x12000, scoped, tag = 'internal scratch']
  #allocation2 [shape = 'f32[18,18,32]{2,1,0:T(8,128)}', space=vmem, size = 0x36000, scoped, tag = 'scratch operand']
  %s0 = inlined_call_operand.vmem [shape: f32[2,18,18,4], index: 0, kind: input, shape index: {}]
  %s1 = inlined_call_operand.vmem [shape: f32[9,4,32], index: 1, kind: input, shape index: {}]
  %s2 = inlined_call_operand.vmem [shape: f32[1,32], index: 2, kind: input, shape index: {}]
  %s3 = inlined_call_operand.vmem [shape: f32[1,32], index: 3, kind: input, shape index: {}]
  %s4 = inlined_call_operand.vmem [shape: f32[9,32,32], index: 4, kind: input, shape index: {}]
  %s5 = inlined_call_operand.vmem [shape: f32[1,32], index: 5, kind: input, shape index: {}]
  %s6 = inlined_call_operand.vmem [shape: f32[1,32], index: 6, kind: input, shape index: {}]
  %s7 = inlined_call_operand.vmem [shape: f32[4,32], index: 7, kind: input, shape index: {}]
  %s8 = inlined_call_operand.vmem [shape: f32[1,32], index: 8, kind: input, shape index: {}]
  %s9 = inlined_call_operand.vmem [shape: f32[1,32], index: 9, kind: input, shape index: {}]
  %s10 = inlined_call_operand.hbm [shape: f32[2,16,16,32], index: 10, kind: output, shape index: {}]
  %s11 = sld [smem:[#allocation0]]
  $region73: #{basic_block_forward.1} parent=0
    _
  %s13 = ssub.s32 1, %s11
  %s14 = scalar_select 0, %s13, %s11
  $region1: #{basic_block_forward.1} parent=0
    #allocation3 [shape = 'u8[262144]{0}', space=vmem, size = 0x40000, scoped, tag = 'output window, operand 0']
    #allocation4 [shape = 's32[2]{0}', space=sflag, size = 0x8, scoped, tag = 'scoped memory for basic_block_forward.1']
    %15 = vsyncpa [#allocation4], 0
    %s16 = scalar_lea.sflag [#allocation4], 1
    %17 = vsyncpa %s16, 0
    loop: start=0, step=1, limit=4
    $region2: #{basic_block_forward.1} parent=1 // loop_pre_header
      _
    $region3: #{basic_block_forward.1} parent=1 // loop_header
      %s19 = sphi 0, %s23
      %p20 = scmp.ge.s32.totalorder %s19, 4
      %s29 = sphi 0, %s31
      %s32 = sphi 0, %s29
      %s33 = sphi 0, %s32
      %s49 = sphi 0, %s33
      %s53 = sphi 0, %s53
      %s55 = sphi 0, %s53
      %s56 = sphi 0, %s55
      %s70 = sphi 0, %s56
      %s74 = sphi 0, %s74
      %s76 = sphi 0, %s74
      %s77 = sphi 0, %s76
      %s91 = sphi 0, %s77
      %s95 = sphi 0, %s95
      %s97 = sphi 0, %s95
      %s98 = sphi 0, %s97
      %s112 = sphi 0, %s98
      %s116 = sphi 0, %s116
      %s118 = sphi 0, %s116
      %s119 = sphi 0, %s118
      %s133 = sphi 0, %s119
      %s137 = sphi 0, %s137
      %s139 = sphi 0, %s137
      %s140 = sphi 0, %s139
      %s154 = sphi 0, %s140
      %s158 = sphi 0, %s158
      %s160 = sphi 0, %s158
      %s161 = sphi 0, %s160
      %s175 = sphi 0, %s161
      %s179 = sphi 0, %s179
      %s181 = sphi 0, %s179
      %s182 = sphi 0, %s181
      %s196 = sphi 0, %s182
      %s200 = sphi 0, %s200
      %s202 = sphi 0, %s200
      %s203 = sphi 0, %s202
      %s217 = sphi 0, %s203
      %s221 = sphi 0, %s221
      %s223 = sphi 0, %s221
      %s224 = sphi 0, %s223
      %s238 = sphi 0, %s224
      %s244 = sphi 0, %s246
      %s247 = sphi 0, %s244
      %s248 = sphi 0, %s247
      %s264 = sphi 0, %s248
    $region4: #{basic_block_forward.1} parent=1 // loop_header_branch
      %22 = sbr.rel (%p20) target = $region8
    $region5: #{basic_block_forward.1} parent=1 // loop_body
      %s24 = ssub.s32 %s19, 1
      %s25 = ssub.s32 %s19, 2
      %s26 = sadd.s32 %s19, 1
      %s27 = ssub.s32 %s19, %s26
      %p28 = scmp.eq.s32.totalorder %s27, 0
      %s30 = sadd.s32 %s29, 1
      %s31 = scalar_select %p28, %s29, %s30
      %p34 = pneg %p28
      %p35 = scmp.eq.s32.totalorder %s19, 1
      %p36 = por %p34, %p35
      %p37 = scmp.ne.s32.totalorder %s29, %s32
      %p38 = scmp.eq.s32.totalorder %s19, 0
      %p39 = por %p37, %p38
      %p40 = scmp.ne.s32.totalorder %s29, %s32
      %p41 = scmp.eq.s32.totalorder %s24, 1
      %p42 = por %p40, %p41
      %p43 = scmp.ne.s32.totalorder %s32, %s33
      %p44 = scmp.eq.s32.totalorder %s24, 0
      %p45 = por %p43, %p44
      %p46 = scmp.ne.s32.totalorder %s32, %s33
      %p47 = scmp.eq.s32.totalorder %s25, 1
      %p48 = por %p46, %p47
      %p50 = scmp.ne.s32.totalorder %s33, %s49
      %p51 = scmp.eq.s32.totalorder %s25, 0
      %p52 = por %p50, %p51
      %s54 = sadd.s32 %s53, 1
      %p57 = scmp.eq.s32.totalorder %s19, 1
      %p58 = scmp.ne.s32.totalorder %s53, %s55
      %p59 = scmp.eq.s32.totalorder %s19, 0
      %p60 = por %p58, %p59
      %p61 = scmp.ne.s32.totalorder %s53, %s55
      %p62 = scmp.eq.s32.totalorder %s24, 1
      %p63 = por %p61, %p62
      %p64 = scmp.ne.s32.totalorder %s55, %s56
      %p65 = scmp.eq.s32.totalorder %s24, 0
      %p66 = por %p64, %p65
      %p67 = scmp.ne.s32.totalorder %s55, %s56
      %p68 = scmp.eq.s32.totalorder %s25, 1
      %p69 = por %p67, %p68
      %p71 = scmp.ne.s32.totalorder %s56, %s70
      %p72 = scmp.eq.s32.totalorder %s25, 0
      %p73 = por %p71, %p72
      %s75 = sadd.s32 %s74, 1
      %p78 = scmp.eq.s32.totalorder %s19, 1
      %p79 = scmp.ne.s32.totalorder %s74, %s76
      %p80 = scmp.eq.s32.totalorder %s19, 0
      %p81 = por %p79, %p80
      %p82 = scmp.ne.s32.totalorder %s74, %s76
      %p83 = scmp.eq.s32.totalorder %s24, 1
      %p84 = por %p82, %p83
      %p85 = scmp.ne.s32.totalorder %s76, %s77
      %p86 = scmp.eq.s32.totalorder %s24, 0
      %p87 = por %p85, %p86
      %p88 = scmp.ne.s32.totalorder %s76, %s77
      %p89 = scmp.eq.s32.totalorder %s25, 1
      %p90 = por %p88, %p89
      %p92 = scmp.ne.s32.totalorder %s77, %s91
      %p93 = scmp.eq.s32.totalorder %s25, 0
      %p94 = por %p92, %p93
      %s96 = sadd.s32 %s95, 1
      %p99 = scmp.eq.s32.totalorder %s19, 1
      %p100 = scmp.ne.s32.totalorder %s95, %s97
      %p101 = scmp.eq.s32.totalorder %s19, 0
      %p102 = por %p100, %p101
      %p103 = scmp.ne.s32.totalorder %s95, %s97
      %p104 = scmp.eq.s32.totalorder %s24, 1
      %p105 = por %p103, %p104
      %p106 = scmp.ne.s32.totalorder %s97, %s98
      %p107 = scmp.eq.s32.totalorder %s24, 0
      %p108 = por %p106, %p107
      %p109 = scmp.ne.s32.totalorder %s97, %s98
      %p110 = scmp.eq.s32.totalorder %s25, 1
      %p111 = por %p109, %p110
      %p113 = scmp.ne.s32.totalorder %s98, %s112
      %p114 = scmp.eq.s32.totalorder %s25, 0
      %p115 = por %p113, %p114
      %s117 = sadd.s32 %s116, 1
      %p120 = scmp.eq.s32.totalorder %s19, 1
      %p121 = scmp.ne.s32.totalorder %s116, %s118
      %p122 = scmp.eq.s32.totalorder %s19, 0
      %p123 = por %p121, %p122
      %p124 = scmp.ne.s32.totalorder %s116, %s118
      %p125 = scmp.eq.s32.totalorder %s24, 1
      %p126 = por %p124, %p125
      %p127 = scmp.ne.s32.totalorder %s118, %s119
      %p128 = scmp.eq.s32.totalorder %s24, 0
      %p129 = por %p127, %p128
      %p130 = scmp.ne.s32.totalorder %s118, %s119
      %p131 = scmp.eq.s32.totalorder %s25, 1
      %p132 = por %p130, %p131
      %p134 = scmp.ne.s32.totalorder %s119, %s133
      %p135 = scmp.eq.s32.totalorder %s25, 0
      %p136 = por %p134, %p135
      %s138 = sadd.s32 %s137, 1
      %p141 = scmp.eq.s32.totalorder %s19, 1
      %p142 = scmp.ne.s32.totalorder %s137, %s139
      %p143 = scmp.eq.s32.totalorder %s19, 0
      %p144 = por %p142, %p143
      %p145 = scmp.ne.s32.totalorder %s137, %s139
      %p146 = scmp.eq.s32.totalorder %s24, 1
      %p147 = por %p145, %p146
      %p148 = scmp.ne.s32.totalorder %s139, %s140
      %p149 = scmp.eq.s32.totalorder %s24, 0
      %p150 = por %p148, %p149
      %p151 = scmp.ne.s32.totalorder %s139, %s140
      %p152 = scmp.eq.s32.totalorder %s25, 1
      %p153 = por %p151, %p152
      %p155 = scmp.ne.s32.totalorder %s140, %s154
      %p156 = scmp.eq.s32.totalorder %s25, 0
      %p157 = por %p155, %p156
      %s159 = sadd.s32 %s158, 1
      %p162 = scmp.eq.s32.totalorder %s19, 1
      %p163 = scmp.ne.s32.totalorder %s158, %s160
      %p164 = scmp.eq.s32.totalorder %s19, 0
      %p165 = por %p163, %p164
      %p166 = scmp.ne.s32.totalorder %s158, %s160
      %p167 = scmp.eq.s32.totalorder %s24, 1
      %p168 = por %p166, %p167
      %p169 = scmp.ne.s32.totalorder %s160, %s161
      %p170 = scmp.eq.s32.totalorder %s24, 0
      %p171 = por %p169, %p170
      %p172 = scmp.ne.s32.totalorder %s160, %s161
      %p173 = scmp.eq.s32.totalorder %s25, 1
      %p174 = por %p172, %p173
      %p176 = scmp.ne.s32.totalorder %s161, %s175
      %p177 = scmp.eq.s32.totalorder %s25, 0
      %p178 = por %p176, %p177
      %s180 = sadd.s32 %s179, 1
      %p183 = scmp.eq.s32.totalorder %s19, 1
      %p184 = scmp.ne.s32.totalorder %s179, %s181
      %p185 = scmp.eq.s32.totalorder %s19, 0
      %p186 = por %p184, %p185
      %p187 = scmp.ne.s32.totalorder %s179, %s181
      %p188 = scmp.eq.s32.totalorder %s24, 1
      %p189 = por %p187, %p188
      %p190 = scmp.ne.s32.totalorder %s181, %s182
      %p191 = scmp.eq.s32.totalorder %s24, 0
      %p192 = por %p190, %p191
      %p193 = scmp.ne.s32.totalorder %s181, %s182
      %p194 = scmp.eq.s32.totalorder %s25, 1
      %p195 = por %p193, %p194
      %p197 = scmp.ne.s32.totalorder %s182, %s196
      %p198 = scmp.eq.s32.totalorder %s25, 0
      %p199 = por %p197, %p198
      %s201 = sadd.s32 %s200, 1
      %p204 = scmp.eq.s32.totalorder %s19, 1
      %p205 = scmp.ne.s32.totalorder %s200, %s202
      %p206 = scmp.eq.s32.totalorder %s19, 0
      %p207 = por %p205, %p206
      %p208 = scmp.ne.s32.totalorder %s200, %s202
      %p209 = scmp.eq.s32.totalorder %s24, 1
      %p210 = por %p208, %p209
      %p211 = scmp.ne.s32.totalorder %s202, %s203
      %p212 = scmp.eq.s32.totalorder %s24, 0
      %p213 = por %p211, %p212
      %p214 = scmp.ne.s32.totalorder %s202, %s203
      %p215 = scmp.eq.s32.totalorder %s25, 1
      %p216 = por %p214, %p215
      %p218 = scmp.ne.s32.totalorder %s203, %s217
      %p219 = scmp.eq.s32.totalorder %s25, 0
      %p220 = por %p218, %p219
      %s222 = sadd.s32 %s221, 1
      %p225 = scmp.eq.s32.totalorder %s19, 1
      %p226 = scmp.ne.s32.totalorder %s221, %s223
      %p227 = scmp.eq.s32.totalorder %s19, 0
      %p228 = por %p226, %p227
      %p229 = scmp.ne.s32.totalorder %s221, %s223
      %p230 = scmp.eq.s32.totalorder %s24, 1
      %p231 = por %p229, %p230
      %p232 = scmp.ne.s32.totalorder %s223, %s224
      %p233 = scmp.eq.s32.totalorder %s24, 0
      %p234 = por %p232, %p233
      %p235 = scmp.ne.s32.totalorder %s223, %s224
      %p236 = scmp.eq.s32.totalorder %s25, 1
      %p237 = por %p235, %p236
      %p239 = scmp.ne.s32.totalorder %s224, %s238
      %p240 = scmp.eq.s32.totalorder %s25, 0
      %p241 = por %p239, %p240
      %s242 = ssub.s32 %s19, %s26
      %p243 = scmp.eq.s32.totalorder %s242, 0
      %s245 = sadd.s32 %s244, 1
      %s246 = scalar_select %p243, %s244, %s245
      %p249 = pneg %p243
      %p250 = scmp.eq.s32.totalorder %s19, 1
      %p251 = por %p249, %p250
      %p252 = scmp.ne.s32.totalorder %s244, %s247
      %p253 = scmp.eq.s32.totalorder %s19, 0
      %p254 = por %p252, %p253
      %p255 = scmp.ne.s32.totalorder %s244, %s247
      %p256 = scmp.eq.s32.totalorder %s24, 1
      %p257 = por %p255, %p256
      %p258 = scmp.ne.s32.totalorder %s247, %s248
      %p259 = scmp.eq.s32.totalorder %s24, 0
      %p260 = por %p258, %p259
      %p261 = scmp.ne.s32.totalorder %s247, %s248
      %p262 = scmp.eq.s32.totalorder %s25, 1
      %p263 = por %p261, %p262
      %p265 = scmp.ne.s32.totalorder %s248, %s264
      %p266 = scmp.eq.s32.totalorder %s25, 0
      %p267 = por %p265, %p266
      %p268 = scmp.le.s32.totalorder 1, %s19
      %p269 = scmp.lt.s32.totalorder %s19, 3
      %p270 = pnand %p268, %p269
      %p271 = pneg %p270
      // Predicated region
      $region9: #{basic_block_forward.1} parent=5 // pred_check
        _
      $region10: #{basic_block_forward.1} parent=5 // pred_check_branch
        %273 = sbr.rel (%p270) target = $region12
      $region11: #{basic_block_forward.1} parent=5 // pred_region
        %s274 = ssub.s32 %s19, 1
        // Predicated region
        $region13: #{basic_block_forward.1} parent=11 // pred_check
          %p275 = pneg %p66
        $region14: #{basic_block_forward.1} parent=11 // pred_check_branch
          %277 = sbr.rel (%p275) target = $region16
        $region15: #{basic_block_forward.1} parent=11 // pred_region
          _
        $region16: #{basic_block_forward.1} parent=11 // pred_fallthru
          _
        // Predicated region
        $region17: #{basic_block_forward.1} parent=11 // pred_check
          %p278 = pneg %p87
        $region18: #{basic_block_forward.1} parent=11 // pred_check_branch
          %280 = sbr.rel (%p278) target = $region20
        $region19: #{basic_block_forward.1} parent=11 // pred_region
          _
        $region20: #{basic_block_forward.1} parent=11 // pred_fallthru
          _
        // Predicated region
        $region21: #{basic_block_forward.1} parent=11 // pred_check
          %p281 = pneg %p108
        $region22: #{basic_block_forward.1} parent=11 // pred_check_branch
          %283 = sbr.rel (%p281) target = $region24
        $region23: #{basic_block_forward.1} parent=11 // pred_region
          _
        $region24: #{basic_block_forward.1} parent=11 // pred_fallthru
          _
        // Predicated region
        $region25: #{basic_block_forward.1} parent=11 // pred_check
          %p284 = pneg %p129
        $region26: #{basic_block_forward.1} parent=11 // pred_check_branch
          %286 = sbr.rel (%p284) target = $region28
        $region27: #{basic_block_forward.1} parent=11 // pred_region
          _
        $region28: #{basic_block_forward.1} parent=11 // pred_fallthru
          _
        // Predicated region
        $region29: #{basic_block_forward.1} parent=11 // pred_check
          %p287 = pneg %p150
        $region30: #{basic_block_forward.1} parent=11 // pred_check_branch
          %289 = sbr.rel (%p287) target = $region32
        $region31: #{basic_block_forward.1} parent=11 // pred_region
          _
        $region32: #{basic_block_forward.1} parent=11 // pred_fallthru
          _
        // Predicated region
        $region33: #{basic_block_forward.1} parent=11 // pred_check
          %p290 = pneg %p171
        $region34: #{basic_block_forward.1} parent=11 // pred_check_branch
          %292 = sbr.rel (%p290) target = $region36
        $region35: #{basic_block_forward.1} parent=11 // pred_region
          _
        $region36: #{basic_block_forward.1} parent=11 // pred_fallthru
          _
        // Predicated region
        $region37: #{basic_block_forward.1} parent=11 // pred_check
          %p293 = pneg %p192
        $region38: #{basic_block_forward.1} parent=11 // pred_check_branch
          %295 = sbr.rel (%p293) target = $region40
        $region39: #{basic_block_forward.1} parent=11 // pred_region
          _
        $region40: #{basic_block_forward.1} parent=11 // pred_fallthru
          _
        // Predicated region
        $region41: #{basic_block_forward.1} parent=11 // pred_check
          %p296 = pneg %p213
        $region42: #{basic_block_forward.1} parent=11 // pred_check_branch
          %298 = sbr.rel (%p296) target = $region44
        $region43: #{basic_block_forward.1} parent=11 // pred_region
          _
        $region44: #{basic_block_forward.1} parent=11 // pred_fallthru
          _
        // Predicated region
        $region45: #{basic_block_forward.1} parent=11 // pred_check
          %p299 = pneg %p234
        $region46: #{basic_block_forward.1} parent=11 // pred_check_branch
          %301 = sbr.rel (%p299) target = $region48
        $region47: #{basic_block_forward.1} parent=11 // pred_region
          _
        $region48: #{basic_block_forward.1} parent=11 // pred_fallthru
          _
      $region12: #{basic_block_forward.1} parent=5 // pred_fallthru
        _
      %p302 = scmp.lt.s32.totalorder %s19, 2
      // Predicated region
      $region49: #{basic_block_forward.1} parent=5 // pred_check
        %p303 = pneg %p302
      $region50: #{basic_block_forward.1} parent=5 // pred_check_branch
        %305 = sbr.rel (%p303) target = $region52
      $region51: #{basic_block_forward.1} parent=5 // pred_region
        // Predicated region
        $region53: #{basic_block_forward.1} parent=51 // pred_check
          %p306 = pneg %p39
        $region54: #{basic_block_forward.1} parent=51 // pred_check_branch
          %308 = sbr.rel (%p306) target = $region56
        $region55: #{basic_block_forward.1} parent=51 // pred_region
          %p309 = scmp.lt.s32.totalorder %s19, 1
          %s310 = scalar_select %p309, %s19, 1
          %s311 = smul.addr %s310, 54
          %s312 = smul.addr %s311, 8
          %s313 = scalar_lea.vmem %s0, %s312
        $region56: #{basic_block_forward.1} parent=51 // pred_fallthru
          _
      $region52: #{basic_block_forward.1} parent=5 // pred_fallthru
        _
      %p314 = scmp.le.s32.totalorder 1, %s19
      %p315 = scmp.lt.s32.totalorder %s19, 3
      %p316 = pnand %p314, %p315
      %p317 = pneg %p316
      // Predicated region
      $region57: #{basic_block_forward.1} parent=5 // pred_check
        _
      $region58: #{basic_block_forward.1} parent=5 // pred_check_branch
        %319 = sbr.rel (%p316) target = $region60
      $region59: #{basic_block_forward.1} parent=5 // pred_region
        %s320 = ssub.s32 %s19, 1
        %p321 = scmp.lt.s32.totalorder %s24, 1
        %s322 = scalar_select %p321, %s24, 1
        %s323 = smul.addr %s322, 54
        %s324 = smul.addr %s323, 8
        %s325 = scalar_lea.vmem %s0, %s324
        %p326 = pneg %p45
        %p327 = pneg %p42
        %p328 = pneg %p66
        %p329 = pneg %p63
        %p330 = pneg %p87
        %p331 = pneg %p84
        %p332 = pneg %p108
        %p333 = pneg %p105
        %p334 = pneg %p129
        %p335 = pneg %p126
        %p336 = pneg %p150
        %p337 = pneg %p147
        %p338 = pneg %p171
        %p339 = pneg %p168
        %p340 = pneg %p192
        %p341 = pneg %p189
        %p342 = pneg %p213
        %p343 = pneg %p210
        %p344 = pneg %p234
        %p345 = pneg %p231
        %p346 = pneg %p260
        %p347 = pneg %p257
        %s348 = sand.u32 %s247, 1
        %s349 = scalar_lea.sflag [#allocation4], %s348
        %s350 = sand.u32 %s247, 1
        %s351 = smul.addr %s350, 256
        %s352 = scalar_lea.vmem [#allocation3], %s351
        %p353 = scmp.lt.s32.totalorder %s24, 1
        %s354 = scalar_select %p353, %s24, 1
        %s355 = smul.addr %s354, 54
        %s356 = smul.addr %s355, 8
        %s357 = scalar_lea.vmem %s0, %s356
        %v358 = vld [vmem:[%s357] sm:$0xff]
        %v359 = vld [vmem:[%s357 + $0x8] sm:$0xff]
        %v360 = vld [vmem:[%s357 + $0x10] sm:$0x3]
        %v361 = vld [vmem:[%s357 + $0x18] sm:$0xff]
        %v362 = vld [vmem:[%s357 + $0x20] sm:$0xff]
        %v363 = vld [vmem:[%s357 + $0x28] sm:$0x3]
        %v364 = vld [vmem:[%s357 + $0x30] sm:$0xff]
        %v365 = vld [vmem:[%s357 + $0x38] sm:$0xff]
        %v366 = vld [vmem:[%s357 + $0x40] sm:$0x3]
        %v367 = vld [vmem:[%s357 + $0x48] sm:$0xff]
        %v368 = vld [vmem:[%s357 + $0x50] sm:$0xff]
        %v369 = vld [vmem:[%s357 + $0x58] sm:$0x3]
        %v370 = vld [vmem:[%s357 + $0x60] sm:$0xff]
        %v371 = vld [vmem:[%s357 + $0x68] sm:$0xff]
        %v372 = vld [vmem:[%s357 + $0x70] sm:$0x3]
        %v373 = vld [vmem:[%s357 + $0x78] sm:$0xff]
        %v374 = vld [vmem:[%s357 + $0x80] sm:$0xff]
        %v375 = vld [vmem:[%s357 + $0x88] sm:$0x3]
        %v376 = vld [vmem:[%s357 + $0x90] sm:$0xff]
        %v377 = vld [vmem:[%s357 + $0x98] sm:$0xff]
        %v378 = vld [vmem:[%s357 + $0xa0] sm:$0x3]
        %v379 = vld [vmem:[%s357 + $0xa8] sm:$0xff]
        %v380 = vld [vmem:[%s357 + $0xb0] sm:$0xff]
        %v381 = vld [vmem:[%s357 + $0xb8] sm:$0x3]
        %v382 = vld [vmem:[%s357 + $0xc0] sm:$0xff]
        %v383 = vld [vmem:[%s357 + $0xc8] sm:$0xff]
        %v384 = vld [vmem:[%s357 + $0xd0] sm:$0x3]
        %v385 = vld [vmem:[%s357 + $0xd8] sm:$0xff]
        %v386 = vld [vmem:[%s357 + $0xe0] sm:$0xff]
        %v387 = vld [vmem:[%s357 + $0xe8] sm:$0x3]
        %v388 = vld [vmem:[%s357 + $0xf0] sm:$0xff]
        %v389 = vld [vmem:[%s357 + $0xf8] sm:$0xff]
        %v390 = vld [vmem:[%s357 + $0x100] sm:$0x3]
        %v391 = vld [vmem:[%s357 + $0x108] sm:$0xff]
        %v392 = vld [vmem:[%s357 + $0x110] sm:$0xff]
        %v393 = vld [vmem:[%s357 + $0x118] sm:$0x3]
        %v394 = vld [vmem:[%s357 + $0x120] sm:$0xff]
        %v395 = vld [vmem:[%s357 + $0x128] sm:$0xff]
        %v396 = vld [vmem:[%s357 + $0x130] sm:$0x3]
        %v397 = vld [vmem:[%s357 + $0x138] sm:$0xff]
        %v398 = vld [vmem:[%s357 + $0x140] sm:$0xff]
        %v399 = vld [vmem:[%s357 + $0x148] sm:$0x3]
        %v400 = vld [vmem:[%s357 + $0x150] sm:$0xff]
        %v401 = vld [vmem:[%s357 + $0x158] sm:$0xff]
        %v402 = vld [vmem:[%s357 + $0x160] sm:$0x3]
        %v403 = vld [vmem:[%s357 + $0x168] sm:$0xff]
        %v404 = vld [vmem:[%s357 + $0x170] sm:$0xff]
        %v405 = vld [vmem:[%s357 + $0x178] sm:$0x3]
        %v406 = vld [vmem:[%s357 + $0x180] sm:$0xff]
        %v407 = vld [vmem:[%s357 + $0x188] sm:$0xff]
        %v408 = vld [vmem:[%s357 + $0x190] sm:$0x3]
        %v409 = vld [vmem:[%s357 + $0x198] sm:$0xff]
        %v410 = vld [vmem:[%s357 + $0x1a0] sm:$0xff]
        %v411 = vld [vmem:[%s357 + $0x1a8] sm:$0x3]
        %v412 = vld [vmem:[%s1] sm:$0xf]
        %vm461 = vcmask 1046528
        %v462 = vrot.slane %v358, 1
        %v463 = vrot.slane %v359, 1
        %v464 = vsel %vm461, %v462, %v463
        %v465 = vrot.slane %v360, 1
        %v466 = vsel %vm461, %v463, %v465
        %v467 = vrot.slane %v361, 1
        %v468 = vrot.slane %v362, 1
        %v469 = vsel %vm461, %v467, %v468
        %v470 = vrot.slane %v363, 1
        %v471 = vsel %vm461, %v468, %v470
        %v472 = vrot.slane %v364, 1
        %v473 = vrot.slane %v365, 1
        %v474 = vsel %vm461, %v472, %v473
        %v475 = vrot.slane %v366, 1
        %v476 = vsel %vm461, %v473, %v475
        %v477 = vrot.slane %v367, 1
        %v478 = vrot.slane %v368, 1
        %v479 = vsel %vm461, %v477, %v478
        %v480 = vrot.slane %v369, 1
        %v481 = vsel %vm461, %v478, %v480
        %v482 = vrot.slane %v370, 1
        %v483 = vrot.slane %v371, 1
        %v484 = vsel %vm461, %v482, %v483
        %v485 = vrot.slane %v372, 1
        %v486 = vsel %vm461, %v483, %v485
        %v487 = vrot.slane %v373, 1
        %v488 = vrot.slane %v374, 1
        %v489 = vsel %vm461, %v487, %v488
        %v490 = vrot.slane %v375, 1
        %v491 = vsel %vm461, %v488, %v490
        %v492 = vrot.slane %v376, 1
        %v493 = vrot.slane %v377, 1
        %v494 = vsel %vm461, %v492, %v493
        %v495 = vrot.slane %v378, 1
        %v496 = vsel %vm461, %v493, %v495
        %v497 = vrot.slane %v379, 1
        %v498 = vrot.slane %v380, 1
        %v499 = vsel %vm461, %v497, %v498
        %v500 = vrot.slane %v381, 1
        %v501 = vsel %vm461, %v498, %v500
        %v502 = vrot.slane %v382, 1
        %v503 = vrot.slane %v383, 1
        %v504 = vsel %vm461, %v502, %v503
        %v505 = vrot.slane %v384, 1
        %v506 = vsel %vm461, %v503, %v505
        %v507 = vrot.slane %v385, 1
        %v508 = vrot.slane %v386, 1
        %v509 = vsel %vm461, %v507, %v508
        %v510 = vrot.slane %v387, 1
        %v511 = vsel %vm461, %v508, %v510
        %v512 = vrot.slane %v388, 1
        %v513 = vrot.slane %v389, 1
        %v514 = vsel %vm461, %v512, %v513
        %v515 = vrot.slane %v390, 1
        %v516 = vsel %vm461, %v513, %v515
        %v517 = vrot.slane %v391, 1
        %v518 = vrot.slane %v392, 1
        %v519 = vsel %vm461, %v517, %v518
        %v520 = vrot.slane %v393, 1
        %v521 = vsel %vm461, %v518, %v520
        %v522 = vrot.slane %v394, 1
        %v523 = vrot.slane %v395, 1
        %v524 = vsel %vm461, %v522, %v523
        %v525 = vrot.slane %v396, 1
        %v526 = vsel %vm461, %v523, %v525
        %v527 = vrot.slane %v397, 1
        %v528 = vrot.slane %v398, 1
        %v529 = vsel %vm461, %v527, %v528
        %v530 = vrot.slane %v399, 1
        %v531 = vsel %vm461, %v528, %v530
        %v532 = vrot.slane %v400, 1
        %v533 = vrot.slane %v401, 1
        %v534 = vsel %vm461, %v532, %v533
        %v535 = vrot.slane %v402, 1
        %v536 = vsel %vm461, %v533, %v535
        %v537 = vrot.slane %v403, 1
        %v538 = vrot.slane %v404, 1
        %v539 = vsel %vm461, %v537, %v538
        %v540 = vrot.slane %v405, 1
        %v541 = vsel %vm461, %v538, %v540
        %s542 = scalar_lea.vmem %s1, 4
        %v543 = vld [vmem:[%s542] sm:$0xf]
        %vm544 = vcmask 31744
        %v545 = vsel %vm544, %v464, 0
        %v547 = vsel %vm544, %v466, 0
        %v549 = vsel %vm544, %v469, 0
        %v551 = vsel %vm544, %v471, 0
        %v553 = vsel %vm544, %v474, 0
        %v555 = vsel %vm544, %v476, 0
        %v557 = vsel %vm544, %v479, 0
        %v559 = vsel %vm544, %v481, 0
        %v561 = vsel %vm544, %v484, 0
        %v563 = vsel %vm544, %v486, 0
        %v565 = vsel %vm544, %v489, 0
        %v567 = vsel %vm544, %v491, 0
        %v569 = vsel %vm544, %v494, 0
        %v571 = vsel %vm544, %v496, 0
        %v573 = vsel %vm544, %v499, 0
        %v575 = vsel %vm544, %v501, 0
        %v577 = vsel %vm544, %v504, 0
        %v579 = vsel %vm544, %v506, 0
        %v581 = vsel %vm544, %v509, 0
        %v583 = vsel %vm544, %v511, 0
        %v585 = vsel %vm544, %v514, 0
        %v587 = vsel %vm544, %v516, 0
        %v589 = vsel %vm544, %v519, 0
        %v591 = vsel %vm544, %v521, 0
        %v593 = vsel %vm544, %v524, 0
        %v595 = vsel %vm544, %v526, 0
        %v597 = vsel %vm544, %v529, 0
        %v599 = vsel %vm544, %v531, 0
        %v601 = vsel %vm544, %v534, 0
        %v603 = vsel %vm544, %v536, 0
        %v605 = vsel %vm544, %v539, 0
        %v607 = vsel %vm544, %v541, 0
        %vm609 = vcmask 1043456
        %v611 = vsel %vm609, %v543, 0
        %613 = vmatprep.subr.mxu0 0.0
        %614 = vmatpush1.msra.mxu0 %v611
        %615 = vmatprep.subr.mxu0 0.0
        %616 = vmatpush1.msra.mxu0 0.0
        %617 = vmatprep.subr.mxu0 0.0
        %618 = vmatpush1.msra.mxu0 0.0
        %619 = vmatprep.subr.mxu0 0.0
        %620 = vmatpush1.msra.mxu0 0.0
        %621 = vmatprep.subr.mxu0 0.0
        %622 = vmatpush1.msra.mxu0 0.0
        %623 = vmatprep.subr.mxu0 0.0
        %624 = vmatpush1.msra.mxu0 0.0
        %625 = vmatprep.subr.mxu0 0.0
        %626 = vmatpush1.msra.mxu0 0.0
        %627 = vmatprep.subr.mxu0 0.0
        %628 = vmatpush1.msra.mxu0 0.0
        %629 = vmatprep.subr.mxu0 0.0
        %630 = vmatpush1.msra.mxu0 0.0
        %631 = vmatprep.subr.mxu0 0.0
        %632 = vmatpush1.msra.mxu0 0.0
        %633 = vmatprep.subr.mxu0 0.0
        %634 = vmatpush1.msra.mxu0 0.0
        %635 = vmatprep.subr.mxu0 0.0
        %636 = vmatpush1.msra.mxu0 0.0
        %637 = vmatprep.subr.mxu0 0.0
        %638 = vmatpush1.msra.mxu0 0.0
        %639 = vmatprep.subr.mxu0 0.0
        %640 = vmatpush1.msra.mxu0 0.0
        %641 = vmatprep.subr.mxu0 0.0
        %642 = vmatpush1.msra.mxu0 0.0
        %643 = vmatprep.subr.mxu0 0.0
        %644 = vmatpush1.msra.mxu0 0.0
        %645 = vmatprep.subr.mxu0 0.0
        %646 = vmatpush1.msra.mxu0 0.0
        %647 = vmatprep.subr.mxu0 0.0
        %648 = vmatpush1.msra.mxu0 0.0
        %649 = vmatprep.subr.mxu0 0.0
        %650 = vmatpush1.msra.mxu0 0.0
        %651 = vmatprep.subr.mxu0 0.0
        %652 = vmatpush1.msra.mxu0 0.0
        %653 = vmatprep.subr.mxu0 0.0
        %654 = vmatpush1.msra.mxu0 0.0
        %655 = vmatprep.subr.mxu0 0.0
        %656 = vmatpush1.msra.mxu0 0.0
        %657 = vmatprep.subr.mxu0 0.0
        %658 = vmatpush1.msra.mxu0 0.0
        %659 = vmatprep.subr.mxu0 0.0
        %660 = vmatpush1.msra.mxu0 0.0
        %661 = vmatprep.subr.mxu0 0.0
        %662 = vmatpush1.msra.mxu0 0.0
        %663 = vmatprep.subr.mxu0 0.0
        %664 = vmatpush1.msra.mxu0 0.0
        %665 = vmatprep.subr.mxu0 0.0
        %666 = vmatpush1.msra.mxu0 0.0
        %667 = vmatprep.subr.mxu0 0.0
        %668 = vmatpush1.msra.mxu0 0.0
        %669 = vmatprep.subr.mxu0 0.0
        %670 = vmatpush1.msra.mxu0 0.0
        %671 = vmatprep.subr.mxu0 0.0
        %672 = vmatpush1.msra.mxu0 0.0
        %673 = vmatprep.subr.mxu0 0.0
        %674 = vmatpush1.msra.mxu0 0.0
        %675 = vmatprep.subr.mxu0 0.0
        %676 = vmatpush1.msra.mxu0 0.0
        %677 = vmatprep.mubr.f32.mxu0 0.0
        %678 = vmatmul.mubr.f32.gmra.mrb[0].mxu0 %v545
        %v679 = vpop.f32.mrb[0].mxu0
        %v680 = vadd.f32 0.0, %v679
        %v681 = vpop.f32.mrb[0].mxu0
        %682 = vmatprep.mubr.f32.mxu0 0.0
        %683 = vmatmul.mubr.f32.gmra.mrb[0].mxu0 %v547
        %v684 = vpop.f32.mrb[0].mxu0
        %v685 = vadd.f32 0.0, %v684
        %v686 = vpop.f32.mrb[0].mxu0
        %687 = vmatprep.mubr.f32.mxu0 0.0
        %688 = vmatmul.mubr.f32.gmra.mrb[0].mxu0 %v549
        %v689 = vpop.f32.mrb[0].mxu0
        %v690 = vadd.f32 0.0, %v689
        %v691 = vpop.f32.mrb[0].mxu0
        %692 = vmatprep.mubr.f32.mxu0 0.0
        %693 = vmatmul.mubr.f32.gmra.mrb[0].mxu0 %v551
        %v694 = vpop.f32.mrb[0].mxu0
        %v695 = vadd.f32 0.0, %v694
        %v696 = vpop.f32.mrb[0].mxu0
        %697 = vmatprep.mubr.f32.mxu0 0.0
        %698 = vmatmul.mubr.f32.gmra.mrb[0].mxu0 %v553
        %v699 = vpop.f32.mrb[0].mxu0
        %v700 = vadd.f32 0.0, %v699
        %v701 = vpop.f32.mrb[0].mxu0
        %702 = vmatprep.mubr.f32.mxu0 0.0
        %703 = vmatmul.mubr.f32.gmra.mrb[0].mxu0 %v555
        %v704 = vpop.f32.mrb[0].mxu0
        %v705 = vadd.f32 0.0, %v704
        %v706 = vpop.f32.mrb[0].mxu0
        %707 = vmatprep.mubr.f32.mxu0 0.0
        %708 = vmatmul.mubr.f32.gmra.mrb[0].mxu0 %v557
        %v709 = vpop.f32.mrb[0].mxu0
        %v710 = vadd.f32 0.0, %v709
        %v711 = vpop.f32.mrb[0].mxu0
        %712 = vmatprep.mubr.f32.mxu0 0.0
        %713 = vmatmul.mubr.f32.gmra.mrb[0].mxu0 %v559
        %v714 = vpop.f32.mrb[0].mxu0
        %v715 = vadd.f32 0.0, %v714
        %v716 = vpop.f32.mrb[0].mxu0
        %717 = vmatprep.mubr.f32.mxu0 0.0
        %718 = vmatmul.mubr.f32.gmra.mrb[0].mxu0 %v561
        %v719 = vpop.f32.mrb[0].mxu0
        %v720 = vadd.f32 0.0, %v719
        %v721 = vpop.f32.mrb[0].mxu0
        %722 = vmatprep.mubr.f32.mxu0 0.0
        %723 = vmatmul.mubr.f32.gmra.mrb[0].mxu0 %v563
        %v724 = vpop.f32.mrb[0].mxu0
        %v725 = vadd.f32 0.0, %v724
        %v726 = vpop.f32.mrb[0].mxu0
        %727 = vmatprep.mubr.f32.mxu0 0.0
        %728 = vmatmul.mubr.f32.gmra.mrb[0].mxu0 %v565
        %v729 = vpop.f32.mrb[0].mxu0
        %v730 = vadd.f32 0.0, %v729
        %v731 = vpop.f32.mrb[0].mxu0
        %732 = vmatprep.mubr.f32.mxu0 0.0
        %733 = vmatmul.mubr.f32.gmra.mrb[0].mxu0 %v567
        %v734 = vpop.f32.mrb[0].mxu0
        %v735 = vadd.f32 0.0, %v734
        %v736 = vpop.f32.mrb[0].mxu0
        %737 = vmatprep.mubr.f32.mxu0 0.0
        %738 = vmatmul.mubr.f32.gmra.mrb[0].mxu0 %v569
        %v739 = vpop.f32.mrb[0].mxu0
        %v740 = vadd.f32 0.0, %v739
        %v741 = vpop.f32.mrb[0].mxu0
        %742 = vmatprep.mubr.f32.mxu0 0.0
        %743 = vmatmul.mubr.f32.gmra.mrb[0].mxu0 %v571
        %v744 = vpop.f32.mrb[0].mxu0
        %v745 = vadd.f32 0.0, %v744
        %v746 = vpop.f32.mrb[0].mxu0
        %747 = vmatprep.mubr.f32.mxu0 0.0
        %748 = vmatmul.mubr.f32.gmra.mrb[0].mxu0 %v573
        %v749 = vpop.f32.mrb[0].mxu0
        %v750 = vadd.f32 0.0, %v749
        %v751 = vpop.f32.mrb[0].mxu0
        %752 = vmatprep.mubr.f32.mxu0 0.0
        %753 = vmatmul.mubr.f32.gmra.mrb[0].mxu0 %v575
        %v754 = vpop.f32.mrb[0].mxu0
        %v755 = vadd.f32 0.0, %v754
        %v756 = vpop.f32.mrb[0].mxu0
        %757 = vmatprep.mubr.f32.mxu0 0.0
        %758 = vmatmul.mubr.f32.gmra.mrb[0].mxu0 %v577
        %v759 = vpop.f32.mrb[0].mxu0
        %v760 = vadd.f32 0.0, %v759
        %v761 = vpop.f32.mrb[0].mxu0
        %762 = vmatprep.mubr.f32.mxu0 0.0
        %763 = vmatmul.mubr.f32.gmra.mrb[0].mxu0 %v579
        %v764 = vpop.f32.mrb[0].mxu0
        %v765 = vadd.f32 0.0, %v764
        %v766 = vpop.f32.mrb[0].mxu0
        %767 = vmatprep.mubr.f32.mxu0 0.0
        %768 = vmatmul.mubr.f32.gmra.mrb[0].mxu0 %v581
        %v769 = vpop.f32.mrb[0].mxu0
        %v770 = vadd.f32 0.0, %v769
        %v771 = vpop.f32.mrb[0].mxu0
        %772 = vmatprep.mubr.f32.mxu0 0.0
        %773 = vmatmul.mubr.f32.gmra.mrb[0].mxu0 %v583
        %v774 = vpop.f32.mrb[0].mxu0
        %v775 = vadd.f32 0.0, %v774
        %v776 = vpop.f32.mrb[0].mxu0
        %777 = vmatprep.mubr.f32.mxu0 0.0
        %778 = vmatmul.mubr.f32.gmra.mrb[0].mxu0 %v585
        %v779 = vpop.f32.mrb[0].mxu0
        %v780 = vadd.f32 0.0, %v779
        %v781 = vpop.f32.mrb[0].mxu0
        %782 = vmatprep.mubr.f32.mxu0 0.0
        %783 = vmatmul.mubr.f32.gmra.mrb[0].mxu0 %v587
        %v784 = vpop.f32.mrb[0].mxu0
        %v785 = vadd.f32 0.0, %v784
        %v786 = vpop.f32.mrb[0].mxu0
        %787 = vmatprep.mubr.f32.mxu0 0.0
        %788 = vmatmul.mubr.f32.gmra.mrb[0].mxu0 %v589
        %v789 = vpop.f32.mrb[0].mxu0
        %v790 = vadd.f32 0.0, %v789
        %v791 = vpop.f32.mrb[0].mxu0
        %792 = vmatprep.mubr.f32.mxu0 0.0
        %793 = vmatmul.mubr.f32.gmra.mrb[0].mxu0 %v591
        %v794 = vpop.f32.mrb[0].mxu0
        %v795 = vadd.f32 0.0, %v794
        %v796 = vpop.f32.mrb[0].mxu0
        %797 = vmatprep.mubr.f32.mxu0 0.0
        %798 = vmatmul.mubr.f32.gmra.mrb[0].mxu0 %v593
        %v799 = vpop.f32.mrb[0].mxu0
        %v800 = vadd.f32 0.0, %v799
        %v801 = vpop.f32.mrb[0].mxu0
        %802 = vmatprep.mubr.f32.mxu0 0.0
        %803 = vmatmul.mubr.f32.gmra.mrb[0].mxu0 %v595
        %v804 = vpop.f32.mrb[0].mxu0
        %v805 = vadd.f32 0.0, %v804
        %v806 = vpop.f32.mrb[0].mxu0
        %807 = vmatprep.mubr.f32.mxu0 0.0
        %808 = vmatmul.mubr.f32.gmra.mrb[0].mxu0 %v597
        %v809 = vpop.f32.mrb[0].mxu0
        %v810 = vadd.f32 0.0, %v809
        %v811 = vpop.f32.mrb[0].mxu0
        %812 = vmatprep.mubr.f32.mxu0 0.0
        %813 = vmatmul.mubr.f32.gmra.mrb[0].mxu0 %v599
        %v814 = vpop.f32.mrb[0].mxu0
        %v815 = vadd.f32 0.0, %v814
        %v816 = vpop.f32.mrb[0].mxu0
        %817 = vmatprep.mubr.f32.mxu0 0.0
        %818 = vmatmul.mubr.f32.gmra.mrb[0].mxu0 %v601
        %v819 = vpop.f32.mrb[0].mxu0
        %v820 = vadd.f32 0.0, %v819
        %v821 = vpop.f32.mrb[0].mxu0
        %822 = vmatprep.mubr.f32.mxu0 0.0
        %823 = vmatmul.mubr.f32.gmra.mrb[0].mxu0 %v603
        %v824 = vpop.f32.mrb[0].mxu0
        %v825 = vadd.f32 0.0, %v824
        %v826 = vpop.f32.mrb[0].mxu0
        %827 = vmatprep.mubr.f32.mxu0 0.0
        %828 = vmatmul.mubr.f32.gmra.mrb[0].mxu0 %v605
        %v829 = vpop.f32.mrb[0].mxu0
        %v830 = vadd.f32 0.0, %v829
        %v831 = vpop.f32.mrb[0].mxu0
        %832 = vmatprep.mubr.f32.mxu0 0.0
        %833 = vmatmul.mubr.f32.gmra.mrb[0].mxu0 %v607
        %v834 = vpop.f32.mrb[0].mxu0
        %v835 = vadd.f32 0.0, %v834
        %v836 = vpop.f32.mrb[0].mxu0
        %837 = vdwg.mxu0
        %v838 = vsel %vm544, %v358, 0
        %v840 = vsel %vm544, %v359, 0
        %v842 = vsel %vm544, %v361, 0
        %v844 = vsel %vm544, %v362, 0
        %v846 = vsel %vm544, %v364, 0
        %v848 = vsel %vm544, %v365, 0
        %v850 = vsel %vm544, %v367, 0
        %v852 = vsel %vm544, %v368, 0
        %v854 = vsel %vm544, %v370, 0
        %v856 = vsel %vm544, %v371, 0
        %v858 = vsel %vm544, %v373, 0
        %v860 = vsel %vm544, %v374, 0
        %v862 = vsel %vm544, %v376, 0
        %v864 = vsel %vm544, %v377, 0
        %v866 = vsel %vm544, %v379, 0
        %v868 = vsel %vm544, %v380, 0
        %v870 = vsel %vm544, %v382, 0
        %v872 = vsel %vm544, %v383, 0
        %v874 = vsel %vm544, %v385, 0
        %v876 = vsel %vm544, %v386, 0
        %v878 = vsel %vm544, %v388, 0
        %v880 = vsel %vm544, %v389, 0
        %v882 = vsel %vm544, %v391, 0
        %v884 = vsel %vm544, %v392, 0
        %v886 = vsel %vm544, %v394, 0
        %v888 = vsel %vm544, %v395, 0
        %v890 = vsel %vm544, %v397, 0
        %v892 = vsel %vm544, %v398, 0
        %v894 = vsel %vm544, %v400, 0
        %v896 = vsel %vm544, %v401, 0
        %v898 = vsel %vm544, %v403, 0
        %v900 = vsel %vm544, %v404, 0
        %v903 = vsel %vm609, %v412, 0
        %905 = vmatprep.subr.mxu0 0.0
        %906 = vmatpush1.msra.mxu0 %v903
        %907 = vmatprep.subr.mxu0 0.0
        %908 = vmatpush1.msra.mxu0 0.0
        %909 = vmatprep.subr.mxu0 0.0
        %910 = vmatpush1.msra.mxu0 0.0
        %911 = vmatprep.subr.mxu0 0.0
        %912 = vmatpush1.msra.mxu0 0.0
        %913 = vmatprep.subr.mxu0 0.0
        %914 = vmatpush1.msra.mxu0 0.0
        %915 = vmatprep.subr.mxu0 0.0
        %916 = vmatpush1.msra.mxu0 0.0
        %917 = vmatprep.subr.mxu0 0.0
        %918 = vmatpush1.msra.mxu0 0.0
        %919 = vmatprep.subr.mxu0 0.0
        %920 = vmatpush1.msra.mxu0 0.0
        %921 = vmatprep.subr.mxu0 0.0
        %922 = vmatpush1.msra.mxu0 0.0
        %923 = vmatprep.subr.mxu0 0.0
        %924 = vmatpush1.msra.mxu0 0.0
        %925 = vmatprep.subr.mxu0 0.0
        %926 = vmatpush1.msra.mxu0 0.0
        %927 = vmatprep.subr.mxu0 0.0
        %928 = vmatpush1.msra.mxu0 0.0
        %929 = vmatprep.subr.mxu0 0.0
        %930 = vmatpush1.msra.mxu0 0.0
        %931 = vmatprep.subr.mxu0 0.0
        %932 = vmatpush1.msra.mxu0 0.0
        %933 = vmatprep.subr.mxu0 0.0
        %934 = vmatpush1.msra.mxu0 0.0
        %935 = vmatprep.subr.mxu0 0.0
        %936 = vmatpush1.msra.mxu0 0.0
        %937 = vmatprep.subr.mxu0 0.0
        %938 = vmatpush1.msra.mxu0 0.0
        %939 = vmatprep.subr.mxu0 0.0
        %940 = vmatpush1.msra.mxu0 0.0
        %941 = vmatprep.subr.mxu0 0.0
        %942 = vmatpush1.msra.mxu0 0.0
        %943 = vmatprep.subr.mxu0 0.0
        %944 = vmatpush1.msra.mxu0 0.0
        %945 = vmatprep.subr.mxu0 0.0
        %946 = vmatpush1.msra.mxu0 0.0
        %947 = vmatprep.subr.mxu0 0.0
        %948 = vmatpush1.msra.mxu0 0.0
        %949 = vmatprep.subr.mxu0 0.0
        %950 = vmatpush1.msra.mxu0 0.0
        %951 = vmatprep.subr.mxu0 0.0
        %952 = vmatpush1.msra.mxu0 0.0
        %953 = vmatprep.subr.mxu0 0.0
        %954 = vmatpush1.msra.mxu0 0.0
        %955 = vmatprep.subr.mxu0 0.0
        %956 = vmatpush1.msra.mxu0 0.0
        %957 = vmatprep.subr.mxu0 0.0
        %958 = vmatpush1.msra.mxu0 0.0
        %959 = vmatprep.subr.mxu0 0.0
        %960 = vmatpush1.msra.mxu0 0.0
        %961 = vmatprep.subr.mxu0 0.0
        %962 = vmatpush1.msra.mxu0 0.0
        %963 = vmatprep.subr.mxu0 0.0
        %964 = vmatpush1.msra.mxu0 0.0
        %965 = vmatprep.subr.mxu0 0.0
        %966 = vmatpush1.msra.mxu0 0.0
        %967 = vmatprep.subr.mxu0 0.0
        %968 = vmatpush1.msra.mxu0 0.0
        %969 = vmatprep.mubr.f32.mxu0 0.0
        %970 = vmatmul.mubr.f32.gmra.mrb[0].mxu0 %v838
        %v971 = vpop.f32.mrb[0].mxu0
        %v972 = vadd.f32 %v680, %v971
        %v973 = vpop.f32.mrb[0].mxu0
        %974 = vmatprep.mubr.f32.mxu0 0.0
        %975 = vmatmul.mubr.f32.gmra.mrb[0].mxu0 %v840
        %v976 = vpop.f32.mrb[0].mxu0
        %v977 = vadd.f32 %v685, %v976
        %v978 = vpop.f32.mrb[0].mxu0
        %979 = vmatprep.mubr.f32.mxu0 0.0
        %980 = vmatmul.mubr.f32.gmra.mrb[0].mxu0 %v842
        %v981 = vpop.f32.mrb[0].mxu0
        %v982 = vadd.f32 %v690, %v981
        %v983 = vpop.f32.mrb[0].mxu0
        %984 = vmatprep.mubr.f32.mxu0 0.0
        %985 = vmatmul.mubr.f32.gmra.mrb[0].mxu0 %v844
        %v986 = vpop.f32.mrb[0].mxu0
        %v987 = vadd.f32 %v695, %v986
        %v988 = vpop.f32.mrb[0].mxu0
        %989 = vmatprep.mubr.f32.mxu0 0.0
        %990 = vmatmul.mubr.f32.gmra.mrb[0].mxu0 %v846
        %v991 = vpop.f32.mrb[0].mxu0
        %v992 = vadd.f32 %v700, %v991
        %v993 = vpop.f32.mrb[0].mxu0
        %994 = vmatprep.mubr.f32.mxu0 0.0
        %995 = vmatmul.mubr.f32.gmra.mrb[0].mxu0 %v848
        %v996 = vpop.f32.mrb[0].mxu0
        %v997 = vadd.f32 %v705, %v996
        %v998 = vpop.f32.mrb[0].mxu0
        %999 = vmatprep.mubr.f32.mxu0 0.0
        %1000 = vmatmul.mubr.f32.gmra.mrb[0].mxu0 %v850
        %v1001 = vpop.f32.mrb[0].mxu0
        %v1002 = vadd.f32 %v710, %v1001
        %v1003 = vpop.f32.mrb[0].mxu0
        %1004 = vmatprep.mubr.f32.mxu0 0.0
        %1005 = vmatmul.mubr.f32.gmra.mrb[0].mxu0 %v852
        %v1006 = vpop.f32.mrb[0].mxu0
        %v1007 = vadd.f32 %v715, %v1006
        %v1008 = vpop.f32.mrb[0].mxu0
        %1009 = vmatprep.mubr.f32.mxu0 0.0
        %1010 = vmatmul.mubr.f32.gmra.mrb[0].mxu0 %v854
        %v1011 = vpop.f32.mrb[0].mxu0
        %v1012 = vadd.f32 %v720, %v1011
        %v1013 = vpop.f32.mrb[0].mxu0
        %1014 = vmatprep.mubr.f32.mxu0 0.0
        %1015 = vmatmul.mubr.f32.gmra.mrb[0].mxu0 %v856
        %v1016 = vpop.f32.mrb[0].mxu0
        %v1017 = vadd.f32 %v725, %v1016
        %v1018 = vpop.f32.mrb[0].mxu0
        %1019 = vmatprep.mubr.f32.mxu0 0.0
        %1020 = vmatmul.mubr.f32.gmra.mrb[0].mxu0 %v858
        %v1021 = vpop.f32.mrb[0].mxu0
        %v1022 = vadd.f32 %v730, %v1021
        %v1023 = vpop.f32.mrb[0].mxu0
        %1024 = vmatprep.mubr.f32.mxu0 0.0
        %1025 = vmatmul.mubr.f32.gmra.mrb[0].mxu0 %v860
        %v1026 = vpop.f32.mrb[0].mxu0
        %v1027 = vadd.f32 %v735, %v1026
        %v1028 = vpop.f32.mrb[0].mxu0
        %1029 = vmatprep.mubr.f32.mxu0 0.0
        %1030 = vmatmul.mubr.f32.gmra.mrb[0].mxu0 %v862
        %v1031 = vpop.f32.mrb[0].mxu0
        %v1032 = vadd.f32 %v740, %v1031
        %v1033 = vpop.f32.mrb[0].mxu0
        %1034 = vmatprep.mubr.f32.mxu0 0.0
        %1035 = vmatmul.mubr.f32.gmra.mrb[0].mxu0 %v864
        %v1036 = vpop.f32.mrb[0].mxu0
        %v1037 = vadd.f32 %v745, %v1036
        %v1038 = vpop.f32.mrb[0].mxu0
        %1039 = vmatprep.mubr.f32.mxu0 0.0
        %1040 = vmatmul.mubr.f32.gmra.mrb[0].mxu0 %v866
        %v1041 = vpop.f32.mrb[0].mxu0
        %v1042 = vadd.f32 %v750, %v1041
        %v1043 = vpop.f32.mrb[0].mxu0
        %1044 = vmatprep.mubr.f32.mxu0 0.0
        %1045 = vmatmul.mubr.f32.gmra.mrb[0].mxu0 %v868
        %v1046 = vpop.f32.mrb[0].mxu0
        %v1047 = vadd.f32 %v755, %v1046
        %v1048 = vpop.f32.mrb[0].mxu0
        %1049 = vmatprep.mubr.f32.mxu0 0.0
        %1050 = vmatmul.mubr.f32.gmra.mrb[0].mxu0 %v870
        %v1051 = vpop.f32.mrb[0].mxu0
        %v1052 = vadd.f32 %v760, %v1051
        %v1053 = vpop.f32.mrb[0].mxu0
        %1054 = vmatprep.mubr.f32.mxu0 0.0
        %1055 = vmatmul.mubr.f32.gmra.mrb[0].mxu0 %v872
        %v1056 = vpop.f32.mrb[0].mxu0
        %v1057 = vadd.f32 %v765, %v1056
        %v1058 = vpop.f32.mrb[0].mxu0
        %1059 = vmatprep.mubr.f32.mxu0 0.0
        %1060 = vmatmul.mubr.f32.gmra.mrb[0].mxu0 %v874
        %v1061 = vpop.f32.mrb[0].mxu0
        %v1062 = vadd.f32 %v770, %v1061
        %v1063 = vpop.f32.mrb[0].mxu0
        %1064 = vmatprep.mubr.f32.mxu0 0.0
        %1065 = vmatmul.mubr.f32.gmra.mrb[0].mxu0 %v876
        %v1066 = vpop.f32.mrb[0].mxu0
        %v1067 = vadd.f32 %v775, %v1066
        %v1068 = vpop.f32.mrb[0].mxu0
        %1069 = vmatprep.mubr.f32.mxu0 0.0
        %1070 = vmatmul.mubr.f32.gmra.mrb[0].mxu0 %v878
        %v1071 = vpop.f32.mrb[0].mxu0
        %v1072 = vadd.f32 %v780, %v1071
        %v1073 = vpop.f32.mrb[0].mxu0
        %1074 = vmatprep.mubr.f32.mxu0 0.0
        %1075 = vmatmul.mubr.f32.gmra.mrb[0].mxu0 %v880
        %v1076 = vpop.f32.mrb[0].mxu0
        %v1077 = vadd.f32 %v785, %v1076
        %v1078 = vpop.f32.mrb[0].mxu0
        %1079 = vmatprep.mubr.f32.mxu0 0.0
        %1080 = vmatmul.mubr.f32.gmra.mrb[0].mxu0 %v882
        %v1081 = vpop.f32.mrb[0].mxu0
        %v1082 = vadd.f32 %v790, %v1081
        %v1083 = vpop.f32.mrb[0].mxu0
        %1084 = vmatprep.mubr.f32.mxu0 0.0
        %1085 = vmatmul.mubr.f32.gmra.mrb[0].mxu0 %v884
        %v1086 = vpop.f32.mrb[0].mxu0
        %v1087 = vadd.f32 %v795, %v1086
        %v1088 = vpop.f32.mrb[0].mxu0
        %1089 = vmatprep.mubr.f32.mxu0 0.0
        %1090 = vmatmul.mubr.f32.gmra.mrb[0].mxu0 %v886
        %v1091 = vpop.f32.mrb[0].mxu0
        %v1092 = vadd.f32 %v800, %v1091
        %v1093 = vpop.f32.mrb[0].mxu0
        %1094 = vmatprep.mubr.f32.mxu0 0.0
        %1095 = vmatmul.mubr.f32.gmra.mrb[0].mxu0 %v888
        %v1096 = vpop.f32.mrb[0].mxu0
        %v1097 = vadd.f32 %v805, %v1096
        %v1098 = vpop.f32.mrb[0].mxu0
        %1099 = vmatprep.mubr.f32.mxu0 0.0
        %1100 = vmatmul.mubr.f32.gmra.mrb[0].mxu0 %v890
        %v1101 = vpop.f32.mrb[0].mxu0
        %v1102 = vadd.f32 %v810, %v1101
        %v1103 = vpop.f32.mrb[0].mxu0
        %1104 = vmatprep.mubr.f32.mxu0 0.0
        %1105 = vmatmul.mubr.f32.gmra.mrb[0].mxu0 %v892
        %v1106 = vpop.f32.mrb[0].mxu0
        %v1107 = vadd.f32 %v815, %v1106
        %v1108 = vpop.f32.mrb[0].mxu0
        %1109 = vmatprep.mubr.f32.mxu0 0.0
        %1110 = vmatmul.mubr.f32.gmra.mrb[0].mxu0 %v894
        %v1111 = vpop.f32.mrb[0].mxu0
        %v1112 = vadd.f32 %v820, %v1111
        %v1113 = vpop.f32.mrb[0].mxu0
        %1114 = vmatprep.mubr.f32.mxu0 0.0
        %1115 = vmatmul.mubr.f32.gmra.mrb[0].mxu0 %v896
        %v1116 = vpop.f32.mrb[0].mxu0
        %v1117 = vadd.f32 %v825, %v1116
        %v1118 = vpop.f32.mrb[0].mxu0
        %1119 = vmatprep.mubr.f32.mxu0 0.0
        %1120 = vmatmul.mubr.f32.gmra.mrb[0].mxu0 %v898
        %v1121 = vpop.f32.mrb[0].mxu0
        %v1122 = vadd.f32 %v830, %v1121
        %v1123 = vpop.f32.mrb[0].mxu0
        %1124 = vmatprep.mubr.f32.mxu0 0.0
        %1125 = vmatmul.mubr.f32.gmra.mrb[0].mxu0 %v900
        %v1126 = vpop.f32.mrb[0].mxu0
        %v1127 = vadd.f32 %v835, %v1126
        %v1128 = vpop.f32.mrb[0].mxu0
        %1129 = vdwg.mxu0
        %vm1130 = vcmask 1045504
        %v1131 = vrot.slane %v358, 2
        %v1132 = vrot.slane %v359, 2
        %v1133 = vsel %vm1130, %v1131, %v1132
        %v1134 = vrot.slane %v360, 2
        %v1135 = vsel %vm1130, %v1132, %v1134
        %v1136 = vrot.slane %v361, 2
        %v1137 = vrot.slane %v362, 2
        %v1138 = vsel %vm1130, %v1136, %v1137
        %v1139 = vrot.slane %v363, 2
        %v1140 = vsel %vm1130, %v1137, %v1139
        %v1141 = vrot.slane %v364, 2
        %v1142 = vrot.slane %v365, 2
        %v1143 = vsel %vm1130, %v1141, %v1142
        %v1144 = vrot.slane %v366, 2
        %v1145 = vsel %vm1130, %v1142, %v1144
        %v1146 = vrot.slane %v367, 2
        %v1147 = vrot.slane %v368, 2
        %v1148 = vsel %vm1130, %v1146, %v1147
        %v1149 = vrot.slane %v369, 2
        %v1150 = vsel %vm1130, %v1147, %v1149
        %v1151 = vrot.slane %v370, 2
        %v1152 = vrot.slane %v371, 2
        %v1153 = vsel %vm1130, %v1151, %v1152
        %v1154 = vrot.slane %v372, 2
        %v1155 = vsel %vm1130, %v1152, %v1154
        %v1156 = vrot.slane %v373, 2
        %v1157 = vrot.slane %v374, 2
        %v1158 = vsel %vm1130, %v1156, %v1157
        %v1159 = vrot.slane %v375, 2
        %v1160 = vsel %vm1130, %v1157, %v1159
        %v1161 = vrot.slane %v376, 2
        %v1162 = vrot.slane %v377, 2
        %v1163 = vsel %vm1130, %v1161, %v1162
        %v1164 = vrot.slane %v378, 2
        %v1165 = vsel %vm1130, %v1162, %v1164
        %v1166 = vrot.slane %v379, 2
        %v1167 = vrot.slane %v380, 2
        %v1168 = vsel %vm1130, %v1166, %v1167
        %v1169 = vrot.slane %v381, 2
        %v1170 = vsel %vm1130, %v1167, %v1169
        %v1171 = vrot.slane %v382, 2
        %v1172 = vrot.slane %v383, 2
        %v1173 = vsel %vm1130, %v1171, %v1172
        %v1174 = vrot.slane %v384, 2
        %v1175 = vsel %vm1130, %v1172, %v1174
        %v1176 = vrot.slane %v385, 2
        %v1177 = vrot.slane %v386, 2
        %v1178 = vsel %vm1130, %v1176, %v1177
        %v1179 = vrot.slane %v387, 2
        %v1180 = vsel %vm1130, %v1177, %v1179
        %v1181 = vrot.slane %v388, 2
        %v1182 = vrot.slane %v389, 2
        %v1183 = vsel %vm1130, %v1181, %v1182
        %v1184 = vrot.slane %v390, 2
        %v1185 = vsel %vm1130, %v1182, %v1184
        %v1186 = vrot.slane %v391, 2
        %v1187 = vrot.slane %v392, 2
        %v1188 = vsel %vm1130, %v1186, %v1187
        %v1189 = vrot.slane %v393, 2
        %v1190 = vsel %vm1130, %v1187, %v1189
        %v1191 = vrot.slane %v394, 2
        %v1192 = vrot.slane %v395, 2
        %v1193 = vsel %vm1130, %v1191, %v1192
        %v1194 = vrot.slane %v396, 2
        %v1195 = vsel %vm1130, %v1192, %v1194
        %v1196 = vrot.slane %v397, 2
        %v1197 = vrot.slane %v398, 2
        %v1198 = vsel %vm1130, %v1196, %v1197
        %v1199 = vrot.slane %v399, 2
        %v1200 = vsel %vm1130, %v1197, %v1199
        %v1201 = vrot.slane %v400, 2
        %v1202 = vrot.slane %v401, 2
        %v1203 = vsel %vm1130, %v1201, %v1202
        %v1204 = vrot.slane %v402, 2
        %v1205 = vsel %vm1130, %v1202, %v1204
        %v1206 = vrot.slane %v403, 2
        %v1207 = vrot.slane %v404, 2
        %v1208 = vsel %vm1130, %v1206, %v1207
        %v1209 = vrot.slane %v405, 2
        %v1210 = vsel %vm1130, %v1207, %v1209
        %s1211 = scalar_lea.vmem %s1, 8
        %v1212 = vld [vmem:[%s1211] sm:$0xf]
        %v1213 = vsel %vm544, %v1133, 0
        %v1215 = vsel %vm544, %v1135, 0
        %v1217 = vsel %vm544, %v1138, 0
        %v1219 = vsel %vm544, %v1140, 0
        %v1221 = vsel %vm544, %v1143, 0
        %v1223 = vsel %vm544, %v1145, 0
        %v1225 = vsel %vm544, %v1148, 0
        %v1227 = vsel %vm544, %v1150, 0
        %v1229 = vsel %vm544, %v1153, 0
        %v1231 = vsel %vm544, %v1155, 0
        %v1233 = vsel %vm544, %v1158, 0
        %v1235 = vsel %vm544, %v1160, 0
        %v1237 = vsel %vm544, %v1163, 0
        %v1239 = vsel %vm544, %v1165, 0
        %v1241 = vsel %vm544, %v1168, 0
        %v1243 = vsel %vm544, %v1170, 0
        %v1245 = vsel %vm544, %v1173, 0
        %v1247 = vsel %vm544, %v1175, 0
        %v1249 = vsel %vm544, %v1178, 0
        %v1251 = vsel %vm544, %v1180, 0
        %v1253 = vsel %vm544, %v1183, 0
        %v1255 = vsel %vm544, %v1185, 0
        %v1257 = vsel %vm544, %v1188, 0
        %v1259 = vsel %vm544, %v1190, 0
        %v1261 = vsel %vm544, %v1193, 0
        %v1263 = vsel %vm544, %v1195, 0
        %v1265 = vsel %vm544, %v1198, 0
        %v1267 = vsel %vm544, %v1200, 0
        %v1269 = vsel %vm544, %v1203, 0
        %v1271 = vsel %vm544, %v1205, 0
        %v1273 = vsel %vm544, %v1208, 0
        %v1275 = vsel %vm544, %v1210, 0
        %v1278 = vsel %vm609, %v1212, 0
        %1280 = vmatprep.subr.mxu0 0.0
        %1281 = vmatpush1.msra.mxu0 %v1278
        %1282 = vmatprep.subr.mxu0 0.0
        %1283 = vmatpush1.msra.mxu0 0.0
        %1284 = vmatprep.subr.mxu0 0.0
        %1285 = vmatpush1.msra.mxu0 0.0
        %1286 = vmatprep.subr.mxu0 0.0
        %1287 = vmatpush1.msra.mxu0 0.0
        %1288 = vmatprep.subr.mxu0 0.0
        %1289 = vmatpush1.msra.mxu0 0.0
        %1290 = vmatprep.subr.mxu0 0.0
        %1291 = vmatpush1.msra.mxu0 0.0
        %1292 = vmatprep.subr.mxu0 0.0
        %1293 = vmatpush1.msra.mxu0 0.0
        %1294 = vmatprep.subr.mxu0 0.0
        %1295 = vmatpush1.msra.mxu0 0.0
        %1296 = vmatprep.subr.mxu0 0.0
        %1297 = vmatpush1.msra.mxu0 0.0
        %1298 = vmatprep.subr.mxu0 0.0
        %1299 = vmatpush1.msra.mxu0 0.0
        %1300 = vmatprep.subr.mxu0 0.0
        %1301 = vmatpush1.msra.mxu0 0.0
        %1302 = vmatprep.subr.mxu0 0.0
        %1303 = vmatpush1.msra.mxu0 0.0
        %1304 = vmatprep.subr.mxu0 0.0
        %1305 = vmatpush1.msra.mxu0 0.0
        %1306 = vmatprep.subr.mxu0 0.0
        %1307 = vmatpush1.msra.mxu0 0.0
        %1308 = vmatprep.subr.mxu0 0.0
        %1309 = vmatpush1.msra.mxu0 0.0
        %1310 = vmatprep.subr.mxu0 0.0
        %1311 = vmatpush1.msra.mxu0 0.0
        %1312 = vmatprep.subr.mxu0 0.0
        %1313 = vmatpush1.msra.mxu0 0.0
        %1314 = vmatprep.subr.mxu0 0.0
        %1315 = vmatpush1.msra.mxu0 0.0
        %1316 = vmatprep.subr.mxu0 0.0
        %1317 = vmatpush1.msra.mxu0 0.0
        %1318 = vmatprep.subr.mxu0 0.0
        %1319 = vmatpush1.msra.mxu0 0.0
        %1320 = vmatprep.subr.mxu0 0.0
        %1321 = vmatpush1.msra.mxu0 0.0
        %1322 = vmatprep.subr.mxu0 0.0
        %1323 = vmatpush1.msra.mxu0 0.0
        %1324 = vmatprep.subr.mxu0 0.0
        %1325 = vmatpush1.msra.mxu0 0.0
        %1326 = vmatprep.subr.mxu0 0.0
        %1327 = vmatpush1.msra.mxu0 0.0
        %1328 = vmatprep.subr.mxu0 0.0
        %1329 = vmatpush1.msra.mxu0 0.0
        %1330 = vmatprep.subr.mxu0 0.0
        %1331 = vmatpush1.msra.mxu0 0.0
        %1332 = vmatprep.subr.mxu0 0.0
        %1333 = vmatpush1.msra.mxu0 0.0
        %1334 = vmatprep.subr.mxu0 0.0
        %1335 = vmatpush1.msra.mxu0 0.0
        %1336 = vmatprep.subr.mxu0 0.0
        %1337 = vmatpush1.msra.mxu0 0.0
        %1338 = vmatprep.subr.mxu0 0.0
        %1339 = vmatpush1.msra.mxu0 0.0
        %1340 = vmatprep.subr.mxu0 0.0
        %1341 = vmatpush1.msra.mxu0 0.0
        %1342 = vmatprep.subr.mxu0 0.0
        %1343 = vmatpush1.msra.mxu0 0.0
        %1344 = vmatprep.mubr.f32.mxu0 0.0
        %1345 = vmatmul.mubr.f32.gmra.mrb[0].mxu0 %v1213
        %v1346 = vpop.f32.mrb[0].mxu0
        %v1347 = vadd.f32 0.0, %v1346
        %v1348 = vpop.f32.mrb[0].mxu0
        %1349 = vmatprep.mubr.f32.mxu0 0.0
        %1350 = vmatmul.mubr.f32.gmra.mrb[0].mxu0 %v1215
        %v1351 = vpop.f32.mrb[0].mxu0
        %v1352 = vadd.f32 0.0, %v1351
        %v1353 = vpop.f32.mrb[0].mxu0
        %1354 = vmatprep.mubr.f32.mxu0 0.0
        %1355 = vmatmul.mubr.f32.gmra.mrb[0].mxu0 %v1217
        %v1356 = vpop.f32.mrb[0].mxu0
        %v1357 = vadd.f32 0.0, %v1356
        %v1358 = vpop.f32.mrb[0].mxu0
        %1359 = vmatprep.mubr.f32.mxu0 0.0
        %1360 = vmatmul.mubr.f32.gmra.mrb[0].mxu0 %v1219
        %v1361 = vpop.f32.mrb[0].mxu0
        %v1362 = vadd.f32 0.0, %v1361
        %v1363 = vpop.f32.mrb[0].mxu0
        %1364 = vmatprep.mubr.f32.mxu0 0.0
        %1365 = vmatmul.mubr.f32.gmra.mrb[0].mxu0 %v1221
        %v1366 = vpop.f32.mrb[0].mxu0
        %v1367 = vadd.f32 0.0, %v1366
        %v1368 = vpop.f32.mrb[0].mxu0
        %1369 = vmatprep.mubr.f32.mxu0 0.0
        %1370 = vmatmul.mubr.f32.gmra.mrb[0].mxu0 %v1223
        %v1371 = vpop.f32.mrb[0].mxu0
        %v1372 = vadd.f32 0.0, %v1371
        %v1373 = vpop.f32.mrb[0].mxu0
        %1374 = vmatprep.mubr.f32.mxu0 0.0
        %1375 = vmatmul.mubr.f32.gmra.mrb[0].mxu0 %v1225
        %v1376 = vpop.f32.mrb[0].mxu0
        %v1377 = vadd.f32 0.0, %v1376
        %v1378 = vpop.f32.mrb[0].mxu0
        %1379 = vmatprep.mubr.f32.mxu0 0.0
        %1380 = vmatmul.mubr.f32.gmra.mrb[0].mxu0 %v1227
        %v1381 = vpop.f32.mrb[0].mxu0
        %v1382 = vadd.f32 0.0, %v1381
        %v1383 = vpop.f32.mrb[0].mxu0
        %1384 = vmatprep.mubr.f32.mxu0 0.0
        %1385 = vmatmul.mubr.f32.gmra.mrb[0].mxu0 %v1229
        %v1386 = vpop.f32.mrb[0].mxu0
        %v1387 = vadd.f32 0.0, %v1386
        %v1388 = vpop.f32.mrb[0].mxu0
        %1389 = vmatprep.mubr.f32.mxu0 0.0
        %1390 = vmatmul.mubr.f32.gmra.mrb[0].mxu0 %v1231
        %v1391 = vpop.f32.mrb[0].mxu0
        %v1392 = vadd.f32 0.0, %v1391
        %v1393 = vpop.f32.mrb[0].mxu0
        %1394 = vmatprep.mubr.f32.mxu0 0.0
        %1395 = vmatmul.mubr.f32.gmra.mrb[0].mxu0 %v1233
        %v1396 = vpop.f32.mrb[0].mxu0
        %v1397 = vadd.f32 0.0, %v1396
        %v1398 = vpop.f32.mrb[0].mxu0
        %1399 = vmatprep.mubr.f32.mxu0 0.0
        %1400 = vmatmul.mubr.f32.gmra.mrb[0].mxu0 %v1235
        %v1401 = vpop.f32.mrb[0].mxu0
        %v1402 = vadd.f32 0.0, %v1401
        %v1403 = vpop.f32.mrb[0].mxu0
        %1404 = vmatprep.mubr.f32.mxu0 0.0
        %1405 = vmatmul.mubr.f32.gmra.mrb[0].mxu0 %v1237
        %v1406 = vpop.f32.mrb[0].mxu0
        %v1407 = vadd.f32 0.0, %v1406
        %v1408 = vpop.f32.mrb[0].mxu0
        %1409 = vmatprep.mubr.f32.mxu0 0.0
        %1410 = vmatmul.mubr.f32.gmra.mrb[0].mxu0 %v1239
        %v1411 = vpop.f32.mrb[0].mxu0
        %v1412 = vadd.f32 0.0, %v1411
        %v1413 = vpop.f32.mrb[0].mxu0
        %1414 = vmatprep.mubr.f32.mxu0 0.0
        %1415 = vmatmul.mubr.f32.gmra.mrb[0].mxu0 %v1241
        %v1416 = vpop.f32.mrb[0].mxu0
        %v1417 = vadd.f32 0.0, %v1416
        %v1418 = vpop.f32.mrb[0].mxu0
        %1419 = vmatprep.mubr.f32.mxu0 0.0
        %1420 = vmatmul.mubr.f32.gmra.mrb[0].mxu0 %v1243
        %v1421 = vpop.f32.mrb[0].mxu0
        %v1422 = vadd.f32 0.0, %v1421
        %v1423 = vpop.f32.mrb[0].mxu0
        %1424 = vmatprep.mubr.f32.mxu0 0.0
        %1425 = vmatmul.mubr.f32.gmra.mrb[0].mxu0 %v1245
        %v1426 = vpop.f32.mrb[0].mxu0
        %v1427 = vadd.f32 0.0, %v1426
        %v1428 = vpop.f32.mrb[0].mxu0
        %1429 = vmatprep.mubr.f32.mxu0 0.0
        %1430 = vmatmul.mubr.f32.gmra.mrb[0].mxu0 %v1247
        %v1431 = vpop.f32.mrb[0].mxu0
        %v1432 = vadd.f32 0.0, %v1431
        %v1433 = vpop.f32.mrb[0].mxu0
        %1434 = vmatprep.mubr.f32.mxu0 0.0
        %1435 = vmatmul.mubr.f32.gmra.mrb[0].mxu0 %v1249
        %v1436 = vpop.f32.mrb[0].mxu0
        %v1437 = vadd.f32 0.0, %v1436
        %v1438 = vpop.f32.mrb[0].mxu0
        %1439 = vmatprep.mubr.f32.mxu0 0.0
        %1440 = vmatmul.mubr.f32.gmra.mrb[0].mxu0 %v1251
        %v1441 = vpop.f32.mrb[0].mxu0
        %v1442 = vadd.f32 0.0, %v1441
        %v1443 = vpop.f32.mrb[0].mxu0
        %1444 = vmatprep.mubr.f32.mxu0 0.0
        %1445 = vmatmul.mubr.f32.gmra.mrb[0].mxu0 %v1253
        %v1446 = vpop.f32.mrb[0].mxu0
        %v1447 = vadd.f32 0.0, %v1446
        %v1448 = vpop.f32.mrb[0].mxu0
        %1449 = vmatprep.mubr.f32.mxu0 0.0
        %1450 = vmatmul.mubr.f32.gmra.mrb[0].mxu0 %v1255
        %v1451 = vpop.f32.mrb[0].mxu0
        %v1452 = vadd.f32 0.0, %v1451
        %v1453 = vpop.f32.mrb[0].mxu0
        %1454 = vmatprep.mubr.f32.mxu0 0.0
        %1455 = vmatmul.mubr.f32.gmra.mrb[0].mxu0 %v1257
        %v1456 = vpop.f32.mrb[0].mxu0
        %v1457 = vadd.f32 0.0, %v1456
        %v1458 = vpop.f32.mrb[0].mxu0
        %1459 = vmatprep.mubr.f32.mxu0 0.0
        %1460 = vmatmul.mubr.f32.gmra.mrb[0].mxu0 %v1259
        %v1461 = vpop.f32.mrb[0].mxu0
        %v1462 = vadd.f32 0.0, %v1461
        %v1463 = vpop.f32.mrb[0].mxu0
        %1464 = vmatprep.mubr.f32.mxu0 0.0
        %1465 = vmatmul.mubr.f32.gmra.mrb[0].mxu0 %v1261
        %v1466 = vpop.f32.mrb[0].mxu0
        %v1467 = vadd.f32 0.0, %v1466
        %v1468 = vpop.f32.mrb[0].mxu0
        %1469 = vmatprep.mubr.f32.mxu0 0.0
        %1470 = vmatmul.mubr.f32.gmra.mrb[0].mxu0 %v1263
        %v1471 = vpop.f32.mrb[0].mxu0
        %v1472 = vadd.f32 0.0, %v1471
        %v1473 = vpop.f32.mrb[0].mxu0
        %1474 = vmatprep.mubr.f32.mxu0 0.0
        %1475 = vmatmul.mubr.f32.gmra.mrb[0].mxu0 %v1265
        %v1476 = vpop.f32.mrb[0].mxu0
        %v1477 = vadd.f32 0.0, %v1476
        %v1478 = vpop.f32.mrb[0].mxu0
        %1479 = vmatprep.mubr.f32.mxu0 0.0
        %1480 = vmatmul.mubr.f32.gmra.mrb[0].mxu0 %v1267
        %v1481 = vpop.f32.mrb[0].mxu0
        %v1482 = vadd.f32 0.0, %v1481
        %v1483 = vpop.f32.mrb[0].mxu0
        %1484 = vmatprep.mubr.f32.mxu0 0.0
        %1485 = vmatmul.mubr.f32.gmra.mrb[0].mxu0 %v1269
        %v1486 = vpop.f32.mrb[0].mxu0
        %v1487 = vadd.f32 0.0, %v1486
        %v1488 = vpop.f32.mrb[0].mxu0
        %1489 = vmatprep.mubr.f32.mxu0 0.0
        %1490 = vmatmul.mubr.f32.gmra.mrb[0].mxu0 %v1271
        %v1491 = vpop.f32.mrb[0].mxu0
        %v1492 = vadd.f32 0.0, %v1491
        %v1493 = vpop.f32.mrb[0].mxu0
        %1494 = vmatprep.mubr.f32.mxu0 0.0
        %1495 = vmatmul.mubr.f32.gmra.mrb[0].mxu0 %v1273
        %v1496 = vpop.f32.mrb[0].mxu0
        %v1497 = vadd.f32 0.0, %v1496
        %v1498 = vpop.f32.mrb[0].mxu0
        %1499 = vmatprep.mubr.f32.mxu0 0.0
        %1500 = vmatmul.mubr.f32.gmra.mrb[0].mxu0 %v1275
        %v1501 = vpop.f32.mrb[0].mxu0
        %v1502 = vadd.f32 0.0, %v1501
        %v1503 = vpop.f32.mrb[0].mxu0
        %1504 = vdwg.mxu0
        %v1505 = vadd.f32 %v972, %v1347
        %v1506 = vadd.f32 %v977, %v1352
        %v1507 = vadd.f32 %v982, %v1357
        %v1508 = vadd.f32 %v987, %v1362
        %v1509 = vadd.f32 %v992, %v1367
        %v1510 = vadd.f32 %v997, %v1372
        %v1511 = vadd.f32 %v1002, %v1377
        %v1512 = vadd.f32 %v1007, %v1382
        %v1513 = vadd.f32 %v1012, %v1387
        %v1514 = vadd.f32 %v1017, %v1392
        %v1515 = vadd.f32 %v1022, %v1397
        %v1516 = vadd.f32 %v1027, %v1402
        %v1517 = vadd.f32 %v1032, %v1407
        %v1518 = vadd.f32 %v1037, %v1412
        %v1519 = vadd.f32 %v1042, %v1417
        %v1520 = vadd.f32 %v1047, %v1422
        %v1521 = vadd.f32 %v1052, %v1427
        %v1522 = vadd.f32 %v1057, %v1432
        %v1523 = vadd.f32 %v1062, %v1437
        %v1524 = vadd.f32 %v1067, %v1442
        %v1525 = vadd.f32 %v1072, %v1447
        %v1526 = vadd.f32 %v1077, %v1452
        %v1527 = vadd.f32 %v1082, %v1457
        %v1528 = vadd.f32 %v1087, %v1462
        %v1529 = vadd.f32 %v1092, %v1467
        %v1530 = vadd.f32 %v1097, %v1472
        %v1531 = vadd.f32 %v1102, %v1477
        %v1532 = vadd.f32 %v1107, %v1482
        %v1533 = vadd.f32 %v1112, %v1487
        %v1534 = vadd.f32 %v1117, %v1492
        %v1535 = vadd.f32 %v1122, %v1497
        %v1536 = vadd.f32 %v1127, %v1502
        %s1537 = scalar_lea.vmem %s1, 12
        %v1538 = vld [vmem:[%s1537] sm:$0xf]
        %v1540 = vsel %vm544, %v406, 0
        %v1543 = vsel %vm544, %v407, 0
        %v1546 = vsel %vm609, %v1538, 0
        %1548 = vmatprep.subr.mxu0 0.0
        %1549 = vmatpush1.msra.mxu0 %v1546
        %1550 = vmatprep.subr.mxu0 0.0
        %1551 = vmatpush1.msra.mxu0 0.0
        %1552 = vmatprep.subr.mxu0 0.0
        %1553 = vmatpush1.msra.mxu0 0.0
        %1554 = vmatprep.subr.mxu0 0.0
        %1555 = vmatpush1.msra.mxu0 0.0
        %1556 = vmatprep.subr.mxu0 0.0
        %1557 = vmatpush1.msra.mxu0 0.0
        %1558 = vmatprep.subr.mxu0 0.0
        %1559 = vmatpush1.msra.mxu0 0.0
        %1560 = vmatprep.subr.mxu0 0.0
        %1561 = vmatpush1.msra.mxu0 0.0
        %1562 = vmatprep.subr.mxu0 0.0
        %1563 = vmatpush1.msra.mxu0 0.0
        %1564 = vmatprep.subr.mxu0 0.0
        %1565 = vmatpush1.msra.mxu0 0.0
        %1566 = vmatprep.subr.mxu0 0.0
        %1567 = vmatpush1.msra.mxu0 0.0
        %1568 = vmatprep.subr.mxu0 0.0
        %1569 = vmatpush1.msra.mxu0 0.0
        %1570 = vmatprep.subr.mxu0 0.0
        %1571 = vmatpush1.msra.mxu0 0.0
        %1572 = vmatprep.subr.mxu0 0.0
        %1573 = vmatpush1.msra.mxu0 0.0
        %1574 = vmatprep.subr.mxu0 0.0
        %1575 = vmatpush1.msra.mxu0 0.0
        %1576 = vmatprep.subr.mxu0 0.0
        %1577 = vmatpush1.msra.mxu0 0.0
        %1578 = vmatprep.subr.mxu0 0.0
        %1579 = vmatpush1.msra.mxu0 0.0
        %1580 = vmatprep.subr.mxu0 0.0
        %1581 = vmatpush1.msra.mxu0 0.0
        %1582 = vmatprep.subr.mxu0 0.0
        %1583 = vmatpush1.msra.mxu0 0.0
        %1584 = vmatprep.subr.mxu0 0.0
        %1585 = vmatpush1.msra.mxu0 0.0
        %1586 = vmatprep.subr.mxu0 0.0
        %1587 = vmatpush1.msra.mxu0 0.0
        %1588 = vmatprep.subr.mxu0 0.0
        %1589 = vmatpush1.msra.mxu0 0.0
        %1590 = vmatprep.subr.mxu0 0.0
        %1591 = vmatpush1.msra.mxu0 0.0
        %1592 = vmatprep.subr.mxu0 0.0
        %1593 = vmatpush1.msra.mxu0 0.0
        %1594 = vmatprep.subr.mxu0 0.0
        %1595 = vmatpush1.msra.mxu0 0.0
        %1596 = vmatprep.subr.mxu0 0.0
        %1597 = vmatpush1.msra.mxu0 0.0
        %1598 = vmatprep.subr.mxu0 0.0
        %1599 = vmatpush1.msra.mxu0 0.0
        %1600 = vmatprep.subr.mxu0 0.0
        %1601 = vmatpush1.msra.mxu0 0.0
        %1602 = vmatprep.subr.mxu0 0.0
        %1603 = vmatpush1.msra.mxu0 0.0
        %1604 = vmatprep.subr.mxu0 0.0
        %1605 = vmatpush1.msra.mxu0 0.0
        %1606 = vmatprep.subr.mxu0 0.0
        %1607 = vmatpush1.msra.mxu0 0.0
        %1608 = vmatprep.subr.mxu0 0.0
        %1609 = vmatpush1.msra.mxu0 0.0
        %1610 = vmatprep.subr.mxu0 0.0
        %1611 = vmatpush1.msra.mxu0 0.0
        %1612 = vmatprep.mubr.f32.mxu0 0.0
        %1613 = vmatmul.mubr.f32.gmra.mrb[0].mxu0 %v842
        %v1614 = vpop.f32.mrb[0].mxu0
        %v1615 = vadd.f32 0.0, %v1614
        %v1616 = vpop.f32.mrb[0].mxu0
        %1617 = vmatprep.mubr.f32.mxu0 0.0
        %1618 = vmatmul.mubr.f32.gmra.mrb[0].mxu0 %v844
        %v1619 = vpop.f32.mrb[0].mxu0
        %v1620 = vadd.f32 0.0, %v1619
        %v1621 = vpop.f32.mrb[0].mxu0
        %1622 = vmatprep.mubr.f32.mxu0 0.0
        %1623 = vmatmul.mubr.f32.gmra.mrb[0].mxu0 %v846
        %v1624 = vpop.f32.mrb[0].mxu0
        %v1625 = vadd.f32 0.0, %v1624
        %v1626 = vpop.f32.mrb[0].mxu0
        %1627 = vmatprep.mubr.f32.mxu0 0.0
        %1628 = vmatmul.mubr.f32.gmra.mrb[0].mxu0 %v848
        %v1629 = vpop.f32.mrb[0].mxu0
        %v1630 = vadd.f32 0.0, %v1629
        %v1631 = vpop.f32.mrb[0].mxu0
        %1632 = vmatprep.mubr.f32.mxu0 0.0
        %1633 = vmatmul.mubr.f32.gmra.mrb[0].mxu0 %v850
        %v1634 = vpop.f32.mrb[0].mxu0
        %v1635 = vadd.f32 0.0, %v1634
        %v1636 = vpop.f32.mrb[0].mxu0
        %1637 = vmatprep.mubr.f32.mxu0 0.0
        %1638 = vmatmul.mubr.f32.gmra.mrb[0].mxu0 %v852
        %v1639 = vpop.f32.mrb[0].mxu0
        %v1640 = vadd.f32 0.0, %v1639
        %v1641 = vpop.f32.mrb[0].mxu0
        %1642 = vmatprep.mubr.f32.mxu0 0.0
        %1643 = vmatmul.mubr.f32.gmra.mrb[0].mxu0 %v854
        %v1644 = vpop.f32.mrb[0].mxu0
        %v1645 = vadd.f32 0.0, %v1644
        %v1646 = vpop.f32.mrb[0].mxu0
        %1647 = vmatprep.mubr.f32.mxu0 0.0
        %1648 = vmatmul.mubr.f32.gmra.mrb[0].mxu0 %v856
        %v1649 = vpop.f32.mrb[0].mxu0
        %v1650 = vadd.f32 0.0, %v1649
        %v1651 = vpop.f32.mrb[0].mxu0
        %1652 = vmatprep.mubr.f32.mxu0 0.0
        %1653 = vmatmul.mubr.f32.gmra.mrb[0].mxu0 %v858
        %v1654 = vpop.f32.mrb[0].mxu0
        %v1655 = vadd.f32 0.0, %v1654
        %v1656 = vpop.f32.mrb[0].mxu0
        %1657 = vmatprep.mubr.f32.mxu0 0.0
        %1658 = vmatmul.mubr.f32.gmra.mrb[0].mxu0 %v860
        %v1659 = vpop.f32.mrb[0].mxu0
        %v1660 = vadd.f32 0.0, %v1659
        %v1661 = vpop.f32.mrb[0].mxu0
        %1662 = vmatprep.mubr.f32.mxu0 0.0
        %1663 = vmatmul.mubr.f32.gmra.mrb[0].mxu0 %v862
        %v1664 = vpop.f32.mrb[0].mxu0
        %v1665 = vadd.f32 0.0, %v1664
        %v1666 = vpop.f32.mrb[0].mxu0
        %1667 = vmatprep.mubr.f32.mxu0 0.0
        %1668 = vmatmul.mubr.f32.gmra.mrb[0].mxu0 %v864
        %v1669 = vpop.f32.mrb[0].mxu0
        %v1670 = vadd.f32 0.0, %v1669
        %v1671 = vpop.f32.mrb[0].mxu0
        %1672 = vmatprep.mubr.f32.mxu0 0.0
        %1673 = vmatmul.mubr.f32.gmra.mrb[0].mxu0 %v866
        %v1674 = vpop.f32.mrb[0].mxu0
        %v1675 = vadd.f32 0.0, %v1674
        %v1676 = vpop.f32.mrb[0].mxu0
        %1677 = vmatprep.mubr.f32.mxu0 0.0
        %1678 = vmatmul.mubr.f32.gmra.mrb[0].mxu0 %v868
        %v1679 = vpop.f32.mrb[0].mxu0
        %v1680 = vadd.f32 0.0, %v1679
        %v1681 = vpop.f32.mrb[0].mxu0
        %1682 = vmatprep.mubr.f32.mxu0 0.0
        %1683 = vmatmul.mubr.f32.gmra.mrb[0].mxu0 %v870
        %v1684 = vpop.f32.mrb[0].mxu0
        %v1685 = vadd.f32 0.0, %v1684
        %v1686 = vpop.f32.mrb[0].mxu0
        %1687 = vmatprep.mubr.f32.mxu0 0.0
        %1688 = vmatmul.mubr.f32.gmra.mrb[0].mxu0 %v872
        %v1689 = vpop.f32.mrb[0].mxu0
        %v1690 = vadd.f32 0.0, %v1689
        %v1691 = vpop.f32.mrb[0].mxu0
        %1692 = vmatprep.mubr.f32.mxu0 0.0
        %1693 = vmatmul.mubr.f32.gmra.mrb[0].mxu0 %v874
        %v1694 = vpop.f32.mrb[0].mxu0
        %v1695 = vadd.f32 0.0, %v1694
        %v1696 = vpop.f32.mrb[0].mxu0
        %1697 = vmatprep.mubr.f32.mxu0 0.0
        %1698 = vmatmul.mubr.f32.gmra.mrb[0].mxu0 %v876
        %v1699 = vpop.f32.mrb[0].mxu0
        %v1700 = vadd.f32 0.0, %v1699
        %v1701 = vpop.f32.mrb[0].mxu0
        %1702 = vmatprep.mubr.f32.mxu0 0.0
        %1703 = vmatmul.mubr.f32.gmra.mrb[0].mxu0 %v878
        %v1704 = vpop.f32.mrb[0].mxu0
        %v1705 = vadd.f32 0.0, %v1704
        %v1706 = vpop.f32.mrb[0].mxu0
        %1707 = vmatprep.mubr.f32.mxu0 0.0
        %1708 = vmatmul.mubr.f32.gmra.mrb[0].mxu0 %v880
        %v1709 = vpop.f32.mrb[0].mxu0
        %v1710 = vadd.f32 0.0, %v1709
        %v1711 = vpop.f32.mrb[0].mxu0
        %1712 = vmatprep.mubr.f32.mxu0 0.0
        %1713 = vmatmul.mubr.f32.gmra.mrb[0].mxu0 %v882
        %v1714 = vpop.f32.mrb[0].mxu0
        %v1715 = vadd.f32 0.0, %v1714
        %v1716 = vpop.f32.mrb[0].mxu0
        %1717 = vmatprep.mubr.f32.mxu0 0.0
        %1718 = vmatmul.mubr.f32.gmra.mrb[0].mxu0 %v884
        %v1719 = vpop.f32.mrb[0].mxu0
        %v1720 = vadd.f32 0.0, %v1719
        %v1721 = vpop.f32.mrb[0].mxu0
        %1722 = vmatprep.mubr.f32.mxu0 0.0
        %1723 = vmatmul.mubr.f32.gmra.mrb[0].mxu0 %v886
        %v1724 = vpop.f32.mrb[0].mxu0
        %v1725 = vadd.f32 0.0, %v1724
        %v1726 = vpop.f32.mrb[0].mxu0
        %1727 = vmatprep.mubr.f32.mxu0 0.0
        %1728 = vmatmul.mubr.f32.gmra.mrb[0].mxu0 %v888
        %v1729 = vpop.f32.mrb[0].mxu0
        %v1730 = vadd.f32 0.0, %v1729
        %v1731 = vpop.f32.mrb[0].mxu0
        %1732 = vmatprep.mubr.f32.mxu0 0.0
        %1733 = vmatmul.mubr.f32.gmra.mrb[0].mxu0 %v890
        %v1734 = vpop.f32.mrb[0].mxu0
        %v1735 = vadd.f32 0.0, %v1734
        %v1736 = vpop.f32.mrb[0].mxu0
        %1737 = vmatprep.mubr.f32.mxu0 0.0
        %1738 = vmatmul.mubr.f32.gmra.mrb[0].mxu0 %v892
        %v1739 = vpop.f32.mrb[0].mxu0
        %v1740 = vadd.f32 0.0, %v1739
        %v1741 = vpop.f32.mrb[0].mxu0
        %1742 = vmatprep.mubr.f32.mxu0 0.0
        %1743 = vmatmul.mubr.f32.gmra.mrb[0].mxu0 %v894
        %v1744 = vpop.f32.mrb[0].mxu0
        %v1745 = vadd.f32 0.0, %v1744
        %v1746 = vpop.f32.mrb[0].mxu0
        %1747 = vmatprep.mubr.f32.mxu0 0.0
        %1748 = vmatmul.mubr.f32.gmra.mrb[0].mxu0 %v896
        %v1749 = vpop.f32.mrb[0].mxu0
        %v1750 = vadd.f32 0.0, %v1749
        %v1751 = vpop.f32.mrb[0].mxu0
        %1752 = vmatprep.mubr.f32.mxu0 0.0
        %1753 = vmatmul.mubr.f32.gmra.mrb[0].mxu0 %v898
        %v1754 = vpop.f32.mrb[0].mxu0
        %v1755 = vadd.f32 0.0, %v1754
        %v1756 = vpop.f32.mrb[0].mxu0
        %1757 = vmatprep.mubr.f32.mxu0 0.0
        %1758 = vmatmul.mubr.f32.gmra.mrb[0].mxu0 %v900
        %v1759 = vpop.f32.mrb[0].mxu0
        %v1760 = vadd.f32 0.0, %v1759
        %v1761 = vpop.f32.mrb[0].mxu0
        %1762 = vmatprep.mubr.f32.mxu0 0.0
        %1763 = vmatmul.mubr.f32.gmra.mrb[0].mxu0 %v1540
        %v1764 = vpop.f32.mrb[0].mxu0
        %v1765 = vadd.f32 0.0, %v1764
        %v1766 = vpop.f32.mrb[0].mxu0
        %1767 = vmatprep.mubr.f32.mxu0 0.0
        %1768 = vmatmul.mubr.f32.gmra.mrb[0].mxu0 %v1543
        %v1769 = vpop.f32.mrb[0].mxu0
        %v1770 = vadd.f32 0.0, %v1769
        %v1771 = vpop.f32.mrb[0].mxu0
        %1772 = vdwg.mxu0
        %v1773 = vadd.f32 %v1505, %v1615
        %v1774 = vadd.f32 %v1506, %v1620
        %v1775 = vadd.f32 %v1507, %v1625
        %v1776 = vadd.f32 %v1508, %v1630
        %v1777 = vadd.f32 %v1509, %v1635
        %v1778 = vadd.f32 %v1510, %v1640
        %v1779 = vadd.f32 %v1511, %v1645
        %v1780 = vadd.f32 %v1512, %v1650
        %v1781 = vadd.f32 %v1513, %v1655
        %v1782 = vadd.f32 %v1514, %v1660
        %v1783 = vadd.f32 %v1515, %v1665
        %v1784 = vadd.f32 %v1516, %v1670
        %v1785 = vadd.f32 %v1517, %v1675
        %v1786 = vadd.f32 %v1518, %v1680
        %v1787 = vadd.f32 %v1519, %v1685
        %v1788 = vadd.f32 %v1520, %v1690
        %v1789 = vadd.f32 %v1521, %v1695
        %v1790 = vadd.f32 %v1522, %v1700
        %v1791 = vadd.f32 %v1523, %v1705
        %v1792 = vadd.f32 %v1524, %v1710
        %v1793 = vadd.f32 %v1525, %v1715
        %v1794 = vadd.f32 %v1526, %v1720
        %v1795 = vadd.f32 %v1527, %v1725
        %v1796 = vadd.f32 %v1528, %v1730
        %v1797 = vadd.f32 %v1529, %v1735
        %v1798 = vadd.f32 %v1530, %v1740
        %v1799 = vadd.f32 %v1531, %v1745
        %v1800 = vadd.f32 %v1532, %v1750
        %v1801 = vadd.f32 %v1533, %v1755
        %v1802 = vadd.f32 %v1534, %v1760
        %v1803 = vadd.f32 %v1535, %v1765
        %v1804 = vadd.f32 %v1536, %v1770
        %v1806 = vrot.slane %v406, 1
        %v1807 = vrot.slane %v407, 1
        %v1808 = vsel %vm461, %v1806, %v1807
        %v1809 = vrot.slane %v408, 1
        %v1810 = vsel %vm461, %v1807, %v1809
        %s1811 = scalar_lea.vmem %s1, 16
        %v1812 = vld [vmem:[%s1811] sm:$0xf]
        %v1813 = vsel %vm544, %v1808, 0
        %v1815 = vsel %vm544, %v1810, 0
        %v1818 = vsel %vm609, %v1812, 0
        %1820 = vmatprep.subr.mxu0 0.0
        %1821 = vmatpush1.msra.mxu0 %v1818
        %1822 = vmatprep.subr.mxu0 0.0
        %1823 = vmatpush1.msra.mxu0 0.0
        %1824 = vmatprep.subr.mxu0 0.0
        %1825 = vmatpush1.msra.mxu0 0.0
        %1826 = vmatprep.subr.mxu0 0.0
        %1827 = vmatpush1.msra.mxu0 0.0
        %1828 = vmatprep.subr.mxu0 0.0
        %1829 = vmatpush1.msra.mxu0 0.0
        %1830 = vmatprep.subr.mxu0 0.0
        %1831 = vmatpush1.msra.mxu0 0.0
        %1832 = vmatprep.subr.mxu0 0.0
        %1833 = vmatpush1.msra.mxu0 0.0
        %1834 = vmatprep.subr.mxu0 0.0
        %1835 = vmatpush1.msra.mxu0 0.0
        %1836 = vmatprep.subr.mxu0 0.0
        %1837 = vmatpush1.msra.mxu0 0.0
        %1838 = vmatprep.subr.mxu0 0.0
        %1839 = vmatpush1.msra.mxu0 0.0
        %1840 = vmatprep.subr.mxu0 0.0
        %1841 = vmatpush1.msra.mxu0 0.0
        %1842 = vmatprep.subr.mxu0 0.0
        %1843 = vmatpush1.msra.mxu0 0.0
        %1844 = vmatprep.subr.mxu0 0.0
        %1845 = vmatpush1.msra.mxu0 0.0
        %1846 = vmatprep.subr.mxu0 0.0
        %1847 = vmatpush1.msra.mxu0 0.0
        %1848 = vmatprep.subr.mxu0 0.0
        %1849 = vmatpush1.msra.mxu0 0.0
        %1850 = vmatprep.subr.mxu0 0.0
        %1851 = vmatpush1.msra.mxu0 0.0
        %1852 = vmatprep.subr.mxu0 0.0
        %1853 = vmatpush1.msra.mxu0 0.0
        %1854 = vmatprep.subr.mxu0 0.0
        %1855 = vmatpush1.msra.mxu0 0.0
        %1856 = vmatprep.subr.mxu0 0.0
        %1857 = vmatpush1.msra.mxu0 0.0
        %1858 = vmatprep.subr.mxu0 0.0
        %1859 = vmatpush1.msra.mxu0 0.0
        %1860 = vmatprep.subr.mxu0 0.0
        %1861 = vmatpush1.msra.mxu0 0.0
        %1862 = vmatprep.subr.mxu0 0.0
        %1863 = vmatpush1.msra.mxu0 0.0
        %1864 = vmatprep.subr.mxu0 0.0
        %1865 = vmatpush1.msra.mxu0 0.0
        %1866 = vmatprep.subr.mxu0 0.0
        %1867 = vmatpush1.msra.mxu0 0.0
        %1868 = vmatprep.subr.mxu0 0.0
        %1869 = vmatpush1.msra.mxu0 0.0
        %1870 = vmatprep.subr.mxu0 0.0
        %1871 = vmatpush1.msra.mxu0 0.0
        %1872 = vmatprep.subr.mxu0 0.0
        %1873 = vmatpush1.msra.mxu0 0.0
        %1874 = vmatprep.subr.mxu0 0.0
        %1875 = vmatpush1.msra.mxu0 0.0
        %1876 = vmatprep.subr.mxu0 0.0
        %1877 = vmatpush1.msra.mxu0 0.0
        %1878 = vmatprep.subr.mxu0 0.0
        %1879 = vmatpush1.msra.mxu0 0.0
        %1880 = vmatprep.subr.mxu0 0.0
        %1881 = vmatpush1.msra.mxu0 0.0
        %1882 = vmatprep.subr.mxu0 0.0
        %1883 = vmatpush1.msra.mxu0 0.0
        %1884 = vmatprep.mubr.f32.mxu0 0.0
        %1885 = vmatmul.mubr.f32.gmra.mrb[0].mxu0 %v549
        %v1886 = vpop.f32.mrb[0].mxu0
        %v1887 = vadd.f32 0.0, %v1886
        %v1888 = vpop.f32.mrb[0].mxu0
        %1889 = vmatprep.mubr.f32.mxu0 0.0
        %1890 = vmatmul.mubr.f32.gmra.mrb[0].mxu0 %v551
        %v1891 = vpop.f32.mrb[0].mxu0
        %v1892 = vadd.f32 0.0, %v1891
        %v1893 = vpop.f32.mrb[0].mxu0
        %1894 = vmatprep.mubr.f32.mxu0 0.0
        %1895 = vmatmul.mubr.f32.gmra.mrb[0].mxu0 %v553
        %v1896 = vpop.f32.mrb[0].mxu0
        %v1897 = vadd.f32 0.0, %v1896
        %v1898 = vpop.f32.mrb[0].mxu0
        %1899 = vmatprep.mubr.f32.mxu0 0.0
        %1900 = vmatmul.mubr.f32.gmra.mrb[0].mxu0 %v555
        %v1901 = vpop.f32.mrb[0].mxu0
        %v1902 = vadd.f32 0.0, %v1901
        %v1903 = vpop.f32.mrb[0].mxu0
        %1904 = vmatprep.mubr.f32.mxu0 0.0
        %1905 = vmatmul.mubr.f32.gmra.mrb[0].mxu0 %v557
        %v1906 = vpop.f32.mrb[0].mxu0
        %v1907 = vadd.f32 0.0, %v1906
        %v1908 = vpop.f32.mrb[0].mxu0
        %1909 = vmatprep.mubr.f32.mxu0 0.0
        %1910 = vmatmul.mubr.f32.gmra.mrb[0].mxu0 %v559
        %v1911 = vpop.f32.mrb[0].mxu0
        %v1912 = vadd.f32 0.0, %v1911
        %v1913 = vpop.f32.mrb[0].mxu0
        %1914 = vmatprep.mubr.f32.mxu0 0.0
        %1915 = vmatmul.mubr.f32.gmra.mrb[0].mxu0 %v561
        %v1916 = vpop.f32.mrb[0].mxu0
        %v1917 = vadd.f32 0.0, %v1916
        %v1918 = vpop.f32.mrb[0].mxu0
        %1919 = vmatprep.mubr.f32.mxu0 0.0
        %1920 = vmatmul.mubr.f32.gmra.mrb[0].mxu0 %v563
        %v1921 = vpop.f32.mrb[0].mxu0
        %v1922 = vadd.f32 0.0, %v1921
        %v1923 = vpop.f32.mrb[0].mxu0
        %1924 = vmatprep.mubr.f32.mxu0 0.0
        %1925 = vmatmul.mubr.f32.gmra.mrb[0].mxu0 %v565
        %v1926 = vpop.f32.mrb[0].mxu0
        %v1927 = vadd.f32 0.0, %v1926
        %v1928 = vpop.f32.mrb[0].mxu0
        %1929 = vmatprep.mubr.f32.mxu0 0.0
        %1930 = vmatmul.mubr.f32.gmra.mrb[0].mxu0 %v567
        %v1931 = vpop.f32.mrb[0].mxu0
        %v1932 = vadd.f32 0.0, %v1931
        %v1933 = vpop.f32.mrb[0].mxu0
        %1934 = vmatprep.mubr.f32.mxu0 0.0
        %1935 = vmatmul.mubr.f32.gmra.mrb[0].mxu0 %v569
        %v1936 = vpop.f32.mrb[0].mxu0
        %v1937 = vadd.f32 0.0, %v1936
        %v1938 = vpop.f32.mrb[0].mxu0
        %1939 = vmatprep.mubr.f32.mxu0 0.0
        %1940 = vmatmul.mubr.f32.gmra.mrb[0].mxu0 %v571
        %v1941 = vpop.f32.mrb[0].mxu0
        %v1942 = vadd.f32 0.0, %v1941
        %v1943 = vpop.f32.mrb[0].mxu0
        %1944 = vmatprep.mubr.f32.mxu0 0.0
        %1945 = vmatmul.mubr.f32.gmra.mrb[0].mxu0 %v573
        %v1946 = vpop.f32.mrb[0].mxu0
        %v1947 = vadd.f32 0.0, %v1946
        %v1948 = vpop.f32.mrb[0].mxu0
        %1949 = vmatprep.mubr.f32.mxu0 0.0
        %1950 = vmatmul.mubr.f32.gmra.mrb[0].mxu0 %v575
        %v1951 = vpop.f32.mrb[0].mxu0
        %v1952 = vadd.f32 0.0, %v1951
        %v1953 = vpop.f32.mrb[0].mxu0
        %1954 = vmatprep.mubr.f32.mxu0 0.0
        %1955 = vmatmul.mubr.f32.gmra.mrb[0].mxu0 %v577
        %v1956 = vpop.f32.mrb[0].mxu0
        %v1957 = vadd.f32 0.0, %v1956
        %v1958 = vpop.f32.mrb[0].mxu0
        %1959 = vmatprep.mubr.f32.mxu0 0.0
        %1960 = vmatmul.mubr.f32.gmra.mrb[0].mxu0 %v579
        %v1961 = vpop.f32.mrb[0].mxu0
        %v1962 = vadd.f32 0.0, %v1961
        %v1963 = vpop.f32.mrb[0].mxu0
        %1964 = vmatprep.mubr.f32.mxu0 0.0
        %1965 = vmatmul.mubr.f32.gmra.mrb[0].mxu0 %v581
        %v1966 = vpop.f32.mrb[0].mxu0
        %v1967 = vadd.f32 0.0, %v1966
        %v1968 = vpop.f32.mrb[0].mxu0
        %1969 = vmatprep.mubr.f32.mxu0 0.0
        %1970 = vmatmul.mubr.f32.gmra.mrb[0].mxu0 %v583
        %v1971 = vpop.f32.mrb[0].mxu0
        %v1972 = vadd.f32 0.0, %v1971
        %v1973 = vpop.f32.mrb[0].mxu0
        %1974 = vmatprep.mubr.f32.mxu0 0.0
        %1975 = vmatmul.mubr.f32.gmra.mrb[0].mxu0 %v585
        %v1976 = vpop.f32.mrb[0].mxu0
        %v1977 = vadd.f32 0.0, %v1976
        %v1978 = vpop.f32.mrb[0].mxu0
        %1979 = vmatprep.mubr.f32.mxu0 0.0
        %1980 = vmatmul.mubr.f32.gmra.mrb[0].mxu0 %v587
        %v1981 = vpop.f32.mrb[0].mxu0
        %v1982 = vadd.f32 0.0, %v1981
        %v1983 = vpop.f32.mrb[0].mxu0
        %1984 = vmatprep.mubr.f32.mxu0 0.0
        %1985 = vmatmul.mubr.f32.gmra.mrb[0].mxu0 %v589
        %v1986 = vpop.f32.mrb[0].mxu0
        %v1987 = vadd.f32 0.0, %v1986
        %v1988 = vpop.f32.mrb[0].mxu0
        %1989 = vmatprep.mubr.f32.mxu0 0.0
        %1990 = vmatmul.mubr.f32.gmra.mrb[0].mxu0 %v591
        %v1991 = vpop.f32.mrb[0].mxu0
        %v1992 = vadd.f32 0.0, %v1991
        %v1993 = vpop.f32.mrb[0].mxu0
        %1994 = vmatprep.mubr.f32.mxu0 0.0
        %1995 = vmatmul.mubr.f32.gmra.mrb[0].mxu0 %v593
        %v1996 = vpop.f32.mrb[0].mxu0
        %v1997 = vadd.f32 0.0, %v1996
        %v1998 = vpop.f32.mrb[0].mxu0
        %1999 = vmatprep.mubr.f32.mxu0 0.0
        %2000 = vmatmul.mubr.f32.gmra.mrb[0].mxu0 %v595
        %v2001 = vpop.f32.mrb[0].mxu0
        %v2002 = vadd.f32 0.0, %v2001
        %v2003 = vpop.f32.mrb[0].mxu0
        %2004 = vmatprep.mubr.f32.mxu0 0.0
        %2005 = vmatmul.mubr.f32.gmra.mrb[0].mxu0 %v597
        %v2006 = vpop.f32.mrb[0].mxu0
        %v2007 = vadd.f32 0.0, %v2006
        %v2008 = vpop.f32.mrb[0].mxu0
        %2009 = vmatprep.mubr.f32.mxu0 0.0
        %2010 = vmatmul.mubr.f32.gmra.mrb[0].mxu0 %v599
        %v2011 = vpop.f32.mrb[0].mxu0
        %v2012 = vadd.f32 0.0, %v2011
        %v2013 = vpop.f32.mrb[0].mxu0
        %2014 = vmatprep.mubr.f32.mxu0 0.0
        %2015 = vmatmul.mubr.f32.gmra.mrb[0].mxu0 %v601
        %v2016 = vpop.f32.mrb[0].mxu0
        %v2017 = vadd.f32 0.0, %v2016
        %v2018 = vpop.f32.mrb[0].mxu0
        %2019 = vmatprep.mubr.f32.mxu0 0.0
        %2020 = vmatmul.mubr.f32.gmra.mrb[0].mxu0 %v603
        %v2021 = vpop.f32.mrb[0].mxu0
        %v2022 = vadd.f32 0.0, %v2021
        %v2023 = vpop.f32.mrb[0].mxu0
        %2024 = vmatprep.mubr.f32.mxu0 0.0
        %2025 = vmatmul.mubr.f32.gmra.mrb[0].mxu0 %v605
        %v2026 = vpop.f32.mrb[0].mxu0
        %v2027 = vadd.f32 0.0, %v2026
        %v2028 = vpop.f32.mrb[0].mxu0
        %2029 = vmatprep.mubr.f32.mxu0 0.0
        %2030 = vmatmul.mubr.f32.gmra.mrb[0].mxu0 %v607
        %v2031 = vpop.f32.mrb[0].mxu0
        %v2032 = vadd.f32 0.0, %v2031
        %v2033 = vpop.f32.mrb[0].mxu0
        %2034 = vmatprep.mubr.f32.mxu0 0.0
        %2035 = vmatmul.mubr.f32.gmra.mrb[0].mxu0 %v1813
        %v2036 = vpop.f32.mrb[0].mxu0
        %v2037 = vadd.f32 0.0, %v2036
        %v2038 = vpop.f32.mrb[0].mxu0
        %2039 = vmatprep.mubr.f32.mxu0 0.0
        %2040 = vmatmul.mubr.f32.gmra.mrb[0].mxu0 %v1815
        %v2041 = vpop.f32.mrb[0].mxu0
        %v2042 = vadd.f32 0.0, %v2041
        %v2043 = vpop.f32.mrb[0].mxu0
        %2044 = vdwg.mxu0
        %v2045 = vadd.f32 %v1773, %v1887
        %v2046 = vadd.f32 %v1774, %v1892
        %v2047 = vadd.f32 %v1775, %v1897
        %v2048 = vadd.f32 %v1776, %v1902
        %v2049 = vadd.f32 %v1777, %v1907
        %v2050 = vadd.f32 %v1778, %v1912
        %v2051 = vadd.f32 %v1779, %v1917
        %v2052 = vadd.f32 %v1780, %v1922
        %v2053 = vadd.f32 %v1781, %v1927
        %v2054 = vadd.f32 %v1782, %v1932
        %v2055 = vadd.f32 %v1783, %v1937
        %v2056 = vadd.f32 %v1784, %v1942
        %v2057 = vadd.f32 %v1785, %v1947
        %v2058 = vadd.f32 %v1786, %v1952
        %v2059 = vadd.f32 %v1787, %v1957
        %v2060 = vadd.f32 %v1788, %v1962
        %v2061 = vadd.f32 %v1789, %v1967
        %v2062 = vadd.f32 %v1790, %v1972
        %v2063 = vadd.f32 %v1791, %v1977
        %v2064 = vadd.f32 %v1792, %v1982
        %v2065 = vadd.f32 %v1793, %v1987
        %v2066 = vadd.f32 %v1794, %v1992
        %v2067 = vadd.f32 %v1795, %v1997
        %v2068 = vadd.f32 %v1796, %v2002
        %v2069 = vadd.f32 %v1797, %v2007
        %v2070 = vadd.f32 %v1798, %v2012
        %v2071 = vadd.f32 %v1799, %v2017
        %v2072 = vadd.f32 %v1800, %v2022
        %v2073 = vadd.f32 %v1801, %v2027
        %v2074 = vadd.f32 %v1802, %v2032
        %v2075 = vadd.f32 %v1803, %v2037
        %v2076 = vadd.f32 %v1804, %v2042
        %v2077 = vrot.slane %v406, 2
        %v2078 = vrot.slane %v407, 2
        %v2079 = vsel %vm1130, %v2077, %v2078
        %v2080 = vrot.slane %v408, 2
        %v2081 = vsel %vm1130, %v2078, %v2080
        %s2082 = scalar_lea.vmem %s1, 20
        %v2083 = vld [vmem:[%s2082] sm:$0xf]
        %v2084 = vsel %vm544, %v2079, 0
        %v2086 = vsel %vm544, %v2081, 0
        %v2089 = vsel %vm609, %v2083, 0
        %2091 = vmatprep.subr.mxu0 0.0
        %2092 = vmatpush1.msra.mxu0 %v2089
        %2093 = vmatprep.subr.mxu0 0.0
        %2094 = vmatpush1.msra.mxu0 0.0
        %2095 = vmatprep.subr.mxu0 0.0
        %2096 = vmatpush1.msra.mxu0 0.0
        %2097 = vmatprep.subr.mxu0 0.0
        %2098 = vmatpush1.msra.mxu0 0.0
        %2099 = vmatprep.subr.mxu0 0.0
        %2100 = vmatpush1.msra.mxu0 0.0
        %2101 = vmatprep.subr.mxu0 0.0
        %2102 = vmatpush1.msra.mxu0 0.0
        %2103 = vmatprep.subr.mxu0 0.0
        %2104 = vmatpush1.msra.mxu0 0.0
        %2105 = vmatprep.subr.mxu0 0.0
        %2106 = vmatpush1.msra.mxu0 0.0
        %2107 = vmatprep.subr.mxu0 0.0
        %2108 = vmatpush1.msra.mxu0 0.0
        %2109 = vmatprep.subr.mxu0 0.0
        %2110 = vmatpush1.msra.mxu0 0.0
        %2111 = vmatprep.subr.mxu0 0.0
        %2112 = vmatpush1.msra.mxu0 0.0
        %2113 = vmatprep.subr.mxu0 0.0
        %2114 = vmatpush1.msra.mxu0 0.0
        %2115 = vmatprep.subr.mxu0 0.0
        %2116 = vmatpush1.msra.mxu0 0.0
        %2117 = vmatprep.subr.mxu0 0.0
        %2118 = vmatpush1.msra.mxu0 0.0
        %2119 = vmatprep.subr.mxu0 0.0
        %2120 = vmatpush1.msra.mxu0 0.0
        %2121 = vmatprep.subr.mxu0 0.0
        %2122 = vmatpush1.msra.mxu0 0.0
        %2123 = vmatprep.subr.mxu0 0.0
        %2124 = vmatpush1.msra.mxu0 0.0
        %2125 = vmatprep.subr.mxu0 0.0
        %2126 = vmatpush1.msra.mxu0 0.0
        %2127 = vmatprep.subr.mxu0 0.0
        %2128 = vmatpush1.msra.mxu0 0.0
        %2129 = vmatprep.subr.mxu0 0.0
        %2130 = vmatpush1.msra.mxu0 0.0
        %2131 = vmatprep.subr.mxu0 0.0
        %2132 = vmatpush1.msra.mxu0 0.0
        %2133 = vmatprep.subr.mxu0 0.0
        %2134 = vmatpush1.msra.mxu0 0.0
        %2135 = vmatprep.subr.mxu0 0.0
        %2136 = vmatpush1.msra.mxu0 0.0
        %2137 = vmatprep.subr.mxu0 0.0
        %2138 = vmatpush1.msra.mxu0 0.0
        %2139 = vmatprep.subr.mxu0 0.0
        %2140 = vmatpush1.msra.mxu0 0.0
        %2141 = vmatprep.subr.mxu0 0.0
        %2142 = vmatpush1.msra.mxu0 0.0
        %2143 = vmatprep.subr.mxu0 0.0
        %2144 = vmatpush1.msra.mxu0 0.0
        %2145 = vmatprep.subr.mxu0 0.0
        %2146 = vmatpush1.msra.mxu0 0.0
        %2147 = vmatprep.subr.mxu0 0.0
        %2148 = vmatpush1.msra.mxu0 0.0
        %2149 = vmatprep.subr.mxu0 0.0
        %2150 = vmatpush1.msra.mxu0 0.0
        %2151 = vmatprep.subr.mxu0 0.0
        %2152 = vmatpush1.msra.mxu0 0.0
        %2153 = vmatprep.subr.mxu0 0.0
        %2154 = vmatpush1.msra.mxu0 0.0
        %2155 = vmatprep.mubr.f32.mxu0 0.0
        %2156 = vmatmul.mubr.f32.gmra.mrb[0].mxu0 %v1217
        %v2157 = vpop.f32.mrb[0].mxu0
        %v2158 = vadd.f32 0.0, %v2157
        %v2159 = vpop.f32.mrb[0].mxu0
        %2160 = vmatprep.mubr.f32.mxu0 0.0
        %2161 = vmatmul.mubr.f32.gmra.mrb[0].mxu0 %v1219
        %v2162 = vpop.f32.mrb[0].mxu0
        %v2163 = vadd.f32 0.0, %v2162
        %v2164 = vpop.f32.mrb[0].mxu0
        %2165 = vmatprep.mubr.f32.mxu0 0.0
        %2166 = vmatmul.mubr.f32.gmra.mrb[0].mxu0 %v1221
        %v2167 = vpop.f32.mrb[0].mxu0
        %v2168 = vadd.f32 0.0, %v2167
        %v2169 = vpop.f32.mrb[0].mxu0
        %2170 = vmatprep.mubr.f32.mxu0 0.0
        %2171 = vmatmul.mubr.f32.gmra.mrb[0].mxu0 %v1223
        %v2172 = vpop.f32.mrb[0].mxu0
        %v2173 = vadd.f32 0.0, %v2172
        %v2174 = vpop.f32.mrb[0].mxu0
        %2175 = vmatprep.mubr.f32.mxu0 0.0
        %2176 = vmatmul.mubr.f32.gmra.mrb[0].mxu0 %v1225
        %v2177 = vpop.f32.mrb[0].mxu0
        %v2178 = vadd.f32 0.0, %v2177
        %v2179 = vpop.f32.mrb[0].mxu0
        %2180 = vmatprep.mubr.f32.mxu0 0.0
        %2181 = vmatmul.mubr.f32.gmra.mrb[0].mxu0 %v1227
        %v2182 = vpop.f32.mrb[0].mxu0
        %v2183 = vadd.f32 0.0, %v2182
        %v2184 = vpop.f32.mrb[0].mxu0
        %2185 = vmatprep.mubr.f32.mxu0 0.0
        %2186 = vmatmul.mubr.f32.gmra.mrb[0].mxu0 %v1229
        %v2187 = vpop.f32.mrb[0].mxu0
        %v2188 = vadd.f32 0.0, %v2187
        %v2189 = vpop.f32.mrb[0].mxu0
        %2190 = vmatprep.mubr.f32.mxu0 0.0
        %2191 = vmatmul.mubr.f32.gmra.mrb[0].mxu0 %v1231
        %v2192 = vpop.f32.mrb[0].mxu0
        %v2193 = vadd.f32 0.0, %v2192
        %v2194 = vpop.f32.mrb[0].mxu0
        %2195 = vmatprep.mubr.f32.mxu0 0.0
        %2196 = vmatmul.mubr.f32.gmra.mrb[0].mxu0 %v1233
        %v2197 = vpop.f32.mrb[0].mxu0
        %v2198 = vadd.f32 0.0, %v2197
        %v2199 = vpop.f32.mrb[0].mxu0
        %2200 = vmatprep.mubr.f32.mxu0 0.0
        %2201 = vmatmul.mubr.f32.gmra.mrb[0].mxu0 %v1235
        %v2202 = vpop.f32.mrb[0].mxu0
        %v2203 = vadd.f32 0.0, %v2202
        %v2204 = vpop.f32.mrb[0].mxu0
        %2205 = vmatprep.mubr.f32.mxu0 0.0
        %2206 = vmatmul.mubr.f32.gmra.mrb[0].mxu0 %v1237
        %v2207 = vpop.f32.mrb[0].mxu0
        %v2208 = vadd.f32 0.0, %v2207
        %v2209 = vpop.f32.mrb[0].mxu0
        %2210 = vmatprep.mubr.f32.mxu0 0.0
        %2211 = vmatmul.mubr.f32.gmra.mrb[0].mxu0 %v1239
        %v2212 = vpop.f32.mrb[0].mxu0
        %v2213 = vadd.f32 0.0, %v2212
        %v2214 = vpop.f32.mrb[0].mxu0
        %2215 = vmatprep.mubr.f32.mxu0 0.0
        %2216 = vmatmul.mubr.f32.gmra.mrb[0].mxu0 %v1241
        %v2217 = vpop.f32.mrb[0].mxu0
        %v2218 = vadd.f32 0.0, %v2217
        %v2219 = vpop.f32.mrb[0].mxu0
        %2220 = vmatprep.mubr.f32.mxu0 0.0
        %2221 = vmatmul.mubr.f32.gmra.mrb[0].mxu0 %v1243
        %v2222 = vpop.f32.mrb[0].mxu0
        %v2223 = vadd.f32 0.0, %v2222
        %v2224 = vpop.f32.mrb[0].mxu0
        %2225 = vmatprep.mubr.f32.mxu0 0.0
        %2226 = vmatmul.mubr.f32.gmra.mrb[0].mxu0 %v1245
        %v2227 = vpop.f32.mrb[0].mxu0
        %v2228 = vadd.f32 0.0, %v2227
        %v2229 = vpop.f32.mrb[0].mxu0
        %2230 = vmatprep.mubr.f32.mxu0 0.0
        %2231 = vmatmul.mubr.f32.gmra.mrb[0].mxu0 %v1247
        %v2232 = vpop.f32.mrb[0].mxu0
        %v2233 = vadd.f32 0.0, %v2232
        %v2234 = vpop.f32.mrb[0].mxu0
        %2235 = vmatprep.mubr.f32.mxu0 0.0
        %2236 = vmatmul.mubr.f32.gmra.mrb[0].mxu0 %v1249
        %v2237 = vpop.f32.mrb[0].mxu0
        %v2238 = vadd.f32 0.0, %v2237
        %v2239 = vpop.f32.mrb[0].mxu0
        %2240 = vmatprep.mubr.f32.mxu0 0.0
        %2241 = vmatmul.mubr.f32.gmra.mrb[0].mxu0 %v1251
        %v2242 = vpop.f32.mrb[0].mxu0
        %v2243 = vadd.f32 0.0, %v2242
        %v2244 = vpop.f32.mrb[0].mxu0
        %2245 = vmatprep.mubr.f32.mxu0 0.0
        %2246 = vmatmul.mubr.f32.gmra.mrb[0].mxu0 %v1253
        %v2247 = vpop.f32.mrb[0].mxu0
        %v2248 = vadd.f32 0.0, %v2247
        %v2249 = vpop.f32.mrb[0].mxu0
        %2250 = vmatprep.mubr.f32.mxu0 0.0
        %2251 = vmatmul.mubr.f32.gmra.mrb[0].mxu0 %v1255
        %v2252 = vpop.f32.mrb[0].mxu0
        %v2253 = vadd.f32 0.0, %v2252
        %v2254 = vpop.f32.mrb[0].mxu0
        %2255 = vmatprep.mubr.f32.mxu0 0.0
        %2256 = vmatmul.mubr.f32.gmra.mrb[0].mxu0 %v1257
        %v2257 = vpop.f32.mrb[0].mxu0
        %v2258 = vadd.f32 0.0, %v2257
        %v2259 = vpop.f32.mrb[0].mxu0
        %2260 = vmatprep.mubr.f32.mxu0 0.0
        %2261 = vmatmul.mubr.f32.gmra.mrb[0].mxu0 %v1259
        %v2262 = vpop.f32.mrb[0].mxu0
        %v2263 = vadd.f32 0.0, %v2262
        %v2264 = vpop.f32.mrb[0].mxu0
        %2265 = vmatprep.mubr.f32.mxu0 0.0
        %2266 = vmatmul.mubr.f32.gmra.mrb[0].mxu0 %v1261
        %v2267 = vpop.f32.mrb[0].mxu0
        %v2268 = vadd.f32 0.0, %v2267
        %v2269 = vpop.f32.mrb[0].mxu0
        %2270 = vmatprep.mubr.f32.mxu0 0.0
        %2271 = vmatmul.mubr.f32.gmra.mrb[0].mxu0 %v1263
        %v2272 = vpop.f32.mrb[0].mxu0
        %v2273 = vadd.f32 0.0, %v2272
        %v2274 = vpop.f32.mrb[0].mxu0
        %2275 = vmatprep.mubr.f32.mxu0 0.0
        %2276 = vmatmul.mubr.f32.gmra.mrb[0].mxu0 %v1265
        %v2277 = vpop.f32.mrb[0].mxu0
        %v2278 = vadd.f32 0.0, %v2277
        %v2279 = vpop.f32.mrb[0].mxu0
        %2280 = vmatprep.mubr.f32.mxu0 0.0
        %2281 = vmatmul.mubr.f32.gmra.mrb[0].mxu0 %v1267
        %v2282 = vpop.f32.mrb[0].mxu0
        %v2283 = vadd.f32 0.0, %v2282
        %v2284 = vpop.f32.mrb[0].mxu0
        %2285 = vmatprep.mubr.f32.mxu0 0.0
        %2286 = vmatmul.mubr.f32.gmra.mrb[0].mxu0 %v1269
        %v2287 = vpop.f32.mrb[0].mxu0
        %v2288 = vadd.f32 0.0, %v2287
        %v2289 = vpop.f32.mrb[0].mxu0
        %2290 = vmatprep.mubr.f32.mxu0 0.0
        %2291 = vmatmul.mubr.f32.gmra.mrb[0].mxu0 %v1271
        %v2292 = vpop.f32.mrb[0].mxu0
        %v2293 = vadd.f32 0.0, %v2292
        %v2294 = vpop.f32.mrb[0].mxu0
        %2295 = vmatprep.mubr.f32.mxu0 0.0
        %2296 = vmatmul.mubr.f32.gmra.mrb[0].mxu0 %v1273
        %v2297 = vpop.f32.mrb[0].mxu0
        %v2298 = vadd.f32 0.0, %v2297
        %v2299 = vpop.f32.mrb[0].mxu0
        %2300 = vmatprep.mubr.f32.mxu0 0.0
        %2301 = vmatmul.mubr.f32.gmra.mrb[0].mxu0 %v1275
        %v2302 = vpop.f32.mrb[0].mxu0
        %v2303 = vadd.f32 0.0, %v2302
        %v2304 = vpop.f32.mrb[0].mxu0
        %2305 = vmatprep.mubr.f32.mxu0 0.0
        %2306 = vmatmul.mubr.f32.gmra.mrb[0].mxu0 %v2084
        %v2307 = vpop.f32.mrb[0].mxu0
        %v2308 = vadd.f32 0.0, %v2307
        %v2309 = vpop.f32.mrb[0].mxu0
        %2310 = vmatprep.mubr.f32.mxu0 0.0
        %2311 = vmatmul.mubr.f32.gmra.mrb[0].mxu0 %v2086
        %v2312 = vpop.f32.mrb[0].mxu0
        %v2313 = vadd.f32 0.0, %v2312
        %v2314 = vpop.f32.mrb[0].mxu0
        %2315 = vdwg.mxu0
        %v2316 = vadd.f32 %v2045, %v2158
        %v2317 = vadd.f32 %v2046, %v2163
        %v2318 = vadd.f32 %v2047, %v2168
        %v2319 = vadd.f32 %v2048, %v2173
        %v2320 = vadd.f32 %v2049, %v2178
        %v2321 = vadd.f32 %v2050, %v2183
        %v2322 = vadd.f32 %v2051, %v2188
        %v2323 = vadd.f32 %v2052, %v2193
        %v2324 = vadd.f32 %v2053, %v2198
        %v2325 = vadd.f32 %v2054, %v2203
        %v2326 = vadd.f32 %v2055, %v2208
        %v2327 = vadd.f32 %v2056, %v2213
        %v2328 = vadd.f32 %v2057, %v2218
        %v2329 = vadd.f32 %v2058, %v2223
        %v2330 = vadd.f32 %v2059, %v2228
        %v2331 = vadd.f32 %v2060, %v2233
        %v2332 = vadd.f32 %v2061, %v2238
        %v2333 = vadd.f32 %v2062, %v2243
        %v2334 = vadd.f32 %v2063, %v2248
        %v2335 = vadd.f32 %v2064, %v2253
        %v2336 = vadd.f32 %v2065, %v2258
        %v2337 = vadd.f32 %v2066, %v2263
        %v2338 = vadd.f32 %v2067, %v2268
        %v2339 = vadd.f32 %v2068, %v2273
        %v2340 = vadd.f32 %v2069, %v2278
        %v2341 = vadd.f32 %v2070, %v2283
        %v2342 = vadd.f32 %v2071, %v2288
        %v2343 = vadd.f32 %v2072, %v2293
        %v2344 = vadd.f32 %v2073, %v2298
        %v2345 = vadd.f32 %v2074, %v2303
        %v2346 = vadd.f32 %v2075, %v2308
        %v2347 = vadd.f32 %v2076, %v2313
        %s2348 = scalar_lea.vmem %s1, 24
        %v2349 = vld [vmem:[%s2348] sm:$0xf]
        %v2351 = vsel %vm544, %v409, 0
        %v2354 = vsel %vm544, %v410, 0
        %v2357 = vsel %vm609, %v2349, 0
        %2359 = vmatprep.subr.mxu0 0.0
        %2360 = vmatpush1.msra.mxu0 %v2357
        %2361 = vmatprep.subr.mxu0 0.0
        %2362 = vmatpush1.msra.mxu0 0.0
        %2363 = vmatprep.subr.mxu0 0.0
        %2364 = vmatpush1.msra.mxu0 0.0
        %2365 = vmatprep.subr.mxu0 0.0
        %2366 = vmatpush1.msra.mxu0 0.0
        %2367 = vmatprep.subr.mxu0 0.0
        %2368 = vmatpush1.msra.mxu0 0.0
        %2369 = vmatprep.subr.mxu0 0.0
        %2370 = vmatpush1.msra.mxu0 0.0
        %2371 = vmatprep.subr.mxu0 0.0
        %2372 = vmatpush1.msra.mxu0 0.0
        %2373 = vmatprep.subr.mxu0 0.0
        %2374 = vmatpush1.msra.mxu0 0.0
        %2375 = vmatprep.subr.mxu0 0.0
        %2376 = vmatpush1.msra.mxu0 0.0
        %2377 = vmatprep.subr.mxu0 0.0
        %2378 = vmatpush1.msra.mxu0 0.0
        %2379 = vmatprep.subr.mxu0 0.0
        %2380 = vmatpush1.msra.mxu0 0.0
        %2381 = vmatprep.subr.mxu0 0.0
        %2382 = vmatpush1.msra.mxu0 0.0
        %2383 = vmatprep.subr.mxu0 0.0
        %2384 = vmatpush1.msra.mxu0 0.0
        %2385 = vmatprep.subr.mxu0 0.0
        %2386 = vmatpush1.msra.mxu0 0.0
        %2387 = vmatprep.subr.mxu0 0.0
        %2388 = vmatpush1.msra.mxu0 0.0
        %2389 = vmatprep.subr.mxu0 0.0
        %2390 = vmatpush1.msra.mxu0 0.0
        %2391 = vmatprep.subr.mxu0 0.0
        %2392 = vmatpush1.msra.mxu0 0.0
        %2393 = vmatprep.subr.mxu0 0.0
        %2394 = vmatpush1.msra.mxu0 0.0
        %2395 = vmatprep.subr.mxu0 0.0
        %2396 = vmatpush1.msra.mxu0 0.0
        %2397 = vmatprep.subr.mxu0 0.0
        %2398 = vmatpush1.msra.mxu0 0.0
        %2399 = vmatprep.subr.mxu0 0.0
        %2400 = vmatpush1.msra.mxu0 0.0
        %2401 = vmatprep.subr.mxu0 0.0
        %2402 = vmatpush1.msra.mxu0 0.0
        %2403 = vmatprep.subr.mxu0 0.0
        %2404 = vmatpush1.msra.mxu0 0.0
        %2405 = vmatprep.subr.mxu0 0.0
        %2406 = vmatpush1.msra.mxu0 0.0
        %2407 = vmatprep.subr.mxu0 0.0
        %2408 = vmatpush1.msra.mxu0 0.0
        %2409 = vmatprep.subr.mxu0 0.0
        %2410 = vmatpush1.msra.mxu0 0.0
        %2411 = vmatprep.subr.mxu0 0.0
        %2412 = vmatpush1.msra.mxu0 0.0
        %2413 = vmatprep.subr.mxu0 0.0
        %2414 = vmatpush1.msra.mxu0 0.0
        %2415 = vmatprep.subr.mxu0 0.0
        %2416 = vmatpush1.msra.mxu0 0.0
        %2417 = vmatprep.subr.mxu0 0.0
        %2418 = vmatpush1.msra.mxu0 0.0
        %2419 = vmatprep.subr.mxu0 0.0
        %2420 = vmatpush1.msra.mxu0 0.0
        %2421 = vmatprep.subr.mxu0 0.0
        %2422 = vmatpush1.msra.mxu0 0.0
        %2423 = vmatprep.mubr.f32.mxu0 0.0
        %2424 = vmatmul.mubr.f32.gmra.mrb[0].mxu0 %v846
        %v2425 = vpop.f32.mrb[0].mxu0
        %v2426 = vadd.f32 0.0, %v2425
        %v2427 = vpop.f32.mrb[0].mxu0
        %2428 = vmatprep.mubr.f32.mxu0 0.0
        %2429 = vmatmul.mubr.f32.gmra.mrb[0].mxu0 %v848
        %v2430 = vpop.f32.mrb[0].mxu0
        %v2431 = vadd.f32 0.0, %v2430
        %v2432 = vpop.f32.mrb[0].mxu0
        %2433 = vmatprep.mubr.f32.mxu0 0.0
        %2434 = vmatmul.mubr.f32.gmra.mrb[0].mxu0 %v850
        %v2435 = vpop.f32.mrb[0].mxu0
        %v2436 = vadd.f32 0.0, %v2435
        %v2437 = vpop.f32.mrb[0].mxu0
        %2438 = vmatprep.mubr.f32.mxu0 0.0
        %2439 = vmatmul.mubr.f32.gmra.mrb[0].mxu0 %v852
        %v2440 = vpop.f32.mrb[0].mxu0
        %v2441 = vadd.f32 0.0, %v2440
        %v2442 = vpop.f32.mrb[0].mxu0
        %2443 = vmatprep.mubr.f32.mxu0 0.0
        %2444 = vmatmul.mubr.f32.gmra.mrb[0].mxu0 %v854
        %v2445 = vpop.f32.mrb[0].mxu0
        %v2446 = vadd.f32 0.0, %v2445
        %v2447 = vpop.f32.mrb[0].mxu0
        %2448 = vmatprep.mubr.f32.mxu0 0.0
        %2449 = vmatmul.mubr.f32.gmra.mrb[0].mxu0 %v856
        %v2450 = vpop.f32.mrb[0].mxu0
        %v2451 = vadd.f32 0.0, %v2450
        %v2452 = vpop.f32.mrb[0].mxu0
        %2453 = vmatprep.mubr.f32.mxu0 0.0
        %2454 = vmatmul.mubr.f32.gmra.mrb[0].mxu0 %v858
        %v2455 = vpop.f32.mrb[0].mxu0
        %v2456 = vadd.f32 0.0, %v2455
        %v2457 = vpop.f32.mrb[0].mxu0
        %2458 = vmatprep.mubr.f32.mxu0 0.0
        %2459 = vmatmul.mubr.f32.gmra.mrb[0].mxu0 %v860
        %v2460 = vpop.f32.mrb[0].mxu0
        %v2461 = vadd.f32 0.0, %v2460
        %v2462 = vpop.f32.mrb[0].mxu0
        %2463 = vmatprep.mubr.f32.mxu0 0.0
        %2464 = vmatmul.mubr.f32.gmra.mrb[0].mxu0 %v862
        %v2465 = vpop.f32.mrb[0].mxu0
        %v2466 = vadd.f32 0.0, %v2465
        %v2467 = vpop.f32.mrb[0].mxu0
        %2468 = vmatprep.mubr.f32.mxu0 0.0
        %2469 = vmatmul.mubr.f32.gmra.mrb[0].mxu0 %v864
        %v2470 = vpop.f32.mrb[0].mxu0
        %v2471 = vadd.f32 0.0, %v2470
        %v2472 = vpop.f32.mrb[0].mxu0
        %2473 = vmatprep.mubr.f32.mxu0 0.0
        %2474 = vmatmul.mubr.f32.gmra.mrb[0].mxu0 %v866
        %v2475 = vpop.f32.mrb[0].mxu0
        %v2476 = vadd.f32 0.0, %v2475
        %v2477 = vpop.f32.mrb[0].mxu0
        %2478 = vmatprep.mubr.f32.mxu0 0.0
        %2479 = vmatmul.mubr.f32.gmra.mrb[0].mxu0 %v868
        %v2480 = vpop.f32.mrb[0].mxu0
        %v2481 = vadd.f32 0.0, %v2480
        %v2482 = vpop.f32.mrb[0].mxu0
        %2483 = vmatprep.mubr.f32.mxu0 0.0
        %2484 = vmatmul.mubr.f32.gmra.mrb[0].mxu0 %v870
        %v2485 = vpop.f32.mrb[0].mxu0
        %v2486 = vadd.f32 0.0, %v2485
        %v2487 = vpop.f32.mrb[0].mxu0
        %2488 = vmatprep.mubr.f32.mxu0 0.0
        %2489 = vmatmul.mubr.f32.gmra.mrb[0].mxu0 %v872
        %v2490 = vpop.f32.mrb[0].mxu0
        %v2491 = vadd.f32 0.0, %v2490
        %v2492 = vpop.f32.mrb[0].mxu0
        %2493 = vmatprep.mubr.f32.mxu0 0.0
        %2494 = vmatmul.mubr.f32.gmra.mrb[0].mxu0 %v874
        %v2495 = vpop.f32.mrb[0].mxu0
        %v2496 = vadd.f32 0.0, %v2495
        %v2497 = vpop.f32.mrb[0].mxu0
        %2498 = vmatprep.mubr.f32.mxu0 0.0
        %2499 = vmatmul.mubr.f32.gmra.mrb[0].mxu0 %v876
        %v2500 = vpop.f32.mrb[0].mxu0
        %v2501 = vadd.f32 0.0, %v2500
        %v2502 = vpop.f32.mrb[0].mxu0
        %2503 = vmatprep.mubr.f32.mxu0 0.0
        %2504 = vmatmul.mubr.f32.gmra.mrb[0].mxu0 %v878
        %v2505 = vpop.f32.mrb[0].mxu0
        %v2506 = vadd.f32 0.0, %v2505
        %v2507 = vpop.f32.mrb[0].mxu0
        %2508 = vmatprep.mubr.f32.mxu0 0.0
        %2509 = vmatmul.mubr.f32.gmra.mrb[0].mxu0 %v880
        %v2510 = vpop.f32.mrb[0].mxu0
        %v2511 = vadd.f32 0.0, %v2510
        %v2512 = vpop.f32.mrb[0].mxu0
        %2513 = vmatprep.mubr.f32.mxu0 0.0
        %2514 = vmatmul.mubr.f32.gmra.mrb[0].mxu0 %v882
        %v2515 = vpop.f32.mrb[0].mxu0
        %v2516 = vadd.f32 0.0, %v2515
        %v2517 = vpop.f32.mrb[0].mxu0
        %2518 = vmatprep.mubr.f32.mxu0 0.0
        %2519 = vmatmul.mubr.f32.gmra.mrb[0].mxu0 %v884
        %v2520 = vpop.f32.mrb[0].mxu0
        %v2521 = vadd.f32 0.0, %v2520
        %v2522 = vpop.f32.mrb[0].mxu0
        %2523 = vmatprep.mubr.f32.mxu0 0.0
        %2524 = vmatmul.mubr.f32.gmra.mrb[0].mxu0 %v886
        %v2525 = vpop.f32.mrb[0].mxu0
        %v2526 = vadd.f32 0.0, %v2525
        %v2527 = vpop.f32.mrb[0].mxu0
        %2528 = vmatprep.mubr.f32.mxu0 0.0
        %2529 = vmatmul.mubr.f32.gmra.mrb[0].mxu0 %v888
        %v2530 = vpop.f32.mrb[0].mxu0
        %v2531 = vadd.f32 0.0, %v2530
        %v2532 = vpop.f32.mrb[0].mxu0
        %2533 = vmatprep.mubr.f32.mxu0 0.0
        %2534 = vmatmul.mubr.f32.gmra.mrb[0].mxu0 %v890
        %v2535 = vpop.f32.mrb[0].mxu0
        %v2536 = vadd.f32 0.0, %v2535
        %v2537 = vpop.f32.mrb[0].mxu0
        %2538 = vmatprep.mubr.f32.mxu0 0.0
        %2539 = vmatmul.mubr.f32.gmra.mrb[0].mxu0 %v892
        %v2540 = vpop.f32.mrb[0].mxu0
        %v2541 = vadd.f32 0.0, %v2540
        %v2542 = vpop.f32.mrb[0].mxu0
        %2543 = vmatprep.mubr.f32.mxu0 0.0
        %2544 = vmatmul.mubr.f32.gmra.mrb[0].mxu0 %v894
        %v2545 = vpop.f32.mrb[0].mxu0
        %v2546 = vadd.f32 0.0, %v2545
        %v2547 = vpop.f32.mrb[0].mxu0
        %2548 = vmatprep.mubr.f32.mxu0 0.0
        %2549 = vmatmul.mubr.f32.gmra.mrb[0].mxu0 %v896
        %v2550 = vpop.f32.mrb[0].mxu0
        %v2551 = vadd.f32 0.0, %v2550
        %v2552 = vpop.f32.mrb[0].mxu0
        %2553 = vmatprep.mubr.f32.mxu0 0.0
        %2554 = vmatmul.mubr.f32.gmra.mrb[0].mxu0 %v898
        %v2555 = vpop.f32.mrb[0].mxu0
        %v2556 = vadd.f32 0.0, %v2555
        %v2557 = vpop.f32.mrb[0].mxu0
        %2558 = vmatprep.mubr.f32.mxu0 0.0
        %2559 = vmatmul.mubr.f32.gmra.mrb[0].mxu0 %v900
        %v2560 = vpop.f32.mrb[0].mxu0
        %v2561 = vadd.f32 0.0, %v2560
        %v2562 = vpop.f32.mrb[0].mxu0
        %2563 = vmatprep.mubr.f32.mxu0 0.0
        %2564 = vmatmul.mubr.f32.gmra.mrb[0].mxu0 %v1540
        %v2565 = vpop.f32.mrb[0].mxu0
        %v2566 = vadd.f32 0.0, %v2565
        %v2567 = vpop.f32.mrb[0].mxu0
        %2568 = vmatprep.mubr.f32.mxu0 0.0
        %2569 = vmatmul.mubr.f32.gmra.mrb[0].mxu0 %v1543
        %v2570 = vpop.f32.mrb[0].mxu0
        %v2571 = vadd.f32 0.0, %v2570
        %v2572 = vpop.f32.mrb[0].mxu0
        %2573 = vmatprep.mubr.f32.mxu0 0.0
        %2574 = vmatmul.mubr.f32.gmra.mrb[0].mxu0 %v2351
        %v2575 = vpop.f32.mrb[0].mxu0
        %v2576 = vadd.f32 0.0, %v2575
        %v2577 = vpop.f32.mrb[0].mxu0
        %2578 = vmatprep.mubr.f32.mxu0 0.0
        %2579 = vmatmul.mubr.f32.gmra.mrb[0].mxu0 %v2354
        %v2580 = vpop.f32.mrb[0].mxu0
        %v2581 = vadd.f32 0.0, %v2580
        %v2582 = vpop.f32.mrb[0].mxu0
        %2583 = vdwg.mxu0
        %v2584 = vadd.f32 %v2316, %v2426
        %v2585 = vadd.f32 %v2317, %v2431
        %v2586 = vadd.f32 %v2318, %v2436
        %v2587 = vadd.f32 %v2319, %v2441
        %v2588 = vadd.f32 %v2320, %v2446
        %v2589 = vadd.f32 %v2321, %v2451
        %v2590 = vadd.f32 %v2322, %v2456
        %v2591 = vadd.f32 %v2323, %v2461
        %v2592 = vadd.f32 %v2324, %v2466
        %v2593 = vadd.f32 %v2325, %v2471
        %v2594 = vadd.f32 %v2326, %v2476
        %v2595 = vadd.f32 %v2327, %v2481
        %v2596 = vadd.f32 %v2328, %v2486
        %v2597 = vadd.f32 %v2329, %v2491
        %v2598 = vadd.f32 %v2330, %v2496
        %v2599 = vadd.f32 %v2331, %v2501
        %v2600 = vadd.f32 %v2332, %v2506
        %v2601 = vadd.f32 %v2333, %v2511
        %v2602 = vadd.f32 %v2334, %v2516
        %v2603 = vadd.f32 %v2335, %v2521
        %v2604 = vadd.f32 %v2336, %v2526
        %v2605 = vadd.f32 %v2337, %v2531
        %v2606 = vadd.f32 %v2338, %v2536
        %v2607 = vadd.f32 %v2339, %v2541
        %v2608 = vadd.f32 %v2340, %v2546
        %v2609 = vadd.f32 %v2341, %v2551
        %v2610 = vadd.f32 %v2342, %v2556
        %v2611 = vadd.f32 %v2343, %v2561
        %v2612 = vadd.f32 %v2344, %v2566
        %v2613 = vadd.f32 %v2345, %v2571
        %v2614 = vadd.f32 %v2346, %v2576
        %v2615 = vadd.f32 %v2347, %v2581
        %v2617 = vrot.slane %v409, 1
        %v2618 = vrot.slane %v410, 1
        %v2619 = vsel %vm461, %v2617, %v2618
        %v2620 = vrot.slane %v411, 1
        %v2621 = vsel %vm461, %v2618, %v2620
        %s2622 = scalar_lea.vmem %s1, 28
        %v2623 = vld [vmem:[%s2622] sm:$0xf]
        %v2624 = vsel %vm544, %v2619, 0
        %v2626 = vsel %vm544, %v2621, 0
        %v2629 = vsel %vm609, %v2623, 0
        %2631 = vmatprep.subr.mxu0 0.0
        %2632 = vmatpush1.msra.mxu0 %v2629
        %2633 = vmatprep.subr.mxu0 0.0
        %2634 = vmatpush1.msra.mxu0 0.0
        %2635 = vmatprep.subr.mxu0 0.0
        %2636 = vmatpush1.msra.mxu0 0.0
        %2637 = vmatprep.subr.mxu0 0.0
        %2638 = vmatpush1.msra.mxu0 0.0
        %2639 = vmatprep.subr.mxu0 0.0
        %2640 = vmatpush1.msra.mxu0 0.0
        %2641 = vmatprep.subr.mxu0 0.0
        %2642 = vmatpush1.msra.mxu0 0.0
        %2643 = vmatprep.subr.mxu0 0.0
        %2644 = vmatpush1.msra.mxu0 0.0
        %2645 = vmatprep.subr.mxu0 0.0
        %2646 = vmatpush1.msra.mxu0 0.0
        %2647 = vmatprep.subr.mxu0 0.0
        %2648 = vmatpush1.msra.mxu0 0.0
        %2649 = vmatprep.subr.mxu0 0.0
        %2650 = vmatpush1.msra.mxu0 0.0
        %2651 = vmatprep.subr.mxu0 0.0
        %2652 = vmatpush1.msra.mxu0 0.0
        %2653 = vmatprep.subr.mxu0 0.0
        %2654 = vmatpush1.msra.mxu0 0.0
        %2655 = vmatprep.subr.mxu0 0.0
        %2656 = vmatpush1.msra.mxu0 0.0
        %2657 = vmatprep.subr.mxu0 0.0
        %2658 = vmatpush1.msra.mxu0 0.0
        %2659 = vmatprep.subr.mxu0 0.0
        %2660 = vmatpush1.msra.mxu0 0.0
        %2661 = vmatprep.subr.mxu0 0.0
        %2662 = vmatpush1.msra.mxu0 0.0
        %2663 = vmatprep.subr.mxu0 0.0
        %2664 = vmatpush1.msra.mxu0 0.0
        %2665 = vmatprep.subr.mxu0 0.0
        %2666 = vmatpush1.msra.mxu0 0.0
        %2667 = vmatprep.subr.mxu0 0.0
        %2668 = vmatpush1.msra.mxu0 0.0
        %2669 = vmatprep.subr.mxu0 0.0
        %2670 = vmatpush1.msra.mxu0 0.0
        %2671 = vmatprep.subr.mxu0 0.0
        %2672 = vmatpush1.msra.mxu0 0.0
        %2673 = vmatprep.subr.mxu0 0.0
        %2674 = vmatpush1.msra.mxu0 0.0
        %2675 = vmatprep.subr.mxu0 0.0
        %2676 = vmatpush1.msra.mxu0 0.0
        %2677 = vmatprep.subr.mxu0 0.0
        %2678 = vmatpush1.msra.mxu0 0.0
        %2679 = vmatprep.subr.mxu0 0.0
        %2680 = vmatpush1.msra.mxu0 0.0
        %2681 = vmatprep.subr.mxu0 0.0
        %2682 = vmatpush1.msra.mxu0 0.0
        %2683 = vmatprep.subr.mxu0 0.0
        %2684 = vmatpush1.msra.mxu0 0.0
        %2685 = vmatprep.subr.mxu0 0.0
        %2686 = vmatpush1.msra.mxu0 0.0
        %2687 = vmatprep.subr.mxu0 0.0
        %2688 = vmatpush1.msra.mxu0 0.0
        %2689 = vmatprep.subr.mxu0 0.0
        %2690 = vmatpush1.msra.mxu0 0.0
        %2691 = vmatprep.subr.mxu0 0.0
        %2692 = vmatpush1.msra.mxu0 0.0
        %2693 = vmatprep.subr.mxu0 0.0
        %2694 = vmatpush1.msra.mxu0 0.0
        %2695 = vmatprep.mubr.f32.mxu0 0.0
        %2696 = vmatmul.mubr.f32.gmra.mrb[0].mxu0 %v553
        %v2697 = vpop.f32.mrb[0].mxu0
        %v2698 = vadd.f32 0.0, %v2697
        %v2699 = vpop.f32.mrb[0].mxu0
        %2700 = vmatprep.mubr.f32.mxu0 0.0
        %2701 = vmatmul.mubr.f32.gmra.mrb[0].mxu0 %v555
        %v2702 = vpop.f32.mrb[0].mxu0
        %v2703 = vadd.f32 0.0, %v2702
        %v2704 = vpop.f32.mrb[0].mxu0
        %2705 = vmatprep.mubr.f32.mxu0 0.0
        %2706 = vmatmul.mubr.f32.gmra.mrb[0].mxu0 %v557
        %v2707 = vpop.f32.mrb[0].mxu0
        %v2708 = vadd.f32 0.0, %v2707
        %v2709 = vpop.f32.mrb[0].mxu0
        %2710 = vmatprep.mubr.f32.mxu0 0.0
        %2711 = vmatmul.mubr.f32.gmra.mrb[0].mxu0 %v559
        %v2712 = vpop.f32.mrb[0].mxu0
        %v2713 = vadd.f32 0.0, %v2712
        %v2714 = vpop.f32.mrb[0].mxu0
        %2715 = vmatprep.mubr.f32.mxu0 0.0
        %2716 = vmatmul.mubr.f32.gmra.mrb[0].mxu0 %v561
        %v2717 = vpop.f32.mrb[0].mxu0
        %v2718 = vadd.f32 0.0, %v2717
        %v2719 = vpop.f32.mrb[0].mxu0
        %2720 = vmatprep.mubr.f32.mxu0 0.0
        %2721 = vmatmul.mubr.f32.gmra.mrb[0].mxu0 %v563
        %v2722 = vpop.f32.mrb[0].mxu0
        %v2723 = vadd.f32 0.0, %v2722
        %v2724 = vpop.f32.mrb[0].mxu0
        %2725 = vmatprep.mubr.f32.mxu0 0.0
        %2726 = vmatmul.mubr.f32.gmra.mrb[0].mxu0 %v565
        %v2727 = vpop.f32.mrb[0].mxu0
        %v2728 = vadd.f32 0.0, %v2727
        %v2729 = vpop.f32.mrb[0].mxu0
        %2730 = vmatprep.mubr.f32.mxu0 0.0
        %2731 = vmatmul.mubr.f32.gmra.mrb[0].mxu0 %v567
        %v2732 = vpop.f32.mrb[0].mxu0
        %v2733 = vadd.f32 0.0, %v2732
        %v2734 = vpop.f32.mrb[0].mxu0
        %2735 = vmatprep.mubr.f32.mxu0 0.0
        %2736 = vmatmul.mubr.f32.gmra.mrb[0].mxu0 %v569
        %v2737 = vpop.f32.mrb[0].mxu0
        %v2738 = vadd.f32 0.0, %v2737
        %v2739 = vpop.f32.mrb[0].mxu0
        %2740 = vmatprep.mubr.f32.mxu0 0.0
        %2741 = vmatmul.mubr.f32.gmra.mrb[0].mxu0 %v571
        %v2742 = vpop.f32.mrb[0].mxu0
        %v2743 = vadd.f32 0.0, %v2742
        %v2744 = vpop.f32.mrb[0].mxu0
        %2745 = vmatprep.mubr.f32.mxu0 0.0
        %2746 = vmatmul.mubr.f32.gmra.mrb[0].mxu0 %v573
        %v2747 = vpop.f32.mrb[0].mxu0
        %v2748 = vadd.f32 0.0, %v2747
        %v2749 = vpop.f32.mrb[0].mxu0
        %2750 = vmatprep.mubr.f32.mxu0 0.0
        %2751 = vmatmul.mubr.f32.gmra.mrb[0].mxu0 %v575
        %v2752 = vpop.f32.mrb[0].mxu0
        %v2753 = vadd.f32 0.0, %v2752
        %v2754 = vpop.f32.mrb[0].mxu0
        %2755 = vmatprep.mubr.f32.mxu0 0.0
        %2756 = vmatmul.mubr.f32.gmra.mrb[0].mxu0 %v577
        %v2757 = vpop.f32.mrb[0].mxu0
        %v2758 = vadd.f32 0.0, %v2757
        %v2759 = vpop.f32.mrb[0].mxu0
        %2760 = vmatprep.mubr.f32.mxu0 0.0
        %2761 = vmatmul.mubr.f32.gmra.mrb[0].mxu0 %v579
        %v2762 = vpop.f32.mrb[0].mxu0
        %v2763 = vadd.f32 0.0, %v2762
        %v2764 = vpop.f32.mrb[0].mxu0
        %2765 = vmatprep.mubr.f32.mxu0 0.0
        %2766 = vmatmul.mubr.f32.gmra.mrb[0].mxu0 %v581
        %v2767 = vpop.f32.mrb[0].mxu0
        %v2768 = vadd.f32 0.0, %v2767
        %v2769 = vpop.f32.mrb[0].mxu0
        %2770 = vmatprep.mubr.f32.mxu0 0.0
        %2771 = vmatmul.mubr.f32.gmra.mrb[0].mxu0 %v583
        %v2772 = vpop.f32.mrb[0].mxu0
        %v2773 = vadd.f32 0.0, %v2772
        %v2774 = vpop.f32.mrb[0].mxu0
        %2775 = vmatprep.mubr.f32.mxu0 0.0
        %2776 = vmatmul.mubr.f32.gmra.mrb[0].mxu0 %v585
        %v2777 = vpop.f32.mrb[0].mxu0
        %v2778 = vadd.f32 0.0, %v2777
        %v2779 = vpop.f32.mrb[0].mxu0
        %2780 = vmatprep.mubr.f32.mxu0 0.0
        %2781 = vmatmul.mubr.f32.gmra.mrb[0].mxu0 %v587
        %v2782 = vpop.f32.mrb[0].mxu0
        %v2783 = vadd.f32 0.0, %v2782
        %v2784 = vpop.f32.mrb[0].mxu0
        %2785 = vmatprep.mubr.f32.mxu0 0.0
        %2786 = vmatmul.mubr.f32.gmra.mrb[0].mxu0 %v589
        %v2787 = vpop.f32.mrb[0].mxu0
        %v2788 = vadd.f32 0.0, %v2787
        %v2789 = vpop.f32.mrb[0].mxu0
        %2790 = vmatprep.mubr.f32.mxu0 0.0
        %2791 = vmatmul.mubr.f32.gmra.mrb[0].mxu0 %v591
        %v2792 = vpop.f32.mrb[0].mxu0
        %v2793 = vadd.f32 0.0, %v2792
        %v2794 = vpop.f32.mrb[0].mxu0
        %2795 = vmatprep.mubr.f32.mxu0 0.0
        %2796 = vmatmul.mubr.f32.gmra.mrb[0].mxu0 %v593
        %v2797 = vpop.f32.mrb[0].mxu0
        %v2798 = vadd.f32 0.0, %v2797
        %v2799 = vpop.f32.mrb[0].mxu0
        %2800 = vmatprep.mubr.f32.mxu0 0.0
        %2801 = vmatmul.mubr.f32.gmra.mrb[0].mxu0 %v595
        %v2802 = vpop.f32.mrb[0].mxu0
        %v2803 = vadd.f32 0.0, %v2802
        %v2804 = vpop.f32.mrb[0].mxu0
        %2805 = vmatprep.mubr.f32.mxu0 0.0
        %2806 = vmatmul.mubr.f32.gmra.mrb[0].mxu0 %v597
        %v2807 = vpop.f32.mrb[0].mxu0
        %v2808 = vadd.f32 0.0, %v2807
        %v2809 = vpop.f32.mrb[0].mxu0
        %2810 = vmatprep.mubr.f32.mxu0 0.0
        %2811 = vmatmul.mubr.f32.gmra.mrb[0].mxu0 %v599
        %v2812 = vpop.f32.mrb[0].mxu0
        %v2813 = vadd.f32 0.0, %v2812
        %v2814 = vpop.f32.mrb[0].mxu0
        %2815 = vmatprep.mubr.f32.mxu0 0.0
        %2816 = vmatmul.mubr.f32.gmra.mrb[0].mxu0 %v601
        %v2817 = vpop.f32.mrb[0].mxu0
        %v2818 = vadd.f32 0.0, %v2817
        %v2819 = vpop.f32.mrb[0].mxu0
        %2820 = vmatprep.mubr.f32.mxu0 0.0
        %2821 = vmatmul.mubr.f32.gmra.mrb[0].mxu0 %v603
        %v2822 = vpop.f32.mrb[0].mxu0
        %v2823 = vadd.f32 0.0, %v2822
        %v2824 = vpop.f32.mrb[0].mxu0
        %2825 = vmatprep.mubr.f32.mxu0 0.0
        %2826 = vmatmul.mubr.f32.gmra.mrb[0].mxu0 %v605
        %v2827 = vpop.f32.mrb[0].mxu0
        %v2828 = vadd.f32 0.0, %v2827
        %v2829 = vpop.f32.mrb[0].mxu0
        %2830 = vmatprep.mubr.f32.mxu0 0.0
        %2831 = vmatmul.mubr.f32.gmra.mrb[0].mxu0 %v607
        %v2832 = vpop.f32.mrb[0].mxu0
        %v2833 = vadd.f32 0.0, %v2832
        %v2834 = vpop.f32.mrb[0].mxu0
        %2835 = vmatprep.mubr.f32.mxu0 0.0
        %2836 = vmatmul.mubr.f32.gmra.mrb[0].mxu0 %v1813
        %v2837 = vpop.f32.mrb[0].mxu0
        %v2838 = vadd.f32 0.0, %v2837
        %v2839 = vpop.f32.mrb[0].mxu0
        %2840 = vmatprep.mubr.f32.mxu0 0.0
        %2841 = vmatmul.mubr.f32.gmra.mrb[0].mxu0 %v1815
        %v2842 = vpop.f32.mrb[0].mxu0
        %v2843 = vadd.f32 0.0, %v2842
        %v2844 = vpop.f32.mrb[0].mxu0
        %2845 = vmatprep.mubr.f32.mxu0 0.0
        %2846 = vmatmul.mubr.f32.gmra.mrb[0].mxu0 %v2624
        %v2847 = vpop.f32.mrb[0].mxu0
        %v2848 = vadd.f32 0.0, %v2847
        %v2849 = vpop.f32.mrb[0].mxu0
        %2850 = vmatprep.mubr.f32.mxu0 0.0
        %2851 = vmatmul.mubr.f32.gmra.mrb[0].mxu0 %v2626
        %v2852 = vpop.f32.mrb[0].mxu0
        %v2853 = vadd.f32 0.0, %v2852
        %v2854 = vpop.f32.mrb[0].mxu0
        %2855 = vdwg.mxu0
        %v2856 = vadd.f32 %v2584, %v2698
        %v2857 = vadd.f32 %v2585, %v2703
        %v2858 = vadd.f32 %v2586, %v2708
        %v2859 = vadd.f32 %v2587, %v2713
        %v2860 = vadd.f32 %v2588, %v2718
        %v2861 = vadd.f32 %v2589, %v2723
        %v2862 = vadd.f32 %v2590, %v2728
        %v2863 = vadd.f32 %v2591, %v2733
        %v2864 = vadd.f32 %v2592, %v2738
        %v2865 = vadd.f32 %v2593, %v2743
        %v2866 = vadd.f32 %v2594, %v2748
        %v2867 = vadd.f32 %v2595, %v2753
        %v2868 = vadd.f32 %v2596, %v2758
        %v2869 = vadd.f32 %v2597, %v2763
        %v2870 = vadd.f32 %v2598, %v2768
        %v2871 = vadd.f32 %v2599, %v2773
        %v2872 = vadd.f32 %v2600, %v2778
        %v2873 = vadd.f32 %v2601, %v2783
        %v2874 = vadd.f32 %v2602, %v2788
        %v2875 = vadd.f32 %v2603, %v2793
        %v2876 = vadd.f32 %v2604, %v2798
        %v2877 = vadd.f32 %v2605, %v2803
        %v2878 = vadd.f32 %v2606, %v2808
        %v2879 = vadd.f32 %v2607, %v2813
        %v2880 = vadd.f32 %v2608, %v2818
        %v2881 = vadd.f32 %v2609, %v2823
        %v2882 = vadd.f32 %v2610, %v2828
        %v2883 = vadd.f32 %v2611, %v2833
        %v2884 = vadd.f32 %v2612, %v2838
        %v2885 = vadd.f32 %v2613, %v2843
        %v2886 = vadd.f32 %v2614, %v2848
        %v2887 = vadd.f32 %v2615, %v2853
        %v2888 = vrot.slane %v409, 2
        %v2889 = vrot.slane %v410, 2
        %v2890 = vsel %vm1130, %v2888, %v2889
        %v2891 = vrot.slane %v411, 2
        %v2892 = vsel %vm1130, %v2889, %v2891
        %s2893 = scalar_lea.vmem %s1, 32
        %v2894 = vld [vmem:[%s2893] sm:$0xf]
        %v2895 = vsel %vm544, %v2890, 0
        %v2897 = vsel %vm544, %v2892, 0
        %v2900 = vsel %vm609, %v2894, 0
        %2902 = vmatprep.subr.mxu0 0.0
        %2903 = vmatpush1.msra.mxu0 %v2900
        %2904 = vmatprep.subr.mxu0 0.0
        %2905 = vmatpush1.msra.mxu0 0.0
        %2906 = vmatprep.subr.mxu0 0.0
        %2907 = vmatpush1.msra.mxu0 0.0
        %2908 = vmatprep.subr.mxu0 0.0
        %2909 = vmatpush1.msra.mxu0 0.0
        %2910 = vmatprep.subr.mxu0 0.0
        %2911 = vmatpush1.msra.mxu0 0.0
        %2912 = vmatprep.subr.mxu0 0.0
        %2913 = vmatpush1.msra.mxu0 0.0
        %2914 = vmatprep.subr.mxu0 0.0
        %2915 = vmatpush1.msra.mxu0 0.0
        %2916 = vmatprep.subr.mxu0 0.0
        %2917 = vmatpush1.msra.mxu0 0.0
        %2918 = vmatprep.subr.mxu0 0.0
        %2919 = vmatpush1.msra.mxu0 0.0
        %2920 = vmatprep.subr.mxu0 0.0
        %2921 = vmatpush1.msra.mxu0 0.0
        %2922 = vmatprep.subr.mxu0 0.0
        %2923 = vmatpush1.msra.mxu0 0.0
        %2924 = vmatprep.subr.mxu0 0.0
        %2925 = vmatpush1.msra.mxu0 0.0
        %2926 = vmatprep.subr.mxu0 0.0
        %2927 = vmatpush1.msra.mxu0 0.0
        %2928 = vmatprep.subr.mxu0 0.0
        %2929 = vmatpush1.msra.mxu0 0.0
        %2930 = vmatprep.subr.mxu0 0.0
        %2931 = vmatpush1.msra.mxu0 0.0
        %2932 = vmatprep.subr.mxu0 0.0
        %2933 = vmatpush1.msra.mxu0 0.0
        %2934 = vmatprep.subr.mxu0 0.0
        %2935 = vmatpush1.msra.mxu0 0.0
        %2936 = vmatprep.subr.mxu0 0.0
        %2937 = vmatpush1.msra.mxu0 0.0
        %2938 = vmatprep.subr.mxu0 0.0
        %2939 = vmatpush1.msra.mxu0 0.0
        %2940 = vmatprep.subr.mxu0 0.0
        %2941 = vmatpush1.msra.mxu0 0.0
        %2942 = vmatprep.subr.mxu0 0.0
        %2943 = vmatpush1.msra.mxu0 0.0
        %2944 = vmatprep.subr.mxu0 0.0
        %2945 = vmatpush1.msra.mxu0 0.0
        %2946 = vmatprep.subr.mxu0 0.0
        %2947 = vmatpush1.msra.mxu0 0.0
        %2948 = vmatprep.subr.mxu0 0.0
        %2949 = vmatpush1.msra.mxu0 0.0
        %2950 = vmatprep.subr.mxu0 0.0
        %2951 = vmatpush1.msra.mxu0 0.0
        %2952 = vmatprep.subr.mxu0 0.0
        %2953 = vmatpush1.msra.mxu0 0.0
        %2954 = vmatprep.subr.mxu0 0.0
        %2955 = vmatpush1.msra.mxu0 0.0
        %2956 = vmatprep.subr.mxu0 0.0
        %2957 = vmatpush1.msra.mxu0 0.0
        %2958 = vmatprep.subr.mxu0 0.0
        %2959 = vmatpush1.msra.mxu0 0.0
        %2960 = vmatprep.subr.mxu0 0.0
        %2961 = vmatpush1.msra.mxu0 0.0
        %2962 = vmatprep.subr.mxu0 0.0
        %2963 = vmatpush1.msra.mxu0 0.0
        %2964 = vmatprep.subr.mxu0 0.0
        %2965 = vmatpush1.msra.mxu0 0.0
        %2966 = vmatprep.mubr.f32.mxu0 0.0
        %2967 = vmatmul.mubr.f32.gmra.mrb[0].mxu0 %v1221
        %v2968 = vpop.f32.mrb[0].mxu0
        %v2969 = vadd.f32 0.0, %v2968
        %v2970 = vpop.f32.mrb[0].mxu0
        %2971 = vmatprep.mubr.f32.mxu0 0.0
        %2972 = vmatmul.mubr.f32.gmra.mrb[0].mxu0 %v1223
        %v2973 = vpop.f32.mrb[0].mxu0
        %v2974 = vadd.f32 0.0, %v2973
        %v2975 = vpop.f32.mrb[0].mxu0
        %2976 = vmatprep.mubr.f32.mxu0 0.0
        %2977 = vmatmul.mubr.f32.gmra.mrb[0].mxu0 %v1225
        %v2978 = vpop.f32.mrb[0].mxu0
        %v2979 = vadd.f32 0.0, %v2978
        %v2980 = vpop.f32.mrb[0].mxu0
        %2981 = vmatprep.mubr.f32.mxu0 0.0
        %2982 = vmatmul.mubr.f32.gmra.mrb[0].mxu0 %v1227
        %v2983 = vpop.f32.mrb[0].mxu0
        %v2984 = vadd.f32 0.0, %v2983
        %v2985 = vpop.f32.mrb[0].mxu0
        %2986 = vmatprep.mubr.f32.mxu0 0.0
        %2987 = vmatmul.mubr.f32.gmra.mrb[0].mxu0 %v1229
        %v2988 = vpop.f32.mrb[0].mxu0
        %v2989 = vadd.f32 0.0, %v2988
        %v2990 = vpop.f32.mrb[0].mxu0
        %2991 = vmatprep.mubr.f32.mxu0 0.0
        %2992 = vmatmul.mubr.f32.gmra.mrb[0].mxu0 %v1231
        %v2993 = vpop.f32.mrb[0].mxu0
        %v2994 = vadd.f32 0.0, %v2993
        %v2995 = vpop.f32.mrb[0].mxu0
        %2996 = vmatprep.mubr.f32.mxu0 0.0
        %2997 = vmatmul.mubr.f32.gmra.mrb[0].mxu0 %v1233
        %v2998 = vpop.f32.mrb[0].mxu0
        %v2999 = vadd.f32 0.0, %v2998
        %v3000 = vpop.f32.mrb[0].mxu0
        %3001 = vmatprep.mubr.f32.mxu0 0.0
        %3002 = vmatmul.mubr.f32.gmra.mrb[0].mxu0 %v1235
        %v3003 = vpop.f32.mrb[0].mxu0
        %v3004 = vadd.f32 0.0, %v3003
        %v3005 = vpop.f32.mrb[0].mxu0
        %3006 = vmatprep.mubr.f32.mxu0 0.0
        %3007 = vmatmul.mubr.f32.gmra.mrb[0].mxu0 %v1237
        %v3008 = vpop.f32.mrb[0].mxu0
        %v3009 = vadd.f32 0.0, %v3008
        %v3010 = vpop.f32.mrb[0].mxu0
        %3011 = vmatprep.mubr.f32.mxu0 0.0
        %3012 = vmatmul.mubr.f32.gmra.mrb[0].mxu0 %v1239
        %v3013 = vpop.f32.mrb[0].mxu0
        %v3014 = vadd.f32 0.0, %v3013
        %v3015 = vpop.f32.mrb[0].mxu0
        %3016 = vmatprep.mubr.f32.mxu0 0.0
        %3017 = vmatmul.mubr.f32.gmra.mrb[0].mxu0 %v1241
        %v3018 = vpop.f32.mrb[0].mxu0
        %v3019 = vadd.f32 0.0, %v3018
        %v3020 = vpop.f32.mrb[0].mxu0
        %3021 = vmatprep.mubr.f32.mxu0 0.0
        %3022 = vmatmul.mubr.f32.gmra.mrb[0].mxu0 %v1243
        %v3023 = vpop.f32.mrb[0].mxu0
        %v3024 = vadd.f32 0.0, %v3023
        %v3025 = vpop.f32.mrb[0].mxu0
        %3026 = vmatprep.mubr.f32.mxu0 0.0
        %3027 = vmatmul.mubr.f32.gmra.mrb[0].mxu0 %v1245
        %v3028 = vpop.f32.mrb[0].mxu0
        %v3029 = vadd.f32 0.0, %v3028
        %v3030 = vpop.f32.mrb[0].mxu0
        %3031 = vmatprep.mubr.f32.mxu0 0.0
        %3032 = vmatmul.mubr.f32.gmra.mrb[0].mxu0 %v1247
        %v3033 = vpop.f32.mrb[0].mxu0
        %v3034 = vadd.f32 0.0, %v3033
        %v3035 = vpop.f32.mrb[0].mxu0
        %3036 = vmatprep.mubr.f32.mxu0 0.0
        %3037 = vmatmul.mubr.f32.gmra.mrb[0].mxu0 %v1249
        %v3038 = vpop.f32.mrb[0].mxu0
        %v3039 = vadd.f32 0.0, %v3038
        %v3040 = vpop.f32.mrb[0].mxu0
        %3041 = vmatprep.mubr.f32.mxu0 0.0
        %3042 = vmatmul.mubr.f32.gmra.mrb[0].mxu0 %v1251
        %v3043 = vpop.f32.mrb[0].mxu0
        %v3044 = vadd.f32 0.0, %v3043
        %v3045 = vpop.f32.mrb[0].mxu0
        %3046 = vmatprep.mubr.f32.mxu0 0.0
        %3047 = vmatmul.mubr.f32.gmra.mrb[0].mxu0 %v1253
        %v3048 = vpop.f32.mrb[0].mxu0
        %v3049 = vadd.f32 0.0, %v3048
        %v3050 = vpop.f32.mrb[0].mxu0
        %3051 = vmatprep.mubr.f32.mxu0 0.0
        %3052 = vmatmul.mubr.f32.gmra.mrb[0].mxu0 %v1255
        %v3053 = vpop.f32.mrb[0].mxu0
        %v3054 = vadd.f32 0.0, %v3053
        %v3055 = vpop.f32.mrb[0].mxu0
        %3056 = vmatprep.mubr.f32.mxu0 0.0
        %3057 = vmatmul.mubr.f32.gmra.mrb[0].mxu0 %v1257
        %v3058 = vpop.f32.mrb[0].mxu0
        %v3059 = vadd.f32 0.0, %v3058
        %v3060 = vpop.f32.mrb[0].mxu0
        %3061 = vmatprep.mubr.f32.mxu0 0.0
        %3062 = vmatmul.mubr.f32.gmra.mrb[0].mxu0 %v1259
        %v3063 = vpop.f32.mrb[0].mxu0
        %v3064 = vadd.f32 0.0, %v3063
        %v3065 = vpop.f32.mrb[0].mxu0
        %3066 = vmatprep.mubr.f32.mxu0 0.0
        %3067 = vmatmul.mubr.f32.gmra.mrb[0].mxu0 %v1261
        %v3068 = vpop.f32.mrb[0].mxu0
        %v3069 = vadd.f32 0.0, %v3068
        %v3070 = vpop.f32.mrb[0].mxu0
        %3071 = vmatprep.mubr.f32.mxu0 0.0
        %3072 = vmatmul.mubr.f32.gmra.mrb[0].mxu0 %v1263
        %v3073 = vpop.f32.mrb[0].mxu0
        %v3074 = vadd.f32 0.0, %v3073
        %v3075 = vpop.f32.mrb[0].mxu0
        %3076 = vmatprep.mubr.f32.mxu0 0.0
        %3077 = vmatmul.mubr.f32.gmra.mrb[0].mxu0 %v1265
        %v3078 = vpop.f32.mrb[0].mxu0
        %v3079 = vadd.f32 0.0, %v3078
        %v3080 = vpop.f32.mrb[0].mxu0
        %3081 = vmatprep.mubr.f32.mxu0 0.0
        %3082 = vmatmul.mubr.f32.gmra.mrb[0].mxu0 %v1267
        %v3083 = vpop.f32.mrb[0].mxu0
        %v3084 = vadd.f32 0.0, %v3083
        %v3085 = vpop.f32.mrb[0].mxu0
        %3086 = vmatprep.mubr.f32.mxu0 0.0
        %3087 = vmatmul.mubr.f32.gmra.mrb[0].mxu0 %v1269
        %v3088 = vpop.f32.mrb[0].mxu0
        %v3089 = vadd.f32 0.0, %v3088
        %v3090 = vpop.f32.mrb[0].mxu0
        %3091 = vmatprep.mubr.f32.mxu0 0.0
        %3092 = vmatmul.mubr.f32.gmra.mrb[0].mxu0 %v1271
        %v3093 = vpop.f32.mrb[0].mxu0
        %v3094 = vadd.f32 0.0, %v3093
        %v3095 = vpop.f32.mrb[0].mxu0
        %3096 = vmatprep.mubr.f32.mxu0 0.0
        %3097 = vmatmul.mubr.f32.gmra.mrb[0].mxu0 %v1273
        %v3098 = vpop.f32.mrb[0].mxu0
        %v3099 = vadd.f32 0.0, %v3098
        %v3100 = vpop.f32.mrb[0].mxu0
        %3101 = vmatprep.mubr.f32.mxu0 0.0
        %3102 = vmatmul.mubr.f32.gmra.mrb[0].mxu0 %v1275
        %v3103 = vpop.f32.mrb[0].mxu0
        %v3104 = vadd.f32 0.0, %v3103
        %v3105 = vpop.f32.mrb[0].mxu0
        %3106 = vmatprep.mubr.f32.mxu0 0.0
        %3107 = vmatmul.mubr.f32.gmra.mrb[0].mxu0 %v2084
        %v3108 = vpop.f32.mrb[0].mxu0
        %v3109 = vadd.f32 0.0, %v3108
        %v3110 = vpop.f32.mrb[0].mxu0
        %3111 = vmatprep.mubr.f32.mxu0 0.0
        %3112 = vmatmul.mubr.f32.gmra.mrb[0].mxu0 %v2086
        %v3113 = vpop.f32.mrb[0].mxu0
        %v3114 = vadd.f32 0.0, %v3113
        %v3115 = vpop.f32.mrb[0].mxu0
        %3116 = vmatprep.mubr.f32.mxu0 0.0
        %3117 = vmatmul.mubr.f32.gmra.mrb[0].mxu0 %v2895
        %v3118 = vpop.f32.mrb[0].mxu0
        %v3119 = vadd.f32 0.0, %v3118
        %v3120 = vpop.f32.mrb[0].mxu0
        %3121 = vmatprep.mubr.f32.mxu0 0.0
        %3122 = vmatmul.mubr.f32.gmra.mrb[0].mxu0 %v2897
        %v3123 = vpop.f32.mrb[0].mxu0
        %v3124 = vadd.f32 0.0, %v3123
        %v3125 = vpop.f32.mrb[0].mxu0
        %3126 = vdwg.mxu0
        %v3127 = vadd.f32 %v2856, %v2969
        %v3128 = vadd.f32 %v2857, %v2974
        %v3129 = vadd.f32 %v2858, %v2979
        %v3130 = vadd.f32 %v2859, %v2984
        %v3131 = vadd.f32 %v2860, %v2989
        %v3132 = vadd.f32 %v2861, %v2994
        %v3133 = vadd.f32 %v2862, %v2999
        %v3134 = vadd.f32 %v2863, %v3004
        %v3135 = vadd.f32 %v2864, %v3009
        %v3136 = vadd.f32 %v2865, %v3014
        %v3137 = vadd.f32 %v2866, %v3019
        %v3138 = vadd.f32 %v2867, %v3024
        %v3139 = vadd.f32 %v2868, %v3029
        %v3140 = vadd.f32 %v2869, %v3034
        %v3141 = vadd.f32 %v2870, %v3039
        %v3142 = vadd.f32 %v2871, %v3044
        %v3143 = vadd.f32 %v2872, %v3049
        %v3144 = vadd.f32 %v2873, %v3054
        %v3145 = vadd.f32 %v2874, %v3059
        %v3146 = vadd.f32 %v2875, %v3064
        %v3147 = vadd.f32 %v2876, %v3069
        %v3148 = vadd.f32 %v2877, %v3074
        %v3149 = vadd.f32 %v2878, %v3079
        %v3150 = vadd.f32 %v2879, %v3084
        %v3151 = vadd.f32 %v2880, %v3089
        %v3152 = vadd.f32 %v2881, %v3094
        %v3153 = vadd.f32 %v2882, %v3099
        %v3154 = vadd.f32 %v2883, %v3104
        %v3155 = vadd.f32 %v2884, %v3109
        %v3156 = vadd.f32 %v2885, %v3114
        %v3157 = vadd.f32 %v2886, %v3119
        %v3158 = vadd.f32 %v2887, %v3124
        %v3159 = vld [vmem:[%s2] sm:$0x1]
        %v3161 = vlaneseq
        %v3162 = vshrl.u32 %v3161, 7
        %v3163 = vsub.s32 0, %v3162
        %v3164 = vrot.slane %v3159, %v3163
        %v3166 = vmul.f32 %v3127, %v3164
        %v3167 = vmul.f32 %v3128, %v3164
        %v3168 = vmul.f32 %v3129, %v3164
        %v3169 = vmul.f32 %v3130, %v3164
        %v3170 = vmul.f32 %v3131, %v3164
        %v3171 = vmul.f32 %v3132, %v3164
        %v3172 = vmul.f32 %v3133, %v3164
        %v3173 = vmul.f32 %v3134, %v3164
        %v3174 = vmul.f32 %v3135, %v3164
        %v3175 = vmul.f32 %v3136, %v3164
        %v3176 = vmul.f32 %v3137, %v3164
        %v3177 = vmul.f32 %v3138, %v3164
        %v3178 = vmul.f32 %v3139, %v3164
        %v3179 = vmul.f32 %v3140, %v3164
        %v3180 = vmul.f32 %v3141, %v3164
        %v3181 = vmul.f32 %v3142, %v3164
        %v3182 = vmul.f32 %v3143, %v3164
        %v3183 = vmul.f32 %v3144, %v3164
        %v3184 = vmul.f32 %v3145, %v3164
        %v3185 = vmul.f32 %v3146, %v3164
        %v3186 = vmul.f32 %v3147, %v3164
        %v3187 = vmul.f32 %v3148, %v3164
        %v3188 = vmul.f32 %v3149, %v3164
        %v3189 = vmul.f32 %v3150, %v3164
        %v3190 = vmul.f32 %v3151, %v3164
        %v3191 = vmul.f32 %v3152, %v3164
        %v3192 = vmul.f32 %v3153, %v3164
        %v3193 = vmul.f32 %v3154, %v3164
        %v3194 = vmul.f32 %v3155, %v3164
        %v3195 = vmul.f32 %v3156, %v3164
        %v3196 = vmul.f32 %v3157, %v3164
        %v3197 = vmul.f32 %v3158, %v3164
        %v3198 = vld [vmem:[%s3] sm:$0x1]
        %v3200 = vlaneseq
        %v3201 = vshrl.u32 %v3200, 7
        %v3202 = vsub.s32 0, %v3201
        %v3203 = vrot.slane %v3198, %v3202
        %v3205 = vadd.f32 %v3166, %v3203
        %v3206 = vadd.f32 %v3167, %v3203
        %v3207 = vadd.f32 %v3168, %v3203
        %v3208 = vadd.f32 %v3169, %v3203
        %v3209 = vadd.f32 %v3170, %v3203
        %v3210 = vadd.f32 %v3171, %v3203
        %v3211 = vadd.f32 %v3172, %v3203
        %v3212 = vadd.f32 %v3173, %v3203
        %v3213 = vadd.f32 %v3174, %v3203
        %v3214 = vadd.f32 %v3175, %v3203
        %v3215 = vadd.f32 %v3176, %v3203
        %v3216 = vadd.f32 %v3177, %v3203
        %v3217 = vadd.f32 %v3178, %v3203
        %v3218 = vadd.f32 %v3179, %v3203
        %v3219 = vadd.f32 %v3180, %v3203
        %v3220 = vadd.f32 %v3181, %v3203
        %v3221 = vadd.f32 %v3182, %v3203
        %v3222 = vadd.f32 %v3183, %v3203
        %v3223 = vadd.f32 %v3184, %v3203
        %v3224 = vadd.f32 %v3185, %v3203
        %v3225 = vadd.f32 %v3186, %v3203
        %v3226 = vadd.f32 %v3187, %v3203
        %v3227 = vadd.f32 %v3188, %v3203
        %v3228 = vadd.f32 %v3189, %v3203
        %v3229 = vadd.f32 %v3190, %v3203
        %v3230 = vadd.f32 %v3191, %v3203
        %v3231 = vadd.f32 %v3192, %v3203
        %v3232 = vadd.f32 %v3193, %v3203
        %v3233 = vadd.f32 %v3194, %v3203
        %v3234 = vadd.f32 %v3195, %v3203
        %v3235 = vadd.f32 %v3196, %v3203
        %v3236 = vadd.f32 %v3197, %v3203
        %v3237 = vmax.f32 %v3205, 0.0
        %v3238 = vmax.f32 %v3206, 0.0
        %v3239 = vmax.f32 %v3207, 0.0
        %v3240 = vmax.f32 %v3208, 0.0
        %v3241 = vmax.f32 %v3209, 0.0
        %v3242 = vmax.f32 %v3210, 0.0
        %v3243 = vmax.f32 %v3211, 0.0
        %v3244 = vmax.f32 %v3212, 0.0
        %v3245 = vmax.f32 %v3213, 0.0
        %v3246 = vmax.f32 %v3214, 0.0
        %v3247 = vmax.f32 %v3215, 0.0
        %v3248 = vmax.f32 %v3216, 0.0
        %v3249 = vmax.f32 %v3217, 0.0
        %v3250 = vmax.f32 %v3218, 0.0
        %v3251 = vmax.f32 %v3219, 0.0
        %v3252 = vmax.f32 %v3220, 0.0
        %v3253 = vmax.f32 %v3221, 0.0
        %v3254 = vmax.f32 %v3222, 0.0
        %v3255 = vmax.f32 %v3223, 0.0
        %v3256 = vmax.f32 %v3224, 0.0
        %v3257 = vmax.f32 %v3225, 0.0
        %v3258 = vmax.f32 %v3226, 0.0
        %v3259 = vmax.f32 %v3227, 0.0
        %v3260 = vmax.f32 %v3228, 0.0
        %v3261 = vmax.f32 %v3229, 0.0
        %v3262 = vmax.f32 %v3230, 0.0
        %v3263 = vmax.f32 %v3231, 0.0
        %v3264 = vmax.f32 %v3232, 0.0
        %v3265 = vmax.f32 %v3233, 0.0
        %v3266 = vmax.f32 %v3234, 0.0
        %v3267 = vmax.f32 %v3235, 0.0
        %v3268 = vmax.f32 %v3236, 0.0
        %vm3269 = vcmask 261120
        %3270 = vst.msk [vmem:[#allocation2] sm:$0xff] %vm3269, 0.0
        %3271 = vst.msk [vmem:[#allocation2 + $0x8] sm:$0xff] %vm3269, 0.0
        %vm3272 = vcmask 254976
        %3273 = vst.msk [vmem:[#allocation2 + $0x10] sm:$0x3] %vm3272, 0.0
        %3274 = vst.msk [vmem:[#allocation2 + $0x18] sm:$0xff] %vm3269, 0.0
        %3275 = vst.msk [vmem:[#allocation2 + $0x20] sm:$0xff] %vm3269, 0.0
        %3276 = vst.msk [vmem:[#allocation2 + $0x28] sm:$0x3] %vm3272, 0.0
        %3277 = vst.msk [vmem:[#allocation2 + $0x30] sm:$0xff] %vm3269, 0.0
        %3278 = vst.msk [vmem:[#allocation2 + $0x38] sm:$0xff] %vm3269, 0.0
        %3279 = vst.msk [vmem:[#allocation2 + $0x40] sm:$0x3] %vm3272, 0.0
        %3280 = vst.msk [vmem:[#allocation2 + $0x48] sm:$0xff] %vm3269, 0.0
        %3281 = vst.msk [vmem:[#allocation2 + $0x50] sm:$0xff] %vm3269, 0.0
        %3282 = vst.msk [vmem:[#allocation2 + $0x58] sm:$0x3] %vm3272, 0.0
        %3283 = vst.msk [vmem:[#allocation2 + $0x60] sm:$0xff] %vm3269, 0.0
        %3284 = vst.msk [vmem:[#allocation2 + $0x68] sm:$0xff] %vm3269, 0.0
        %3285 = vst.msk [vmem:[#allocation2 + $0x70] sm:$0x3] %vm3272, 0.0
        %3286 = vst.msk [vmem:[#allocation2 + $0x78] sm:$0xff] %vm3269, 0.0
        %3287 = vst.msk [vmem:[#allocation2 + $0x80] sm:$0xff] %vm3269, 0.0
        %3288 = vst.msk [vmem:[#allocation2 + $0x88] sm:$0x3] %vm3272, 0.0
        %3289 = vst.msk [vmem:[#allocation2 + $0x90] sm:$0xff] %vm3269, 0.0
        %3290 = vst.msk [vmem:[#allocation2 + $0x98] sm:$0xff] %vm3269, 0.0
        %3291 = vst.msk [vmem:[#allocation2 + $0xa0] sm:$0x3] %vm3272, 0.0
        %3292 = vst.msk [vmem:[#allocation2 + $0xa8] sm:$0xff] %vm3269, 0.0
        %3293 = vst.msk [vmem:[#allocation2 + $0xb0] sm:$0xff] %vm3269, 0.0
        %3294 = vst.msk [vmem:[#allocation2 + $0xb8] sm:$0x3] %vm3272, 0.0
        %3295 = vst.msk [vmem:[#allocation2 + $0xc0] sm:$0xff] %vm3269, 0.0
        %3296 = vst.msk [vmem:[#allocation2 + $0xc8] sm:$0xff] %vm3269, 0.0
        %3297 = vst.msk [vmem:[#allocation2 + $0xd0] sm:$0x3] %vm3272, 0.0
        %3298 = vst.msk [vmem:[#allocation2 + $0xd8] sm:$0xff] %vm3269, 0.0
        %3299 = vst.msk [vmem:[#allocation2 + $0xe0] sm:$0xff] %vm3269, 0.0
        %3300 = vst.msk [vmem:[#allocation2 + $0xe8] sm:$0x3] %vm3272, 0.0
        %3301 = vst.msk [vmem:[#allocation2 + $0xf0] sm:$0xff] %vm3269, 0.0
        %3302 = vst.msk [vmem:[#allocation2 + $0xf8] sm:$0xff] %vm3269, 0.0
        %3303 = vst.msk [vmem:[#allocation2 + $0x100] sm:$0x3] %vm3272, 0.0
        %3304 = vst.msk [vmem:[#allocation2 + $0x108] sm:$0xff] %vm3269, 0.0
        %3305 = vst.msk [vmem:[#allocation2 + $0x110] sm:$0xff] %vm3269, 0.0
        %3306 = vst.msk [vmem:[#allocation2 + $0x118] sm:$0x3] %vm3272, 0.0
        %3307 = vst.msk [vmem:[#allocation2 + $0x120] sm:$0xff] %vm3269, 0.0
        %3308 = vst.msk [vmem:[#allocation2 + $0x128] sm:$0xff] %vm3269, 0.0
        %3309 = vst.msk [vmem:[#allocation2 + $0x130] sm:$0x3] %vm3272, 0.0
        %3310 = vst.msk [vmem:[#allocation2 + $0x138] sm:$0xff] %vm3269, 0.0
        %3311 = vst.msk [vmem:[#allocation2 + $0x140] sm:$0xff] %vm3269, 0.0
        %3312 = vst.msk [vmem:[#allocation2 + $0x148] sm:$0x3] %vm3272, 0.0
        %3313 = vst.msk [vmem:[#allocation2 + $0x150] sm:$0xff] %vm3269, 0.0
        %3314 = vst.msk [vmem:[#allocation2 + $0x158] sm:$0xff] %vm3269, 0.0
        %3315 = vst.msk [vmem:[#allocation2 + $0x160] sm:$0x3] %vm3272, 0.0
        %3316 = vst.msk [vmem:[#allocation2 + $0x168] sm:$0xff] %vm3269, 0.0
        %3317 = vst.msk [vmem:[#allocation2 + $0x170] sm:$0xff] %vm3269, 0.0
        %3318 = vst.msk [vmem:[#allocation2 + $0x178] sm:$0x3] %vm3272, 0.0
        %3319 = vst.msk [vmem:[#allocation2 + $0x180] sm:$0xff] %vm3269, 0.0
        %3320 = vst.msk [vmem:[#allocation2 + $0x188] sm:$0xff] %vm3269, 0.0
        %3321 = vst.msk [vmem:[#allocation2 + $0x190] sm:$0x3] %vm3272, 0.0
        %3322 = vst.msk [vmem:[#allocation2 + $0x198] sm:$0xff] %vm3269, 0.0
        %3323 = vst.msk [vmem:[#allocation2 + $0x1a0] sm:$0xff] %vm3269, 0.0
        %3324 = vst.msk [vmem:[#allocation2 + $0x1a8] sm:$0x3] %vm3272, 0.0
        %s3325 = scalar_lea.vmem [#allocation2], 24
        %3326 = vst.msk [vmem:[%s3325 + $0x1] sm:$0xff] %vm3269, %v3237
        %3327 = vst.msk [vmem:[%s3325 + $0x9] sm:$0xff] %vm3269, %v3238
        %3328 = vst.msk [vmem:[%s3325 + $0x19] sm:$0xff] %vm3269, %v3239
        %3329 = vst.msk [vmem:[%s3325 + $0x21] sm:$0xff] %vm3269, %v3240
        %3330 = vst.msk [vmem:[%s3325 + $0x31] sm:$0xff] %vm3269, %v3241
        %3331 = vst.msk [vmem:[%s3325 + $0x39] sm:$0xff] %vm3269, %v3242
        %3332 = vst.msk [vmem:[%s3325 + $0x49] sm:$0xff] %vm3269, %v3243
        %3333 = vst.msk [vmem:[%s3325 + $0x51] sm:$0xff] %vm3269, %v3244
        %3334 = vst.msk [vmem:[%s3325 + $0x61] sm:$0xff] %vm3269, %v3245
        %3335 = vst.msk [vmem:[%s3325 + $0x69] sm:$0xff] %vm3269, %v3246
        %3336 = vst.msk [vmem:[%s3325 + $0x79] sm:$0xff] %vm3269, %v3247
        %3337 = vst.msk [vmem:[%s3325 + $0x81] sm:$0xff] %vm3269, %v3248
        %3338 = vst.msk [vmem:[%s3325 + $0x91] sm:$0xff] %vm3269, %v3249
        %3339 = vst.msk [vmem:[%s3325 + $0x99] sm:$0xff] %vm3269, %v3250
        %3340 = vst.msk [vmem:[%s3325 + $0xa9] sm:$0xff] %vm3269, %v3251
        %3341 = vst.msk [vmem:[%s3325 + $0xb1] sm:$0xff] %vm3269, %v3252
        %3342 = vst.msk [vmem:[%s3325 + $0xc1] sm:$0xff] %vm3269, %v3253
        %3343 = vst.msk [vmem:[%s3325 + $0xc9] sm:$0xff] %vm3269, %v3254
        %3344 = vst.msk [vmem:[%s3325 + $0xd9] sm:$0xff] %vm3269, %v3255
        %3345 = vst.msk [vmem:[%s3325 + $0xe1] sm:$0xff] %vm3269, %v3256
        %3346 = vst.msk [vmem:[%s3325 + $0xf1] sm:$0xff] %vm3269, %v3257
        %3347 = vst.msk [vmem:[%s3325 + $0xf9] sm:$0xff] %vm3269, %v3258
        %3348 = vst.msk [vmem:[%s3325 + $0x109] sm:$0xff] %vm3269, %v3259
        %3349 = vst.msk [vmem:[%s3325 + $0x111] sm:$0xff] %vm3269, %v3260
        %3350 = vst.msk [vmem:[%s3325 + $0x121] sm:$0xff] %vm3269, %v3261
        %3351 = vst.msk [vmem:[%s3325 + $0x129] sm:$0xff] %vm3269, %v3262
        %3352 = vst.msk [vmem:[%s3325 + $0x139] sm:$0xff] %vm3269, %v3263
        %3353 = vst.msk [vmem:[%s3325 + $0x141] sm:$0xff] %vm3269, %v3264
        %3354 = vst.msk [vmem:[%s3325 + $0x151] sm:$0xff] %vm3269, %v3265
        %3355 = vst.msk [vmem:[%s3325 + $0x159] sm:$0xff] %vm3269, %v3266
        %3356 = vst.msk [vmem:[%s3325 + $0x169] sm:$0xff] %vm3269, %v3267
        %3357 = vst.msk [vmem:[%s3325 + $0x171] sm:$0xff] %vm3269, %v3268
        %v3358 = vld [vmem:[#allocation2] sm:$0xff]
        %v3359 = vld [vmem:[#allocation2 + $0x8] sm:$0xff]
        %v3360 = vld [vmem:[#allocation2 + $0x10] sm:$0x3]
        %v3361 = vld [vmem:[#allocation2 + $0x18] sm:$0xff]
        %v3362 = vld [vmem:[#allocation2 + $0x20] sm:$0xff]
        %v3363 = vld [vmem:[#allocation2 + $0x28] sm:$0x3]
        %v3364 = vld [vmem:[#allocation2 + $0x30] sm:$0xff]
        %v3365 = vld [vmem:[#allocation2 + $0x38] sm:$0xff]
        %v3366 = vld [vmem:[#allocation2 + $0x40] sm:$0x3]
        %v3367 = vld [vmem:[#allocation2 + $0x48] sm:$0xff]
        %v3368 = vld [vmem:[#allocation2 + $0x50] sm:$0xff]
        %v3369 = vld [vmem:[#allocation2 + $0x58] sm:$0x3]
        %v3370 = vld [vmem:[#allocation2 + $0x60] sm:$0xff]
        %v3371 = vld [vmem:[#allocation2 + $0x68] sm:$0xff]
        %v3372 = vld [vmem:[#allocation2 + $0x70] sm:$0x3]
        %v3373 = vld [vmem:[#allocation2 + $0x78] sm:$0xff]
        %v3374 = vld [vmem:[#allocation2 + $0x80] sm:$0xff]
        %v3375 = vld [vmem:[#allocation2 + $0x88] sm:$0x3]
        %v3376 = vld [vmem:[#allocation2 + $0x90] sm:$0xff]
        %v3377 = vld [vmem:[#allocation2 + $0x98] sm:$0xff]
        %v3378 = vld [vmem:[#allocation2 + $0xa0] sm:$0x3]
        %v3379 = vld [vmem:[#allocation2 + $0xa8] sm:$0xff]
        %v3380 = vld [vmem:[#allocation2 + $0xb0] sm:$0xff]
        %v3381 = vld [vmem:[#allocation2 + $0xb8] sm:$0x3]
        %v3382 = vld [vmem:[#allocation2 + $0xc0] sm:$0xff]
        %v3383 = vld [vmem:[#allocation2 + $0xc8] sm:$0xff]
        %v3384 = vld [vmem:[#allocation2 + $0xd0] sm:$0x3]
        %v3385 = vld [vmem:[#allocation2 + $0xd8] sm:$0xff]
        %v3386 = vld [vmem:[#allocation2 + $0xe0] sm:$0xff]
        %v3387 = vld [vmem:[#allocation2 + $0xe8] sm:$0x3]
        %v3388 = vld [vmem:[#allocation2 + $0xf0] sm:$0xff]
        %v3389 = vld [vmem:[#allocation2 + $0xf8] sm:$0xff]
        %v3390 = vld [vmem:[#allocation2 + $0x100] sm:$0x3]
        %v3391 = vld [vmem:[#allocation2 + $0x108] sm:$0xff]
        %v3392 = vld [vmem:[#allocation2 + $0x110] sm:$0xff]
        %v3393 = vld [vmem:[#allocation2 + $0x118] sm:$0x3]
        %v3394 = vld [vmem:[#allocation2 + $0x120] sm:$0xff]
        %v3395 = vld [vmem:[#allocation2 + $0x128] sm:$0xff]
        %v3396 = vld [vmem:[#allocation2 + $0x130] sm:$0x3]
        %v3397 = vld [vmem:[#allocation2 + $0x138] sm:$0xff]
        %v3398 = vld [vmem:[#allocation2 + $0x140] sm:$0xff]
        %v3399 = vld [vmem:[#allocation2 + $0x148] sm:$0x3]
        %v3400 = vld [vmem:[#allocation2 + $0x150] sm:$0xff]
        %v3401 = vld [vmem:[#allocation2 + $0x158] sm:$0xff]
        %v3402 = vld [vmem:[#allocation2 + $0x160] sm:$0x3]
        %v3403 = vld [vmem:[#allocation2 + $0x168] sm:$0xff]
        %v3404 = vld [vmem:[#allocation2 + $0x170] sm:$0xff]
        %v3405 = vld [vmem:[#allocation2 + $0x178] sm:$0x3]
        %v3406 = vld [vmem:[#allocation2 + $0x180] sm:$0xff]
        %v3407 = vld [vmem:[#allocation2 + $0x188] sm:$0xff]
        %v3408 = vld [vmem:[#allocation2 + $0x190] sm:$0x3]
        %v3409 = vld [vmem:[#allocation2 + $0x198] sm:$0xff]
        %v3410 = vld [vmem:[#allocation2 + $0x1a0] sm:$0xff]
        %v3411 = vld [vmem:[#allocation2 + $0x1a8] sm:$0x3]
        %v3412 = vld [vmem:[%s4] sm:$0xff]
        %v3413 = vld [vmem:[%s4 + $0x8] sm:$0xff]
        %v3414 = vld [vmem:[%s4 + $0x10] sm:$0xff]
        %v3415 = vld [vmem:[%s4 + $0x18] sm:$0xff]
        %v3464 = vrot.slane %v3358, 1
        %v3465 = vrot.slane %v3359, 1
        %v3466 = vsel %vm461, %v3464, %v3465
        %v3467 = vrot.slane %v3360, 1
        %v3468 = vsel %vm461, %v3465, %v3467
        %v3469 = vrot.slane %v3361, 1
        %v3470 = vrot.slane %v3362, 1
        %v3471 = vsel %vm461, %v3469, %v3470
        %v3472 = vrot.slane %v3363, 1
        %v3473 = vsel %vm461, %v3470, %v3472
        %v3474 = vrot.slane %v3364, 1
        %v3475 = vrot.slane %v3365, 1
        %v3476 = vsel %vm461, %v3474, %v3475
        %v3477 = vrot.slane %v3366, 1
        %v3478 = vsel %vm461, %v3475, %v3477
        %v3479 = vrot.slane %v3367, 1
        %v3480 = vrot.slane %v3368, 1
        %v3481 = vsel %vm461, %v3479, %v3480
        %v3482 = vrot.slane %v3369, 1
        %v3483 = vsel %vm461, %v3480, %v3482
        %v3484 = vrot.slane %v3370, 1
        %v3485 = vrot.slane %v3371, 1
        %v3486 = vsel %vm461, %v3484, %v3485
        %v3487 = vrot.slane %v3372, 1
        %v3488 = vsel %vm461, %v3485, %v3487
        %v3489 = vrot.slane %v3373, 1
        %v3490 = vrot.slane %v3374, 1
        %v3491 = vsel %vm461, %v3489, %v3490
        %v3492 = vrot.slane %v3375, 1
        %v3493 = vsel %vm461, %v3490, %v3492
        %v3494 = vrot.slane %v3376, 1
        %v3495 = vrot.slane %v3377, 1
        %v3496 = vsel %vm461, %v3494, %v3495
        %v3497 = vrot.slane %v3378, 1
        %v3498 = vsel %vm461, %v3495, %v3497
        %v3499 = vrot.slane %v3379, 1
        %v3500 = vrot.slane %v3380, 1
        %v3501 = vsel %vm461, %v3499, %v3500
        %v3502 = vrot.slane %v3381, 1
        %v3503 = vsel %vm461, %v3500, %v3502
        %v3504 = vrot.slane %v3382, 1
        %v3505 = vrot.slane %v3383, 1
        %v3506 = vsel %vm461, %v3504, %v3505
        %v3507 = vrot.slane %v3384, 1
        %v3508 = vsel %vm461, %v3505, %v3507
        %v3509 = vrot.slane %v3385, 1
        %v3510 = vrot.slane %v3386, 1
        %v3511 = vsel %vm461, %v3509, %v3510
        %v3512 = vrot.slane %v3387, 1
        %v3513 = vsel %vm461, %v3510, %v3512
        %v3514 = vrot.slane %v3388, 1
        %v3515 = vrot.slane %v3389, 1
        %v3516 = vsel %vm461, %v3514, %v3515
        %v3517 = vrot.slane %v3390, 1
        %v3518 = vsel %vm461, %v3515, %v3517
        %v3519 = vrot.slane %v3391, 1
        %v3520 = vrot.slane %v3392, 1
        %v3521 = vsel %vm461, %v3519, %v3520
        %v3522 = vrot.slane %v3393, 1
        %v3523 = vsel %vm461, %v3520, %v3522
        %v3524 = vrot.slane %v3394, 1
        %v3525 = vrot.slane %v3395, 1
        %v3526 = vsel %vm461, %v3524, %v3525
        %v3527 = vrot.slane %v3396, 1
        %v3528 = vsel %vm461, %v3525, %v3527
        %v3529 = vrot.slane %v3397, 1
        %v3530 = vrot.slane %v3398, 1
        %v3531 = vsel %vm461, %v3529, %v3530
        %v3532 = vrot.slane %v3399, 1
        %v3533 = vsel %vm461, %v3530, %v3532
        %v3534 = vrot.slane %v3400, 1
        %v3535 = vrot.slane %v3401, 1
        %v3536 = vsel %vm461, %v3534, %v3535
        %v3537 = vrot.slane %v3402, 1
        %v3538 = vsel %vm461, %v3535, %v3537
        %v3539 = vrot.slane %v3403, 1
        %v3540 = vrot.slane %v3404, 1
        %v3541 = vsel %vm461, %v3539, %v3540
        %v3542 = vrot.slane %v3405, 1
        %v3543 = vsel %vm461, %v3540, %v3542
        %s3544 = scalar_lea.vmem %s4, 32
        %v3545 = vld [vmem:[%s3544] sm:$0xff]
        %v3546 = vld [vmem:[%s3544 + $0x8] sm:$0xff]
        %v3547 = vld [vmem:[%s3544 + $0x10] sm:$0xff]
        %v3548 = vld [vmem:[%s3544 + $0x18] sm:$0xff]
        %v3549 = vsel %vm3269, %v3466, 0
        %v3551 = vsel %vm3269, %v3468, 0
        %v3553 = vsel %vm3269, %v3471, 0
        %v3555 = vsel %vm3269, %v3473, 0
        %v3557 = vsel %vm3269, %v3476, 0
        %v3559 = vsel %vm3269, %v3478, 0
        %v3561 = vsel %vm3269, %v3481, 0
        %v3563 = vsel %vm3269, %v3483, 0
        %v3565 = vsel %vm3269, %v3486, 0
        %v3567 = vsel %vm3269, %v3488, 0
        %v3569 = vsel %vm3269, %v3491, 0
        %v3571 = vsel %vm3269, %v3493, 0
        %v3573 = vsel %vm3269, %v3496, 0
        %v3575 = vsel %vm3269, %v3498, 0
        %v3577 = vsel %vm3269, %v3501, 0
        %v3579 = vsel %vm3269, %v3503, 0
        %v3581 = vsel %vm3269, %v3506, 0
        %v3583 = vsel %vm3269, %v3508, 0
        %v3585 = vsel %vm3269, %v3511, 0
        %v3587 = vsel %vm3269, %v3513, 0
        %v3589 = vsel %vm3269, %v3516, 0
        %v3591 = vsel %vm3269, %v3518, 0
        %v3593 = vsel %vm3269, %v3521, 0
        %v3595 = vsel %vm3269, %v3523, 0
        %v3597 = vsel %vm3269, %v3526, 0
        %v3599 = vsel %vm3269, %v3528, 0
        %v3601 = vsel %vm3269, %v3531, 0
        %v3603 = vsel %vm3269, %v3533, 0
        %v3605 = vsel %vm3269, %v3536, 0
        %v3607 = vsel %vm3269, %v3538, 0
        %v3609 = vsel %vm3269, %v3541, 0
        %v3611 = vsel %vm3269, %v3543, 0
        %3613 = vmatprep.subr.mxu0 0.0
        %3614 = vmatpush1.msra.mxu0 %v3545
        %3615 = vmatprep.subr.mxu0 0.0
        %3616 = vmatpush1.msra.mxu0 %v3546
        %3617 = vmatprep.subr.mxu0 0.0
        %3618 = vmatpush1.msra.mxu0 %v3547
        %3619 = vmatprep.subr.mxu0 0.0
        %3620 = vmatpush1.msra.mxu0 %v3548
        %3621 = vmatprep.subr.mxu0 0.0
        %3622 = vmatpush1.msra.mxu0 0.0
        %3623 = vmatprep.subr.mxu0 0.0
        %3624 = vmatpush1.msra.mxu0 0.0
        %3625 = vmatprep.subr.mxu0 0.0
        %3626 = vmatpush1.msra.mxu0 0.0
        %3627 = vmatprep.subr.mxu0 0.0
        %3628 = vmatpush1.msra.mxu0 0.0
        %3629 = vmatprep.subr.mxu0 0.0
        %3630 = vmatpush1.msra.mxu0 0.0
        %3631 = vmatprep.subr.mxu0 0.0
        %3632 = vmatpush1.msra.mxu0 0.0
        %3633 = vmatprep.subr.mxu0 0.0
        %3634 = vmatpush1.msra.mxu0 0.0
        %3635 = vmatprep.subr.mxu0 0.0
        %3636 = vmatpush1.msra.mxu0 0.0
        %3637 = vmatprep.subr.mxu0 0.0
        %3638 = vmatpush1.msra.mxu0 0.0
        %3639 = vmatprep.subr.mxu0 0.0
        %3640 = vmatpush1.msra.mxu0 0.0
        %3641 = vmatprep.subr.mxu0 0.0
        %3642 = vmatpush1.msra.mxu0 0.0
        %3643 = vmatprep.subr.mxu0 0.0
        %3644 = vmatpush1.msra.mxu0 0.0
        %3645 = vmatprep.subr.mxu0 0.0
        %3646 = vmatpush1.msra.mxu0 0.0
        %3647 = vmatprep.subr.mxu0 0.0
        %3648 = vmatpush1.msra.mxu0 0.0
        %3649 = vmatprep.subr.mxu0 0.0
        %3650 = vmatpush1.msra.mxu0 0.0
        %3651 = vmatprep.subr.mxu0 0.0
        %3652 = vmatpush1.msra.mxu0 0.0
        %3653 = vmatprep.subr.mxu0 0.0
        %3654 = vmatpush1.msra.mxu0 0.0
        %3655 = vmatprep.subr.mxu0 0.0
        %3656 = vmatpush1.msra.mxu0 0.0
        %3657 = vmatprep.subr.mxu0 0.0
        %3658 = vmatpush1.msra.mxu0 0.0
        %3659 = vmatprep.subr.mxu0 0.0
        %3660 = vmatpush1.msra.mxu0 0.0
        %3661 = vmatprep.subr.mxu0 0.0
        %3662 = vmatpush1.msra.mxu0 0.0
        %3663 = vmatprep.subr.mxu0 0.0
        %3664 = vmatpush1.msra.mxu0 0.0
        %3665 = vmatprep.subr.mxu0 0.0
        %3666 = vmatpush1.msra.mxu0 0.0
        %3667 = vmatprep.subr.mxu0 0.0
        %3668 = vmatpush1.msra.mxu0 0.0
        %3669 = vmatprep.subr.mxu0 0.0
        %3670 = vmatpush1.msra.mxu0 0.0
        %3671 = vmatprep.subr.mxu0 0.0
        %3672 = vmatpush1.msra.mxu0 0.0
        %3673 = vmatprep.subr.mxu0 0.0
        %3674 = vmatpush1.msra.mxu0 0.0
        %3675 = vmatprep.subr.mxu0 0.0
        %3676 = vmatpush1.msra.mxu0 0.0
        %3677 = vmatprep.mubr.f32.mxu0 0.0
        %3678 = vmatmul.mubr.f32.gmra.mrb[0].mxu0 %v3549
        %v3679 = vpop.f32.mrb[0].mxu0
        %v3680 = vadd.f32 0.0, %v3679
        %v3681 = vpop.f32.mrb[0].mxu0
        %3682 = vmatprep.mubr.f32.mxu0 0.0
        %3683 = vmatmul.mubr.f32.gmra.mrb[0].mxu0 %v3551
        %v3684 = vpop.f32.mrb[0].mxu0
        %v3685 = vadd.f32 0.0, %v3684
        %v3686 = vpop.f32.mrb[0].mxu0
        %3687 = vmatprep.mubr.f32.mxu0 0.0
        %3688 = vmatmul.mubr.f32.gmra.mrb[0].mxu0 %v3553
        %v3689 = vpop.f32.mrb[0].mxu0
        %v3690 = vadd.f32 0.0, %v3689
        %v3691 = vpop.f32.mrb[0].mxu0
        %3692 = vmatprep.mubr.f32.mxu0 0.0
        %3693 = vmatmul.mubr.f32.gmra.mrb[0].mxu0 %v3555
        %v3694 = vpop.f32.mrb[0].mxu0
        %v3695 = vadd.f32 0.0, %v3694
        %v3696 = vpop.f32.mrb[0].mxu0
        %3697 = vmatprep.mubr.f32.mxu0 0.0
        %3698 = vmatmul.mubr.f32.gmra.mrb[0].mxu0 %v3557
        %v3699 = vpop.f32.mrb[0].mxu0
        %v3700 = vadd.f32 0.0, %v3699
        %v3701 = vpop.f32.mrb[0].mxu0
        %3702 = vmatprep.mubr.f32.mxu0 0.0
        %3703 = vmatmul.mubr.f32.gmra.mrb[0].mxu0 %v3559
        %v3704 = vpop.f32.mrb[0].mxu0
        %v3705 = vadd.f32 0.0, %v3704
        %v3706 = vpop.f32.mrb[0].mxu0
        %3707 = vmatprep.mubr.f32.mxu0 0.0
        %3708 = vmatmul.mubr.f32.gmra.mrb[0].mxu0 %v3561
        %v3709 = vpop.f32.mrb[0].mxu0
        %v3710 = vadd.f32 0.0, %v3709
        %v3711 = vpop.f32.mrb[0].mxu0
        %3712 = vmatprep.mubr.f32.mxu0 0.0
        %3713 = vmatmul.mubr.f32.gmra.mrb[0].mxu0 %v3563
        %v3714 = vpop.f32.mrb[0].mxu0
        %v3715 = vadd.f32 0.0, %v3714
        %v3716 = vpop.f32.mrb[0].mxu0
        %3717 = vmatprep.mubr.f32.mxu0 0.0
        %3718 = vmatmul.mubr.f32.gmra.mrb[0].mxu0 %v3565
        %v3719 = vpop.f32.mrb[0].mxu0
        %v3720 = vadd.f32 0.0, %v3719
        %v3721 = vpop.f32.mrb[0].mxu0
        %3722 = vmatprep.mubr.f32.mxu0 0.0
        %3723 = vmatmul.mubr.f32.gmra.mrb[0].mxu0 %v3567
        %v3724 = vpop.f32.mrb[0].mxu0
        %v3725 = vadd.f32 0.0, %v3724
        %v3726 = vpop.f32.mrb[0].mxu0
        %3727 = vmatprep.mubr.f32.mxu0 0.0
        %3728 = vmatmul.mubr.f32.gmra.mrb[0].mxu0 %v3569
        %v3729 = vpop.f32.mrb[0].mxu0
        %v3730 = vadd.f32 0.0, %v3729
        %v3731 = vpop.f32.mrb[0].mxu0
        %3732 = vmatprep.mubr.f32.mxu0 0.0
        %3733 = vmatmul.mubr.f32.gmra.mrb[0].mxu0 %v3571
        %v3734 = vpop.f32.mrb[0].mxu0
        %v3735 = vadd.f32 0.0, %v3734
        %v3736 = vpop.f32.mrb[0].mxu0
        %3737 = vmatprep.mubr.f32.mxu0 0.0
        %3738 = vmatmul.mubr.f32.gmra.mrb[0].mxu0 %v3573
        %v3739 = vpop.f32.mrb[0].mxu0
        %v3740 = vadd.f32 0.0, %v3739
        %v3741 = vpop.f32.mrb[0].mxu0
        %3742 = vmatprep.mubr.f32.mxu0 0.0
        %3743 = vmatmul.mubr.f32.gmra.mrb[0].mxu0 %v3575
        %v3744 = vpop.f32.mrb[0].mxu0
        %v3745 = vadd.f32 0.0, %v3744
        %v3746 = vpop.f32.mrb[0].mxu0
        %3747 = vmatprep.mubr.f32.mxu0 0.0
        %3748 = vmatmul.mubr.f32.gmra.mrb[0].mxu0 %v3577
        %v3749 = vpop.f32.mrb[0].mxu0
        %v3750 = vadd.f32 0.0, %v3749
        %v3751 = vpop.f32.mrb[0].mxu0
        %3752 = vmatprep.mubr.f32.mxu0 0.0
        %3753 = vmatmul.mubr.f32.gmra.mrb[0].mxu0 %v3579
        %v3754 = vpop.f32.mrb[0].mxu0
        %v3755 = vadd.f32 0.0, %v3754
        %v3756 = vpop.f32.mrb[0].mxu0
        %3757 = vmatprep.mubr.f32.mxu0 0.0
        %3758 = vmatmul.mubr.f32.gmra.mrb[0].mxu0 %v3581
        %v3759 = vpop.f32.mrb[0].mxu0
        %v3760 = vadd.f32 0.0, %v3759
        %v3761 = vpop.f32.mrb[0].mxu0
        %3762 = vmatprep.mubr.f32.mxu0 0.0
        %3763 = vmatmul.mubr.f32.gmra.mrb[0].mxu0 %v3583
        %v3764 = vpop.f32.mrb[0].mxu0
        %v3765 = vadd.f32 0.0, %v3764
        %v3766 = vpop.f32.mrb[0].mxu0
        %3767 = vmatprep.mubr.f32.mxu0 0.0
        %3768 = vmatmul.mubr.f32.gmra.mrb[0].mxu0 %v3585
        %v3769 = vpop.f32.mrb[0].mxu0
        %v3770 = vadd.f32 0.0, %v3769
        %v3771 = vpop.f32.mrb[0].mxu0
        %3772 = vmatprep.mubr.f32.mxu0 0.0
        %3773 = vmatmul.mubr.f32.gmra.mrb[0].mxu0 %v3587
        %v3774 = vpop.f32.mrb[0].mxu0
        %v3775 = vadd.f32 0.0, %v3774
        %v3776 = vpop.f32.mrb[0].mxu0
        %3777 = vmatprep.mubr.f32.mxu0 0.0
        %3778 = vmatmul.mubr.f32.gmra.mrb[0].mxu0 %v3589
        %v3779 = vpop.f32.mrb[0].mxu0
        %v3780 = vadd.f32 0.0, %v3779
        %v3781 = vpop.f32.mrb[0].mxu0
        %3782 = vmatprep.mubr.f32.mxu0 0.0
        %3783 = vmatmul.mubr.f32.gmra.mrb[0].mxu0 %v3591
        %v3784 = vpop.f32.mrb[0].mxu0
        %v3785 = vadd.f32 0.0, %v3784
        %v3786 = vpop.f32.mrb[0].mxu0
        %3787 = vmatprep.mubr.f32.mxu0 0.0
        %3788 = vmatmul.mubr.f32.gmra.mrb[0].mxu0 %v3593
        %v3789 = vpop.f32.mrb[0].mxu0
        %v3790 = vadd.f32 0.0, %v3789
        %v3791 = vpop.f32.mrb[0].mxu0
        %3792 = vmatprep.mubr.f32.mxu0 0.0
        %3793 = vmatmul.mubr.f32.gmra.mrb[0].mxu0 %v3595
        %v3794 = vpop.f32.mrb[0].mxu0
        %v3795 = vadd.f32 0.0, %v3794
        %v3796 = vpop.f32.mrb[0].mxu0
        %3797 = vmatprep.mubr.f32.mxu0 0.0
        %3798 = vmatmul.mubr.f32.gmra.mrb[0].mxu0 %v3597
        %v3799 = vpop.f32.mrb[0].mxu0
        %v3800 = vadd.f32 0.0, %v3799
        %v3801 = vpop.f32.mrb[0].mxu0
        %3802 = vmatprep.mubr.f32.mxu0 0.0
        %3803 = vmatmul.mubr.f32.gmra.mrb[0].mxu0 %v3599
        %v3804 = vpop.f32.mrb[0].mxu0
        %v3805 = vadd.f32 0.0, %v3804
        %v3806 = vpop.f32.mrb[0].mxu0
        %3807 = vmatprep.mubr.f32.mxu0 0.0
        %3808 = vmatmul.mubr.f32.gmra.mrb[0].mxu0 %v3601
        %v3809 = vpop.f32.mrb[0].mxu0
        %v3810 = vadd.f32 0.0, %v3809
        %v3811 = vpop.f32.mrb[0].mxu0
        %3812 = vmatprep.mubr.f32.mxu0 0.0
        %3813 = vmatmul.mubr.f32.gmra.mrb[0].mxu0 %v3603
        %v3814 = vpop.f32.mrb[0].mxu0
        %v3815 = vadd.f32 0.0, %v3814
        %v3816 = vpop.f32.mrb[0].mxu0
        %3817 = vmatprep.mubr.f32.mxu0 0.0
        %3818 = vmatmul.mubr.f32.gmra.mrb[0].mxu0 %v3605
        %v3819 = vpop.f32.mrb[0].mxu0
        %v3820 = vadd.f32 0.0, %v3819
        %v3821 = vpop.f32.mrb[0].mxu0
        %3822 = vmatprep.mubr.f32.mxu0 0.0
        %3823 = vmatmul.mubr.f32.gmra.mrb[0].mxu0 %v3607
        %v3824 = vpop.f32.mrb[0].mxu0
        %v3825 = vadd.f32 0.0, %v3824
        %v3826 = vpop.f32.mrb[0].mxu0
        %3827 = vmatprep.mubr.f32.mxu0 0.0
        %3828 = vmatmul.mubr.f32.gmra.mrb[0].mxu0 %v3609
        %v3829 = vpop.f32.mrb[0].mxu0
        %v3830 = vadd.f32 0.0, %v3829
        %v3831 = vpop.f32.mrb[0].mxu0
        %3832 = vmatprep.mubr.f32.mxu0 0.0
        %3833 = vmatmul.mubr.f32.gmra.mrb[0].mxu0 %v3611
        %v3834 = vpop.f32.mrb[0].mxu0
        %v3835 = vadd.f32 0.0, %v3834
        %v3836 = vpop.f32.mrb[0].mxu0
        %3837 = vdwg.mxu0
        %v3838 = vsel %vm3269, %v3358, 0
        %v3840 = vsel %vm3269, %v3359, 0
        %v3842 = vsel %vm3269, %v3361, 0
        %v3844 = vsel %vm3269, %v3362, 0
        %v3846 = vsel %vm3269, %v3364, 0
        %v3848 = vsel %vm3269, %v3365, 0
        %v3850 = vsel %vm3269, %v3367, 0
        %v3852 = vsel %vm3269, %v3368, 0
        %v3854 = vsel %vm3269, %v3370, 0
        %v3856 = vsel %vm3269, %v3371, 0
        %v3858 = vsel %vm3269, %v3373, 0
        %v3860 = vsel %vm3269, %v3374, 0
        %v3862 = vsel %vm3269, %v3376, 0
        %v3864 = vsel %vm3269, %v3377, 0
        %v3866 = vsel %vm3269, %v3379, 0
        %v3868 = vsel %vm3269, %v3380, 0
        %v3870 = vsel %vm3269, %v3382, 0
        %v3872 = vsel %vm3269, %v3383, 0
        %v3874 = vsel %vm3269, %v3385, 0
        %v3876 = vsel %vm3269, %v3386, 0
        %v3878 = vsel %vm3269, %v3388, 0
        %v3880 = vsel %vm3269, %v3389, 0
        %v3882 = vsel %vm3269, %v3391, 0
        %v3884 = vsel %vm3269, %v3392, 0
        %v3886 = vsel %vm3269, %v3394, 0
        %v3888 = vsel %vm3269, %v3395, 0
        %v3890 = vsel %vm3269, %v3397, 0
        %v3892 = vsel %vm3269, %v3398, 0
        %v3894 = vsel %vm3269, %v3400, 0
        %v3896 = vsel %vm3269, %v3401, 0
        %v3898 = vsel %vm3269, %v3403, 0
        %v3900 = vsel %vm3269, %v3404, 0
        %3902 = vmatprep.subr.mxu0 0.0
        %3903 = vmatpush1.msra.mxu0 %v3412
        %3904 = vmatprep.subr.mxu0 0.0
        %3905 = vmatpush1.msra.mxu0 %v3413
        %3906 = vmatprep.subr.mxu0 0.0
        %3907 = vmatpush1.msra.mxu0 %v3414
        %3908 = vmatprep.subr.mxu0 0.0
        %3909 = vmatpush1.msra.mxu0 %v3415
        %3910 = vmatprep.subr.mxu0 0.0
        %3911 = vmatpush1.msra.mxu0 0.0
        %3912 = vmatprep.subr.mxu0 0.0
        %3913 = vmatpush1.msra.mxu0 0.0
        %3914 = vmatprep.subr.mxu0 0.0
        %3915 = vmatpush1.msra.mxu0 0.0
        %3916 = vmatprep.subr.mxu0 0.0
        %3917 = vmatpush1.msra.mxu0 0.0
        %3918 = vmatprep.subr.mxu0 0.0
        %3919 = vmatpush1.msra.mxu0 0.0
        %3920 = vmatprep.subr.mxu0 0.0
        %3921 = vmatpush1.msra.mxu0 0.0
        %3922 = vmatprep.subr.mxu0 0.0
        %3923 = vmatpush1.msra.mxu0 0.0
        %3924 = vmatprep.subr.mxu0 0.0
        %3925 = vmatpush1.msra.mxu0 0.0
        %3926 = vmatprep.subr.mxu0 0.0
        %3927 = vmatpush1.msra.mxu0 0.0
        %3928 = vmatprep.subr.mxu0 0.0
        %3929 = vmatpush1.msra.mxu0 0.0
        %3930 = vmatprep.subr.mxu0 0.0
        %3931 = vmatpush1.msra.mxu0 0.0
        %3932 = vmatprep.subr.mxu0 0.0
        %3933 = vmatpush1.msra.mxu0 0.0
        %3934 = vmatprep.subr.mxu0 0.0
        %3935 = vmatpush1.msra.mxu0 0.0
        %3936 = vmatprep.subr.mxu0 0.0
        %3937 = vmatpush1.msra.mxu0 0.0
        %3938 = vmatprep.subr.mxu0 0.0
        %3939 = vmatpush1.msra.mxu0 0.0
        %3940 = vmatprep.subr.mxu0 0.0
        %3941 = vmatpush1.msra.mxu0 0.0
        %3942 = vmatprep.subr.mxu0 0.0
        %3943 = vmatpush1.msra.mxu0 0.0
        %3944 = vmatprep.subr.mxu0 0.0
        %3945 = vmatpush1.msra.mxu0 0.0
        %3946 = vmatprep.subr.mxu0 0.0
        %3947 = vmatpush1.msra.mxu0 0.0
        %3948 = vmatprep.subr.mxu0 0.0
        %3949 = vmatpush1.msra.mxu0 0.0
        %3950 = vmatprep.subr.mxu0 0.0
        %3951 = vmatpush1.msra.mxu0 0.0
        %3952 = vmatprep.subr.mxu0 0.0
        %3953 = vmatpush1.msra.mxu0 0.0
        %3954 = vmatprep.subr.mxu0 0.0
        %3955 = vmatpush1.msra.mxu0 0.0
        %3956 = vmatprep.subr.mxu0 0.0
        %3957 = vmatpush1.msra.mxu0 0.0
        %3958 = vmatprep.subr.mxu0 0.0
        %3959 = vmatpush1.msra.mxu0 0.0
        %3960 = vmatprep.subr.mxu0 0.0
        %3961 = vmatpush1.msra.mxu0 0.0
        %3962 = vmatprep.subr.mxu0 0.0
        %3963 = vmatpush1.msra.mxu0 0.0
        %3964 = vmatprep.subr.mxu0 0.0
        %3965 = vmatpush1.msra.mxu0 0.0
        %3966 = vmatprep.mubr.f32.mxu0 0.0
        %3967 = vmatmul.mubr.f32.gmra.mrb[0].mxu0 %v3838
        %v3968 = vpop.f32.mrb[0].mxu0
        %v3969 = vadd.f32 %v3680, %v3968
        %v3970 = vpop.f32.mrb[0].mxu0
        %3971 = vmatprep.mubr.f32.mxu0 0.0
        %3972 = vmatmul.mubr.f32.gmra.mrb[0].mxu0 %v3840
        %v3973 = vpop.f32.mrb[0].mxu0
        %v3974 = vadd.f32 %v3685, %v3973
        %v3975 = vpop.f32.mrb[0].mxu0
        %3976 = vmatprep.mubr.f32.mxu0 0.0
        %3977 = vmatmul.mubr.f32.gmra.mrb[0].mxu0 %v3842
        %v3978 = vpop.f32.mrb[0].mxu0
        %v3979 = vadd.f32 %v3690, %v3978
        %v3980 = vpop.f32.mrb[0].mxu0
        %3981 = vmatprep.mubr.f32.mxu0 0.0
        %3982 = vmatmul.mubr.f32.gmra.mrb[0].mxu0 %v3844
        %v3983 = vpop.f32.mrb[0].mxu0
        %v3984 = vadd.f32 %v3695, %v3983
        %v3985 = vpop.f32.mrb[0].mxu0
        %3986 = vmatprep.mubr.f32.mxu0 0.0
        %3987 = vmatmul.mubr.f32.gmra.mrb[0].mxu0 %v3846
        %v3988 = vpop.f32.mrb[0].mxu0
        %v3989 = vadd.f32 %v3700, %v3988
        %v3990 = vpop.f32.mrb[0].mxu0
        %3991 = vmatprep.mubr.f32.mxu0 0.0
        %3992 = vmatmul.mubr.f32.gmra.mrb[0].mxu0 %v3848
        %v3993 = vpop.f32.mrb[0].mxu0
        %v3994 = vadd.f32 %v3705, %v3993
        %v3995 = vpop.f32.mrb[0].mxu0
        %3996 = vmatprep.mubr.f32.mxu0 0.0
        %3997 = vmatmul.mubr.f32.gmra.mrb[0].mxu0 %v3850
        %v3998 = vpop.f32.mrb[0].mxu0
        %v3999 = vadd.f32 %v3710, %v3998
        %v4000 = vpop.f32.mrb[0].mxu0
        %4001 = vmatprep.mubr.f32.mxu0 0.0
        %4002 = vmatmul.mubr.f32.gmra.mrb[0].mxu0 %v3852
        %v4003 = vpop.f32.mrb[0].mxu0
        %v4004 = vadd.f32 %v3715, %v4003
        %v4005 = vpop.f32.mrb[0].mxu0
        %4006 = vmatprep.mubr.f32.mxu0 0.0
        %4007 = vmatmul.mubr.f32.gmra.mrb[0].mxu0 %v3854
        %v4008 = vpop.f32.mrb[0].mxu0
        %v4009 = vadd.f32 %v3720, %v4008
        %v4010 = vpop.f32.mrb[0].mxu0
        %4011 = vmatprep.mubr.f32.mxu0 0.0
        %4012 = vmatmul.mubr.f32.gmra.mrb[0].mxu0 %v3856
        %v4013 = vpop.f32.mrb[0].mxu0
        %v4014 = vadd.f32 %v3725, %v4013
        %v4015 = vpop.f32.mrb[0].mxu0
        %4016 = vmatprep.mubr.f32.mxu0 0.0
        %4017 = vmatmul.mubr.f32.gmra.mrb[0].mxu0 %v3858
        %v4018 = vpop.f32.mrb[0].mxu0
        %v4019 = vadd.f32 %v3730, %v4018
        %v4020 = vpop.f32.mrb[0].mxu0
        %4021 = vmatprep.mubr.f32.mxu0 0.0
        %4022 = vmatmul.mubr.f32.gmra.mrb[0].mxu0 %v3860
        %v4023 = vpop.f32.mrb[0].mxu0
        %v4024 = vadd.f32 %v3735, %v4023
        %v4025 = vpop.f32.mrb[0].mxu0
        %4026 = vmatprep.mubr.f32.mxu0 0.0
        %4027 = vmatmul.mubr.f32.gmra.mrb[0].mxu0 %v3862
        %v4028 = vpop.f32.mrb[0].mxu0
        %v4029 = vadd.f32 %v3740, %v4028
        %v4030 = vpop.f32.mrb[0].mxu0
        %4031 = vmatprep.mubr.f32.mxu0 0.0
        %4032 = vmatmul.mubr.f32.gmra.mrb[0].mxu0 %v3864
        %v4033 = vpop.f32.mrb[0].mxu0
        %v4034 = vadd.f32 %v3745, %v4033
        %v4035 = vpop.f32.mrb[0].mxu0
        %4036 = vmatprep.mubr.f32.mxu0 0.0
        %4037 = vmatmul.mubr.f32.gmra.mrb[0].mxu0 %v3866
        %v4038 = vpop.f32.mrb[0].mxu0
        %v4039 = vadd.f32 %v3750, %v4038
        %v4040 = vpop.f32.mrb[0].mxu0
        %4041 = vmatprep.mubr.f32.mxu0 0.0
        %4042 = vmatmul.mubr.f32.gmra.mrb[0].mxu0 %v3868
        %v4043 = vpop.f32.mrb[0].mxu0
        %v4044 = vadd.f32 %v3755, %v4043
        %v4045 = vpop.f32.mrb[0].mxu0
        %4046 = vmatprep.mubr.f32.mxu0 0.0
        %4047 = vmatmul.mubr.f32.gmra.mrb[0].mxu0 %v3870
        %v4048 = vpop.f32.mrb[0].mxu0
        %v4049 = vadd.f32 %v3760, %v4048
        %v4050 = vpop.f32.mrb[0].mxu0
        %4051 = vmatprep.mubr.f32.mxu0 0.0
        %4052 = vmatmul.mubr.f32.gmra.mrb[0].mxu0 %v3872
        %v4053 = vpop.f32.mrb[0].mxu0
        %v4054 = vadd.f32 %v3765, %v4053
        %v4055 = vpop.f32.mrb[0].mxu0
        %4056 = vmatprep.mubr.f32.mxu0 0.0
        %4057 = vmatmul.mubr.f32.gmra.mrb[0].mxu0 %v3874
        %v4058 = vpop.f32.mrb[0].mxu0
        %v4059 = vadd.f32 %v3770, %v4058
        %v4060 = vpop.f32.mrb[0].mxu0
        %4061 = vmatprep.mubr.f32.mxu0 0.0
        %4062 = vmatmul.mubr.f32.gmra.mrb[0].mxu0 %v3876
        %v4063 = vpop.f32.mrb[0].mxu0
        %v4064 = vadd.f32 %v3775, %v4063
        %v4065 = vpop.f32.mrb[0].mxu0
        %4066 = vmatprep.mubr.f32.mxu0 0.0
        %4067 = vmatmul.mubr.f32.gmra.mrb[0].mxu0 %v3878
        %v4068 = vpop.f32.mrb[0].mxu0
        %v4069 = vadd.f32 %v3780, %v4068
        %v4070 = vpop.f32.mrb[0].mxu0
        %4071 = vmatprep.mubr.f32.mxu0 0.0
        %4072 = vmatmul.mubr.f32.gmra.mrb[0].mxu0 %v3880
        %v4073 = vpop.f32.mrb[0].mxu0
        %v4074 = vadd.f32 %v3785, %v4073
        %v4075 = vpop.f32.mrb[0].mxu0
        %4076 = vmatprep.mubr.f32.mxu0 0.0
        %4077 = vmatmul.mubr.f32.gmra.mrb[0].mxu0 %v3882
        %v4078 = vpop.f32.mrb[0].mxu0
        %v4079 = vadd.f32 %v3790, %v4078
        %v4080 = vpop.f32.mrb[0].mxu0
        %4081 = vmatprep.mubr.f32.mxu0 0.0
        %4082 = vmatmul.mubr.f32.gmra.mrb[0].mxu0 %v3884
        %v4083 = vpop.f32.mrb[0].mxu0
        %v4084 = vadd.f32 %v3795, %v4083
        %v4085 = vpop.f32.mrb[0].mxu0
        %4086 = vmatprep.mubr.f32.mxu0 0.0
        %4087 = vmatmul.mubr.f32.gmra.mrb[0].mxu0 %v3886
        %v4088 = vpop.f32.mrb[0].mxu0
        %v4089 = vadd.f32 %v3800, %v4088
        %v4090 = vpop.f32.mrb[0].mxu0
        %4091 = vmatprep.mubr.f32.mxu0 0.0
        %4092 = vmatmul.mubr.f32.gmra.mrb[0].mxu0 %v3888
        %v4093 = vpop.f32.mrb[0].mxu0
        %v4094 = vadd.f32 %v3805, %v4093
        %v4095 = vpop.f32.mrb[0].mxu0
        %4096 = vmatprep.mubr.f32.mxu0 0.0
        %4097 = vmatmul.mubr.f32.gmra.mrb[0].mxu0 %v3890
        %v4098 = vpop.f32.mrb[0].mxu0
        %v4099 = vadd.f32 %v3810, %v4098
        %v4100 = vpop.f32.mrb[0].mxu0
        %4101 = vmatprep.mubr.f32.mxu0 0.0
        %4102 = vmatmul.mubr.f32.gmra.mrb[0].mxu0 %v3892
        %v4103 = vpop.f32.mrb[0].mxu0
        %v4104 = vadd.f32 %v3815, %v4103
        %v4105 = vpop.f32.mrb[0].mxu0
        %4106 = vmatprep.mubr.f32.mxu0 0.0
        %4107 = vmatmul.mubr.f32.gmra.mrb[0].mxu0 %v3894
        %v4108 = vpop.f32.mrb[0].mxu0
        %v4109 = vadd.f32 %v3820, %v4108
        %v4110 = vpop.f32.mrb[0].mxu0
        %4111 = vmatprep.mubr.f32.mxu0 0.0
        %4112 = vmatmul.mubr.f32.gmra.mrb[0].mxu0 %v3896
        %v4113 = vpop.f32.mrb[0].mxu0
        %v4114 = vadd.f32 %v3825, %v4113
        %v4115 = vpop.f32.mrb[0].mxu0
        %4116 = vmatprep.mubr.f32.mxu0 0.0
        %4117 = vmatmul.mubr.f32.gmra.mrb[0].mxu0 %v3898
        %v4118 = vpop.f32.mrb[0].mxu0
        %v4119 = vadd.f32 %v3830, %v4118
        %v4120 = vpop.f32.mrb[0].mxu0
        %4121 = vmatprep.mubr.f32.mxu0 0.0
        %4122 = vmatmul.mubr.f32.gmra.mrb[0].mxu0 %v3900
        %v4123 = vpop.f32.mrb[0].mxu0
        %v4124 = vadd.f32 %v3835, %v4123
        %v4125 = vpop.f32.mrb[0].mxu0
        %4126 = vdwg.mxu0
        %v4127 = vrot.slane %v3358, 2
        %v4128 = vrot.slane %v3359, 2
        %v4129 = vsel %vm1130, %v4127, %v4128
        %v4130 = vrot.slane %v3360, 2
        %v4131 = vsel %vm1130, %v4128, %v4130
        %v4132 = vrot.slane %v3361, 2
        %v4133 = vrot.slane %v3362, 2
        %v4134 = vsel %vm1130, %v4132, %v4133
        %v4135 = vrot.slane %v3363, 2
        %v4136 = vsel %vm1130, %v4133, %v4135
        %v4137 = vrot.slane %v3364, 2
        %v4138 = vrot.slane %v3365, 2
        %v4139 = vsel %vm1130, %v4137, %v4138
        %v4140 = vrot.slane %v3366, 2
        %v4141 = vsel %vm1130, %v4138, %v4140
        %v4142 = vrot.slane %v3367, 2
        %v4143 = vrot.slane %v3368, 2
        %v4144 = vsel %vm1130, %v4142, %v4143
        %v4145 = vrot.slane %v3369, 2
        %v4146 = vsel %vm1130, %v4143, %v4145
        %v4147 = vrot.slane %v3370, 2
        %v4148 = vrot.slane %v3371, 2
        %v4149 = vsel %vm1130, %v4147, %v4148
        %v4150 = vrot.slane %v3372, 2
        %v4151 = vsel %vm1130, %v4148, %v4150
        %v4152 = vrot.slane %v3373, 2
        %v4153 = vrot.slane %v3374, 2
        %v4154 = vsel %vm1130, %v4152, %v4153
        %v4155 = vrot.slane %v3375, 2
        %v4156 = vsel %vm1130, %v4153, %v4155
        %v4157 = vrot.slane %v3376, 2
        %v4158 = vrot.slane %v3377, 2
        %v4159 = vsel %vm1130, %v4157, %v4158
        %v4160 = vrot.slane %v3378, 2
        %v4161 = vsel %vm1130, %v4158, %v4160
        %v4162 = vrot.slane %v3379, 2
        %v4163 = vrot.slane %v3380, 2
        %v4164 = vsel %vm1130, %v4162, %v4163
        %v4165 = vrot.slane %v3381, 2
        %v4166 = vsel %vm1130, %v4163, %v4165
        %v4167 = vrot.slane %v3382, 2
        %v4168 = vrot.slane %v3383, 2
        %v4169 = vsel %vm1130, %v4167, %v4168
        %v4170 = vrot.slane %v3384, 2
        %v4171 = vsel %vm1130, %v4168, %v4170
        %v4172 = vrot.slane %v3385, 2
        %v4173 = vrot.slane %v3386, 2
        %v4174 = vsel %vm1130, %v4172, %v4173
        %v4175 = vrot.slane %v3387, 2
        %v4176 = vsel %vm1130, %v4173, %v4175
        %v4177 = vrot.slane %v3388, 2
        %v4178 = vrot.slane %v3389, 2
        %v4179 = vsel %vm1130, %v4177, %v4178
        %v4180 = vrot.slane %v3390, 2
        %v4181 = vsel %vm1130, %v4178, %v4180
        %v4182 = vrot.slane %v3391, 2
        %v4183 = vrot.slane %v3392, 2
        %v4184 = vsel %vm1130, %v4182, %v4183
        %v4185 = vrot.slane %v3393, 2
        %v4186 = vsel %vm1130, %v4183, %v4185
        %v4187 = vrot.slane %v3394, 2
        %v4188 = vrot.slane %v3395, 2
        %v4189 = vsel %vm1130, %v4187, %v4188
        %v4190 = vrot.slane %v3396, 2
        %v4191 = vsel %vm1130, %v4188, %v4190
        %v4192 = vrot.slane %v3397, 2
        %v4193 = vrot.slane %v3398, 2
        %v4194 = vsel %vm1130, %v4192, %v4193
        %v4195 = vrot.slane %v3399, 2
        %v4196 = vsel %vm1130, %v4193, %v4195
        %v4197 = vrot.slane %v3400, 2
        %v4198 = vrot.slane %v3401, 2
        %v4199 = vsel %vm1130, %v4197, %v4198
        %v4200 = vrot.slane %v3402, 2
        %v4201 = vsel %vm1130, %v4198, %v4200
        %v4202 = vrot.slane %v3403, 2
        %v4203 = vrot.slane %v3404, 2
        %v4204 = vsel %vm1130, %v4202, %v4203
        %v4205 = vrot.slane %v3405, 2
        %v4206 = vsel %vm1130, %v4203, %v4205
        %s4207 = scalar_lea.vmem %s4, 64
        %v4208 = vld [vmem:[%s4207] sm:$0xff]
        %v4209 = vld [vmem:[%s4207 + $0x8] sm:$0xff]
        %v4210 = vld [vmem:[%s4207 + $0x10] sm:$0xff]
        %v4211 = vld [vmem:[%s4207 + $0x18] sm:$0xff]
        %v4212 = vsel %vm3269, %v4129, 0
        %v4214 = vsel %vm3269, %v4131, 0
        %v4216 = vsel %vm3269, %v4134, 0
        %v4218 = vsel %vm3269, %v4136, 0
        %v4220 = vsel %vm3269, %v4139, 0
        %v4222 = vsel %vm3269, %v4141, 0
        %v4224 = vsel %vm3269, %v4144, 0
        %v4226 = vsel %vm3269, %v4146, 0
        %v4228 = vsel %vm3269, %v4149, 0
        %v4230 = vsel %vm3269, %v4151, 0
        %v4232 = vsel %vm3269, %v4154, 0
        %v4234 = vsel %vm3269, %v4156, 0
        %v4236 = vsel %vm3269, %v4159, 0
        %v4238 = vsel %vm3269, %v4161, 0
        %v4240 = vsel %vm3269, %v4164, 0
        %v4242 = vsel %vm3269, %v4166, 0
        %v4244 = vsel %vm3269, %v4169, 0
        %v4246 = vsel %vm3269, %v4171, 0
        %v4248 = vsel %vm3269, %v4174, 0
        %v4250 = vsel %vm3269, %v4176, 0
        %v4252 = vsel %vm3269, %v4179, 0
        %v4254 = vsel %vm3269, %v4181, 0
        %v4256 = vsel %vm3269, %v4184, 0
        %v4258 = vsel %vm3269, %v4186, 0
        %v4260 = vsel %vm3269, %v4189, 0
        %v4262 = vsel %vm3269, %v4191, 0
        %v4264 = vsel %vm3269, %v4194, 0
        %v4266 = vsel %vm3269, %v4196, 0
        %v4268 = vsel %vm3269, %v4199, 0
        %v4270 = vsel %vm3269, %v4201, 0
        %v4272 = vsel %vm3269, %v4204, 0
        %v4274 = vsel %vm3269, %v4206, 0
        %4276 = vmatprep.subr.mxu0 0.0
        %4277 = vmatpush1.msra.mxu0 %v4208
        %4278 = vmatprep.subr.mxu0 0.0
        %4279 = vmatpush1.msra.mxu0 %v4209
        %4280 = vmatprep.subr.mxu0 0.0
        %4281 = vmatpush1.msra.mxu0 %v4210
        %4282 = vmatprep.subr.mxu0 0.0
        %4283 = vmatpush1.msra.mxu0 %v4211
        %4284 = vmatprep.subr.mxu0 0.0
        %4285 = vmatpush1.msra.mxu0 0.0
        %4286 = vmatprep.subr.mxu0 0.0
        %4287 = vmatpush1.msra.mxu0 0.0
        %4288 = vmatprep.subr.mxu0 0.0
        %4289 = vmatpush1.msra.mxu0 0.0
        %4290 = vmatprep.subr.mxu0 0.0
        %4291 = vmatpush1.msra.mxu0 0.0
        %4292 = vmatprep.subr.mxu0 0.0
        %4293 = vmatpush1.msra.mxu0 0.0
        %4294 = vmatprep.subr.mxu0 0.0
        %4295 = vmatpush1.msra.mxu0 0.0
        %4296 = vmatprep.subr.mxu0 0.0
        %4297 = vmatpush1.msra.mxu0 0.0
        %4298 = vmatprep.subr.mxu0 0.0
        %4299 = vmatpush1.msra.mxu0 0.0
        %4300 = vmatprep.subr.mxu0 0.0
        %4301 = vmatpush1.msra.mxu0 0.0
        %4302 = vmatprep.subr.mxu0 0.0
        %4303 = vmatpush1.msra.mxu0 0.0
        %4304 = vmatprep.subr.mxu0 0.0
        %4305 = vmatpush1.msra.mxu0 0.0
        %4306 = vmatprep.subr.mxu0 0.0
        %4307 = vmatpush1.msra.mxu0 0.0
        %4308 = vmatprep.subr.mxu0 0.0
        %4309 = vmatpush1.msra.mxu0 0.0
        %4310 = vmatprep.subr.mxu0 0.0
        %4311 = vmatpush1.msra.mxu0 0.0
        %4312 = vmatprep.subr.mxu0 0.0
        %4313 = vmatpush1.msra.mxu0 0.0
        %4314 = vmatprep.subr.mxu0 0.0
        %4315 = vmatpush1.msra.mxu0 0.0
        %4316 = vmatprep.subr.mxu0 0.0
        %4317 = vmatpush1.msra.mxu0 0.0
        %4318 = vmatprep.subr.mxu0 0.0
        %4319 = vmatpush1.msra.mxu0 0.0
        %4320 = vmatprep.subr.mxu0 0.0
        %4321 = vmatpush1.msra.mxu0 0.0
        %4322 = vmatprep.subr.mxu0 0.0
        %4323 = vmatpush1.msra.mxu0 0.0
        %4324 = vmatprep.subr.mxu0 0.0
        %4325 = vmatpush1.msra.mxu0 0.0
        %4326 = vmatprep.subr.mxu0 0.0
        %4327 = vmatpush1.msra.mxu0 0.0
        %4328 = vmatprep.subr.mxu0 0.0
        %4329 = vmatpush1.msra.mxu0 0.0
        %4330 = vmatprep.subr.mxu0 0.0
        %4331 = vmatpush1.msra.mxu0 0.0
        %4332 = vmatprep.subr.mxu0 0.0
        %4333 = vmatpush1.msra.mxu0 0.0
        %4334 = vmatprep.subr.mxu0 0.0
        %4335 = vmatpush1.msra.mxu0 0.0
        %4336 = vmatprep.subr.mxu0 0.0
        %4337 = vmatpush1.msra.mxu0 0.0
        %4338 = vmatprep.subr.mxu0 0.0
        %4339 = vmatpush1.msra.mxu0 0.0
        %4340 = vmatprep.mubr.f32.mxu0 0.0
        %4341 = vmatmul.mubr.f32.gmra.mrb[0].mxu0 %v4212
        %v4342 = vpop.f32.mrb[0].mxu0
        %v4343 = vadd.f32 0.0, %v4342
        %v4344 = vpop.f32.mrb[0].mxu0
        %4345 = vmatprep.mubr.f32.mxu0 0.0
        %4346 = vmatmul.mubr.f32.gmra.mrb[0].mxu0 %v4214
        %v4347 = vpop.f32.mrb[0].mxu0
        %v4348 = vadd.f32 0.0, %v4347
        %v4349 = vpop.f32.mrb[0].mxu0
        %4350 = vmatprep.mubr.f32.mxu0 0.0
        %4351 = vmatmul.mubr.f32.gmra.mrb[0].mxu0 %v4216
        %v4352 = vpop.f32.mrb[0].mxu0
        %v4353 = vadd.f32 0.0, %v4352
        %v4354 = vpop.f32.mrb[0].mxu0
        %4355 = vmatprep.mubr.f32.mxu0 0.0
        %4356 = vmatmul.mubr.f32.gmra.mrb[0].mxu0 %v4218
        %v4357 = vpop.f32.mrb[0].mxu0
        %v4358 = vadd.f32 0.0, %v4357
        %v4359 = vpop.f32.mrb[0].mxu0
        %4360 = vmatprep.mubr.f32.mxu0 0.0
        %4361 = vmatmul.mubr.f32.gmra.mrb[0].mxu0 %v4220
        %v4362 = vpop.f32.mrb[0].mxu0
        %v4363 = vadd.f32 0.0, %v4362
        %v4364 = vpop.f32.mrb[0].mxu0
        %4365 = vmatprep.mubr.f32.mxu0 0.0
        %4366 = vmatmul.mubr.f32.gmra.mrb[0].mxu0 %v4222
        %v4367 = vpop.f32.mrb[0].mxu0
        %v4368 = vadd.f32 0.0, %v4367
        %v4369 = vpop.f32.mrb[0].mxu0
        %4370 = vmatprep.mubr.f32.mxu0 0.0
        %4371 = vmatmul.mubr.f32.gmra.mrb[0].mxu0 %v4224
        %v4372 = vpop.f32.mrb[0].mxu0
        %v4373 = vadd.f32 0.0, %v4372
        %v4374 = vpop.f32.mrb[0].mxu0
        %4375 = vmatprep.mubr.f32.mxu0 0.0
        %4376 = vmatmul.mubr.f32.gmra.mrb[0].mxu0 %v4226
        %v4377 = vpop.f32.mrb[0].mxu0
        %v4378 = vadd.f32 0.0, %v4377
        %v4379 = vpop.f32.mrb[0].mxu0
        %4380 = vmatprep.mubr.f32.mxu0 0.0
        %4381 = vmatmul.mubr.f32.gmra.mrb[0].mxu0 %v4228
        %v4382 = vpop.f32.mrb[0].mxu0
        %v4383 = vadd.f32 0.0, %v4382
        %v4384 = vpop.f32.mrb[0].mxu0
        %4385 = vmatprep.mubr.f32.mxu0 0.0
        %4386 = vmatmul.mubr.f32.gmra.mrb[0].mxu0 %v4230
        %v4387 = vpop.f32.mrb[0].mxu0
        %v4388 = vadd.f32 0.0, %v4387
        %v4389 = vpop.f32.mrb[0].mxu0
        %4390 = vmatprep.mubr.f32.mxu0 0.0
        %4391 = vmatmul.mubr.f32.gmra.mrb[0].mxu0 %v4232
        %v4392 = vpop.f32.mrb[0].mxu0
        %v4393 = vadd.f32 0.0, %v4392
        %v4394 = vpop.f32.mrb[0].mxu0
        %4395 = vmatprep.mubr.f32.mxu0 0.0
        %4396 = vmatmul.mubr.f32.gmra.mrb[0].mxu0 %v4234
        %v4397 = vpop.f32.mrb[0].mxu0
        %v4398 = vadd.f32 0.0, %v4397
        %v4399 = vpop.f32.mrb[0].mxu0
        %4400 = vmatprep.mubr.f32.mxu0 0.0
        %4401 = vmatmul.mubr.f32.gmra.mrb[0].mxu0 %v4236
        %v4402 = vpop.f32.mrb[0].mxu0
        %v4403 = vadd.f32 0.0, %v4402
        %v4404 = vpop.f32.mrb[0].mxu0
        %4405 = vmatprep.mubr.f32.mxu0 0.0
        %4406 = vmatmul.mubr.f32.gmra.mrb[0].mxu0 %v4238
        %v4407 = vpop.f32.mrb[0].mxu0
        %v4408 = vadd.f32 0.0, %v4407
        %v4409 = vpop.f32.mrb[0].mxu0
        %4410 = vmatprep.mubr.f32.mxu0 0.0
        %4411 = vmatmul.mubr.f32.gmra.mrb[0].mxu0 %v4240
        %v4412 = vpop.f32.mrb[0].mxu0
        %v4413 = vadd.f32 0.0, %v4412
        %v4414 = vpop.f32.mrb[0].mxu0
        %4415 = vmatprep.mubr.f32.mxu0 0.0
        %4416 = vmatmul.mubr.f32.gmra.mrb[0].mxu0 %v4242
        %v4417 = vpop.f32.mrb[0].mxu0
        %v4418 = vadd.f32 0.0, %v4417
        %v4419 = vpop.f32.mrb[0].mxu0
        %4420 = vmatprep.mubr.f32.mxu0 0.0
        %4421 = vmatmul.mubr.f32.gmra.mrb[0].mxu0 %v4244
        %v4422 = vpop.f32.mrb[0].mxu0
        %v4423 = vadd.f32 0.0, %v4422
        %v4424 = vpop.f32.mrb[0].mxu0
        %4425 = vmatprep.mubr.f32.mxu0 0.0
        %4426 = vmatmul.mubr.f32.gmra.mrb[0].mxu0 %v4246
        %v4427 = vpop.f32.mrb[0].mxu0
        %v4428 = vadd.f32 0.0, %v4427
        %v4429 = vpop.f32.mrb[0].mxu0
        %4430 = vmatprep.mubr.f32.mxu0 0.0
        %4431 = vmatmul.mubr.f32.gmra.mrb[0].mxu0 %v4248
        %v4432 = vpop.f32.mrb[0].mxu0
        %v4433 = vadd.f32 0.0, %v4432
        %v4434 = vpop.f32.mrb[0].mxu0
        %4435 = vmatprep.mubr.f32.mxu0 0.0
        %4436 = vmatmul.mubr.f32.gmra.mrb[0].mxu0 %v4250
        %v4437 = vpop.f32.mrb[0].mxu0
        %v4438 = vadd.f32 0.0, %v4437
        %v4439 = vpop.f32.mrb[0].mxu0
        %4440 = vmatprep.mubr.f32.mxu0 0.0
        %4441 = vmatmul.mubr.f32.gmra.mrb[0].mxu0 %v4252
        %v4442 = vpop.f32.mrb[0].mxu0
        %v4443 = vadd.f32 0.0, %v4442
        %v4444 = vpop.f32.mrb[0].mxu0
        %4445 = vmatprep.mubr.f32.mxu0 0.0
        %4446 = vmatmul.mubr.f32.gmra.mrb[0].mxu0 %v4254
        %v4447 = vpop.f32.mrb[0].mxu0
        %v4448 = vadd.f32 0.0, %v4447
        %v4449 = vpop.f32.mrb[0].mxu0
        %4450 = vmatprep.mubr.f32.mxu0 0.0
        %4451 = vmatmul.mubr.f32.gmra.mrb[0].mxu0 %v4256
        %v4452 = vpop.f32.mrb[0].mxu0
        %v4453 = vadd.f32 0.0, %v4452
        %v4454 = vpop.f32.mrb[0].mxu0
        %4455 = vmatprep.mubr.f32.mxu0 0.0
        %4456 = vmatmul.mubr.f32.gmra.mrb[0].mxu0 %v4258
        %v4457 = vpop.f32.mrb[0].mxu0
        %v4458 = vadd.f32 0.0, %v4457
        %v4459 = vpop.f32.mrb[0].mxu0
        %4460 = vmatprep.mubr.f32.mxu0 0.0
        %4461 = vmatmul.mubr.f32.gmra.mrb[0].mxu0 %v4260
        %v4462 = vpop.f32.mrb[0].mxu0
        %v4463 = vadd.f32 0.0, %v4462
        %v4464 = vpop.f32.mrb[0].mxu0
        %4465 = vmatprep.mubr.f32.mxu0 0.0
        %4466 = vmatmul.mubr.f32.gmra.mrb[0].mxu0 %v4262
        %v4467 = vpop.f32.mrb[0].mxu0
        %v4468 = vadd.f32 0.0, %v4467
        %v4469 = vpop.f32.mrb[0].mxu0
        %4470 = vmatprep.mubr.f32.mxu0 0.0
        %4471 = vmatmul.mubr.f32.gmra.mrb[0].mxu0 %v4264
        %v4472 = vpop.f32.mrb[0].mxu0
        %v4473 = vadd.f32 0.0, %v4472
        %v4474 = vpop.f32.mrb[0].mxu0
        %4475 = vmatprep.mubr.f32.mxu0 0.0
        %4476 = vmatmul.mubr.f32.gmra.mrb[0].mxu0 %v4266
        %v4477 = vpop.f32.mrb[0].mxu0
        %v4478 = vadd.f32 0.0, %v4477
        %v4479 = vpop.f32.mrb[0].mxu0
        %4480 = vmatprep.mubr.f32.mxu0 0.0
        %4481 = vmatmul.mubr.f32.gmra.mrb[0].mxu0 %v4268
        %v4482 = vpop.f32.mrb[0].mxu0
        %v4483 = vadd.f32 0.0, %v4482
        %v4484 = vpop.f32.mrb[0].mxu0
        %4485 = vmatprep.mubr.f32.mxu0 0.0
        %4486 = vmatmul.mubr.f32.gmra.mrb[0].mxu0 %v4270
        %v4487 = vpop.f32.mrb[0].mxu0
        %v4488 = vadd.f32 0.0, %v4487
        %v4489 = vpop.f32.mrb[0].mxu0
        %4490 = vmatprep.mubr.f32.mxu0 0.0
        %4491 = vmatmul.mubr.f32.gmra.mrb[0].mxu0 %v4272
        %v4492 = vpop.f32.mrb[0].mxu0
        %v4493 = vadd.f32 0.0, %v4492
        %v4494 = vpop.f32.mrb[0].mxu0
        %4495 = vmatprep.mubr.f32.mxu0 0.0
        %4496 = vmatmul.mubr.f32.gmra.mrb[0].mxu0 %v4274
        %v4497 = vpop.f32.mrb[0].mxu0
        %v4498 = vadd.f32 0.0, %v4497
        %v4499 = vpop.f32.mrb[0].mxu0
        %4500 = vdwg.mxu0
        %v4501 = vadd.f32 %v3969, %v4343
        %v4502 = vadd.f32 %v3974, %v4348
        %v4503 = vadd.f32 %v3979, %v4353
        %v4504 = vadd.f32 %v3984, %v4358
        %v4505 = vadd.f32 %v3989, %v4363
        %v4506 = vadd.f32 %v3994, %v4368
        %v4507 = vadd.f32 %v3999, %v4373
        %v4508 = vadd.f32 %v4004, %v4378
        %v4509 = vadd.f32 %v4009, %v4383
        %v4510 = vadd.f32 %v4014, %v4388
        %v4511 = vadd.f32 %v4019, %v4393
        %v4512 = vadd.f32 %v4024, %v4398
        %v4513 = vadd.f32 %v4029, %v4403
        %v4514 = vadd.f32 %v4034, %v4408
        %v4515 = vadd.f32 %v4039, %v4413
        %v4516 = vadd.f32 %v4044, %v4418
        %v4517 = vadd.f32 %v4049, %v4423
        %v4518 = vadd.f32 %v4054, %v4428
        %v4519 = vadd.f32 %v4059, %v4433
        %v4520 = vadd.f32 %v4064, %v4438
        %v4521 = vadd.f32 %v4069, %v4443
        %v4522 = vadd.f32 %v4074, %v4448
        %v4523 = vadd.f32 %v4079, %v4453
        %v4524 = vadd.f32 %v4084, %v4458
        %v4525 = vadd.f32 %v4089, %v4463
        %v4526 = vadd.f32 %v4094, %v4468
        %v4527 = vadd.f32 %v4099, %v4473
        %v4528 = vadd.f32 %v4104, %v4478
        %v4529 = vadd.f32 %v4109, %v4483
        %v4530 = vadd.f32 %v4114, %v4488
        %v4531 = vadd.f32 %v4119, %v4493
        %v4532 = vadd.f32 %v4124, %v4498
        %s4533 = scalar_lea.vmem %s4, 96
        %v4534 = vld [vmem:[%s4533] sm:$0xff]
        %v4535 = vld [vmem:[%s4533 + $0x8] sm:$0xff]
        %v4536 = vld [vmem:[%s4533 + $0x10] sm:$0xff]
        %v4537 = vld [vmem:[%s4533 + $0x18] sm:$0xff]
        %v4539 = vsel %vm3269, %v3406, 0
        %v4542 = vsel %vm3269, %v3407, 0
        %4544 = vmatprep.subr.mxu0 0.0
        %4545 = vmatpush1.msra.mxu0 %v4534
        %4546 = vmatprep.subr.mxu0 0.0
        %4547 = vmatpush1.msra.mxu0 %v4535
        %4548 = vmatprep.subr.mxu0 0.0
        %4549 = vmatpush1.msra.mxu0 %v4536
        %4550 = vmatprep.subr.mxu0 0.0
        %4551 = vmatpush1.msra.mxu0 %v4537
        %4552 = vmatprep.subr.mxu0 0.0
        %4553 = vmatpush1.msra.mxu0 0.0
        %4554 = vmatprep.subr.mxu0 0.0
        %4555 = vmatpush1.msra.mxu0 0.0
        %4556 = vmatprep.subr.mxu0 0.0
        %4557 = vmatpush1.msra.mxu0 0.0
        %4558 = vmatprep.subr.mxu0 0.0
        %4559 = vmatpush1.msra.mxu0 0.0
        %4560 = vmatprep.subr.mxu0 0.0
        %4561 = vmatpush1.msra.mxu0 0.0
        %4562 = vmatprep.subr.mxu0 0.0
        %4563 = vmatpush1.msra.mxu0 0.0
        %4564 = vmatprep.subr.mxu0 0.0
        %4565 = vmatpush1.msra.mxu0 0.0
        %4566 = vmatprep.subr.mxu0 0.0
        %4567 = vmatpush1.msra.mxu0 0.0
        %4568 = vmatprep.subr.mxu0 0.0
        %4569 = vmatpush1.msra.mxu0 0.0
        %4570 = vmatprep.subr.mxu0 0.0
        %4571 = vmatpush1.msra.mxu0 0.0
        %4572 = vmatprep.subr.mxu0 0.0
        %4573 = vmatpush1.msra.mxu0 0.0
        %4574 = vmatprep.subr.mxu0 0.0
        %4575 = vmatpush1.msra.mxu0 0.0
        %4576 = vmatprep.subr.mxu0 0.0
        %4577 = vmatpush1.msra.mxu0 0.0
        %4578 = vmatprep.subr.mxu0 0.0
        %4579 = vmatpush1.msra.mxu0 0.0
        %4580 = vmatprep.subr.mxu0 0.0
        %4581 = vmatpush1.msra.mxu0 0.0
        %4582 = vmatprep.subr.mxu0 0.0
        %4583 = vmatpush1.msra.mxu0 0.0
        %4584 = vmatprep.subr.mxu0 0.0
        %4585 = vmatpush1.msra.mxu0 0.0
        %4586 = vmatprep.subr.mxu0 0.0
        %4587 = vmatpush1.msra.mxu0 0.0
        %4588 = vmatprep.subr.mxu0 0.0
        %4589 = vmatpush1.msra.mxu0 0.0
        %4590 = vmatprep.subr.mxu0 0.0
        %4591 = vmatpush1.msra.mxu0 0.0
        %4592 = vmatprep.subr.mxu0 0.0
        %4593 = vmatpush1.msra.mxu0 0.0
        %4594 = vmatprep.subr.mxu0 0.0
        %4595 = vmatpush1.msra.mxu0 0.0
        %4596 = vmatprep.subr.mxu0 0.0
        %4597 = vmatpush1.msra.mxu0 0.0
        %4598 = vmatprep.subr.mxu0 0.0
        %4599 = vmatpush1.msra.mxu0 0.0
        %4600 = vmatprep.subr.mxu0 0.0
        %4601 = vmatpush1.msra.mxu0 0.0
        %4602 = vmatprep.subr.mxu0 0.0
        %4603 = vmatpush1.msra.mxu0 0.0
        %4604 = vmatprep.subr.mxu0 0.0
        %4605 = vmatpush1.msra.mxu0 0.0
        %4606 = vmatprep.subr.mxu0 0.0
        %4607 = vmatpush1.msra.mxu0 0.0
        %4608 = vmatprep.mubr.f32.mxu0 0.0
        %4609 = vmatmul.mubr.f32.gmra.mrb[0].mxu0 %v3842
        %v4610 = vpop.f32.mrb[0].mxu0
        %v4611 = vadd.f32 0.0, %v4610
        %v4612 = vpop.f32.mrb[0].mxu0
        %4613 = vmatprep.mubr.f32.mxu0 0.0
        %4614 = vmatmul.mubr.f32.gmra.mrb[0].mxu0 %v3844
        %v4615 = vpop.f32.mrb[0].mxu0
        %v4616 = vadd.f32 0.0, %v4615
        %v4617 = vpop.f32.mrb[0].mxu0
        %4618 = vmatprep.mubr.f32.mxu0 0.0
        %4619 = vmatmul.mubr.f32.gmra.mrb[0].mxu0 %v3846
        %v4620 = vpop.f32.mrb[0].mxu0
        %v4621 = vadd.f32 0.0, %v4620
        %v4622 = vpop.f32.mrb[0].mxu0
        %4623 = vmatprep.mubr.f32.mxu0 0.0
        %4624 = vmatmul.mubr.f32.gmra.mrb[0].mxu0 %v3848
        %v4625 = vpop.f32.mrb[0].mxu0
        %v4626 = vadd.f32 0.0, %v4625
        %v4627 = vpop.f32.mrb[0].mxu0
        %4628 = vmatprep.mubr.f32.mxu0 0.0
        %4629 = vmatmul.mubr.f32.gmra.mrb[0].mxu0 %v3850
        %v4630 = vpop.f32.mrb[0].mxu0
        %v4631 = vadd.f32 0.0, %v4630
        %v4632 = vpop.f32.mrb[0].mxu0
        %4633 = vmatprep.mubr.f32.mxu0 0.0
        %4634 = vmatmul.mubr.f32.gmra.mrb[0].mxu0 %v3852
        %v4635 = vpop.f32.mrb[0].mxu0
        %v4636 = vadd.f32 0.0, %v4635
        %v4637 = vpop.f32.mrb[0].mxu0
        %4638 = vmatprep.mubr.f32.mxu0 0.0
        %4639 = vmatmul.mubr.f32.gmra.mrb[0].mxu0 %v3854
        %v4640 = vpop.f32.mrb[0].mxu0
        %v4641 = vadd.f32 0.0, %v4640
        %v4642 = vpop.f32.mrb[0].mxu0
        %4643 = vmatprep.mubr.f32.mxu0 0.0
        %4644 = vmatmul.mubr.f32.gmra.mrb[0].mxu0 %v3856
        %v4645 = vpop.f32.mrb[0].mxu0
        %v4646 = vadd.f32 0.0, %v4645
        %v4647 = vpop.f32.mrb[0].mxu0
        %4648 = vmatprep.mubr.f32.mxu0 0.0
        %4649 = vmatmul.mubr.f32.gmra.mrb[0].mxu0 %v3858
        %v4650 = vpop.f32.mrb[0].mxu0
        %v4651 = vadd.f32 0.0, %v4650
        %v4652 = vpop.f32.mrb[0].mxu0
        %4653 = vmatprep.mubr.f32.mxu0 0.0
        %4654 = vmatmul.mubr.f32.gmra.mrb[0].mxu0 %v3860
        %v4655 = vpop.f32.mrb[0].mxu0
        %v4656 = vadd.f32 0.0, %v4655
        %v4657 = vpop.f32.mrb[0].mxu0
        %4658 = vmatprep.mubr.f32.mxu0 0.0
        %4659 = vmatmul.mubr.f32.gmra.mrb[0].mxu0 %v3862
        %v4660 = vpop.f32.mrb[0].mxu0
        %v4661 = vadd.f32 0.0, %v4660
        %v4662 = vpop.f32.mrb[0].mxu0
        %4663 = vmatprep.mubr.f32.mxu0 0.0
        %4664 = vmatmul.mubr.f32.gmra.mrb[0].mxu0 %v3864
        %v4665 = vpop.f32.mrb[0].mxu0
        %v4666 = vadd.f32 0.0, %v4665
        %v4667 = vpop.f32.mrb[0].mxu0
        %4668 = vmatprep.mubr.f32.mxu0 0.0
        %4669 = vmatmul.mubr.f32.gmra.mrb[0].mxu0 %v3866
        %v4670 = vpop.f32.mrb[0].mxu0
        %v4671 = vadd.f32 0.0, %v4670
        %v4672 = vpop.f32.mrb[0].mxu0
        %4673 = vmatprep.mubr.f32.mxu0 0.0
        %4674 = vmatmul.mubr.f32.gmra.mrb[0].mxu0 %v3868
        %v4675 = vpop.f32.mrb[0].mxu0
        %v4676 = vadd.f32 0.0, %v4675
        %v4677 = vpop.f32.mrb[0].mxu0
        %4678 = vmatprep.mubr.f32.mxu0 0.0
        %4679 = vmatmul.mubr.f32.gmra.mrb[0].mxu0 %v3870
        %v4680 = vpop.f32.mrb[0].mxu0
        %v4681 = vadd.f32 0.0, %v4680
        %v4682 = vpop.f32.mrb[0].mxu0
        %4683 = vmatprep.mubr.f32.mxu0 0.0
        %4684 = vmatmul.mubr.f32.gmra.mrb[0].mxu0 %v3872
        %v4685 = vpop.f32.mrb[0].mxu0
        %v4686 = vadd.f32 0.0, %v4685
        %v4687 = vpop.f32.mrb[0].mxu0
        %4688 = vmatprep.mubr.f32.mxu0 0.0
        %4689 = vmatmul.mubr.f32.gmra.mrb[0].mxu0 %v3874
        %v4690 = vpop.f32.mrb[0].mxu0
        %v4691 = vadd.f32 0.0, %v4690
        %v4692 = vpop.f32.mrb[0].mxu0
        %4693 = vmatprep.mubr.f32.mxu0 0.0
        %4694 = vmatmul.mubr.f32.gmra.mrb[0].mxu0 %v3876
        %v4695 = vpop.f32.mrb[0].mxu0
        %v4696 = vadd.f32 0.0, %v4695
        %v4697 = vpop.f32.mrb[0].mxu0
        %4698 = vmatprep.mubr.f32.mxu0 0.0
        %4699 = vmatmul.mubr.f32.gmra.mrb[0].mxu0 %v3878
        %v4700 = vpop.f32.mrb[0].mxu0
        %v4701 = vadd.f32 0.0, %v4700
        %v4702 = vpop.f32.mrb[0].mxu0
        %4703 = vmatprep.mubr.f32.mxu0 0.0
        %4704 = vmatmul.mubr.f32.gmra.mrb[0].mxu0 %v3880
        %v4705 = vpop.f32.mrb[0].mxu0
        %v4706 = vadd.f32 0.0, %v4705
        %v4707 = vpop.f32.mrb[0].mxu0
        %4708 = vmatprep.mubr.f32.mxu0 0.0
        %4709 = vmatmul.mubr.f32.gmra.mrb[0].mxu0 %v3882
        %v4710 = vpop.f32.mrb[0].mxu0
        %v4711 = vadd.f32 0.0, %v4710
        %v4712 = vpop.f32.mrb[0].mxu0
        %4713 = vmatprep.mubr.f32.mxu0 0.0
        %4714 = vmatmul.mubr.f32.gmra.mrb[0].mxu0 %v3884
        %v4715 = vpop.f32.mrb[0].mxu0
        %v4716 = vadd.f32 0.0, %v4715
        %v4717 = vpop.f32.mrb[0].mxu0
        %4718 = vmatprep.mubr.f32.mxu0 0.0
        %4719 = vmatmul.mubr.f32.gmra.mrb[0].mxu0 %v3886
        %v4720 = vpop.f32.mrb[0].mxu0
        %v4721 = vadd.f32 0.0, %v4720
        %v4722 = vpop.f32.mrb[0].mxu0
        %4723 = vmatprep.mubr.f32.mxu0 0.0
        %4724 = vmatmul.mubr.f32.gmra.mrb[0].mxu0 %v3888
        %v4725 = vpop.f32.mrb[0].mxu0
        %v4726 = vadd.f32 0.0, %v4725
        %v4727 = vpop.f32.mrb[0].mxu0
        %4728 = vmatprep.mubr.f32.mxu0 0.0
        %4729 = vmatmul.mubr.f32.gmra.mrb[0].mxu0 %v3890
        %v4730 = vpop.f32.mrb[0].mxu0
        %v4731 = vadd.f32 0.0, %v4730
        %v4732 = vpop.f32.mrb[0].mxu0
        %4733 = vmatprep.mubr.f32.mxu0 0.0
        %4734 = vmatmul.mubr.f32.gmra.mrb[0].mxu0 %v3892
        %v4735 = vpop.f32.mrb[0].mxu0
        %v4736 = vadd.f32 0.0, %v4735
        %v4737 = vpop.f32.mrb[0].mxu0
        %4738 = vmatprep.mubr.f32.mxu0 0.0
        %4739 = vmatmul.mubr.f32.gmra.mrb[0].mxu0 %v3894
        %v4740 = vpop.f32.mrb[0].mxu0
        %v4741 = vadd.f32 0.0, %v4740
        %v4742 = vpop.f32.mrb[0].mxu0
        %4743 = vmatprep.mubr.f32.mxu0 0.0
        %4744 = vmatmul.mubr.f32.gmra.mrb[0].mxu0 %v3896
        %v4745 = vpop.f32.mrb[0].mxu0
        %v4746 = vadd.f32 0.0, %v4745
        %v4747 = vpop.f32.mrb[0].mxu0
        %4748 = vmatprep.mubr.f32.mxu0 0.0
        %4749 = vmatmul.mubr.f32.gmra.mrb[0].mxu0 %v3898
        %v4750 = vpop.f32.mrb[0].mxu0
        %v4751 = vadd.f32 0.0, %v4750
        %v4752 = vpop.f32.mrb[0].mxu0
        %4753 = vmatprep.mubr.f32.mxu0 0.0
        %4754 = vmatmul.mubr.f32.gmra.mrb[0].mxu0 %v3900
        %v4755 = vpop.f32.mrb[0].mxu0
        %v4756 = vadd.f32 0.0, %v4755
        %v4757 = vpop.f32.mrb[0].mxu0
        %4758 = vmatprep.mubr.f32.mxu0 0.0
        %4759 = vmatmul.mubr.f32.gmra.mrb[0].mxu0 %v4539
        %v4760 = vpop.f32.mrb[0].mxu0
        %v4761 = vadd.f32 0.0, %v4760
        %v4762 = vpop.f32.mrb[0].mxu0
        %4763 = vmatprep.mubr.f32.mxu0 0.0
        %4764 = vmatmul.mubr.f32.gmra.mrb[0].mxu0 %v4542
        %v4765 = vpop.f32.mrb[0].mxu0
        %v4766 = vadd.f32 0.0, %v4765
        %v4767 = vpop.f32.mrb[0].mxu0
        %4768 = vdwg.mxu0
        %v4769 = vadd.f32 %v4501, %v4611
        %v4770 = vadd.f32 %v4502, %v4616
        %v4771 = vadd.f32 %v4503, %v4621
        %v4772 = vadd.f32 %v4504, %v4626
        %v4773 = vadd.f32 %v4505, %v4631
        %v4774 = vadd.f32 %v4506, %v4636
        %v4775 = vadd.f32 %v4507, %v4641
        %v4776 = vadd.f32 %v4508, %v4646
        %v4777 = vadd.f32 %v4509, %v4651
        %v4778 = vadd.f32 %v4510, %v4656
        %v4779 = vadd.f32 %v4511, %v4661
        %v4780 = vadd.f32 %v4512, %v4666
        %v4781 = vadd.f32 %v4513, %v4671
        %v4782 = vadd.f32 %v4514, %v4676
        %v4783 = vadd.f32 %v4515, %v4681
        %v4784 = vadd.f32 %v4516, %v4686
        %v4785 = vadd.f32 %v4517, %v4691
        %v4786 = vadd.f32 %v4518, %v4696
        %v4787 = vadd.f32 %v4519, %v4701
        %v4788 = vadd.f32 %v4520, %v4706
        %v4789 = vadd.f32 %v4521, %v4711
        %v4790 = vadd.f32 %v4522, %v4716
        %v4791 = vadd.f32 %v4523, %v4721
        %v4792 = vadd.f32 %v4524, %v4726
        %v4793 = vadd.f32 %v4525, %v4731
        %v4794 = vadd.f32 %v4526, %v4736
        %v4795 = vadd.f32 %v4527, %v4741
        %v4796 = vadd.f32 %v4528, %v4746
        %v4797 = vadd.f32 %v4529, %v4751
        %v4798 = vadd.f32 %v4530, %v4756
        %v4799 = vadd.f32 %v4531, %v4761
        %v4800 = vadd.f32 %v4532, %v4766
        %v4802 = vrot.slane %v3406, 1
        %v4803 = vrot.slane %v3407, 1
        %v4804 = vsel %vm461, %v4802, %v4803
        %v4805 = vrot.slane %v3408, 1
        %v4806 = vsel %vm461, %v4803, %v4805
        %s4807 = scalar_lea.vmem %s4, 128
        %v4808 = vld [vmem:[%s4807] sm:$0xff]
        %v4809 = vld [vmem:[%s4807 + $0x8] sm:$0xff]
        %v4810 = vld [vmem:[%s4807 + $0x10] sm:$0xff]
        %v4811 = vld [vmem:[%s4807 + $0x18] sm:$0xff]
        %v4812 = vsel %vm3269, %v4804, 0
        %v4814 = vsel %vm3269, %v4806, 0
        %4816 = vmatprep.subr.mxu0 0.0
        %4817 = vmatpush1.msra.mxu0 %v4808
        %4818 = vmatprep.subr.mxu0 0.0
        %4819 = vmatpush1.msra.mxu0 %v4809
        %4820 = vmatprep.subr.mxu0 0.0
        %4821 = vmatpush1.msra.mxu0 %v4810
        %4822 = vmatprep.subr.mxu0 0.0
        %4823 = vmatpush1.msra.mxu0 %v4811
        %4824 = vmatprep.subr.mxu0 0.0
        %4825 = vmatpush1.msra.mxu0 0.0
        %4826 = vmatprep.subr.mxu0 0.0
        %4827 = vmatpush1.msra.mxu0 0.0
        %4828 = vmatprep.subr.mxu0 0.0
        %4829 = vmatpush1.msra.mxu0 0.0
        %4830 = vmatprep.subr.mxu0 0.0
        %4831 = vmatpush1.msra.mxu0 0.0
        %4832 = vmatprep.subr.mxu0 0.0
        %4833 = vmatpush1.msra.mxu0 0.0
        %4834 = vmatprep.subr.mxu0 0.0
        %4835 = vmatpush1.msra.mxu0 0.0
        %4836 = vmatprep.subr.mxu0 0.0
        %4837 = vmatpush1.msra.mxu0 0.0
        %4838 = vmatprep.subr.mxu0 0.0
        %4839 = vmatpush1.msra.mxu0 0.0
        %4840 = vmatprep.subr.mxu0 0.0
        %4841 = vmatpush1.msra.mxu0 0.0
        %4842 = vmatprep.subr.mxu0 0.0
        %4843 = vmatpush1.msra.mxu0 0.0
        %4844 = vmatprep.subr.mxu0 0.0
        %4845 = vmatpush1.msra.mxu0 0.0
        %4846 = vmatprep.subr.mxu0 0.0
        %4847 = vmatpush1.msra.mxu0 0.0
        %4848 = vmatprep.subr.mxu0 0.0
        %4849 = vmatpush1.msra.mxu0 0.0
        %4850 = vmatprep.subr.mxu0 0.0
        %4851 = vmatpush1.msra.mxu0 0.0
        %4852 = vmatprep.subr.mxu0 0.0
        %4853 = vmatpush1.msra.mxu0 0.0
        %4854 = vmatprep.subr.mxu0 0.0
        %4855 = vmatpush1.msra.mxu0 0.0
        %4856 = vmatprep.subr.mxu0 0.0
        %4857 = vmatpush1.msra.mxu0 0.0
        %4858 = vmatprep.subr.mxu0 0.0
        %4859 = vmatpush1.msra.mxu0 0.0
        %4860 = vmatprep.subr.mxu0 0.0
        %4861 = vmatpush1.msra.mxu0 0.0
        %4862 = vmatprep.subr.mxu0 0.0
        %4863 = vmatpush1.msra.mxu0 0.0
        %4864 = vmatprep.subr.mxu0 0.0
        %4865 = vmatpush1.msra.mxu0 0.0
        %4866 = vmatprep.subr.mxu0 0.0
        %4867 = vmatpush1.msra.mxu0 0.0
        %4868 = vmatprep.subr.mxu0 0.0
        %4869 = vmatpush1.msra.mxu0 0.0
        %4870 = vmatprep.subr.mxu0 0.0
        %4871 = vmatpush1.msra.mxu0 0.0
        %4872 = vmatprep.subr.mxu0 0.0
        %4873 = vmatpush1.msra.mxu0 0.0
        %4874 = vmatprep.subr.mxu0 0.0
        %4875 = vmatpush1.msra.mxu0 0.0
        %4876 = vmatprep.subr.mxu0 0.0
        %4877 = vmatpush1.msra.mxu0 0.0
        %4878 = vmatprep.subr.mxu0 0.0
        %4879 = vmatpush1.msra.mxu0 0.0
        %4880 = vmatprep.mubr.f32.mxu0 0.0
        %4881 = vmatmul.mubr.f32.gmra.mrb[0].mxu0 %v3553
        %v4882 = vpop.f32.mrb[0].mxu0
        %v4883 = vadd.f32 0.0, %v4882
        %v4884 = vpop.f32.mrb[0].mxu0
        %4885 = vmatprep.mubr.f32.mxu0 0.0
        %4886 = vmatmul.mubr.f32.gmra.mrb[0].mxu0 %v3555
        %v4887 = vpop.f32.mrb[0].mxu0
        %v4888 = vadd.f32 0.0, %v4887
        %v4889 = vpop.f32.mrb[0].mxu0
        %4890 = vmatprep.mubr.f32.mxu0 0.0
        %4891 = vmatmul.mubr.f32.gmra.mrb[0].mxu0 %v3557
        %v4892 = vpop.f32.mrb[0].mxu0
        %v4893 = vadd.f32 0.0, %v4892
        %v4894 = vpop.f32.mrb[0].mxu0
        %4895 = vmatprep.mubr.f32.mxu0 0.0
        %4896 = vmatmul.mubr.f32.gmra.mrb[0].mxu0 %v3559
        %v4897 = vpop.f32.mrb[0].mxu0
        %v4898 = vadd.f32 0.0, %v4897
        %v4899 = vpop.f32.mrb[0].mxu0
        %4900 = vmatprep.mubr.f32.mxu0 0.0
        %4901 = vmatmul.mubr.f32.gmra.mrb[0].mxu0 %v3561
        %v4902 = vpop.f32.mrb[0].mxu0
        %v4903 = vadd.f32 0.0, %v4902
        %v4904 = vpop.f32.mrb[0].mxu0
        %4905 = vmatprep.mubr.f32.mxu0 0.0
        %4906 = vmatmul.mubr.f32.gmra.mrb[0].mxu0 %v3563
        %v4907 = vpop.f32.mrb[0].mxu0
        %v4908 = vadd.f32 0.0, %v4907
        %v4909 = vpop.f32.mrb[0].mxu0
        %4910 = vmatprep.mubr.f32.mxu0 0.0
        %4911 = vmatmul.mubr.f32.gmra.mrb[0].mxu0 %v3565
        %v4912 = vpop.f32.mrb[0].mxu0
        %v4913 = vadd.f32 0.0, %v4912
        %v4914 = vpop.f32.mrb[0].mxu0
        %4915 = vmatprep.mubr.f32.mxu0 0.0
        %4916 = vmatmul.mubr.f32.gmra.mrb[0].mxu0 %v3567
        %v4917 = vpop.f32.mrb[0].mxu0
        %v4918 = vadd.f32 0.0, %v4917
        %v4919 = vpop.f32.mrb[0].mxu0
        %4920 = vmatprep.mubr.f32.mxu0 0.0
        %4921 = vmatmul.mubr.f32.gmra.mrb[0].mxu0 %v3569
        %v4922 = vpop.f32.mrb[0].mxu0
        %v4923 = vadd.f32 0.0, %v4922
        %v4924 = vpop.f32.mrb[0].mxu0
        %4925 = vmatprep.mubr.f32.mxu0 0.0
        %4926 = vmatmul.mubr.f32.gmra.mrb[0].mxu0 %v3571
        %v4927 = vpop.f32.mrb[0].mxu0
        %v4928 = vadd.f32 0.0, %v4927
        %v4929 = vpop.f32.mrb[0].mxu0
        %4930 = vmatprep.mubr.f32.mxu0 0.0
        %4931 = vmatmul.mubr.f32.gmra.mrb[0].mxu0 %v3573
        %v4932 = vpop.f32.mrb[0].mxu0
        %v4933 = vadd.f32 0.0, %v4932
        %v4934 = vpop.f32.mrb[0].mxu0
        %4935 = vmatprep.mubr.f32.mxu0 0.0
        %4936 = vmatmul.mubr.f32.gmra.mrb[0].mxu0 %v3575
        %v4937 = vpop.f32.mrb[0].mxu0
        %v4938 = vadd.f32 0.0, %v4937
        %v4939 = vpop.f32.mrb[0].mxu0
        %4940 = vmatprep.mubr.f32.mxu0 0.0
        %4941 = vmatmul.mubr.f32.gmra.mrb[0].mxu0 %v3577
        %v4942 = vpop.f32.mrb[0].mxu0
        %v4943 = vadd.f32 0.0, %v4942
        %v4944 = vpop.f32.mrb[0].mxu0
        %4945 = vmatprep.mubr.f32.mxu0 0.0
        %4946 = vmatmul.mubr.f32.gmra.mrb[0].mxu0 %v3579
        %v4947 = vpop.f32.mrb[0].mxu0
        %v4948 = vadd.f32 0.0, %v4947
        %v4949 = vpop.f32.mrb[0].mxu0
        %4950 = vmatprep.mubr.f32.mxu0 0.0
        %4951 = vmatmul.mubr.f32.gmra.mrb[0].mxu0 %v3581
        %v4952 = vpop.f32.mrb[0].mxu0
        %v4953 = vadd.f32 0.0, %v4952
        %v4954 = vpop.f32.mrb[0].mxu0
        %4955 = vmatprep.mubr.f32.mxu0 0.0
        %4956 = vmatmul.mubr.f32.gmra.mrb[0].mxu0 %v3583
        %v4957 = vpop.f32.mrb[0].mxu0
        %v4958 = vadd.f32 0.0, %v4957
        %v4959 = vpop.f32.mrb[0].mxu0
        %4960 = vmatprep.mubr.f32.mxu0 0.0
        %4961 = vmatmul.mubr.f32.gmra.mrb[0].mxu0 %v3585
        %v4962 = vpop.f32.mrb[0].mxu0
        %v4963 = vadd.f32 0.0, %v4962
        %v4964 = vpop.f32.mrb[0].mxu0
        %4965 = vmatprep.mubr.f32.mxu0 0.0
        %4966 = vmatmul.mubr.f32.gmra.mrb[0].mxu0 %v3587
        %v4967 = vpop.f32.mrb[0].mxu0
        %v4968 = vadd.f32 0.0, %v4967
        %v4969 = vpop.f32.mrb[0].mxu0
        %4970 = vmatprep.mubr.f32.mxu0 0.0
        %4971 = vmatmul.mubr.f32.gmra.mrb[0].mxu0 %v3589
        %v4972 = vpop.f32.mrb[0].mxu0
        %v4973 = vadd.f32 0.0, %v4972
        %v4974 = vpop.f32.mrb[0].mxu0
        %4975 = vmatprep.mubr.f32.mxu0 0.0
        %4976 = vmatmul.mubr.f32.gmra.mrb[0].mxu0 %v3591
        %v4977 = vpop.f32.mrb[0].mxu0
        %v4978 = vadd.f32 0.0, %v4977
        %v4979 = vpop.f32.mrb[0].mxu0
        %4980 = vmatprep.mubr.f32.mxu0 0.0
        %4981 = vmatmul.mubr.f32.gmra.mrb[0].mxu0 %v3593
        %v4982 = vpop.f32.mrb[0].mxu0
        %v4983 = vadd.f32 0.0, %v4982
        %v4984 = vpop.f32.mrb[0].mxu0
        %4985 = vmatprep.mubr.f32.mxu0 0.0
        %4986 = vmatmul.mubr.f32.gmra.mrb[0].mxu0 %v3595
        %v4987 = vpop.f32.mrb[0].mxu0
        %v4988 = vadd.f32 0.0, %v4987
        %v4989 = vpop.f32.mrb[0].mxu0
        %4990 = vmatprep.mubr.f32.mxu0 0.0
        %4991 = vmatmul.mubr.f32.gmra.mrb[0].mxu0 %v3597
        %v4992 = vpop.f32.mrb[0].mxu0
        %v4993 = vadd.f32 0.0, %v4992
        %v4994 = vpop.f32.mrb[0].mxu0
        %4995 = vmatprep.mubr.f32.mxu0 0.0
        %4996 = vmatmul.mubr.f32.gmra.mrb[0].mxu0 %v3599
        %v4997 = vpop.f32.mrb[0].mxu0
        %v4998 = vadd.f32 0.0, %v4997
        %v4999 = vpop.f32.mrb[0].mxu0
        %5000 = vmatprep.mubr.f32.mxu0 0.0
        %5001 = vmatmul.mubr.f32.gmra.mrb[0].mxu0 %v3601
        %v5002 = vpop.f32.mrb[0].mxu0
        %v5003 = vadd.f32 0.0, %v5002
        %v5004 = vpop.f32.mrb[0].mxu0
        %5005 = vmatprep.mubr.f32.mxu0 0.0
        %5006 = vmatmul.mubr.f32.gmra.mrb[0].mxu0 %v3603
        %v5007 = vpop.f32.mrb[0].mxu0
        %v5008 = vadd.f32 0.0, %v5007
        %v5009 = vpop.f32.mrb[0].mxu0
        %5010 = vmatprep.mubr.f32.mxu0 0.0
        %5011 = vmatmul.mubr.f32.gmra.mrb[0].mxu0 %v3605
        %v5012 = vpop.f32.mrb[0].mxu0
        %v5013 = vadd.f32 0.0, %v5012
        %v5014 = vpop.f32.mrb[0].mxu0
        %5015 = vmatprep.mubr.f32.mxu0 0.0
        %5016 = vmatmul.mubr.f32.gmra.mrb[0].mxu0 %v3607
        %v5017 = vpop.f32.mrb[0].mxu0
        %v5018 = vadd.f32 0.0, %v5017
        %v5019 = vpop.f32.mrb[0].mxu0
        %5020 = vmatprep.mubr.f32.mxu0 0.0
        %5021 = vmatmul.mubr.f32.gmra.mrb[0].mxu0 %v3609
        %v5022 = vpop.f32.mrb[0].mxu0
        %v5023 = vadd.f32 0.0, %v5022
        %v5024 = vpop.f32.mrb[0].mxu0
        %5025 = vmatprep.mubr.f32.mxu0 0.0
        %5026 = vmatmul.mubr.f32.gmra.mrb[0].mxu0 %v3611
        %v5027 = vpop.f32.mrb[0].mxu0
        %v5028 = vadd.f32 0.0, %v5027
        %v5029 = vpop.f32.mrb[0].mxu0
        %5030 = vmatprep.mubr.f32.mxu0 0.0
        %5031 = vmatmul.mubr.f32.gmra.mrb[0].mxu0 %v4812
        %v5032 = vpop.f32.mrb[0].mxu0
        %v5033 = vadd.f32 0.0, %v5032
        %v5034 = vpop.f32.mrb[0].mxu0
        %5035 = vmatprep.mubr.f32.mxu0 0.0
        %5036 = vmatmul.mubr.f32.gmra.mrb[0].mxu0 %v4814
        %v5037 = vpop.f32.mrb[0].mxu0
        %v5038 = vadd.f32 0.0, %v5037
        %v5039 = vpop.f32.mrb[0].mxu0
        %5040 = vdwg.mxu0
        %v5041 = vadd.f32 %v4769, %v4883
        %v5042 = vadd.f32 %v4770, %v4888
        %v5043 = vadd.f32 %v4771, %v4893
        %v5044 = vadd.f32 %v4772, %v4898
        %v5045 = vadd.f32 %v4773, %v4903
        %v5046 = vadd.f32 %v4774, %v4908
        %v5047 = vadd.f32 %v4775, %v4913
        %v5048 = vadd.f32 %v4776, %v4918
        %v5049 = vadd.f32 %v4777, %v4923
        %v5050 = vadd.f32 %v4778, %v4928
        %v5051 = vadd.f32 %v4779, %v4933
        %v5052 = vadd.f32 %v4780, %v4938
        %v5053 = vadd.f32 %v4781, %v4943
        %v5054 = vadd.f32 %v4782, %v4948
        %v5055 = vadd.f32 %v4783, %v4953
        %v5056 = vadd.f32 %v4784, %v4958
        %v5057 = vadd.f32 %v4785, %v4963
        %v5058 = vadd.f32 %v4786, %v4968
        %v5059 = vadd.f32 %v4787, %v4973
        %v5060 = vadd.f32 %v4788, %v4978
        %v5061 = vadd.f32 %v4789, %v4983
        %v5062 = vadd.f32 %v4790, %v4988
        %v5063 = vadd.f32 %v4791, %v4993
        %v5064 = vadd.f32 %v4792, %v4998
        %v5065 = vadd.f32 %v4793, %v5003
        %v5066 = vadd.f32 %v4794, %v5008
        %v5067 = vadd.f32 %v4795, %v5013
        %v5068 = vadd.f32 %v4796, %v5018
        %v5069 = vadd.f32 %v4797, %v5023
        %v5070 = vadd.f32 %v4798, %v5028
        %v5071 = vadd.f32 %v4799, %v5033
        %v5072 = vadd.f32 %v4800, %v5038
        %v5073 = vrot.slane %v3406, 2
        %v5074 = vrot.slane %v3407, 2
        %v5075 = vsel %vm1130, %v5073, %v5074
        %v5076 = vrot.slane %v3408, 2
        %v5077 = vsel %vm1130, %v5074, %v5076
        %s5078 = scalar_lea.vmem %s4, 160
        %v5079 = vld [vmem:[%s5078] sm:$0xff]
        %v5080 = vld [vmem:[%s5078 + $0x8] sm:$0xff]
        %v5081 = vld [vmem:[%s5078 + $0x10] sm:$0xff]
        %v5082 = vld [vmem:[%s5078 + $0x18] sm:$0xff]
        %v5083 = vsel %vm3269, %v5075, 0
        %v5085 = vsel %vm3269, %v5077, 0
        %5087 = vmatprep.subr.mxu0 0.0
        %5088 = vmatpush1.msra.mxu0 %v5079
        %5089 = vmatprep.subr.mxu0 0.0
        %5090 = vmatpush1.msra.mxu0 %v5080
        %5091 = vmatprep.subr.mxu0 0.0
        %5092 = vmatpush1.msra.mxu0 %v5081
        %5093 = vmatprep.subr.mxu0 0.0
        %5094 = vmatpush1.msra.mxu0 %v5082
        %5095 = vmatprep.subr.mxu0 0.0
        %5096 = vmatpush1.msra.mxu0 0.0
        %5097 = vmatprep.subr.mxu0 0.0
        %5098 = vmatpush1.msra.mxu0 0.0
        %5099 = vmatprep.subr.mxu0 0.0
        %5100 = vmatpush1.msra.mxu0 0.0
        %5101 = vmatprep.subr.mxu0 0.0
        %5102 = vmatpush1.msra.mxu0 0.0
        %5103 = vmatprep.subr.mxu0 0.0
        %5104 = vmatpush1.msra.mxu0 0.0
        %5105 = vmatprep.subr.mxu0 0.0
        %5106 = vmatpush1.msra.mxu0 0.0
        %5107 = vmatprep.subr.mxu0 0.0
        %5108 = vmatpush1.msra.mxu0 0.0
        %5109 = vmatprep.subr.mxu0 0.0
        %5110 = vmatpush1.msra.mxu0 0.0
        %5111 = vmatprep.subr.mxu0 0.0
        %5112 = vmatpush1.msra.mxu0 0.0
        %5113 = vmatprep.subr.mxu0 0.0
        %5114 = vmatpush1.msra.mxu0 0.0
        %5115 = vmatprep.subr.mxu0 0.0
        %5116 = vmatpush1.msra.mxu0 0.0
        %5117 = vmatprep.subr.mxu0 0.0
        %5118 = vmatpush1.msra.mxu0 0.0
        %5119 = vmatprep.subr.mxu0 0.0
        %5120 = vmatpush1.msra.mxu0 0.0
        %5121 = vmatprep.subr.mxu0 0.0
        %5122 = vmatpush1.msra.mxu0 0.0
        %5123 = vmatprep.subr.mxu0 0.0
        %5124 = vmatpush1.msra.mxu0 0.0
        %5125 = vmatprep.subr.mxu0 0.0
        %5126 = vmatpush1.msra.mxu0 0.0
        %5127 = vmatprep.subr.mxu0 0.0
        %5128 = vmatpush1.msra.mxu0 0.0
        %5129 = vmatprep.subr.mxu0 0.0
        %5130 = vmatpush1.msra.mxu0 0.0
        %5131 = vmatprep.subr.mxu0 0.0
        %5132 = vmatpush1.msra.mxu0 0.0
        %5133 = vmatprep.subr.mxu0 0.0
        %5134 = vmatpush1.msra.mxu0 0.0
        %5135 = vmatprep.subr.mxu0 0.0
        %5136 = vmatpush1.msra.mxu0 0.0
        %5137 = vmatprep.subr.mxu0 0.0
        %5138 = vmatpush1.msra.mxu0 0.0
        %5139 = vmatprep.subr.mxu0 0.0
        %5140 = vmatpush1.msra.mxu0 0.0
        %5141 = vmatprep.subr.mxu0 0.0
        %5142 = vmatpush1.msra.mxu0 0.0
        %5143 = vmatprep.subr.mxu0 0.0
        %5144 = vmatpush1.msra.mxu0 0.0
        %5145 = vmatprep.subr.mxu0 0.0
        %5146 = vmatpush1.msra.mxu0 0.0
        %5147 = vmatprep.subr.mxu0 0.0
        %5148 = vmatpush1.msra.mxu0 0.0
        %5149 = vmatprep.subr.mxu0 0.0
        %5150 = vmatpush1.msra.mxu0 0.0
        %5151 = vmatprep.mubr.f32.mxu0 0.0
        %5152 = vmatmul.mubr.f32.gmra.mrb[0].mxu0 %v4216
        %v5153 = vpop.f32.mrb[0].mxu0
        %v5154 = vadd.f32 0.0, %v5153
        %v5155 = vpop.f32.mrb[0].mxu0
        %5156 = vmatprep.mubr.f32.mxu0 0.0
        %5157 = vmatmul.mubr.f32.gmra.mrb[0].mxu0 %v4218
        %v5158 = vpop.f32.mrb[0].mxu0
        %v5159 = vadd.f32 0.0, %v5158
        %v5160 = vpop.f32.mrb[0].mxu0
        %5161 = vmatprep.mubr.f32.mxu0 0.0
        %5162 = vmatmul.mubr.f32.gmra.mrb[0].mxu0 %v4220
        %v5163 = vpop.f32.mrb[0].mxu0
        %v5164 = vadd.f32 0.0, %v5163
        %v5165 = vpop.f32.mrb[0].mxu0
        %5166 = vmatprep.mubr.f32.mxu0 0.0
        %5167 = vmatmul.mubr.f32.gmra.mrb[0].mxu0 %v4222
        %v5168 = vpop.f32.mrb[0].mxu0
        %v5169 = vadd.f32 0.0, %v5168
        %v5170 = vpop.f32.mrb[0].mxu0
        %5171 = vmatprep.mubr.f32.mxu0 0.0
        %5172 = vmatmul.mubr.f32.gmra.mrb[0].mxu0 %v4224
        %v5173 = vpop.f32.mrb[0].mxu0
        %v5174 = vadd.f32 0.0, %v5173
        %v5175 = vpop.f32.mrb[0].mxu0
        %5176 = vmatprep.mubr.f32.mxu0 0.0
        %5177 = vmatmul.mubr.f32.gmra.mrb[0].mxu0 %v4226
        %v5178 = vpop.f32.mrb[0].mxu0
        %v5179 = vadd.f32 0.0, %v5178
        %v5180 = vpop.f32.mrb[0].mxu0
        %5181 = vmatprep.mubr.f32.mxu0 0.0
        %5182 = vmatmul.mubr.f32.gmra.mrb[0].mxu0 %v4228
        %v5183 = vpop.f32.mrb[0].mxu0
        %v5184 = vadd.f32 0.0, %v5183
        %v5185 = vpop.f32.mrb[0].mxu0
        %5186 = vmatprep.mubr.f32.mxu0 0.0
        %5187 = vmatmul.mubr.f32.gmra.mrb[0].mxu0 %v4230
        %v5188 = vpop.f32.mrb[0].mxu0
        %v5189 = vadd.f32 0.0, %v5188
        %v5190 = vpop.f32.mrb[0].mxu0
        %5191 = vmatprep.mubr.f32.mxu0 0.0
        %5192 = vmatmul.mubr.f32.gmra.mrb[0].mxu0 %v4232
        %v5193 = vpop.f32.mrb[0].mxu0
        %v5194 = vadd.f32 0.0, %v5193
        %v5195 = vpop.f32.mrb[0].mxu0
        %5196 = vmatprep.mubr.f32.mxu0 0.0
        %5197 = vmatmul.mubr.f32.gmra.mrb[0].mxu0 %v4234
        %v5198 = vpop.f32.mrb[0].mxu0
        %v5199 = vadd.f32 0.0, %v5198
        %v5200 = vpop.f32.mrb[0].mxu0
        %5201 = vmatprep.mubr.f32.mxu0 0.0
        %5202 = vmatmul.mubr.f32.gmra.mrb[0].mxu0 %v4236
        %v5203 = vpop.f32.mrb[0].mxu0
        %v5204 = vadd.f32 0.0, %v5203
        %v5205 = vpop.f32.mrb[0].mxu0
        %5206 = vmatprep.mubr.f32.mxu0 0.0
        %5207 = vmatmul.mubr.f32.gmra.mrb[0].mxu0 %v4238
        %v5208 = vpop.f32.mrb[0].mxu0
        %v5209 = vadd.f32 0.0, %v5208
        %v5210 = vpop.f32.mrb[0].mxu0
        %5211 = vmatprep.mubr.f32.mxu0 0.0
        %5212 = vmatmul.mubr.f32.gmra.mrb[0].mxu0 %v4240
        %v5213 = vpop.f32.mrb[0].mxu0
        %v5214 = vadd.f32 0.0, %v5213
        %v5215 = vpop.f32.mrb[0].mxu0
        %5216 = vmatprep.mubr.f32.mxu0 0.0
        %5217 = vmatmul.mubr.f32.gmra.mrb[0].mxu0 %v4242
        %v5218 = vpop.f32.mrb[0].mxu0
        %v5219 = vadd.f32 0.0, %v5218
        %v5220 = vpop.f32.mrb[0].mxu0
        %5221 = vmatprep.mubr.f32.mxu0 0.0
        %5222 = vmatmul.mubr.f32.gmra.mrb[0].mxu0 %v4244
        %v5223 = vpop.f32.mrb[0].mxu0
        %v5224 = vadd.f32 0.0, %v5223
        %v5225 = vpop.f32.mrb[0].mxu0
        %5226 = vmatprep.mubr.f32.mxu0 0.0
        %5227 = vmatmul.mubr.f32.gmra.mrb[0].mxu0 %v4246
        %v5228 = vpop.f32.mrb[0].mxu0
        %v5229 = vadd.f32 0.0, %v5228
        %v5230 = vpop.f32.mrb[0].mxu0
        %5231 = vmatprep.mubr.f32.mxu0 0.0
        %5232 = vmatmul.mubr.f32.gmra.mrb[0].mxu0 %v4248
        %v5233 = vpop.f32.mrb[0].mxu0
        %v5234 = vadd.f32 0.0, %v5233
        %v5235 = vpop.f32.mrb[0].mxu0
        %5236 = vmatprep.mubr.f32.mxu0 0.0
        %5237 = vmatmul.mubr.f32.gmra.mrb[0].mxu0 %v4250
        %v5238 = vpop.f32.mrb[0].mxu0
        %v5239 = vadd.f32 0.0, %v5238
        %v5240 = vpop.f32.mrb[0].mxu0
        %5241 = vmatprep.mubr.f32.mxu0 0.0
        %5242 = vmatmul.mubr.f32.gmra.mrb[0].mxu0 %v4252
        %v5243 = vpop.f32.mrb[0].mxu0
        %v5244 = vadd.f32 0.0, %v5243
        %v5245 = vpop.f32.mrb[0].mxu0
        %5246 = vmatprep.mubr.f32.mxu0 0.0
        %5247 = vmatmul.mubr.f32.gmra.mrb[0].mxu0 %v4254
        %v5248 = vpop.f32.mrb[0].mxu0
        %v5249 = vadd.f32 0.0, %v5248
        %v5250 = vpop.f32.mrb[0].mxu0
        %5251 = vmatprep.mubr.f32.mxu0 0.0
        %5252 = vmatmul.mubr.f32.gmra.mrb[0].mxu0 %v4256
        %v5253 = vpop.f32.mrb[0].mxu0
        %v5254 = vadd.f32 0.0, %v5253
        %v5255 = vpop.f32.mrb[0].mxu0
        %5256 = vmatprep.mubr.f32.mxu0 0.0
        %5257 = vmatmul.mubr.f32.gmra.mrb[0].mxu0 %v4258
        %v5258 = vpop.f32.mrb[0].mxu0
        %v5259 = vadd.f32 0.0, %v5258
        %v5260 = vpop.f32.mrb[0].mxu0
        %5261 = vmatprep.mubr.f32.mxu0 0.0
        %5262 = vmatmul.mubr.f32.gmra.mrb[0].mxu0 %v4260
        %v5263 = vpop.f32.mrb[0].mxu0
        %v5264 = vadd.f32 0.0, %v5263
        %v5265 = vpop.f32.mrb[0].mxu0
        %5266 = vmatprep.mubr.f32.mxu0 0.0
        %5267 = vmatmul.mubr.f32.gmra.mrb[0].mxu0 %v4262
        %v5268 = vpop.f32.mrb[0].mxu0
        %v5269 = vadd.f32 0.0, %v5268
        %v5270 = vpop.f32.mrb[0].mxu0
        %5271 = vmatprep.mubr.f32.mxu0 0.0
        %5272 = vmatmul.mubr.f32.gmra.mrb[0].mxu0 %v4264
        %v5273 = vpop.f32.mrb[0].mxu0
        %v5274 = vadd.f32 0.0, %v5273
        %v5275 = vpop.f32.mrb[0].mxu0
        %5276 = vmatprep.mubr.f32.mxu0 0.0
        %5277 = vmatmul.mubr.f32.gmra.mrb[0].mxu0 %v4266
        %v5278 = vpop.f32.mrb[0].mxu0
        %v5279 = vadd.f32 0.0, %v5278
        %v5280 = vpop.f32.mrb[0].mxu0
        %5281 = vmatprep.mubr.f32.mxu0 0.0
        %5282 = vmatmul.mubr.f32.gmra.mrb[0].mxu0 %v4268
        %v5283 = vpop.f32.mrb[0].mxu0
        %v5284 = vadd.f32 0.0, %v5283
        %v5285 = vpop.f32.mrb[0].mxu0
        %5286 = vmatprep.mubr.f32.mxu0 0.0
        %5287 = vmatmul.mubr.f32.gmra.mrb[0].mxu0 %v4270
        %v5288 = vpop.f32.mrb[0].mxu0
        %v5289 = vadd.f32 0.0, %v5288
        %v5290 = vpop.f32.mrb[0].mxu0
        %5291 = vmatprep.mubr.f32.mxu0 0.0
        %5292 = vmatmul.mubr.f32.gmra.mrb[0].mxu0 %v4272
        %v5293 = vpop.f32.mrb[0].mxu0
        %v5294 = vadd.f32 0.0, %v5293
        %v5295 = vpop.f32.mrb[0].mxu0
        %5296 = vmatprep.mubr.f32.mxu0 0.0
        %5297 = vmatmul.mubr.f32.gmra.mrb[0].mxu0 %v4274
        %v5298 = vpop.f32.mrb[0].mxu0
        %v5299 = vadd.f32 0.0, %v5298
        %v5300 = vpop.f32.mrb[0].mxu0
        %5301 = vmatprep.mubr.f32.mxu0 0.0
        %5302 = vmatmul.mubr.f32.gmra.mrb[0].mxu0 %v5083
        %v5303 = vpop.f32.mrb[0].mxu0
        %v5304 = vadd.f32 0.0, %v5303
        %v5305 = vpop.f32.mrb[0].mxu0
        %5306 = vmatprep.mubr.f32.mxu0 0.0
        %5307 = vmatmul.mubr.f32.gmra.mrb[0].mxu0 %v5085
        %v5308 = vpop.f32.mrb[0].mxu0
        %v5309 = vadd.f32 0.0, %v5308
        %v5310 = vpop.f32.mrb[0].mxu0
        %5311 = vdwg.mxu0
        %v5312 = vadd.f32 %v5041, %v5154
        %v5313 = vadd.f32 %v5042, %v5159
        %v5314 = vadd.f32 %v5043, %v5164
        %v5315 = vadd.f32 %v5044, %v5169
        %v5316 = vadd.f32 %v5045, %v5174
        %v5317 = vadd.f32 %v5046, %v5179
        %v5318 = vadd.f32 %v5047, %v5184
        %v5319 = vadd.f32 %v5048, %v5189
        %v5320 = vadd.f32 %v5049, %v5194
        %v5321 = vadd.f32 %v5050, %v5199
        %v5322 = vadd.f32 %v5051, %v5204
        %v5323 = vadd.f32 %v5052, %v5209
        %v5324 = vadd.f32 %v5053, %v5214
        %v5325 = vadd.f32 %v5054, %v5219
        %v5326 = vadd.f32 %v5055, %v5224
        %v5327 = vadd.f32 %v5056, %v5229
        %v5328 = vadd.f32 %v5057, %v5234
        %v5329 = vadd.f32 %v5058, %v5239
        %v5330 = vadd.f32 %v5059, %v5244
        %v5331 = vadd.f32 %v5060, %v5249
        %v5332 = vadd.f32 %v5061, %v5254
        %v5333 = vadd.f32 %v5062, %v5259
        %v5334 = vadd.f32 %v5063, %v5264
        %v5335 = vadd.f32 %v5064, %v5269
        %v5336 = vadd.f32 %v5065, %v5274
        %v5337 = vadd.f32 %v5066, %v5279
        %v5338 = vadd.f32 %v5067, %v5284
        %v5339 = vadd.f32 %v5068, %v5289
        %v5340 = vadd.f32 %v5069, %v5294
        %v5341 = vadd.f32 %v5070, %v5299
        %v5342 = vadd.f32 %v5071, %v5304
        %v5343 = vadd.f32 %v5072, %v5309
        %s5344 = scalar_lea.vmem %s4, 192
        %v5345 = vld [vmem:[%s5344] sm:$0xff]
        %v5346 = vld [vmem:[%s5344 + $0x8] sm:$0xff]
        %v5347 = vld [vmem:[%s5344 + $0x10] sm:$0xff]
        %v5348 = vld [vmem:[%s5344 + $0x18] sm:$0xff]
        %v5350 = vsel %vm3269, %v3409, 0
        %v5353 = vsel %vm3269, %v3410, 0
        %5355 = vmatprep.subr.mxu0 0.0
        %5356 = vmatpush1.msra.mxu0 %v5345
        %5357 = vmatprep.subr.mxu0 0.0
        %5358 = vmatpush1.msra.mxu0 %v5346
        %5359 = vmatprep.subr.mxu0 0.0
        %5360 = vmatpush1.msra.mxu0 %v5347
        %5361 = vmatprep.subr.mxu0 0.0
        %5362 = vmatpush1.msra.mxu0 %v5348
        %5363 = vmatprep.subr.mxu0 0.0
        %5364 = vmatpush1.msra.mxu0 0.0
        %5365 = vmatprep.subr.mxu0 0.0
        %5366 = vmatpush1.msra.mxu0 0.0
        %5367 = vmatprep.subr.mxu0 0.0
        %5368 = vmatpush1.msra.mxu0 0.0
        %5369 = vmatprep.subr.mxu0 0.0
        %5370 = vmatpush1.msra.mxu0 0.0
        %5371 = vmatprep.subr.mxu0 0.0
        %5372 = vmatpush1.msra.mxu0 0.0
        %5373 = vmatprep.subr.mxu0 0.0
        %5374 = vmatpush1.msra.mxu0 0.0
        %5375 = vmatprep.subr.mxu0 0.0
        %5376 = vmatpush1.msra.mxu0 0.0
        %5377 = vmatprep.subr.mxu0 0.0
        %5378 = vmatpush1.msra.mxu0 0.0
        %5379 = vmatprep.subr.mxu0 0.0
        %5380 = vmatpush1.msra.mxu0 0.0
        %5381 = vmatprep.subr.mxu0 0.0
        %5382 = vmatpush1.msra.mxu0 0.0
        %5383 = vmatprep.subr.mxu0 0.0
        %5384 = vmatpush1.msra.mxu0 0.0
        %5385 = vmatprep.subr.mxu0 0.0
        %5386 = vmatpush1.msra.mxu0 0.0
        %5387 = vmatprep.subr.mxu0 0.0
        %5388 = vmatpush1.msra.mxu0 0.0
        %5389 = vmatprep.subr.mxu0 0.0
        %5390 = vmatpush1.msra.mxu0 0.0
        %5391 = vmatprep.subr.mxu0 0.0
        %5392 = vmatpush1.msra.mxu0 0.0
        %5393 = vmatprep.subr.mxu0 0.0
        %5394 = vmatpush1.msra.mxu0 0.0
        %5395 = vmatprep.subr.mxu0 0.0
        %5396 = vmatpush1.msra.mxu0 0.0
        %5397 = vmatprep.subr.mxu0 0.0
        %5398 = vmatpush1.msra.mxu0 0.0
        %5399 = vmatprep.subr.mxu0 0.0
        %5400 = vmatpush1.msra.mxu0 0.0
        %5401 = vmatprep.subr.mxu0 0.0
        %5402 = vmatpush1.msra.mxu0 0.0
        %5403 = vmatprep.subr.mxu0 0.0
        %5404 = vmatpush1.msra.mxu0 0.0
        %5405 = vmatprep.subr.mxu0 0.0
        %5406 = vmatpush1.msra.mxu0 0.0
        %5407 = vmatprep.subr.mxu0 0.0
        %5408 = vmatpush1.msra.mxu0 0.0
        %5409 = vmatprep.subr.mxu0 0.0
        %5410 = vmatpush1.msra.mxu0 0.0
        %5411 = vmatprep.subr.mxu0 0.0
        %5412 = vmatpush1.msra.mxu0 0.0
        %5413 = vmatprep.subr.mxu0 0.0
        %5414 = vmatpush1.msra.mxu0 0.0
        %5415 = vmatprep.subr.mxu0 0.0
        %5416 = vmatpush1.msra.mxu0 0.0
        %5417 = vmatprep.subr.mxu0 0.0
        %5418 = vmatpush1.msra.mxu0 0.0
        %5419 = vmatprep.mubr.f32.mxu0 0.0
        %5420 = vmatmul.mubr.f32.gmra.mrb[0].mxu0 %v3846
        %v5421 = vpop.f32.mrb[0].mxu0
        %v5422 = vadd.f32 0.0, %v5421
        %v5423 = vpop.f32.mrb[0].mxu0
        %5424 = vmatprep.mubr.f32.mxu0 0.0
        %5425 = vmatmul.mubr.f32.gmra.mrb[0].mxu0 %v3848
        %v5426 = vpop.f32.mrb[0].mxu0
        %v5427 = vadd.f32 0.0, %v5426
        %v5428 = vpop.f32.mrb[0].mxu0
        %5429 = vmatprep.mubr.f32.mxu0 0.0
        %5430 = vmatmul.mubr.f32.gmra.mrb[0].mxu0 %v3850
        %v5431 = vpop.f32.mrb[0].mxu0
        %v5432 = vadd.f32 0.0, %v5431
        %v5433 = vpop.f32.mrb[0].mxu0
        %5434 = vmatprep.mubr.f32.mxu0 0.0
        %5435 = vmatmul.mubr.f32.gmra.mrb[0].mxu0 %v3852
        %v5436 = vpop.f32.mrb[0].mxu0
        %v5437 = vadd.f32 0.0, %v5436
        %v5438 = vpop.f32.mrb[0].mxu0
        %5439 = vmatprep.mubr.f32.mxu0 0.0
        %5440 = vmatmul.mubr.f32.gmra.mrb[0].mxu0 %v3854
        %v5441 = vpop.f32.mrb[0].mxu0
        %v5442 = vadd.f32 0.0, %v5441
        %v5443 = vpop.f32.mrb[0].mxu0
        %5444 = vmatprep.mubr.f32.mxu0 0.0
        %5445 = vmatmul.mubr.f32.gmra.mrb[0].mxu0 %v3856
        %v5446 = vpop.f32.mrb[0].mxu0
        %v5447 = vadd.f32 0.0, %v5446
        %v5448 = vpop.f32.mrb[0].mxu0
        %5449 = vmatprep.mubr.f32.mxu0 0.0
        %5450 = vmatmul.mubr.f32.gmra.mrb[0].mxu0 %v3858
        %v5451 = vpop.f32.mrb[0].mxu0
        %v5452 = vadd.f32 0.0, %v5451
        %v5453 = vpop.f32.mrb[0].mxu0
        %5454 = vmatprep.mubr.f32.mxu0 0.0
        %5455 = vmatmul.mubr.f32.gmra.mrb[0].mxu0 %v3860
        %v5456 = vpop.f32.mrb[0].mxu0
        %v5457 = vadd.f32 0.0, %v5456
        %v5458 = vpop.f32.mrb[0].mxu0
        %5459 = vmatprep.mubr.f32.mxu0 0.0
        %5460 = vmatmul.mubr.f32.gmra.mrb[0].mxu0 %v3862
        %v5461 = vpop.f32.mrb[0].mxu0
        %v5462 = vadd.f32 0.0, %v5461
        %v5463 = vpop.f32.mrb[0].mxu0
        %5464 = vmatprep.mubr.f32.mxu0 0.0
        %5465 = vmatmul.mubr.f32.gmra.mrb[0].mxu0 %v3864
        %v5466 = vpop.f32.mrb[0].mxu0
        %v5467 = vadd.f32 0.0, %v5466
        %v5468 = vpop.f32.mrb[0].mxu0
        %5469 = vmatprep.mubr.f32.mxu0 0.0
        %5470 = vmatmul.mubr.f32.gmra.mrb[0].mxu0 %v3866
        %v5471 = vpop.f32.mrb[0].mxu0
        %v5472 = vadd.f32 0.0, %v5471
        %v5473 = vpop.f32.mrb[0].mxu0
        %5474 = vmatprep.mubr.f32.mxu0 0.0
        %5475 = vmatmul.mubr.f32.gmra.mrb[0].mxu0 %v3868
        %v5476 = vpop.f32.mrb[0].mxu0
        %v5477 = vadd.f32 0.0, %v5476
        %v5478 = vpop.f32.mrb[0].mxu0
        %5479 = vmatprep.mubr.f32.mxu0 0.0
        %5480 = vmatmul.mubr.f32.gmra.mrb[0].mxu0 %v3870
        %v5481 = vpop.f32.mrb[0].mxu0
        %v5482 = vadd.f32 0.0, %v5481
        %v5483 = vpop.f32.mrb[0].mxu0
        %5484 = vmatprep.mubr.f32.mxu0 0.0
        %5485 = vmatmul.mubr.f32.gmra.mrb[0].mxu0 %v3872
        %v5486 = vpop.f32.mrb[0].mxu0
        %v5487 = vadd.f32 0.0, %v5486
        %v5488 = vpop.f32.mrb[0].mxu0
        %5489 = vmatprep.mubr.f32.mxu0 0.0
        %5490 = vmatmul.mubr.f32.gmra.mrb[0].mxu0 %v3874
        %v5491 = vpop.f32.mrb[0].mxu0
        %v5492 = vadd.f32 0.0, %v5491
        %v5493 = vpop.f32.mrb[0].mxu0
        %5494 = vmatprep.mubr.f32.mxu0 0.0
        %5495 = vmatmul.mubr.f32.gmra.mrb[0].mxu0 %v3876
        %v5496 = vpop.f32.mrb[0].mxu0
        %v5497 = vadd.f32 0.0, %v5496
        %v5498 = vpop.f32.mrb[0].mxu0
        %5499 = vmatprep.mubr.f32.mxu0 0.0
        %5500 = vmatmul.mubr.f32.gmra.mrb[0].mxu0 %v3878
        %v5501 = vpop.f32.mrb[0].mxu0
        %v5502 = vadd.f32 0.0, %v5501
        %v5503 = vpop.f32.mrb[0].mxu0
        %5504 = vmatprep.mubr.f32.mxu0 0.0
        %5505 = vmatmul.mubr.f32.gmra.mrb[0].mxu0 %v3880
        %v5506 = vpop.f32.mrb[0].mxu0
        %v5507 = vadd.f32 0.0, %v5506
        %v5508 = vpop.f32.mrb[0].mxu0
        %5509 = vmatprep.mubr.f32.mxu0 0.0
        %5510 = vmatmul.mubr.f32.gmra.mrb[0].mxu0 %v3882
        %v5511 = vpop.f32.mrb[0].mxu0
        %v5512 = vadd.f32 0.0, %v5511
        %v5513 = vpop.f32.mrb[0].mxu0
        %5514 = vmatprep.mubr.f32.mxu0 0.0
        %5515 = vmatmul.mubr.f32.gmra.mrb[0].mxu0 %v3884
        %v5516 = vpop.f32.mrb[0].mxu0
        %v5517 = vadd.f32 0.0, %v5516
        %v5518 = vpop.f32.mrb[0].mxu0
        %5519 = vmatprep.mubr.f32.mxu0 0.0
        %5520 = vmatmul.mubr.f32.gmra.mrb[0].mxu0 %v3886
        %v5521 = vpop.f32.mrb[0].mxu0
        %v5522 = vadd.f32 0.0, %v5521
        %v5523 = vpop.f32.mrb[0].mxu0
        %5524 = vmatprep.mubr.f32.mxu0 0.0
        %5525 = vmatmul.mubr.f32.gmra.mrb[0].mxu0 %v3888
        %v5526 = vpop.f32.mrb[0].mxu0
        %v5527 = vadd.f32 0.0, %v5526
        %v5528 = vpop.f32.mrb[0].mxu0
        %5529 = vmatprep.mubr.f32.mxu0 0.0
        %5530 = vmatmul.mubr.f32.gmra.mrb[0].mxu0 %v3890
        %v5531 = vpop.f32.mrb[0].mxu0
        %v5532 = vadd.f32 0.0, %v5531
        %v5533 = vpop.f32.mrb[0].mxu0
        %5534 = vmatprep.mubr.f32.mxu0 0.0
        %5535 = vmatmul.mubr.f32.gmra.mrb[0].mxu0 %v3892
        %v5536 = vpop.f32.mrb[0].mxu0
        %v5537 = vadd.f32 0.0, %v5536
        %v5538 = vpop.f32.mrb[0].mxu0
        %5539 = vmatprep.mubr.f32.mxu0 0.0
        %5540 = vmatmul.mubr.f32.gmra.mrb[0].mxu0 %v3894
        %v5541 = vpop.f32.mrb[0].mxu0
        %v5542 = vadd.f32 0.0, %v5541
        %v5543 = vpop.f32.mrb[0].mxu0
        %5544 = vmatprep.mubr.f32.mxu0 0.0
        %5545 = vmatmul.mubr.f32.gmra.mrb[0].mxu0 %v3896
        %v5546 = vpop.f32.mrb[0].mxu0
        %v5547 = vadd.f32 0.0, %v5546
        %v5548 = vpop.f32.mrb[0].mxu0
        %5549 = vmatprep.mubr.f32.mxu0 0.0
        %5550 = vmatmul.mubr.f32.gmra.mrb[0].mxu0 %v3898
        %v5551 = vpop.f32.mrb[0].mxu0
        %v5552 = vadd.f32 0.0, %v5551
        %v5553 = vpop.f32.mrb[0].mxu0
        %5554 = vmatprep.mubr.f32.mxu0 0.0
        %5555 = vmatmul.mubr.f32.gmra.mrb[0].mxu0 %v3900
        %v5556 = vpop.f32.mrb[0].mxu0
        %v5557 = vadd.f32 0.0, %v5556
        %v5558 = vpop.f32.mrb[0].mxu0
        %5559 = vmatprep.mubr.f32.mxu0 0.0
        %5560 = vmatmul.mubr.f32.gmra.mrb[0].mxu0 %v4539
        %v5561 = vpop.f32.mrb[0].mxu0
        %v5562 = vadd.f32 0.0, %v5561
        %v5563 = vpop.f32.mrb[0].mxu0
        %5564 = vmatprep.mubr.f32.mxu0 0.0
        %5565 = vmatmul.mubr.f32.gmra.mrb[0].mxu0 %v4542
        %v5566 = vpop.f32.mrb[0].mxu0
        %v5567 = vadd.f32 0.0, %v5566
        %v5568 = vpop.f32.mrb[0].mxu0
        %5569 = vmatprep.mubr.f32.mxu0 0.0
        %5570 = vmatmul.mubr.f32.gmra.mrb[0].mxu0 %v5350
        %v5571 = vpop.f32.mrb[0].mxu0
        %v5572 = vadd.f32 0.0, %v5571
        %v5573 = vpop.f32.mrb[0].mxu0
        %5574 = vmatprep.mubr.f32.mxu0 0.0
        %5575 = vmatmul.mubr.f32.gmra.mrb[0].mxu0 %v5353
        %v5576 = vpop.f32.mrb[0].mxu0
        %v5577 = vadd.f32 0.0, %v5576
        %v5578 = vpop.f32.mrb[0].mxu0
        %5579 = vdwg.mxu0
        %v5580 = vadd.f32 %v5312, %v5422
        %v5581 = vadd.f32 %v5313, %v5427
        %v5582 = vadd.f32 %v5314, %v5432
        %v5583 = vadd.f32 %v5315, %v5437
        %v5584 = vadd.f32 %v5316, %v5442
        %v5585 = vadd.f32 %v5317, %v5447
        %v5586 = vadd.f32 %v5318, %v5452
        %v5587 = vadd.f32 %v5319, %v5457
        %v5588 = vadd.f32 %v5320, %v5462
        %v5589 = vadd.f32 %v5321, %v5467
        %v5590 = vadd.f32 %v5322, %v5472
        %v5591 = vadd.f32 %v5323, %v5477
        %v5592 = vadd.f32 %v5324, %v5482
        %v5593 = vadd.f32 %v5325, %v5487
        %v5594 = vadd.f32 %v5326, %v5492
        %v5595 = vadd.f32 %v5327, %v5497
        %v5596 = vadd.f32 %v5328, %v5502
        %v5597 = vadd.f32 %v5329, %v5507
        %v5598 = vadd.f32 %v5330, %v5512
        %v5599 = vadd.f32 %v5331, %v5517
        %v5600 = vadd.f32 %v5332, %v5522
        %v5601 = vadd.f32 %v5333, %v5527
        %v5602 = vadd.f32 %v5334, %v5532
        %v5603 = vadd.f32 %v5335, %v5537
        %v5604 = vadd.f32 %v5336, %v5542
        %v5605 = vadd.f32 %v5337, %v5547
        %v5606 = vadd.f32 %v5338, %v5552
        %v5607 = vadd.f32 %v5339, %v5557
        %v5608 = vadd.f32 %v5340, %v5562
        %v5609 = vadd.f32 %v5341, %v5567
        %v5610 = vadd.f32 %v5342, %v5572
        %v5611 = vadd.f32 %v5343, %v5577
        %v5613 = vrot.slane %v3409, 1
        %v5614 = vrot.slane %v3410, 1
        %v5615 = vsel %vm461, %v5613, %v5614
        %v5616 = vrot.slane %v3411, 1
        %v5617 = vsel %vm461, %v5614, %v5616
        %s5618 = scalar_lea.vmem %s4, 224
        %v5619 = vld [vmem:[%s5618] sm:$0xff]
        %v5620 = vld [vmem:[%s5618 + $0x8] sm:$0xff]
        %v5621 = vld [vmem:[%s5618 + $0x10] sm:$0xff]
        %v5622 = vld [vmem:[%s5618 + $0x18] sm:$0xff]
        %v5623 = vsel %vm3269, %v5615, 0
        %v5625 = vsel %vm3269, %v5617, 0
        %5627 = vmatprep.subr.mxu0 0.0
        %5628 = vmatpush1.msra.mxu0 %v5619
        %5629 = vmatprep.subr.mxu0 0.0
        %5630 = vmatpush1.msra.mxu0 %v5620
        %5631 = vmatprep.subr.mxu0 0.0
        %5632 = vmatpush1.msra.mxu0 %v5621
        %5633 = vmatprep.subr.mxu0 0.0
        %5634 = vmatpush1.msra.mxu0 %v5622
        %5635 = vmatprep.subr.mxu0 0.0
        %5636 = vmatpush1.msra.mxu0 0.0
        %5637 = vmatprep.subr.mxu0 0.0
        %5638 = vmatpush1.msra.mxu0 0.0
        %5639 = vmatprep.subr.mxu0 0.0
        %5640 = vmatpush1.msra.mxu0 0.0
        %5641 = vmatprep.subr.mxu0 0.0
        %5642 = vmatpush1.msra.mxu0 0.0
        %5643 = vmatprep.subr.mxu0 0.0
        %5644 = vmatpush1.msra.mxu0 0.0
        %5645 = vmatprep.subr.mxu0 0.0
        %5646 = vmatpush1.msra.mxu0 0.0
        %5647 = vmatprep.subr.mxu0 0.0
        %5648 = vmatpush1.msra.mxu0 0.0
        %5649 = vmatprep.subr.mxu0 0.0
        %5650 = vmatpush1.msra.mxu0 0.0
        %5651 = vmatprep.subr.mxu0 0.0
        %5652 = vmatpush1.msra.mxu0 0.0
        %5653 = vmatprep.subr.mxu0 0.0
        %5654 = vmatpush1.msra.mxu0 0.0
        %5655 = vmatprep.subr.mxu0 0.0
        %5656 = vmatpush1.msra.mxu0 0.0
        %5657 = vmatprep.subr.mxu0 0.0
        %5658 = vmatpush1.msra.mxu0 0.0
        %5659 = vmatprep.subr.mxu0 0.0
        %5660 = vmatpush1.msra.mxu0 0.0
        %5661 = vmatprep.subr.mxu0 0.0
        %5662 = vmatpush1.msra.mxu0 0.0
        %5663 = vmatprep.subr.mxu0 0.0
        %5664 = vmatpush1.msra.mxu0 0.0
        %5665 = vmatprep.subr.mxu0 0.0
        %5666 = vmatpush1.msra.mxu0 0.0
        %5667 = vmatprep.subr.mxu0 0.0
        %5668 = vmatpush1.msra.mxu0 0.0
        %5669 = vmatprep.subr.mxu0 0.0
        %5670 = vmatpush1.msra.mxu0 0.0
        %5671 = vmatprep.subr.mxu0 0.0
        %5672 = vmatpush1.msra.mxu0 0.0
        %5673 = vmatprep.subr.mxu0 0.0
        %5674 = vmatpush1.msra.mxu0 0.0
        %5675 = vmatprep.subr.mxu0 0.0
        %5676 = vmatpush1.msra.mxu0 0.0
        %5677 = vmatprep.subr.mxu0 0.0
        %5678 = vmatpush1.msra.mxu0 0.0
        %5679 = vmatprep.subr.mxu0 0.0
        %5680 = vmatpush1.msra.mxu0 0.0
        %5681 = vmatprep.subr.mxu0 0.0
        %5682 = vmatpush1.msra.mxu0 0.0
        %5683 = vmatprep.subr.mxu0 0.0
        %5684 = vmatpush1.msra.mxu0 0.0
        %5685 = vmatprep.subr.mxu0 0.0
        %5686 = vmatpush1.msra.mxu0 0.0
        %5687 = vmatprep.subr.mxu0 0.0
        %5688 = vmatpush1.msra.mxu0 0.0
        %5689 = vmatprep.subr.mxu0 0.0
        %5690 = vmatpush1.msra.mxu0 0.0
        %5691 = vmatprep.mubr.f32.mxu0 0.0
        %5692 = vmatmul.mubr.f32.gmra.mrb[0].mxu0 %v3557
        %v5693 = vpop.f32.mrb[0].mxu0
        %v5694 = vadd.f32 0.0, %v5693
        %v5695 = vpop.f32.mrb[0].mxu0
        %5696 = vmatprep.mubr.f32.mxu0 0.0
        %5697 = vmatmul.mubr.f32.gmra.mrb[0].mxu0 %v3559
        %v5698 = vpop.f32.mrb[0].mxu0
        %v5699 = vadd.f32 0.0, %v5698
        %v5700 = vpop.f32.mrb[0].mxu0
        %5701 = vmatprep.mubr.f32.mxu0 0.0
        %5702 = vmatmul.mubr.f32.gmra.mrb[0].mxu0 %v3561
        %v5703 = vpop.f32.mrb[0].mxu0
        %v5704 = vadd.f32 0.0, %v5703
        %v5705 = vpop.f32.mrb[0].mxu0
        %5706 = vmatprep.mubr.f32.mxu0 0.0
        %5707 = vmatmul.mubr.f32.gmra.mrb[0].mxu0 %v3563
        %v5708 = vpop.f32.mrb[0].mxu0
        %v5709 = vadd.f32 0.0, %v5708
        %v5710 = vpop.f32.mrb[0].mxu0
        %5711 = vmatprep.mubr.f32.mxu0 0.0
        %5712 = vmatmul.mubr.f32.gmra.mrb[0].mxu0 %v3565
        %v5713 = vpop.f32.mrb[0].mxu0
        %v5714 = vadd.f32 0.0, %v5713
        %v5715 = vpop.f32.mrb[0].mxu0
        %5716 = vmatprep.mubr.f32.mxu0 0.0
        %5717 = vmatmul.mubr.f32.gmra.mrb[0].mxu0 %v3567
        %v5718 = vpop.f32.mrb[0].mxu0
        %v5719 = vadd.f32 0.0, %v5718
        %v5720 = vpop.f32.mrb[0].mxu0
        %5721 = vmatprep.mubr.f32.mxu0 0.0
        %5722 = vmatmul.mubr.f32.gmra.mrb[0].mxu0 %v3569
        %v5723 = vpop.f32.mrb[0].mxu0
        %v5724 = vadd.f32 0.0, %v5723
        %v5725 = vpop.f32.mrb[0].mxu0
        %5726 = vmatprep.mubr.f32.mxu0 0.0
        %5727 = vmatmul.mubr.f32.gmra.mrb[0].mxu0 %v3571
        %v5728 = vpop.f32.mrb[0].mxu0
        %v5729 = vadd.f32 0.0, %v5728
        %v5730 = vpop.f32.mrb[0].mxu0
        %5731 = vmatprep.mubr.f32.mxu0 0.0
        %5732 = vmatmul.mubr.f32.gmra.mrb[0].mxu0 %v3573
        %v5733 = vpop.f32.mrb[0].mxu0
        %v5734 = vadd.f32 0.0, %v5733
        %v5735 = vpop.f32.mrb[0].mxu0
        %5736 = vmatprep.mubr.f32.mxu0 0.0
        %5737 = vmatmul.mubr.f32.gmra.mrb[0].mxu0 %v3575
        %v5738 = vpop.f32.mrb[0].mxu0
        %v5739 = vadd.f32 0.0, %v5738
        %v5740 = vpop.f32.mrb[0].mxu0
        %5741 = vmatprep.mubr.f32.mxu0 0.0
        %5742 = vmatmul.mubr.f32.gmra.mrb[0].mxu0 %v3577
        %v5743 = vpop.f32.mrb[0].mxu0
        %v5744 = vadd.f32 0.0, %v5743
        %v5745 = vpop.f32.mrb[0].mxu0
        %5746 = vmatprep.mubr.f32.mxu0 0.0
        %5747 = vmatmul.mubr.f32.gmra.mrb[0].mxu0 %v3579
        %v5748 = vpop.f32.mrb[0].mxu0
        %v5749 = vadd.f32 0.0, %v5748
        %v5750 = vpop.f32.mrb[0].mxu0
        %5751 = vmatprep.mubr.f32.mxu0 0.0
        %5752 = vmatmul.mubr.f32.gmra.mrb[0].mxu0 %v3581
        %v5753 = vpop.f32.mrb[0].mxu0
        %v5754 = vadd.f32 0.0, %v5753
        %v5755 = vpop.f32.mrb[0].mxu0
        %5756 = vmatprep.mubr.f32.mxu0 0.0
        %5757 = vmatmul.mubr.f32.gmra.mrb[0].mxu0 %v3583
        %v5758 = vpop.f32.mrb[0].mxu0
        %v5759 = vadd.f32 0.0, %v5758
        %v5760 = vpop.f32.mrb[0].mxu0
        %5761 = vmatprep.mubr.f32.mxu0 0.0
        %5762 = vmatmul.mubr.f32.gmra.mrb[0].mxu0 %v3585
        %v5763 = vpop.f32.mrb[0].mxu0
        %v5764 = vadd.f32 0.0, %v5763
        %v5765 = vpop.f32.mrb[0].mxu0
        %5766 = vmatprep.mubr.f32.mxu0 0.0
        %5767 = vmatmul.mubr.f32.gmra.mrb[0].mxu0 %v3587
        %v5768 = vpop.f32.mrb[0].mxu0
        %v5769 = vadd.f32 0.0, %v5768
        %v5770 = vpop.f32.mrb[0].mxu0
        %5771 = vmatprep.mubr.f32.mxu0 0.0
        %5772 = vmatmul.mubr.f32.gmra.mrb[0].mxu0 %v3589
        %v5773 = vpop.f32.mrb[0].mxu0
        %v5774 = vadd.f32 0.0, %v5773
        %v5775 = vpop.f32.mrb[0].mxu0
        %5776 = vmatprep.mubr.f32.mxu0 0.0
        %5777 = vmatmul.mubr.f32.gmra.mrb[0].mxu0 %v3591
        %v5778 = vpop.f32.mrb[0].mxu0
        %v5779 = vadd.f32 0.0, %v5778
        %v5780 = vpop.f32.mrb[0].mxu0
        %5781 = vmatprep.mubr.f32.mxu0 0.0
        %5782 = vmatmul.mubr.f32.gmra.mrb[0].mxu0 %v3593
        %v5783 = vpop.f32.mrb[0].mxu0
        %v5784 = vadd.f32 0.0, %v5783
        %v5785 = vpop.f32.mrb[0].mxu0
        %5786 = vmatprep.mubr.f32.mxu0 0.0
        %5787 = vmatmul.mubr.f32.gmra.mrb[0].mxu0 %v3595
        %v5788 = vpop.f32.mrb[0].mxu0
        %v5789 = vadd.f32 0.0, %v5788
        %v5790 = vpop.f32.mrb[0].mxu0
        %5791 = vmatprep.mubr.f32.mxu0 0.0
        %5792 = vmatmul.mubr.f32.gmra.mrb[0].mxu0 %v3597
        %v5793 = vpop.f32.mrb[0].mxu0
        %v5794 = vadd.f32 0.0, %v5793
        %v5795 = vpop.f32.mrb[0].mxu0
        %5796 = vmatprep.mubr.f32.mxu0 0.0
        %5797 = vmatmul.mubr.f32.gmra.mrb[0].mxu0 %v3599
        %v5798 = vpop.f32.mrb[0].mxu0
        %v5799 = vadd.f32 0.0, %v5798
        %v5800 = vpop.f32.mrb[0].mxu0
        %5801 = vmatprep.mubr.f32.mxu0 0.0
        %5802 = vmatmul.mubr.f32.gmra.mrb[0].mxu0 %v3601
        %v5803 = vpop.f32.mrb[0].mxu0
        %v5804 = vadd.f32 0.0, %v5803
        %v5805 = vpop.f32.mrb[0].mxu0
        %5806 = vmatprep.mubr.f32.mxu0 0.0
        %5807 = vmatmul.mubr.f32.gmra.mrb[0].mxu0 %v3603
        %v5808 = vpop.f32.mrb[0].mxu0
        %v5809 = vadd.f32 0.0, %v5808
        %v5810 = vpop.f32.mrb[0].mxu0
        %5811 = vmatprep.mubr.f32.mxu0 0.0
        %5812 = vmatmul.mubr.f32.gmra.mrb[0].mxu0 %v3605
        %v5813 = vpop.f32.mrb[0].mxu0
        %v5814 = vadd.f32 0.0, %v5813
        %v5815 = vpop.f32.mrb[0].mxu0
        %5816 = vmatprep.mubr.f32.mxu0 0.0
        %5817 = vmatmul.mubr.f32.gmra.mrb[0].mxu0 %v3607
        %v5818 = vpop.f32.mrb[0].mxu0
        %v5819 = vadd.f32 0.0, %v5818
        %v5820 = vpop.f32.mrb[0].mxu0
        %5821 = vmatprep.mubr.f32.mxu0 0.0
        %5822 = vmatmul.mubr.f32.gmra.mrb[0].mxu0 %v3609
        %v5823 = vpop.f32.mrb[0].mxu0
        %v5824 = vadd.f32 0.0, %v5823
        %v5825 = vpop.f32.mrb[0].mxu0
        %5826 = vmatprep.mubr.f32.mxu0 0.0
        %5827 = vmatmul.mubr.f32.gmra.mrb[0].mxu0 %v3611
        %v5828 = vpop.f32.mrb[0].mxu0
        %v5829 = vadd.f32 0.0, %v5828
        %v5830 = vpop.f32.mrb[0].mxu0
        %5831 = vmatprep.mubr.f32.mxu0 0.0
        %5832 = vmatmul.mubr.f32.gmra.mrb[0].mxu0 %v4812
        %v5833 = vpop.f32.mrb[0].mxu0
        %v5834 = vadd.f32 0.0, %v5833
        %v5835 = vpop.f32.mrb[0].mxu0
        %5836 = vmatprep.mubr.f32.mxu0 0.0
        %5837 = vmatmul.mubr.f32.gmra.mrb[0].mxu0 %v4814
        %v5838 = vpop.f32.mrb[0].mxu0
        %v5839 = vadd.f32 0.0, %v5838
        %v5840 = vpop.f32.mrb[0].mxu0
        %5841 = vmatprep.mubr.f32.mxu0 0.0
        %5842 = vmatmul.mubr.f32.gmra.mrb[0].mxu0 %v5623
        %v5843 = vpop.f32.mrb[0].mxu0
        %v5844 = vadd.f32 0.0, %v5843
        %v5845 = vpop.f32.mrb[0].mxu0
        %5846 = vmatprep.mubr.f32.mxu0 0.0
        %5847 = vmatmul.mubr.f32.gmra.mrb[0].mxu0 %v5625
        %v5848 = vpop.f32.mrb[0].mxu0
        %v5849 = vadd.f32 0.0, %v5848
        %v5850 = vpop.f32.mrb[0].mxu0
        %5851 = vdwg.mxu0
        %v5852 = vadd.f32 %v5580, %v5694
        %v5853 = vadd.f32 %v5581, %v5699
        %v5854 = vadd.f32 %v5582, %v5704
        %v5855 = vadd.f32 %v5583, %v5709
        %v5856 = vadd.f32 %v5584, %v5714
        %v5857 = vadd.f32 %v5585, %v5719
        %v5858 = vadd.f32 %v5586, %v5724
        %v5859 = vadd.f32 %v5587, %v5729
        %v5860 = vadd.f32 %v5588, %v5734
        %v5861 = vadd.f32 %v5589, %v5739
        %v5862 = vadd.f32 %v5590, %v5744
        %v5863 = vadd.f32 %v5591, %v5749
        %v5864 = vadd.f32 %v5592, %v5754
        %v5865 = vadd.f32 %v5593, %v5759
        %v5866 = vadd.f32 %v5594, %v5764
        %v5867 = vadd.f32 %v5595, %v5769
        %v5868 = vadd.f32 %v5596, %v5774
        %v5869 = vadd.f32 %v5597, %v5779
        %v5870 = vadd.f32 %v5598, %v5784
        %v5871 = vadd.f32 %v5599, %v5789
        %v5872 = vadd.f32 %v5600, %v5794
        %v5873 = vadd.f32 %v5601, %v5799
        %v5874 = vadd.f32 %v5602, %v5804
        %v5875 = vadd.f32 %v5603, %v5809
        %v5876 = vadd.f32 %v5604, %v5814
        %v5877 = vadd.f32 %v5605, %v5819
        %v5878 = vadd.f32 %v5606, %v5824
        %v5879 = vadd.f32 %v5607, %v5829
        %v5880 = vadd.f32 %v5608, %v5834
        %v5881 = vadd.f32 %v5609, %v5839
        %v5882 = vadd.f32 %v5610, %v5844
        %v5883 = vadd.f32 %v5611, %v5849
        %v5884 = vrot.slane %v3409, 2
        %v5885 = vrot.slane %v3410, 2
        %v5886 = vsel %vm1130, %v5884, %v5885
        %v5887 = vrot.slane %v3411, 2
        %v5888 = vsel %vm1130, %v5885, %v5887
        %s5889 = scalar_lea.vmem %s4, 256
        %v5890 = vld [vmem:[%s5889] sm:$0xff]
        %v5891 = vld [vmem:[%s5889 + $0x8] sm:$0xff]
        %v5892 = vld [vmem:[%s5889 + $0x10] sm:$0xff]
        %v5893 = vld [vmem:[%s5889 + $0x18] sm:$0xff]
        %v5894 = vsel %vm3269, %v5886, 0
        %v5896 = vsel %vm3269, %v5888, 0
        %5898 = vmatprep.subr.mxu0 0.0
        %5899 = vmatpush1.msra.mxu0 %v5890
        %5900 = vmatprep.subr.mxu0 0.0
        %5901 = vmatpush1.msra.mxu0 %v5891
        %5902 = vmatprep.subr.mxu0 0.0
        %5903 = vmatpush1.msra.mxu0 %v5892
        %5904 = vmatprep.subr.mxu0 0.0
        %5905 = vmatpush1.msra.mxu0 %v5893
        %5906 = vmatprep.subr.mxu0 0.0
        %5907 = vmatpush1.msra.mxu0 0.0
        %5908 = vmatprep.subr.mxu0 0.0
        %5909 = vmatpush1.msra.mxu0 0.0
        %5910 = vmatprep.subr.mxu0 0.0
        %5911 = vmatpush1.msra.mxu0 0.0
        %5912 = vmatprep.subr.mxu0 0.0
        %5913 = vmatpush1.msra.mxu0 0.0
        %5914 = vmatprep.subr.mxu0 0.0
        %5915 = vmatpush1.msra.mxu0 0.0
        %5916 = vmatprep.subr.mxu0 0.0
        %5917 = vmatpush1.msra.mxu0 0.0
        %5918 = vmatprep.subr.mxu0 0.0
        %5919 = vmatpush1.msra.mxu0 0.0
        %5920 = vmatprep.subr.mxu0 0.0
        %5921 = vmatpush1.msra.mxu0 0.0
        %5922 = vmatprep.subr.mxu0 0.0
        %5923 = vmatpush1.msra.mxu0 0.0
        %5924 = vmatprep.subr.mxu0 0.0
        %5925 = vmatpush1.msra.mxu0 0.0
        %5926 = vmatprep.subr.mxu0 0.0
        %5927 = vmatpush1.msra.mxu0 0.0
        %5928 = vmatprep.subr.mxu0 0.0
        %5929 = vmatpush1.msra.mxu0 0.0
        %5930 = vmatprep.subr.mxu0 0.0
        %5931 = vmatpush1.msra.mxu0 0.0
        %5932 = vmatprep.subr.mxu0 0.0
        %5933 = vmatpush1.msra.mxu0 0.0
        %5934 = vmatprep.subr.mxu0 0.0
        %5935 = vmatpush1.msra.mxu0 0.0
        %5936 = vmatprep.subr.mxu0 0.0
        %5937 = vmatpush1.msra.mxu0 0.0
        %5938 = vmatprep.subr.mxu0 0.0
        %5939 = vmatpush1.msra.mxu0 0.0
        %5940 = vmatprep.subr.mxu0 0.0
        %5941 = vmatpush1.msra.mxu0 0.0
        %5942 = vmatprep.subr.mxu0 0.0
        %5943 = vmatpush1.msra.mxu0 0.0
        %5944 = vmatprep.subr.mxu0 0.0
        %5945 = vmatpush1.msra.mxu0 0.0
        %5946 = vmatprep.subr.mxu0 0.0
        %5947 = vmatpush1.msra.mxu0 0.0
        %5948 = vmatprep.subr.mxu0 0.0
        %5949 = vmatpush1.msra.mxu0 0.0
        %5950 = vmatprep.subr.mxu0 0.0
        %5951 = vmatpush1.msra.mxu0 0.0
        %5952 = vmatprep.subr.mxu0 0.0
        %5953 = vmatpush1.msra.mxu0 0.0
        %5954 = vmatprep.subr.mxu0 0.0
        %5955 = vmatpush1.msra.mxu0 0.0
        %5956 = vmatprep.subr.mxu0 0.0
        %5957 = vmatpush1.msra.mxu0 0.0
        %5958 = vmatprep.subr.mxu0 0.0
        %5959 = vmatpush1.msra.mxu0 0.0
        %5960 = vmatprep.subr.mxu0 0.0
        %5961 = vmatpush1.msra.mxu0 0.0
        %5962 = vmatprep.mubr.f32.mxu0 0.0
        %5963 = vmatmul.mubr.f32.gmra.mrb[0].mxu0 %v4220
        %v5964 = vpop.f32.mrb[0].mxu0
        %v5965 = vadd.f32 0.0, %v5964
        %v5966 = vpop.f32.mrb[0].mxu0
        %5967 = vmatprep.mubr.f32.mxu0 0.0
        %5968 = vmatmul.mubr.f32.gmra.mrb[0].mxu0 %v4222
        %v5969 = vpop.f32.mrb[0].mxu0
        %v5970 = vadd.f32 0.0, %v5969
        %v5971 = vpop.f32.mrb[0].mxu0
        %5972 = vmatprep.mubr.f32.mxu0 0.0
        %5973 = vmatmul.mubr.f32.gmra.mrb[0].mxu0 %v4224
        %v5974 = vpop.f32.mrb[0].mxu0
        %v5975 = vadd.f32 0.0, %v5974
        %v5976 = vpop.f32.mrb[0].mxu0
        %5977 = vmatprep.mubr.f32.mxu0 0.0
        %5978 = vmatmul.mubr.f32.gmra.mrb[0].mxu0 %v4226
        %v5979 = vpop.f32.mrb[0].mxu0
        %v5980 = vadd.f32 0.0, %v5979
        %v5981 = vpop.f32.mrb[0].mxu0
        %5982 = vmatprep.mubr.f32.mxu0 0.0
        %5983 = vmatmul.mubr.f32.gmra.mrb[0].mxu0 %v4228
        %v5984 = vpop.f32.mrb[0].mxu0
        %v5985 = vadd.f32 0.0, %v5984
        %v5986 = vpop.f32.mrb[0].mxu0
        %5987 = vmatprep.mubr.f32.mxu0 0.0
        %5988 = vmatmul.mubr.f32.gmra.mrb[0].mxu0 %v4230
        %v5989 = vpop.f32.mrb[0].mxu0
        %v5990 = vadd.f32 0.0, %v5989
        %v5991 = vpop.f32.mrb[0].mxu0
        %5992 = vmatprep.mubr.f32.mxu0 0.0
        %5993 = vmatmul.mubr.f32.gmra.mrb[0].mxu0 %v4232
        %v5994 = vpop.f32.mrb[0].mxu0
        %v5995 = vadd.f32 0.0, %v5994
        %v5996 = vpop.f32.mrb[0].mxu0
        %5997 = vmatprep.mubr.f32.mxu0 0.0
        %5998 = vmatmul.mubr.f32.gmra.mrb[0].mxu0 %v4234
        %v5999 = vpop.f32.mrb[0].mxu0
        %v6000 = vadd.f32 0.0, %v5999
        %v6001 = vpop.f32.mrb[0].mxu0
        %6002 = vmatprep.mubr.f32.mxu0 0.0
        %6003 = vmatmul.mubr.f32.gmra.mrb[0].mxu0 %v4236
        %v6004 = vpop.f32.mrb[0].mxu0
        %v6005 = vadd.f32 0.0, %v6004
        %v6006 = vpop.f32.mrb[0].mxu0
        %6007 = vmatprep.mubr.f32.mxu0 0.0
        %6008 = vmatmul.mubr.f32.gmra.mrb[0].mxu0 %v4238
        %v6009 = vpop.f32.mrb[0].mxu0
        %v6010 = vadd.f32 0.0, %v6009
        %v6011 = vpop.f32.mrb[0].mxu0
        %6012 = vmatprep.mubr.f32.mxu0 0.0
        %6013 = vmatmul.mubr.f32.gmra.mrb[0].mxu0 %v4240
        %v6014 = vpop.f32.mrb[0].mxu0
        %v6015 = vadd.f32 0.0, %v6014
        %v6016 = vpop.f32.mrb[0].mxu0
        %6017 = vmatprep.mubr.f32.mxu0 0.0
        %6018 = vmatmul.mubr.f32.gmra.mrb[0].mxu0 %v4242
        %v6019 = vpop.f32.mrb[0].mxu0
        %v6020 = vadd.f32 0.0, %v6019
        %v6021 = vpop.f32.mrb[0].mxu0
        %6022 = vmatprep.mubr.f32.mxu0 0.0
        %6023 = vmatmul.mubr.f32.gmra.mrb[0].mxu0 %v4244
        %v6024 = vpop.f32.mrb[0].mxu0
        %v6025 = vadd.f32 0.0, %v6024
        %v6026 = vpop.f32.mrb[0].mxu0
        %6027 = vmatprep.mubr.f32.mxu0 0.0
        %6028 = vmatmul.mubr.f32.gmra.mrb[0].mxu0 %v4246
        %v6029 = vpop.f32.mrb[0].mxu0
        %v6030 = vadd.f32 0.0, %v6029
        %v6031 = vpop.f32.mrb[0].mxu0
        %6032 = vmatprep.mubr.f32.mxu0 0.0
        %6033 = vmatmul.mubr.f32.gmra.mrb[0].mxu0 %v4248
        %v6034 = vpop.f32.mrb[0].mxu0
        %v6035 = vadd.f32 0.0, %v6034
        %v6036 = vpop.f32.mrb[0].mxu0
        %6037 = vmatprep.mubr.f32.mxu0 0.0
        %6038 = vmatmul.mubr.f32.gmra.mrb[0].mxu0 %v4250
        %v6039 = vpop.f32.mrb[0].mxu0
        %v6040 = vadd.f32 0.0, %v6039
        %v6041 = vpop.f32.mrb[0].mxu0
        %6042 = vmatprep.mubr.f32.mxu0 0.0
        %6043 = vmatmul.mubr.f32.gmra.mrb[0].mxu0 %v4252
        %v6044 = vpop.f32.mrb[0].mxu0
        %v6045 = vadd.f32 0.0, %v6044
        %v6046 = vpop.f32.mrb[0].mxu0
        %6047 = vmatprep.mubr.f32.mxu0 0.0
        %6048 = vmatmul.mubr.f32.gmra.mrb[0].mxu0 %v4254
        %v6049 = vpop.f32.mrb[0].mxu0
        %v6050 = vadd.f32 0.0, %v6049
        %v6051 = vpop.f32.mrb[0].mxu0
        %6052 = vmatprep.mubr.f32.mxu0 0.0
        %6053 = vmatmul.mubr.f32.gmra.mrb[0].mxu0 %v4256
        %v6054 = vpop.f32.mrb[0].mxu0
        %v6055 = vadd.f32 0.0, %v6054
        %v6056 = vpop.f32.mrb[0].mxu0
        %6057 = vmatprep.mubr.f32.mxu0 0.0
        %6058 = vmatmul.mubr.f32.gmra.mrb[0].mxu0 %v4258
        %v6059 = vpop.f32.mrb[0].mxu0
        %v6060 = vadd.f32 0.0, %v6059
        %v6061 = vpop.f32.mrb[0].mxu0
        %6062 = vmatprep.mubr.f32.mxu0 0.0
        %6063 = vmatmul.mubr.f32.gmra.mrb[0].mxu0 %v4260
        %v6064 = vpop.f32.mrb[0].mxu0
        %v6065 = vadd.f32 0.0, %v6064
        %v6066 = vpop.f32.mrb[0].mxu0
        %6067 = vmatprep.mubr.f32.mxu0 0.0
        %6068 = vmatmul.mubr.f32.gmra.mrb[0].mxu0 %v4262
        %v6069 = vpop.f32.mrb[0].mxu0
        %v6070 = vadd.f32 0.0, %v6069
        %v6071 = vpop.f32.mrb[0].mxu0
        %6072 = vmatprep.mubr.f32.mxu0 0.0
        %6073 = vmatmul.mubr.f32.gmra.mrb[0].mxu0 %v4264
        %v6074 = vpop.f32.mrb[0].mxu0
        %v6075 = vadd.f32 0.0, %v6074
        %v6076 = vpop.f32.mrb[0].mxu0
        %6077 = vmatprep.mubr.f32.mxu0 0.0
        %6078 = vmatmul.mubr.f32.gmra.mrb[0].mxu0 %v4266
        %v6079 = vpop.f32.mrb[0].mxu0
        %v6080 = vadd.f32 0.0, %v6079
        %v6081 = vpop.f32.mrb[0].mxu0
        %6082 = vmatprep.mubr.f32.mxu0 0.0
        %6083 = vmatmul.mubr.f32.gmra.mrb[0].mxu0 %v4268
        %v6084 = vpop.f32.mrb[0].mxu0
        %v6085 = vadd.f32 0.0, %v6084
        %v6086 = vpop.f32.mrb[0].mxu0
        %6087 = vmatprep.mubr.f32.mxu0 0.0
        %6088 = vmatmul.mubr.f32.gmra.mrb[0].mxu0 %v4270
        %v6089 = vpop.f32.mrb[0].mxu0
        %v6090 = vadd.f32 0.0, %v6089
        %v6091 = vpop.f32.mrb[0].mxu0
        %6092 = vmatprep.mubr.f32.mxu0 0.0
        %6093 = vmatmul.mubr.f32.gmra.mrb[0].mxu0 %v4272
        %v6094 = vpop.f32.mrb[0].mxu0
        %v6095 = vadd.f32 0.0, %v6094
        %v6096 = vpop.f32.mrb[0].mxu0
        %6097 = vmatprep.mubr.f32.mxu0 0.0
        %6098 = vmatmul.mubr.f32.gmra.mrb[0].mxu0 %v4274
        %v6099 = vpop.f32.mrb[0].mxu0
        %v6100 = vadd.f32 0.0, %v6099
        %v6101 = vpop.f32.mrb[0].mxu0
        %6102 = vmatprep.mubr.f32.mxu0 0.0
        %6103 = vmatmul.mubr.f32.gmra.mrb[0].mxu0 %v5083
        %v6104 = vpop.f32.mrb[0].mxu0
        %v6105 = vadd.f32 0.0, %v6104
        %v6106 = vpop.f32.mrb[0].mxu0
        %6107 = vmatprep.mubr.f32.mxu0 0.0
        %6108 = vmatmul.mubr.f32.gmra.mrb[0].mxu0 %v5085
        %v6109 = vpop.f32.mrb[0].mxu0
        %v6110 = vadd.f32 0.0, %v6109
        %v6111 = vpop.f32.mrb[0].mxu0
        %6112 = vmatprep.mubr.f32.mxu0 0.0
        %6113 = vmatmul.mubr.f32.gmra.mrb[0].mxu0 %v5894
        %v6114 = vpop.f32.mrb[0].mxu0
        %v6115 = vadd.f32 0.0, %v6114
        %v6116 = vpop.f32.mrb[0].mxu0
        %6117 = vmatprep.mubr.f32.mxu0 0.0
        %6118 = vmatmul.mubr.f32.gmra.mrb[0].mxu0 %v5896
        %v6119 = vpop.f32.mrb[0].mxu0
        %v6120 = vadd.f32 0.0, %v6119
        %v6121 = vpop.f32.mrb[0].mxu0
        %6122 = vdwg.mxu0
        %v6123 = vadd.f32 %v5852, %v5965
        %v6124 = vadd.f32 %v5853, %v5970
        %v6125 = vadd.f32 %v5854, %v5975
        %v6126 = vadd.f32 %v5855, %v5980
        %v6127 = vadd.f32 %v5856, %v5985
        %v6128 = vadd.f32 %v5857, %v5990
        %v6129 = vadd.f32 %v5858, %v5995
        %v6130 = vadd.f32 %v5859, %v6000
        %v6131 = vadd.f32 %v5860, %v6005
        %v6132 = vadd.f32 %v5861, %v6010
        %v6133 = vadd.f32 %v5862, %v6015
        %v6134 = vadd.f32 %v5863, %v6020
        %v6135 = vadd.f32 %v5864, %v6025
        %v6136 = vadd.f32 %v5865, %v6030
        %v6137 = vadd.f32 %v5866, %v6035
        %v6138 = vadd.f32 %v5867, %v6040
        %v6139 = vadd.f32 %v5868, %v6045
        %v6140 = vadd.f32 %v5869, %v6050
        %v6141 = vadd.f32 %v5870, %v6055
        %v6142 = vadd.f32 %v5871, %v6060
        %v6143 = vadd.f32 %v5872, %v6065
        %v6144 = vadd.f32 %v5873, %v6070
        %v6145 = vadd.f32 %v5874, %v6075
        %v6146 = vadd.f32 %v5875, %v6080
        %v6147 = vadd.f32 %v5876, %v6085
        %v6148 = vadd.f32 %v5877, %v6090
        %v6149 = vadd.f32 %v5878, %v6095
        %v6150 = vadd.f32 %v5879, %v6100
        %v6151 = vadd.f32 %v5880, %v6105
        %v6152 = vadd.f32 %v5881, %v6110
        %v6153 = vadd.f32 %v5882, %v6115
        %v6154 = vadd.f32 %v5883, %v6120
        %v6155 = vld [vmem:[%s5] sm:$0x1]
        %v6157 = vlaneseq
        %v6158 = vshrl.u32 %v6157, 7
        %v6159 = vsub.s32 0, %v6158
        %v6160 = vrot.slane %v6155, %v6159
        %v6162 = vmul.f32 %v6123, %v6160
        %v6163 = vmul.f32 %v6124, %v6160
        %v6164 = vmul.f32 %v6125, %v6160
        %v6165 = vmul.f32 %v6126, %v6160
        %v6166 = vmul.f32 %v6127, %v6160
        %v6167 = vmul.f32 %v6128, %v6160
        %v6168 = vmul.f32 %v6129, %v6160
        %v6169 = vmul.f32 %v6130, %v6160
        %v6170 = vmul.f32 %v6131, %v6160
        %v6171 = vmul.f32 %v6132, %v6160
        %v6172 = vmul.f32 %v6133, %v6160
        %v6173 = vmul.f32 %v6134, %v6160
        %v6174 = vmul.f32 %v6135, %v6160
        %v6175 = vmul.f32 %v6136, %v6160
        %v6176 = vmul.f32 %v6137, %v6160
        %v6177 = vmul.f32 %v6138, %v6160
        %v6178 = vmul.f32 %v6139, %v6160
        %v6179 = vmul.f32 %v6140, %v6160
        %v6180 = vmul.f32 %v6141, %v6160
        %v6181 = vmul.f32 %v6142, %v6160
        %v6182 = vmul.f32 %v6143, %v6160
        %v6183 = vmul.f32 %v6144, %v6160
        %v6184 = vmul.f32 %v6145, %v6160
        %v6185 = vmul.f32 %v6146, %v6160
        %v6186 = vmul.f32 %v6147, %v6160
        %v6187 = vmul.f32 %v6148, %v6160
        %v6188 = vmul.f32 %v6149, %v6160
        %v6189 = vmul.f32 %v6150, %v6160
        %v6190 = vmul.f32 %v6151, %v6160
        %v6191 = vmul.f32 %v6152, %v6160
        %v6192 = vmul.f32 %v6153, %v6160
        %v6193 = vmul.f32 %v6154, %v6160
        %v6194 = vld [vmem:[%s6] sm:$0x1]
        %v6196 = vlaneseq
        %v6197 = vshrl.u32 %v6196, 7
        %v6198 = vsub.s32 0, %v6197
        %v6199 = vrot.slane %v6194, %v6198
        %v6201 = vadd.f32 %v6162, %v6199
        %v6202 = vadd.f32 %v6163, %v6199
        %v6203 = vadd.f32 %v6164, %v6199
        %v6204 = vadd.f32 %v6165, %v6199
        %v6205 = vadd.f32 %v6166, %v6199
        %v6206 = vadd.f32 %v6167, %v6199
        %v6207 = vadd.f32 %v6168, %v6199
        %v6208 = vadd.f32 %v6169, %v6199
        %v6209 = vadd.f32 %v6170, %v6199
        %v6210 = vadd.f32 %v6171, %v6199
        %v6211 = vadd.f32 %v6172, %v6199
        %v6212 = vadd.f32 %v6173, %v6199
        %v6213 = vadd.f32 %v6174, %v6199
        %v6214 = vadd.f32 %v6175, %v6199
        %v6215 = vadd.f32 %v6176, %v6199
        %v6216 = vadd.f32 %v6177, %v6199
        %v6217 = vadd.f32 %v6178, %v6199
        %v6218 = vadd.f32 %v6179, %v6199
        %v6219 = vadd.f32 %v6180, %v6199
        %v6220 = vadd.f32 %v6181, %v6199
        %v6221 = vadd.f32 %v6182, %v6199
        %v6222 = vadd.f32 %v6183, %v6199
        %v6223 = vadd.f32 %v6184, %v6199
        %v6224 = vadd.f32 %v6185, %v6199
        %v6225 = vadd.f32 %v6186, %v6199
        %v6226 = vadd.f32 %v6187, %v6199
        %v6227 = vadd.f32 %v6188, %v6199
        %v6228 = vadd.f32 %v6189, %v6199
        %v6229 = vadd.f32 %v6190, %v6199
        %v6230 = vadd.f32 %v6191, %v6199
        %v6231 = vadd.f32 %v6192, %v6199
        %v6232 = vadd.f32 %v6193, %v6199
        %v6233 = vld [vmem:[%s7] sm:$0xf]
        %v6235 = vsel %vm609, %v6233, 0
        %6237 = vmatprep.subr.mxu0 0.0
        %6238 = vmatpush1.msra.mxu0 %v6235
        %6239 = vmatprep.subr.mxu0 0.0
        %6240 = vmatpush1.msra.mxu0 0.0
        %6241 = vmatprep.subr.mxu0 0.0
        %6242 = vmatpush1.msra.mxu0 0.0
        %6243 = vmatprep.subr.mxu0 0.0
        %6244 = vmatpush1.msra.mxu0 0.0
        %6245 = vmatprep.subr.mxu0 0.0
        %6246 = vmatpush1.msra.mxu0 0.0
        %6247 = vmatprep.subr.mxu0 0.0
        %6248 = vmatpush1.msra.mxu0 0.0
        %6249 = vmatprep.subr.mxu0 0.0
        %6250 = vmatpush1.msra.mxu0 0.0
        %6251 = vmatprep.subr.mxu0 0.0
        %6252 = vmatpush1.msra.mxu0 0.0
        %6253 = vmatprep.subr.mxu0 0.0
        %6254 = vmatpush1.msra.mxu0 0.0
        %6255 = vmatprep.subr.mxu0 0.0
        %6256 = vmatpush1.msra.mxu0 0.0
        %6257 = vmatprep.subr.mxu0 0.0
        %6258 = vmatpush1.msra.mxu0 0.0
        %6259 = vmatprep.subr.mxu0 0.0
        %6260 = vmatpush1.msra.mxu0 0.0
        %6261 = vmatprep.subr.mxu0 0.0
        %6262 = vmatpush1.msra.mxu0 0.0
        %6263 = vmatprep.subr.mxu0 0.0
        %6264 = vmatpush1.msra.mxu0 0.0
        %6265 = vmatprep.subr.mxu0 0.0
        %6266 = vmatpush1.msra.mxu0 0.0
        %6267 = vmatprep.subr.mxu0 0.0
        %6268 = vmatpush1.msra.mxu0 0.0
        %6269 = vmatprep.subr.mxu0 0.0
        %6270 = vmatpush1.msra.mxu0 0.0
        %6271 = vmatprep.subr.mxu0 0.0
        %6272 = vmatpush1.msra.mxu0 0.0
        %6273 = vmatprep.subr.mxu0 0.0
        %6274 = vmatpush1.msra.mxu0 0.0
        %6275 = vmatprep.subr.mxu0 0.0
        %6276 = vmatpush1.msra.mxu0 0.0
        %6277 = vmatprep.subr.mxu0 0.0
        %6278 = vmatpush1.msra.mxu0 0.0
        %6279 = vmatprep.subr.mxu0 0.0
        %6280 = vmatpush1.msra.mxu0 0.0
        %6281 = vmatprep.subr.mxu0 0.0
        %6282 = vmatpush1.msra.mxu0 0.0
        %6283 = vmatprep.subr.mxu0 0.0
        %6284 = vmatpush1.msra.mxu0 0.0
        %6285 = vmatprep.subr.mxu0 0.0
        %6286 = vmatpush1.msra.mxu0 0.0
        %6287 = vmatprep.subr.mxu0 0.0
        %6288 = vmatpush1.msra.mxu0 0.0
        %6289 = vmatprep.subr.mxu0 0.0
        %6290 = vmatpush1.msra.mxu0 0.0
        %6291 = vmatprep.subr.mxu0 0.0
        %6292 = vmatpush1.msra.mxu0 0.0
        %6293 = vmatprep.subr.mxu0 0.0
        %6294 = vmatpush1.msra.mxu0 0.0
        %6295 = vmatprep.subr.mxu0 0.0
        %6296 = vmatpush1.msra.mxu0 0.0
        %6297 = vmatprep.subr.mxu0 0.0
        %6298 = vmatpush1.msra.mxu0 0.0
        %6299 = vmatprep.subr.mxu0 0.0
        %6300 = vmatpush1.msra.mxu0 0.0
        %6301 = vmatprep.mubr.f32.mxu0 0.0
        %6302 = vmatmul.mubr.f32.gmra.mrb[0].mxu0 %v549
        %v6303 = vpop.f32.mrb[0].mxu0
        %v6304 = vadd.f32 0.0, %v6303
        %v6305 = vpop.f32.mrb[0].mxu0
        %6306 = vmatprep.mubr.f32.mxu0 0.0
        %6307 = vmatmul.mubr.f32.gmra.mrb[0].mxu0 %v551
        %v6308 = vpop.f32.mrb[0].mxu0
        %v6309 = vadd.f32 0.0, %v6308
        %v6310 = vpop.f32.mrb[0].mxu0
        %6311 = vmatprep.mubr.f32.mxu0 0.0
        %6312 = vmatmul.mubr.f32.gmra.mrb[0].mxu0 %v553
        %v6313 = vpop.f32.mrb[0].mxu0
        %v6314 = vadd.f32 0.0, %v6313
        %v6315 = vpop.f32.mrb[0].mxu0
        %6316 = vmatprep.mubr.f32.mxu0 0.0
        %6317 = vmatmul.mubr.f32.gmra.mrb[0].mxu0 %v555
        %v6318 = vpop.f32.mrb[0].mxu0
        %v6319 = vadd.f32 0.0, %v6318
        %v6320 = vpop.f32.mrb[0].mxu0
        %6321 = vmatprep.mubr.f32.mxu0 0.0
        %6322 = vmatmul.mubr.f32.gmra.mrb[0].mxu0 %v557
        %v6323 = vpop.f32.mrb[0].mxu0
        %v6324 = vadd.f32 0.0, %v6323
        %v6325 = vpop.f32.mrb[0].mxu0
        %6326 = vmatprep.mubr.f32.mxu0 0.0
        %6327 = vmatmul.mubr.f32.gmra.mrb[0].mxu0 %v559
        %v6328 = vpop.f32.mrb[0].mxu0
        %v6329 = vadd.f32 0.0, %v6328
        %v6330 = vpop.f32.mrb[0].mxu0
        %6331 = vmatprep.mubr.f32.mxu0 0.0
        %6332 = vmatmul.mubr.f32.gmra.mrb[0].mxu0 %v561
        %v6333 = vpop.f32.mrb[0].mxu0
        %v6334 = vadd.f32 0.0, %v6333
        %v6335 = vpop.f32.mrb[0].mxu0
        %6336 = vmatprep.mubr.f32.mxu0 0.0
        %6337 = vmatmul.mubr.f32.gmra.mrb[0].mxu0 %v563
        %v6338 = vpop.f32.mrb[0].mxu0
        %v6339 = vadd.f32 0.0, %v6338
        %v6340 = vpop.f32.mrb[0].mxu0
        %6341 = vmatprep.mubr.f32.mxu0 0.0
        %6342 = vmatmul.mubr.f32.gmra.mrb[0].mxu0 %v565
        %v6343 = vpop.f32.mrb[0].mxu0
        %v6344 = vadd.f32 0.0, %v6343
        %v6345 = vpop.f32.mrb[0].mxu0
        %6346 = vmatprep.mubr.f32.mxu0 0.0
        %6347 = vmatmul.mubr.f32.gmra.mrb[0].mxu0 %v567
        %v6348 = vpop.f32.mrb[0].mxu0
        %v6349 = vadd.f32 0.0, %v6348
        %v6350 = vpop.f32.mrb[0].mxu0
        %6351 = vmatprep.mubr.f32.mxu0 0.0
        %6352 = vmatmul.mubr.f32.gmra.mrb[0].mxu0 %v569
        %v6353 = vpop.f32.mrb[0].mxu0
        %v6354 = vadd.f32 0.0, %v6353
        %v6355 = vpop.f32.mrb[0].mxu0
        %6356 = vmatprep.mubr.f32.mxu0 0.0
        %6357 = vmatmul.mubr.f32.gmra.mrb[0].mxu0 %v571
        %v6358 = vpop.f32.mrb[0].mxu0
        %v6359 = vadd.f32 0.0, %v6358
        %v6360 = vpop.f32.mrb[0].mxu0
        %6361 = vmatprep.mubr.f32.mxu0 0.0
        %6362 = vmatmul.mubr.f32.gmra.mrb[0].mxu0 %v573
        %v6363 = vpop.f32.mrb[0].mxu0
        %v6364 = vadd.f32 0.0, %v6363
        %v6365 = vpop.f32.mrb[0].mxu0
        %6366 = vmatprep.mubr.f32.mxu0 0.0
        %6367 = vmatmul.mubr.f32.gmra.mrb[0].mxu0 %v575
        %v6368 = vpop.f32.mrb[0].mxu0
        %v6369 = vadd.f32 0.0, %v6368
        %v6370 = vpop.f32.mrb[0].mxu0
        %6371 = vmatprep.mubr.f32.mxu0 0.0
        %6372 = vmatmul.mubr.f32.gmra.mrb[0].mxu0 %v577
        %v6373 = vpop.f32.mrb[0].mxu0
        %v6374 = vadd.f32 0.0, %v6373
        %v6375 = vpop.f32.mrb[0].mxu0
        %6376 = vmatprep.mubr.f32.mxu0 0.0
        %6377 = vmatmul.mubr.f32.gmra.mrb[0].mxu0 %v579
        %v6378 = vpop.f32.mrb[0].mxu0
        %v6379 = vadd.f32 0.0, %v6378
        %v6380 = vpop.f32.mrb[0].mxu0
        %6381 = vmatprep.mubr.f32.mxu0 0.0
        %6382 = vmatmul.mubr.f32.gmra.mrb[0].mxu0 %v581
        %v6383 = vpop.f32.mrb[0].mxu0
        %v6384 = vadd.f32 0.0, %v6383
        %v6385 = vpop.f32.mrb[0].mxu0
        %6386 = vmatprep.mubr.f32.mxu0 0.0
        %6387 = vmatmul.mubr.f32.gmra.mrb[0].mxu0 %v583
        %v6388 = vpop.f32.mrb[0].mxu0
        %v6389 = vadd.f32 0.0, %v6388
        %v6390 = vpop.f32.mrb[0].mxu0
        %6391 = vmatprep.mubr.f32.mxu0 0.0
        %6392 = vmatmul.mubr.f32.gmra.mrb[0].mxu0 %v585
        %v6393 = vpop.f32.mrb[0].mxu0
        %v6394 = vadd.f32 0.0, %v6393
        %v6395 = vpop.f32.mrb[0].mxu0
        %6396 = vmatprep.mubr.f32.mxu0 0.0
        %6397 = vmatmul.mubr.f32.gmra.mrb[0].mxu0 %v587
        %v6398 = vpop.f32.mrb[0].mxu0
        %v6399 = vadd.f32 0.0, %v6398
        %v6400 = vpop.f32.mrb[0].mxu0
        %6401 = vmatprep.mubr.f32.mxu0 0.0
        %6402 = vmatmul.mubr.f32.gmra.mrb[0].mxu0 %v589
        %v6403 = vpop.f32.mrb[0].mxu0
        %v6404 = vadd.f32 0.0, %v6403
        %v6405 = vpop.f32.mrb[0].mxu0
        %6406 = vmatprep.mubr.f32.mxu0 0.0
        %6407 = vmatmul.mubr.f32.gmra.mrb[0].mxu0 %v591
        %v6408 = vpop.f32.mrb[0].mxu0
        %v6409 = vadd.f32 0.0, %v6408
        %v6410 = vpop.f32.mrb[0].mxu0
        %6411 = vmatprep.mubr.f32.mxu0 0.0
        %6412 = vmatmul.mubr.f32.gmra.mrb[0].mxu0 %v593
        %v6413 = vpop.f32.mrb[0].mxu0
        %v6414 = vadd.f32 0.0, %v6413
        %v6415 = vpop.f32.mrb[0].mxu0
        %6416 = vmatprep.mubr.f32.mxu0 0.0
        %6417 = vmatmul.mubr.f32.gmra.mrb[0].mxu0 %v595
        %v6418 = vpop.f32.mrb[0].mxu0
        %v6419 = vadd.f32 0.0, %v6418
        %v6420 = vpop.f32.mrb[0].mxu0
        %6421 = vmatprep.mubr.f32.mxu0 0.0
        %6422 = vmatmul.mubr.f32.gmra.mrb[0].mxu0 %v597
        %v6423 = vpop.f32.mrb[0].mxu0
        %v6424 = vadd.f32 0.0, %v6423
        %v6425 = vpop.f32.mrb[0].mxu0
        %6426 = vmatprep.mubr.f32.mxu0 0.0
        %6427 = vmatmul.mubr.f32.gmra.mrb[0].mxu0 %v599
        %v6428 = vpop.f32.mrb[0].mxu0
        %v6429 = vadd.f32 0.0, %v6428
        %v6430 = vpop.f32.mrb[0].mxu0
        %6431 = vmatprep.mubr.f32.mxu0 0.0
        %6432 = vmatmul.mubr.f32.gmra.mrb[0].mxu0 %v601
        %v6433 = vpop.f32.mrb[0].mxu0
        %v6434 = vadd.f32 0.0, %v6433
        %v6435 = vpop.f32.mrb[0].mxu0
        %6436 = vmatprep.mubr.f32.mxu0 0.0
        %6437 = vmatmul.mubr.f32.gmra.mrb[0].mxu0 %v603
        %v6438 = vpop.f32.mrb[0].mxu0
        %v6439 = vadd.f32 0.0, %v6438
        %v6440 = vpop.f32.mrb[0].mxu0
        %6441 = vmatprep.mubr.f32.mxu0 0.0
        %6442 = vmatmul.mubr.f32.gmra.mrb[0].mxu0 %v605
        %v6443 = vpop.f32.mrb[0].mxu0
        %v6444 = vadd.f32 0.0, %v6443
        %v6445 = vpop.f32.mrb[0].mxu0
        %6446 = vmatprep.mubr.f32.mxu0 0.0
        %6447 = vmatmul.mubr.f32.gmra.mrb[0].mxu0 %v607
        %v6448 = vpop.f32.mrb[0].mxu0
        %v6449 = vadd.f32 0.0, %v6448
        %v6450 = vpop.f32.mrb[0].mxu0
        %6451 = vmatprep.mubr.f32.mxu0 0.0
        %6452 = vmatmul.mubr.f32.gmra.mrb[0].mxu0 %v1813
        %v6453 = vpop.f32.mrb[0].mxu0
        %v6454 = vadd.f32 0.0, %v6453
        %v6455 = vpop.f32.mrb[0].mxu0
        %6456 = vmatprep.mubr.f32.mxu0 0.0
        %6457 = vmatmul.mubr.f32.gmra.mrb[0].mxu0 %v1815
        %v6458 = vpop.f32.mrb[0].mxu0
        %v6459 = vadd.f32 0.0, %v6458
        %v6460 = vpop.f32.mrb[0].mxu0
        %6461 = vdwg.mxu0
        %v6462 = vld [vmem:[%s8] sm:$0x1]
        %v6464 = vlaneseq
        %v6465 = vshrl.u32 %v6464, 7
        %v6466 = vsub.s32 0, %v6465
        %v6467 = vrot.slane %v6462, %v6466
        %v6469 = vmul.f32 %v6304, %v6467
        %v6470 = vmul.f32 %v6309, %v6467
        %v6471 = vmul.f32 %v6314, %v6467
        %v6472 = vmul.f32 %v6319, %v6467
        %v6473 = vmul.f32 %v6324, %v6467
        %v6474 = vmul.f32 %v6329, %v6467
        %v6475 = vmul.f32 %v6334, %v6467
        %v6476 = vmul.f32 %v6339, %v6467
        %v6477 = vmul.f32 %v6344, %v6467
        %v6478 = vmul.f32 %v6349, %v6467
        %v6479 = vmul.f32 %v6354, %v6467
        %v6480 = vmul.f32 %v6359, %v6467
        %v6481 = vmul.f32 %v6364, %v6467
        %v6482 = vmul.f32 %v6369, %v6467
        %v6483 = vmul.f32 %v6374, %v6467
        %v6484 = vmul.f32 %v6379, %v6467
        %v6485 = vmul.f32 %v6384, %v6467
        %v6486 = vmul.f32 %v6389, %v6467
        %v6487 = vmul.f32 %v6394, %v6467
        %v6488 = vmul.f32 %v6399, %v6467
        %v6489 = vmul.f32 %v6404, %v6467
        %v6490 = vmul.f32 %v6409, %v6467
        %v6491 = vmul.f32 %v6414, %v6467
        %v6492 = vmul.f32 %v6419, %v6467
        %v6493 = vmul.f32 %v6424, %v6467
        %v6494 = vmul.f32 %v6429, %v6467
        %v6495 = vmul.f32 %v6434, %v6467
        %v6496 = vmul.f32 %v6439, %v6467
        %v6497 = vmul.f32 %v6444, %v6467
        %v6498 = vmul.f32 %v6449, %v6467
        %v6499 = vmul.f32 %v6454, %v6467
        %v6500 = vmul.f32 %v6459, %v6467
        %v6501 = vld [vmem:[%s9] sm:$0x1]
        %v6503 = vlaneseq
        %v6504 = vshrl.u32 %v6503, 7
        %v6505 = vsub.s32 0, %v6504
        %v6506 = vrot.slane %v6501, %v6505
        %v6508 = vadd.f32 %v6469, %v6506
        %v6509 = vadd.f32 %v6470, %v6506
        %v6510 = vadd.f32 %v6471, %v6506
        %v6511 = vadd.f32 %v6472, %v6506
        %v6512 = vadd.f32 %v6473, %v6506
        %v6513 = vadd.f32 %v6474, %v6506
        %v6514 = vadd.f32 %v6475, %v6506
        %v6515 = vadd.f32 %v6476, %v6506
        %v6516 = vadd.f32 %v6477, %v6506
        %v6517 = vadd.f32 %v6478, %v6506
        %v6518 = vadd.f32 %v6479, %v6506
        %v6519 = vadd.f32 %v6480, %v6506
        %v6520 = vadd.f32 %v6481, %v6506
        %v6521 = vadd.f32 %v6482, %v6506
        %v6522 = vadd.f32 %v6483, %v6506
        %v6523 = vadd.f32 %v6484, %v6506
        %v6524 = vadd.f32 %v6485, %v6506
        %v6525 = vadd.f32 %v6486, %v6506
        %v6526 = vadd.f32 %v6487, %v6506
        %v6527 = vadd.f32 %v6488, %v6506
        %v6528 = vadd.f32 %v6489, %v6506
        %v6529 = vadd.f32 %v6490, %v6506
        %v6530 = vadd.f32 %v6491, %v6506
        %v6531 = vadd.f32 %v6492, %v6506
        %v6532 = vadd.f32 %v6493, %v6506
        %v6533 = vadd.f32 %v6494, %v6506
        %v6534 = vadd.f32 %v6495, %v6506
        %v6535 = vadd.f32 %v6496, %v6506
        %v6536 = vadd.f32 %v6497, %v6506
        %v6537 = vadd.f32 %v6498, %v6506
        %v6538 = vadd.f32 %v6499, %v6506
        %v6539 = vadd.f32 %v6500, %v6506
        %v6540 = vadd.f32 %v6201, %v6508
        %v6541 = vadd.f32 %v6202, %v6509
        %v6542 = vadd.f32 %v6203, %v6510
        %v6543 = vadd.f32 %v6204, %v6511
        %v6544 = vadd.f32 %v6205, %v6512
        %v6545 = vadd.f32 %v6206, %v6513
        %v6546 = vadd.f32 %v6207, %v6514
        %v6547 = vadd.f32 %v6208, %v6515
        %v6548 = vadd.f32 %v6209, %v6516
        %v6549 = vadd.f32 %v6210, %v6517
        %v6550 = vadd.f32 %v6211, %v6518
        %v6551 = vadd.f32 %v6212, %v6519
        %v6552 = vadd.f32 %v6213, %v6520
        %v6553 = vadd.f32 %v6214, %v6521
        %v6554 = vadd.f32 %v6215, %v6522
        %v6555 = vadd.f32 %v6216, %v6523
        %v6556 = vadd.f32 %v6217, %v6524
        %v6557 = vadd.f32 %v6218, %v6525
        %v6558 = vadd.f32 %v6219, %v6526
        %v6559 = vadd.f32 %v6220, %v6527
        %v6560 = vadd.f32 %v6221, %v6528
        %v6561 = vadd.f32 %v6222, %v6529
        %v6562 = vadd.f32 %v6223, %v6530
        %v6563 = vadd.f32 %v6224, %v6531
        %v6564 = vadd.f32 %v6225, %v6532
        %v6565 = vadd.f32 %v6226, %v6533
        %v6566 = vadd.f32 %v6227, %v6534
        %v6567 = vadd.f32 %v6228, %v6535
        %v6568 = vadd.f32 %v6229, %v6536
        %v6569 = vadd.f32 %v6230, %v6537
        %v6570 = vadd.f32 %v6231, %v6538
        %v6571 = vadd.f32 %v6232, %v6539
        %v6572 = vmax.f32 %v6540, 0.0
        %v6573 = vmax.f32 %v6541, 0.0
        %v6574 = vmax.f32 %v6542, 0.0
        %v6575 = vmax.f32 %v6543, 0.0
        %v6576 = vmax.f32 %v6544, 0.0
        %v6577 = vmax.f32 %v6545, 0.0
        %v6578 = vmax.f32 %v6546, 0.0
        %v6579 = vmax.f32 %v6547, 0.0
        %v6580 = vmax.f32 %v6548, 0.0
        %v6581 = vmax.f32 %v6549, 0.0
        %v6582 = vmax.f32 %v6550, 0.0
        %v6583 = vmax.f32 %v6551, 0.0
        %v6584 = vmax.f32 %v6552, 0.0
        %v6585 = vmax.f32 %v6553, 0.0
        %v6586 = vmax.f32 %v6554, 0.0
        %v6587 = vmax.f32 %v6555, 0.0
        %v6588 = vmax.f32 %v6556, 0.0
        %v6589 = vmax.f32 %v6557, 0.0
        %v6590 = vmax.f32 %v6558, 0.0
        %v6591 = vmax.f32 %v6559, 0.0
        %v6592 = vmax.f32 %v6560, 0.0
        %v6593 = vmax.f32 %v6561, 0.0
        %v6594 = vmax.f32 %v6562, 0.0
        %v6595 = vmax.f32 %v6563, 0.0
        %v6596 = vmax.f32 %v6564, 0.0
        %v6597 = vmax.f32 %v6565, 0.0
        %v6598 = vmax.f32 %v6566, 0.0
        %v6599 = vmax.f32 %v6567, 0.0
        %v6600 = vmax.f32 %v6568, 0.0
        %v6601 = vmax.f32 %v6569, 0.0
        %v6602 = vmax.f32 %v6570, 0.0
        %v6603 = vmax.f32 %v6571, 0.0
        %6604 = vst.msk [vmem:[%s352] sm:$0xff] %vm3269, %v6572
        %6605 = vst.msk [vmem:[%s352 + $0x8] sm:$0xff] %vm3269, %v6573
        %6606 = vst.msk [vmem:[%s352 + $0x10] sm:$0xff] %vm3269, %v6574
        %6607 = vst.msk [vmem:[%s352 + $0x18] sm:$0xff] %vm3269, %v6575
        %6608 = vst.msk [vmem:[%s352 + $0x20] sm:$0xff] %vm3269, %v6576
        %6609 = vst.msk [vmem:[%s352 + $0x28] sm:$0xff] %vm3269, %v6577
        %6610 = vst.msk [vmem:[%s352 + $0x30] sm:$0xff] %vm3269, %v6578
        %6611 = vst.msk [vmem:[%s352 + $0x38] sm:$0xff] %vm3269, %v6579
        %6612 = vst.msk [vmem:[%s352 + $0x40] sm:$0xff] %vm3269, %v6580
        %6613 = vst.msk [vmem:[%s352 + $0x48] sm:$0xff] %vm3269, %v6581
        %6614 = vst.msk [vmem:[%s352 + $0x50] sm:$0xff] %vm3269, %v6582
        %6615 = vst.msk [vmem:[%s352 + $0x58] sm:$0xff] %vm3269, %v6583
        %6616 = vst.msk [vmem:[%s352 + $0x60] sm:$0xff] %vm3269, %v6584
        %6617 = vst.msk [vmem:[%s352 + $0x68] sm:$0xff] %vm3269, %v6585
        %6618 = vst.msk [vmem:[%s352 + $0x70] sm:$0xff] %vm3269, %v6586
        %6619 = vst.msk [vmem:[%s352 + $0x78] sm:$0xff] %vm3269, %v6587
        %6620 = vst.msk [vmem:[%s352 + $0x80] sm:$0xff] %vm3269, %v6588
        %6621 = vst.msk [vmem:[%s352 + $0x88] sm:$0xff] %vm3269, %v6589
        %6622 = vst.msk [vmem:[%s352 + $0x90] sm:$0xff] %vm3269, %v6590
        %6623 = vst.msk [vmem:[%s352 + $0x98] sm:$0xff] %vm3269, %v6591
        %6624 = vst.msk [vmem:[%s352 + $0xa0] sm:$0xff] %vm3269, %v6592
        %6625 = vst.msk [vmem:[%s352 + $0xa8] sm:$0xff] %vm3269, %v6593
        %6626 = vst.msk [vmem:[%s352 + $0xb0] sm:$0xff] %vm3269, %v6594
        %6627 = vst.msk [vmem:[%s352 + $0xb8] sm:$0xff] %vm3269, %v6595
        %6628 = vst.msk [vmem:[%s352 + $0xc0] sm:$0xff] %vm3269, %v6596
        %6629 = vst.msk [vmem:[%s352 + $0xc8] sm:$0xff] %vm3269, %v6597
        %6630 = vst.msk [vmem:[%s352 + $0xd0] sm:$0xff] %vm3269, %v6598
        %6631 = vst.msk [vmem:[%s352 + $0xd8] sm:$0xff] %vm3269, %v6599
        %6632 = vst.msk [vmem:[%s352 + $0xe0] sm:$0xff] %vm3269, %v6600
        %6633 = vst.msk [vmem:[%s352 + $0xe8] sm:$0xff] %vm3269, %v6601
        %6634 = vst.msk [vmem:[%s352 + $0xf0] sm:$0xff] %vm3269, %v6602
        %6635 = vst.msk [vmem:[%s352 + $0xf8] sm:$0xff] %vm3269, %v6603
        %s6636 = sand.u32 %s247, 1
        %s6637 = scalar_lea.sflag [#allocation4], %s6636
        %s6638 = sand.u32 %s247, 1
        %s6639 = smul.addr %s6638, 256
        %s6640 = scalar_lea.vmem [#allocation3], %s6639
        // Predicated region
        $region61: #{basic_block_forward.1} parent=59 // pred_check
          %p6641 = pneg %p257
        $region62: #{basic_block_forward.1} parent=59 // pred_check_branch
          %6643 = sbr.rel (%p6641) target = $region64
        $region63: #{basic_block_forward.1} parent=59 // pred_region
          %s6645 = ssub.s32 4096, 4096
          %6646 = vsyncadd %s6637, %s6645
          %s6647 = smul.addr %s24, 32
          %s6648 = smul.addr %s6647, 128
          %s6649 = scalar_lea.hbm %s10, %s6648
          %s6650 = sshll.u32 %s6640, 4
          %s6651 = int_to_ptr.vmem [resolvable:$true] %s6650
          %6656 = dma.vmem_to_hbm [thread:$0]  %s6651, 4096, %s6649, %s6637, 128, 128, 8
        $region64: #{basic_block_forward.1} parent=59 // pred_fallthru
          _
      $region60: #{basic_block_forward.1} parent=5 // pred_fallthru
        _
      %p6657 = scmp.le.s32.totalorder 2, %s19
      // Predicated region
      $region65: #{basic_block_forward.1} parent=5 // pred_check
        %p6658 = pneg %p6657
      $region66: #{basic_block_forward.1} parent=5 // pred_check_branch
        %6660 = sbr.rel (%p6658) target = $region68
      $region67: #{basic_block_forward.1} parent=5 // pred_region
        %s6661 = ssub.s32 %s19, 2
        // Predicated region
        $region69: #{basic_block_forward.1} parent=67 // pred_check
          %p6662 = pneg %p263
        $region70: #{basic_block_forward.1} parent=67 // pred_check_branch
          %6664 = sbr.rel (%p6662) target = $region72
        $region71: #{basic_block_forward.1} parent=67 // pred_region
          %s6665 = sand.u32 %s248, 1
          %s6666 = scalar_lea.sflag [#allocation4], %s6665
          %s6667 = sand.u32 %s248, 1
          %s6668 = smul.addr %s6667, 256
          %s6669 = scalar_lea.vmem [#allocation3], %s6668
          %6670 = dma.done %s6666, 4096
        $region72: #{basic_block_forward.1} parent=67 // pred_fallthru
          _
      $region68: #{basic_block_forward.1} parent=5 // pred_fallthru
        _
    $region6: #{basic_block_forward.1} parent=1 // loop_footer
      %s23 = sadd.s32 1, %s19
    $region7: #{basic_block_forward.1} parent=1 // loop_footer_branch
      %18 = sbr.rel target = $region3
    $region8: #{basic_block_forward.1} parent=1 // loop_exit
      _
    %6671 = vsyncpa [#allocation4], 1
    %s6672 = scalar_lea.sflag [#allocation4], 1
    %6673 = vsyncpa %s6672, 1

</llo_original>
